<compile_context>
chip_gen: v6e
topology: v6e:2x2x1
jax: 0.10.0
libtpu: 0.0.40
codegen_flags: <defaults>
</compile_context>

<pallas_src>
import functools

import jax
import jax.numpy as jnp
from jax.experimental import pallas as pl
from jax.experimental.pallas import tpu as pltpu

NEG_SLOPE = 0.2  # GATv2Conv default negative_slope
_VMEM_LIMIT = 32 * 1024 * 1024  # explicit scoped-VMEM limit (safe on v5e/v6e/v7x)


# ---------------------------------------------------------------------------
# Kernel 1: head-fused projection   g = x @ [Wl | Wr] + [bl | br]
# ---------------------------------------------------------------------------
def _project_kernel(x_ref, w_ref, b_ref, gl_ref, gr_ref):
    hc = gl_ref.shape[-1]
    g = jnp.dot(x_ref[...], w_ref[...], preferred_element_type=jnp.float32)
    g = g + b_ref[...]                      # [TI, 2*H*C]
    gl_ref[...] = g[:, :hc]                 # source projection, all heads
    gr_ref[...] = g[:, hc:]                 # target projection, all heads


# ---------------------------------------------------------------------------
# Kernel 2: GATv2 attention + aggregation for one tile of target rows.
#   e[h,i,j] = att_h . leaky_relu(gl[h,j] + gr[h,i])
#   alpha    = softmax_j(e masked by adj)
#   out[i]   = concat_h( sum_j alpha[h,i,j] * gl[h,j] ) + bias   (opt. ELU)
# ---------------------------------------------------------------------------
def _make_attention_kernel(heads, ch, apply_elu):
    def kernel(gr_ref, gl_ref, adj_ref, ab_ref, out_ref):
        gl = gl_ref[...]                    # [N,  H*C]  (all source nodes)
        grt = gr_ref[...]                   # [TI, H*C]  (this tile's targets)
        edge = adj_ref[...] > 0.0           # [TI, N]
        att = ab_ref[0:1, :]                # [1, H*C]   packed attention vecs

        outs = []
        for h in range(heads):              # small static unroll (4 or 1 heads)
            lo, hi = h * ch, (h + 1) * ch
            glh = gl[:, lo:hi]              # [N, C]
            grh = grt[:, lo:hi]             # [TI, C]
            ah = att[:, lo:hi]              # [1, C]

            s = grh[:, None, :] + glh[None, :, :]          # [TI, N, C]
            s = jnp.where(s > 0.0, s, NEG_SLOPE * s)       # leaky_relu
            e = jnp.sum(s * ah[None, :, :], axis=-1)       # [TI, N]

            e = jnp.where(edge, e, -1e30)                  # mask non-edges
            m = jnp.max(e, axis=-1, keepdims=True)
            p = jnp.exp(e - m)
            denom = jnp.sum(p, axis=-1, keepdims=True)
            alpha = p * pl.reciprocal(denom, approx=True)  # [TI, N]
            # TODO(synk): attention dropout (p=0.6) omitted -- identity in eval.

            outs.append(jnp.dot(alpha, glh,
                                preferred_element_type=jnp.float32))  # [TI, C]

        out = outs[0] if heads == 1 else jnp.concatenate(outs, axis=-1)
        out = out + ab_ref[1:2, :]          # final bias, all heads at once
        if apply_elu:                       # fused F.elu (safe on pos. branch)
            out = jnp.where(out > 0.0, out,
                            jnp.exp(jnp.minimum(out, 0.0)) - 1.0)
        out_ref[...] = out                  # lane-dense [TI, H*C] store

    return kernel


def _pick_row_tile(n, n_src, ch, budget_bytes=8 * 1024 * 1024):
    """Largest row tile (divides n, multiple of 8) whose per-head [TI, N, C]
    f32 score tile fits the budget; falls back to the full row range."""
    ti = n
    while ti > 8 and ti % 16 == 0 and ti * n_src * ch * 4 > budget_bytes:
        ti //= 2
    return ti


# ---------------------------------------------------------------------------
# One GATv2Conv layer (two pallas_call's)
# ---------------------------------------------------------------------------
def gatv2_conv(x, adj, params, *, heads, concat, apply_elu):
    w, b, att_fb = params["w"], params["b"], params["att_fb"]
    n, f = x.shape
    two_hc = w.shape[1]
    hc = two_hc // 2
    ch = hc // heads

    ti = _pick_row_tile(n, n, ch)
    grid = (n // ti,)
    cp = pltpu.CompilerParams(
        dimension_semantics=("parallel",),   # row tiles are independent
        vmem_limit_bytes=_VMEM_LIMIT,
    )

    # ---- fused projection: one wide matmul for every head, gl & gr -------
    gl, gr = pl.pallas_call(
        _project_kernel,
        out_shape=(jax.ShapeDtypeStruct((n, hc), jnp.float32),
                   jax.ShapeDtypeStruct((n, hc), jnp.float32)),
        grid=grid,
        in_specs=[
            pl.BlockSpec((ti, f), lambda i: (i, 0)),        # x row tile
            pl.BlockSpec((f, two_hc), lambda i: (0, 0)),    # packed [Wl|Wr]
            pl.BlockSpec((1, two_hc), lambda i: (0, 0)),    # packed [bl|br]
        ],
        out_specs=(pl.BlockSpec((ti, hc), lambda i: (i, 0)),
                   pl.BlockSpec((ti, hc), lambda i: (i, 0))),
        compiler_params=cp,
    )(x, w, b)

    # ---- attention + aggregation, tiled over target rows ------------------
    out = pl.pallas_call(
        _make_attention_kernel(heads, ch, apply_elu),
        out_shape=jax.ShapeDtypeStruct((n, hc), jnp.float32),
        grid=grid,
        in_specs=[
            pl.BlockSpec((ti, hc), lambda i: (i, 0)),       # gr (target rows)
            pl.BlockSpec((n, hc), lambda i: (0, 0)),        # gl (all sources)
            pl.BlockSpec((ti, n), lambda i: (i, 0)),        # adjacency rows
            # NOTE: adj is pure mask data; could be bf16/int8 on v5e.
            pl.BlockSpec((2, hc), lambda i: (0, 0)),        # packed att / bias
        ],
        out_specs=pl.BlockSpec((ti, hc), lambda i: (i, 0)),  # lane-dense [N,H*C]
        compiler_params=cp,
    )(gr, gl, adj, att_fb)

    if concat or heads == 1:
        return out                                           # [N, H*C]
    return out.reshape(n, heads, ch).mean(axis=1)            # [N, C]


# ---------------------------------------------------------------------------
# Full GAT forward
# ---------------------------------------------------------------------------
def gat_forward(x, adj, params, *, heads=(4, 4, 1)):
    # F.dropout(p=0.6, training=False) == identity
    x = gatv2_conv(x, adj, params["conv1"], heads=heads[0], concat=True,
                   apply_elu=True)
    x = gatv2_conv(x, adj, params["conv3"], heads=heads[1], concat=True,
                   apply_elu=True)
    x = gatv2_conv(x, adj, params["conv2"], heads=heads[2], concat=False,
                   apply_elu=False)
    return jax.nn.log_softmax(x, axis=-1)                    # [N, out_channels]


# ---------------------------------------------------------------------------
# Deterministic parameter init (glorot-uniform, synthetic) in packed layout
# ---------------------------------------------------------------------------
def _glorot(key, shape, fan_in, fan_out):
    lim = (6.0 / (fan_in + fan_out)) ** 0.5
    return jax.random.uniform(key, shape, jnp.float32, -lim, lim)


def init_gatv2_params(key, in_ch, out_ch, heads):
    k = jax.random.split(key, 6)
    hc = heads * out_ch
    wl = _glorot(k[0], (in_ch, hc), in_ch, hc)
    wr = _glorot(k[1], (in_ch, hc), in_ch, hc)
    bl = 0.01 * jax.random.normal(k[2], (hc,), jnp.float32)
    br = 0.01 * jax.random.normal(k[3], (hc,), jnp.float32)
    att = _glorot(k[4], (hc,), out_ch, 1)
    fb = 0.01 * jax.random.normal(k[5], (hc,), jnp.float32)
    return {
        "w": jnp.concatenate([wl, wr], axis=1),              # [F, 2*H*C]
        "b": jnp.concatenate([bl, br])[None, :],             # [1, 2*H*C]
        "att_fb": jnp.stack([att, fb], axis=0),              # [2, H*C]
    }


def init_gat_params(key, in_channels, out_channels=2, dim=16, heads=4):
    k1, k2, k3 = jax.random.split(key, 3)
    return {
        "conv1": init_gatv2_params(k1, in_channels, dim, heads),
        "conv3": init_gatv2_params(k2, dim * heads, dim, heads),
        "conv2": init_gatv2_params(k3, dim * heads, out_channels, 1),
    }


def edge_index_to_adj(edge_index, num_nodes):
    src, dst = edge_index[0], edge_index[1]
    adj = jnp.zeros((num_nodes, num_nodes), jnp.float32).at[dst, src].set(1.0)
    # GATv2Conv: remove then add self-loops
    return jnp.maximum(adj, jnp.eye(num_nodes, dtype=jnp.float32))


if __name__ == "__main__":
    N, IN_CH, OUT_CH, DIM, HEADS, E = 32, 16, 2, 16, 4, 64

    key = jax.random.PRNGKey(0)
    kx, ke1, ke2, kp = jax.random.split(key, 4)

    x = jax.random.normal(kx, (N, IN_CH), jnp.float32)
    edge_index = jnp.stack([
        jax.random.randint(ke1, (E,), 0, N),
        jax.random.randint(ke2, (E,), 0, N),
    ])                                                       # [2, E]
    adj = edge_index_to_adj(edge_index, N)

    params = init_gat_params(kp, IN_CH, OUT_CH, DIM, HEADS)

    fwd = jax.jit(functools.partial(gat_forward, heads=(HEADS, HEADS, 1)))
    out = jax.block_until_ready(fwd(x, adj, params))

    assert out.shape == (N, OUT_CH)
    assert bool(jnp.all(jnp.isfinite(out)))
    # log_softmax rows should sum to ~1 in prob space
    assert bool(jnp.allclose(jnp.sum(jnp.exp(out), axis=-1), 1.0, atol=1e-4))
    print("KERNEL_OK")
</pallas_src>

<mosaic_0001>
module attributes {stable_mosaic.version = 11 : i64} {
  func.func @kernel(%arg0: i32, %arg1: memref<32x64xf32, #tpu.memory_space<vmem>>, %arg2: memref<32x64xf32, #tpu.memory_space<vmem>>, %arg3: memref<32x32xf32, #tpu.memory_space<vmem>>, %arg4: memref<2x64xf32, #tpu.memory_space<vmem>>, %arg5: memref<32x64xf32, #tpu.memory_space<vmem>>) attributes {dimension_semantics = [#tpu.dimension_semantics<parallel>], iteration_bounds = array<i64: 1>, scalar_prefetch = 0 : i64, scratch_operands = 0 : i64, tpu.core_type = #tpu.core_type<tc>, window_params = [{transform_indices = @transform_0, window_bounds = array<i64: 32, 64>}, {pipeline_mode = #tpu.pipeline_mode<synchronous>, transform_indices = @transform_1, window_bounds = array<i64: 32, 64>}, {transform_indices = @transform_2, window_bounds = array<i64: 32, 32>}, {pipeline_mode = #tpu.pipeline_mode<synchronous>, transform_indices = @transform_3, window_bounds = array<i64: 2, 64>}, {transform_indices = @transform_4, window_bounds = array<i64: 32, 64>}]} {
    %c0 = arith.constant 0 : index
    %c0_0 = arith.constant 0 : index
    %0 = vector.load %arg2[%c0, %c0_0] : memref<32x64xf32, #tpu.memory_space<vmem>>, vector<32x64xf32>
    %c0_1 = arith.constant 0 : index
    %c0_2 = arith.constant 0 : index
    %1 = vector.load %arg1[%c0_1, %c0_2] : memref<32x64xf32, #tpu.memory_space<vmem>>, vector<32x64xf32>
    %c0_3 = arith.constant 0 : index
    %c0_4 = arith.constant 0 : index
    %2 = vector.load %arg3[%c0_3, %c0_4] : memref<32x32xf32, #tpu.memory_space<vmem>>, vector<32x32xf32>
    %cst = arith.constant 0.000000e+00 : f32
    %3 = vector.broadcast %cst : f32 to vector<32x32xf32>
    %4 = arith.cmpf ogt, %2, %3 : vector<32x32xf32>
    %c0_5 = arith.constant 0 : index
    %c0_6 = arith.constant 0 : index
    %5 = vector.load %arg4[%c0_5, %c0_6] : memref<2x64xf32, #tpu.memory_space<vmem>>, vector<1x64xf32>
    %6 = vector.extract_strided_slice %0 {offsets = [0, 0], sizes = [32, 16], strides = [1, 1]} : vector<32x64xf32> to vector<32x16xf32>
    %7 = vector.extract_strided_slice %1 {offsets = [0, 0], sizes = [32, 16], strides = [1, 1]} : vector<32x64xf32> to vector<32x16xf32>
    %8 = vector.extract_strided_slice %5 {offsets = [0, 0], sizes = [1, 16], strides = [1, 1]} : vector<1x64xf32> to vector<1x16xf32>
    %9 = vector.shape_cast %7 : vector<32x16xf32> to vector<32x1x16xf32>
    %10 = vector.shape_cast %6 : vector<32x16xf32> to vector<1x32x16xf32>
    %11 = vector.broadcast %9 : vector<32x1x16xf32> to vector<32x32x16xf32>
    %12 = vector.broadcast %10 : vector<1x32x16xf32> to vector<32x32x16xf32>
    %13 = arith.addf %11, %12 : vector<32x32x16xf32>
    %cst_7 = arith.constant 0.000000e+00 : f32
    %14 = vector.broadcast %cst_7 : f32 to vector<32x32x16xf32>
    %15 = arith.cmpf ogt, %13, %14 : vector<32x32x16xf32>
    %cst_8 = arith.constant 2.000000e-01 : f32
    %16 = vector.broadcast %cst_8 : f32 to vector<32x32x16xf32>
    %17 = arith.mulf %16, %13 : vector<32x32x16xf32>
    %18 = arith.select %15, %13, %17 : vector<32x32x16xi1>, vector<32x32x16xf32>
    %19 = vector.shape_cast %8 : vector<1x16xf32> to vector<1x1x16xf32>
    %20 = vector.broadcast %19 : vector<1x1x16xf32> to vector<32x32x16xf32>
    %21 = arith.mulf %18, %20 : vector<32x32x16xf32>
    %cst_9 = arith.constant dense<0.000000e+00> : vector<32x32xf32>
    %22 = vector.multi_reduction <add>, %21, %cst_9 [2] : vector<32x32x16xf32> to vector<32x32xf32>
    %cst_10 = arith.constant -1.000000e+30 : f32
    %23 = vector.broadcast %cst_10 : f32 to vector<32x32xf32>
    %24 = arith.select %4, %22, %23 : vector<32x32xi1>, vector<32x32xf32>
    %cst_11 = arith.constant dense<0xFF800000> : vector<32xf32>
    %25 = vector.multi_reduction <maximumf>, %24, %cst_11 [1] : vector<32x32xf32> to vector<32xf32>
    %26 = vector.shape_cast %25 : vector<32xf32> to vector<32x1xf32>
    %27 = vector.broadcast %26 : vector<32x1xf32> to vector<32x32xf32>
    %28 = arith.subf %24, %27 : vector<32x32xf32>
    %29 = math.exp %28 : vector<32x32xf32>
    %cst_12 = arith.constant dense<0.000000e+00> : vector<32xf32>
    %30 = vector.multi_reduction <add>, %29, %cst_12 [1] : vector<32x32xf32> to vector<32xf32>
    %31 = vector.shape_cast %30 : vector<32xf32> to vector<32x1xf32>
    %32 = tpu.reciprocal %31 {approx = true} : vector<32x1xf32> -> vector<32x1xf32>
    %33 = vector.broadcast %32 : vector<32x1xf32> to vector<32x32xf32>
    %34 = arith.mulf %29, %33 : vector<32x32xf32>
    %cst_13 = arith.constant dense<0.000000e+00> : vector<32x16xf32>
    %35 = tpu.matmul %34, %6, %cst_13 {dimension_numbers = #tpu.dot_dimension_numbers<[1], [0], [0], [1], [0, 0, 1, 1], [], []>} : vector<32x32xf32>, vector<32x16xf32>, vector<32x16xf32> -> vector<32x16xf32>
    %36 = vector.extract_strided_slice %0 {offsets = [0, 16], sizes = [32, 16], strides = [1, 1]} : vector<32x64xf32> to vector<32x16xf32>
    %37 = vector.extract_strided_slice %1 {offsets = [0, 16], sizes = [32, 16], strides = [1, 1]} : vector<32x64xf32> to vector<32x16xf32>
    %38 = vector.extract_strided_slice %5 {offsets = [0, 16], sizes = [1, 16], strides = [1, 1]} : vector<1x64xf32> to vector<1x16xf32>
    %39 = vector.shape_cast %37 : vector<32x16xf32> to vector<32x1x16xf32>
    %40 = vector.shape_cast %36 : vector<32x16xf32> to vector<1x32x16xf32>
    %41 = vector.broadcast %39 : vector<32x1x16xf32> to vector<32x32x16xf32>
    %42 = vector.broadcast %40 : vector<1x32x16xf32> to vector<32x32x16xf32>
    %43 = arith.addf %41, %42 : vector<32x32x16xf32>
    %cst_14 = arith.constant 0.000000e+00 : f32
    %44 = vector.broadcast %cst_14 : f32 to vector<32x32x16xf32>
    %45 = arith.cmpf ogt, %43, %44 : vector<32x32x16xf32>
    %cst_15 = arith.constant 2.000000e-01 : f32
    %46 = vector.broadcast %cst_15 : f32 to vector<32x32x16xf32>
    %47 = arith.mulf %46, %43 : vector<32x32x16xf32>
    %48 = arith.select %45, %43, %47 : vector<32x32x16xi1>, vector<32x32x16xf32>
    %49 = vector.shape_cast %38 : vector<1x16xf32> to vector<1x1x16xf32>
    %50 = vector.broadcast %49 : vector<1x1x16xf32> to vector<32x32x16xf32>
    %51 = arith.mulf %48, %50 : vector<32x32x16xf32>
    %cst_16 = arith.constant dense<0.000000e+00> : vector<32x32xf32>
    %52 = vector.multi_reduction <add>, %51, %cst_16 [2] : vector<32x32x16xf32> to vector<32x32xf32>
    %cst_17 = arith.constant -1.000000e+30 : f32
    %53 = vector.broadcast %cst_17 : f32 to vector<32x32xf32>
    %54 = arith.select %4, %52, %53 : vector<32x32xi1>, vector<32x32xf32>
    %cst_18 = arith.constant dense<0xFF800000> : vector<32xf32>
    %55 = vector.multi_reduction <maximumf>, %54, %cst_18 [1] : vector<32x32xf32> to vector<32xf32>
    %56 = vector.shape_cast %55 : vector<32xf32> to vector<32x1xf32>
    %57 = vector.broadcast %56 : vector<32x1xf32> to vector<32x32xf32>
    %58 = arith.subf %54, %57 : vector<32x32xf32>
    %59 = math.exp %58 : vector<32x32xf32>
    %cst_19 = arith.constant dense<0.000000e+00> : vector<32xf32>
    %60 = vector.multi_reduction <add>, %59, %cst_19 [1] : vector<32x32xf32> to vector<32xf32>
    %61 = vector.shape_cast %60 : vector<32xf32> to vector<32x1xf32>
    %62 = tpu.reciprocal %61 {approx = true} : vector<32x1xf32> -> vector<32x1xf32>
    %63 = vector.broadcast %62 : vector<32x1xf32> to vector<32x32xf32>
    %64 = arith.mulf %59, %63 : vector<32x32xf32>
    %cst_20 = arith.constant dense<0.000000e+00> : vector<32x16xf32>
    %65 = tpu.matmul %64, %36, %cst_20 {dimension_numbers = #tpu.dot_dimension_numbers<[1], [0], [0], [1], [0, 0, 1, 1], [], []>} : vector<32x32xf32>, vector<32x16xf32>, vector<32x16xf32> -> vector<32x16xf32>
    %66 = vector.extract_strided_slice %0 {offsets = [0, 32], sizes = [32, 16], strides = [1, 1]} : vector<32x64xf32> to vector<32x16xf32>
    %67 = vector.extract_strided_slice %1 {offsets = [0, 32], sizes = [32, 16], strides = [1, 1]} : vector<32x64xf32> to vector<32x16xf32>
    %68 = vector.extract_strided_slice %5 {offsets = [0, 32], sizes = [1, 16], strides = [1, 1]} : vector<1x64xf32> to vector<1x16xf32>
    %69 = vector.shape_cast %67 : vector<32x16xf32> to vector<32x1x16xf32>
    %70 = vector.shape_cast %66 : vector<32x16xf32> to vector<1x32x16xf32>
    %71 = vector.broadcast %69 : vector<32x1x16xf32> to vector<32x32x16xf32>
    %72 = vector.broadcast %70 : vector<1x32x16xf32> to vector<32x32x16xf32>
    %73 = arith.addf %71, %72 : vector<32x32x16xf32>
    %cst_21 = arith.constant 0.000000e+00 : f32
    %74 = vector.broadcast %cst_21 : f32 to vector<32x32x16xf32>
    %75 = arith.cmpf ogt, %73, %74 : vector<32x32x16xf32>
    %cst_22 = arith.constant 2.000000e-01 : f32
    %76 = vector.broadcast %cst_22 : f32 to vector<32x32x16xf32>
    %77 = arith.mulf %76, %73 : vector<32x32x16xf32>
    %78 = arith.select %75, %73, %77 : vector<32x32x16xi1>, vector<32x32x16xf32>
    %79 = vector.shape_cast %68 : vector<1x16xf32> to vector<1x1x16xf32>
    %80 = vector.broadcast %79 : vector<1x1x16xf32> to vector<32x32x16xf32>
    %81 = arith.mulf %78, %80 : vector<32x32x16xf32>
    %cst_23 = arith.constant dense<0.000000e+00> : vector<32x32xf32>
    %82 = vector.multi_reduction <add>, %81, %cst_23 [2] : vector<32x32x16xf32> to vector<32x32xf32>
    %cst_24 = arith.constant -1.000000e+30 : f32
    %83 = vector.broadcast %cst_24 : f32 to vector<32x32xf32>
    %84 = arith.select %4, %82, %83 : vector<32x32xi1>, vector<32x32xf32>
    %cst_25 = arith.constant dense<0xFF800000> : vector<32xf32>
    %85 = vector.multi_reduction <maximumf>, %84, %cst_25 [1] : vector<32x32xf32> to vector<32xf32>
    %86 = vector.shape_cast %85 : vector<32xf32> to vector<32x1xf32>
    %87 = vector.broadcast %86 : vector<32x1xf32> to vector<32x32xf32>
    %88 = arith.subf %84, %87 : vector<32x32xf32>
    %89 = math.exp %88 : vector<32x32xf32>
    %cst_26 = arith.constant dense<0.000000e+00> : vector<32xf32>
    %90 = vector.multi_reduction <add>, %89, %cst_26 [1] : vector<32x32xf32> to vector<32xf32>
    %91 = vector.shape_cast %90 : vector<32xf32> to vector<32x1xf32>
    %92 = tpu.reciprocal %91 {approx = true} : vector<32x1xf32> -> vector<32x1xf32>
    %93 = vector.broadcast %92 : vector<32x1xf32> to vector<32x32xf32>
    %94 = arith.mulf %89, %93 : vector<32x32xf32>
    %cst_27 = arith.constant dense<0.000000e+00> : vector<32x16xf32>
    %95 = tpu.matmul %94, %66, %cst_27 {dimension_numbers = #tpu.dot_dimension_numbers<[1], [0], [0], [1], [0, 0, 1, 1], [], []>} : vector<32x32xf32>, vector<32x16xf32>, vector<32x16xf32> -> vector<32x16xf32>
    %96 = vector.extract_strided_slice %0 {offsets = [0, 48], sizes = [32, 16], strides = [1, 1]} : vector<32x64xf32> to vector<32x16xf32>
    %97 = vector.extract_strided_slice %1 {offsets = [0, 48], sizes = [32, 16], strides = [1, 1]} : vector<32x64xf32> to vector<32x16xf32>
    %98 = vector.extract_strided_slice %5 {offsets = [0, 48], sizes = [1, 16], strides = [1, 1]} : vector<1x64xf32> to vector<1x16xf32>
    %99 = vector.shape_cast %97 : vector<32x16xf32> to vector<32x1x16xf32>
    %100 = vector.shape_cast %96 : vector<32x16xf32> to vector<1x32x16xf32>
    %101 = vector.broadcast %99 : vector<32x1x16xf32> to vector<32x32x16xf32>
    %102 = vector.broadcast %100 : vector<1x32x16xf32> to vector<32x32x16xf32>
    %103 = arith.addf %101, %102 : vector<32x32x16xf32>
    %cst_28 = arith.constant 0.000000e+00 : f32
    %104 = vector.broadcast %cst_28 : f32 to vector<32x32x16xf32>
    %105 = arith.cmpf ogt, %103, %104 : vector<32x32x16xf32>
    %cst_29 = arith.constant 2.000000e-01 : f32
    %106 = vector.broadcast %cst_29 : f32 to vector<32x32x16xf32>
    %107 = arith.mulf %106, %103 : vector<32x32x16xf32>
    %108 = arith.select %105, %103, %107 : vector<32x32x16xi1>, vector<32x32x16xf32>
    %109 = vector.shape_cast %98 : vector<1x16xf32> to vector<1x1x16xf32>
    %110 = vector.broadcast %109 : vector<1x1x16xf32> to vector<32x32x16xf32>
    %111 = arith.mulf %108, %110 : vector<32x32x16xf32>
    %cst_30 = arith.constant dense<0.000000e+00> : vector<32x32xf32>
    %112 = vector.multi_reduction <add>, %111, %cst_30 [2] : vector<32x32x16xf32> to vector<32x32xf32>
    %cst_31 = arith.constant -1.000000e+30 : f32
    %113 = vector.broadcast %cst_31 : f32 to vector<32x32xf32>
    %114 = arith.select %4, %112, %113 : vector<32x32xi1>, vector<32x32xf32>
    %cst_32 = arith.constant dense<0xFF800000> : vector<32xf32>
    %115 = vector.multi_reduction <maximumf>, %114, %cst_32 [1] : vector<32x32xf32> to vector<32xf32>
    %116 = vector.shape_cast %115 : vector<32xf32> to vector<32x1xf32>
    %117 = vector.broadcast %116 : vector<32x1xf32> to vector<32x32xf32>
    %118 = arith.subf %114, %117 : vector<32x32xf32>
    %119 = math.exp %118 : vector<32x32xf32>
    %cst_33 = arith.constant dense<0.000000e+00> : vector<32xf32>
    %120 = vector.multi_reduction <add>, %119, %cst_33 [1] : vector<32x32xf32> to vector<32xf32>
    %121 = vector.shape_cast %120 : vector<32xf32> to vector<32x1xf32>
    %122 = tpu.reciprocal %121 {approx = true} : vector<32x1xf32> -> vector<32x1xf32>
    %123 = vector.broadcast %122 : vector<32x1xf32> to vector<32x32xf32>
    %124 = arith.mulf %119, %123 : vector<32x32xf32>
    %cst_34 = arith.constant dense<0.000000e+00> : vector<32x16xf32>
    %125 = tpu.matmul %124, %96, %cst_34 {dimension_numbers = #tpu.dot_dimension_numbers<[1], [0], [0], [1], [0, 0, 1, 1], [], []>} : vector<32x32xf32>, vector<32x16xf32>, vector<32x16xf32> -> vector<32x16xf32>
    %126 = tpu.concatenate %35, %65, %95, %125 in 1 : vector<32x16xf32>, vector<32x16xf32>, vector<32x16xf32>, vector<32x16xf32> -> vector<32x64xf32>
    %c1 = arith.constant 1 : index
    %c0_35 = arith.constant 0 : index
    %127 = vector.load %arg4[%c1, %c0_35] : memref<2x64xf32, #tpu.memory_space<vmem>>, vector<1x64xf32>
    %128 = vector.broadcast %127 : vector<1x64xf32> to vector<32x64xf32>
    %129 = arith.addf %126, %128 : vector<32x64xf32>
    %cst_36 = arith.constant 0.000000e+00 : f32
    %130 = vector.broadcast %cst_36 : f32 to vector<32x64xf32>
    %131 = arith.cmpf ogt, %129, %130 : vector<32x64xf32>
    %cst_37 = arith.constant 0.000000e+00 : f32
    %132 = vector.broadcast %cst_37 : f32 to vector<32x64xf32>
    %133 = arith.minimumf %129, %132 : vector<32x64xf32>
    %134 = math.exp %133 : vector<32x64xf32>
    %cst_38 = arith.constant 1.000000e+00 : f32
    %135 = vector.broadcast %cst_38 : f32 to vector<32x64xf32>
    %136 = arith.subf %134, %135 : vector<32x64xf32>
    %137 = arith.select %131, %129, %136 : vector<32x64xi1>, vector<32x64xf32>
    %c0_39 = arith.constant 0 : index
    %c0_40 = arith.constant 0 : index
    %138 = vector.load %arg5[%c0_39, %c0_40] : memref<32x64xf32, #tpu.memory_space<vmem>>, vector<32x64xf32>
    tpu.vector_store %arg5[%c0_39, %c0_40], %137 {strides = array<i32>} : memref<32x64xf32, #tpu.memory_space<vmem>>, vector<32x64xf32>,
    return
  }
  func.func @transform_0(%arg0: i32) -> (i32, i32) {
    %c0_i32 = arith.constant 0 : i32
    %c0_i32_0 = arith.constant 0 : i32
    return %arg0, %c0_i32 : i32, i32
  }
  func.func @transform_1(%arg0: i32) -> (i32, i32) {
    %c0_i32 = arith.constant 0 : i32
    %c0_i32_0 = arith.constant 0 : i32
    %c0_i32_1 = arith.constant 0 : i32
    return %c0_i32, %c0_i32_0 : i32, i32
  }
  func.func @transform_2(%arg0: i32) -> (i32, i32) {
    %c0_i32 = arith.constant 0 : i32
    %c0_i32_0 = arith.constant 0 : i32
    return %arg0, %c0_i32 : i32, i32
  }
  func.func @transform_3(%arg0: i32) -> (i32, i32) {
    %c0_i32 = arith.constant 0 : i32
    %c0_i32_0 = arith.constant 0 : i32
    %c0_i32_1 = arith.constant 0 : i32
    return %c0_i32, %c0_i32_0 : i32, i32
  }
  func.func @transform_4(%arg0: i32) -> (i32, i32) {
    %c0_i32 = arith.constant 0 : i32
    %c0_i32_0 = arith.constant 0 : i32
    return %arg0, %c0_i32 : i32, i32
  }
}

module attributes {stable_mosaic.version = 11 : i64} {
  func.func @_project_kernel(%arg0: i32, %arg1: memref<32x64xf32, #tpu.memory_space<vmem>>, %arg2: memref<64x128xf32, #tpu.memory_space<vmem>>, %arg3: memref<1x128xf32, #tpu.memory_space<vmem>>, %arg4: memref<32x64xf32, #tpu.memory_space<vmem>>, %arg5: memref<32x64xf32, #tpu.memory_space<vmem>>) attributes {dimension_semantics = [#tpu.dimension_semantics<parallel>], iteration_bounds = array<i64: 1>, scalar_prefetch = 0 : i64, scratch_operands = 0 : i64, tpu.core_type = #tpu.core_type<tc>, window_params = [{transform_indices = @transform_0, window_bounds = array<i64: 32, 64>}, {pipeline_mode = #tpu.pipeline_mode<synchronous>, transform_indices = @transform_1, window_bounds = array<i64: 64, 128>}, {pipeline_mode = #tpu.pipeline_mode<synchronous>, transform_indices = @transform_2, window_bounds = array<i64: 1, 128>}, {transform_indices = @transform_3, window_bounds = array<i64: 32, 64>}, {transform_indices = @transform_4, window_bounds = array<i64: 32, 64>}]} {
    %c0 = arith.constant 0 : index
    %c0_0 = arith.constant 0 : index
    %0 = vector.load %arg1[%c0, %c0_0] : memref<32x64xf32, #tpu.memory_space<vmem>>, vector<32x64xf32>
    %c0_1 = arith.constant 0 : index
    %c0_2 = arith.constant 0 : index
    %1 = vector.load %arg2[%c0_1, %c0_2] : memref<64x128xf32, #tpu.memory_space<vmem>>, vector<64x128xf32>
    %cst = arith.constant dense<0.000000e+00> : vector<32x128xf32>
    %2 = tpu.matmul %0, %1, %cst {dimension_numbers = #tpu.dot_dimension_numbers<[1], [0], [0], [1], [0, 0, 1, 1], [], []>} : vector<32x64xf32>, vector<64x128xf32>, vector<32x128xf32> -> vector<32x128xf32>
    %c0_3 = arith.constant 0 : index
    %c0_4 = arith.constant 0 : index
    %3 = vector.load %arg3[%c0_3, %c0_4] : memref<1x128xf32, #tpu.memory_space<vmem>>, vector<1x128xf32>
    %4 = vector.broadcast %3 : vector<1x128xf32> to vector<32x128xf32>
    %5 = arith.addf %2, %4 : vector<32x128xf32>
    %6 = vector.extract_strided_slice %5 {offsets = [0, 0], sizes = [32, 64], strides = [1, 1]} : vector<32x128xf32> to vector<32x64xf32>
    %c0_5 = arith.constant 0 : index
    %c0_6 = arith.constant 0 : index
    %7 = vector.load %arg4[%c0_5, %c0_6] : memref<32x64xf32, #tpu.memory_space<vmem>>, vector<32x64xf32>
    tpu.vector_store %arg4[%c0_5, %c0_6], %6 {strides = array<i32>} : memref<32x64xf32, #tpu.memory_space<vmem>>, vector<32x64xf32>,
    %8 = vector.extract_strided_slice %5 {offsets = [0, 64], sizes = [32, 64], strides = [1, 1]} : vector<32x128xf32> to vector<32x64xf32>
    %c0_7 = arith.constant 0 : index
    %c0_8 = arith.constant 0 : index
    %9 = vector.load %arg5[%c0_7, %c0_8] : memref<32x64xf32, #tpu.memory_space<vmem>>, vector<32x64xf32>
    tpu.vector_store %arg5[%c0_7, %c0_8], %8 {strides = array<i32>} : memref<32x64xf32, #tpu.memory_space<vmem>>, vector<32x64xf32>,
    return
  }
  func.func @transform_0(%arg0: i32) -> (i32, i32) {
    %c0_i32 = arith.constant 0 : i32
    %c0_i32_0 = arith.constant 0 : i32
    return %arg0, %c0_i32 : i32, i32
  }
  func.func @transform_1(%arg0: i32) -> (i32, i32) {
    %c0_i32 = arith.constant 0 : i32
    %c0_i32_0 = arith.constant 0 : i32
    %c0_i32_1 = arith.constant 0 : i32
    return %c0_i32, %c0_i32_0 : i32, i32
  }
  func.func @transform_2(%arg0: i32) -> (i32, i32) {
    %c0_i32 = arith.constant 0 : i32
    %c0_i32_0 = arith.constant 0 : i32
    %c0_i32_1 = arith.constant 0 : i32
    return %c0_i32, %c0_i32_0 : i32, i32
  }
  func.func @transform_3(%arg0: i32) -> (i32, i32) {
    %c0_i32 = arith.constant 0 : i32
    %c0_i32_0 = arith.constant 0 : i32
    return %arg0, %c0_i32 : i32, i32
  }
  func.func @transform_4(%arg0: i32) -> (i32, i32) {
    %c0_i32 = arith.constant 0 : i32
    %c0_i32_0 = arith.constant 0 : i32
    return %arg0, %c0_i32 : i32, i32
  }
}

module attributes {stable_mosaic.version = 11 : i64} {
  func.func @_project_kernel(%arg0: i32, %arg1: memref<32x16xf32, #tpu.memory_space<vmem>>, %arg2: memref<16x128xf32, #tpu.memory_space<vmem>>, %arg3: memref<1x128xf32, #tpu.memory_space<vmem>>, %arg4: memref<32x64xf32, #tpu.memory_space<vmem>>, %arg5: memref<32x64xf32, #tpu.memory_space<vmem>>) attributes {dimension_semantics = [#tpu.dimension_semantics<parallel>], iteration_bounds = array<i64: 1>, scalar_prefetch = 0 : i64, scratch_operands = 0 : i64, tpu.core_type = #tpu.core_type<tc>, window_params = [{transform_indices = @transform_0, window_bounds = array<i64: 32, 16>}, {pipeline_mode = #tpu.pipeline_mode<synchronous>, transform_indices = @transform_1, window_bounds = array<i64: 16, 128>}, {pipeline_mode = #tpu.pipeline_mode<synchronous>, transform_indices = @transform_2, window_bounds = array<i64: 1, 128>}, {transform_indices = @transform_3, window_bounds = array<i64: 32, 64>}, {transform_indices = @transform_4, window_bounds = array<i64: 32, 64>}]} {
    %c0 = arith.constant 0 : index
    %c0_0 = arith.constant 0 : index
    %0 = vector.load %arg1[%c0, %c0_0] : memref<32x16xf32, #tpu.memory_space<vmem>>, vector<32x16xf32>
    %c0_1 = arith.constant 0 : index
    %c0_2 = arith.constant 0 : index
    %1 = vector.load %arg2[%c0_1, %c0_2] : memref<16x128xf32, #tpu.memory_space<vmem>>, vector<16x128xf32>
    %cst = arith.constant dense<0.000000e+00> : vector<32x128xf32>
    %2 = tpu.matmul %0, %1, %cst {dimension_numbers = #tpu.dot_dimension_numbers<[1], [0], [0], [1], [0, 0, 1, 1], [], []>} : vector<32x16xf32>, vector<16x128xf32>, vector<32x128xf32> -> vector<32x128xf32>
    %c0_3 = arith.constant 0 : index
    %c0_4 = arith.constant 0 : index
    %3 = vector.load %arg3[%c0_3, %c0_4] : memref<1x128xf32, #tpu.memory_space<vmem>>, vector<1x128xf32>
    %4 = vector.broadcast %3 : vector<1x128xf32> to vector<32x128xf32>
    %5 = arith.addf %2, %4 : vector<32x128xf32>
    %6 = vector.extract_strided_slice %5 {offsets = [0, 0], sizes = [32, 64], strides = [1, 1]} : vector<32x128xf32> to vector<32x64xf32>
    %c0_5 = arith.constant 0 : index
    %c0_6 = arith.constant 0 : index
    %7 = vector.load %arg4[%c0_5, %c0_6] : memref<32x64xf32, #tpu.memory_space<vmem>>, vector<32x64xf32>
    tpu.vector_store %arg4[%c0_5, %c0_6], %6 {strides = array<i32>} : memref<32x64xf32, #tpu.memory_space<vmem>>, vector<32x64xf32>,
    %8 = vector.extract_strided_slice %5 {offsets = [0, 64], sizes = [32, 64], strides = [1, 1]} : vector<32x128xf32> to vector<32x64xf32>
    %c0_7 = arith.constant 0 : index
    %c0_8 = arith.constant 0 : index
    %9 = vector.load %arg5[%c0_7, %c0_8] : memref<32x64xf32, #tpu.memory_space<vmem>>, vector<32x64xf32>
    tpu.vector_store %arg5[%c0_7, %c0_8], %8 {strides = array<i32>} : memref<32x64xf32, #tpu.memory_space<vmem>>, vector<32x64xf32>,
    return
  }
  func.func @transform_0(%arg0: i32) -> (i32, i32) {
    %c0_i32 = arith.constant 0 : i32
    %c0_i32_0 = arith.constant 0 : i32
    return %arg0, %c0_i32 : i32, i32
  }
  func.func @transform_1(%arg0: i32) -> (i32, i32) {
    %c0_i32 = arith.constant 0 : i32
    %c0_i32_0 = arith.constant 0 : i32
    %c0_i32_1 = arith.constant 0 : i32
    return %c0_i32, %c0_i32_0 : i32, i32
  }
  func.func @transform_2(%arg0: i32) -> (i32, i32) {
    %c0_i32 = arith.constant 0 : i32
    %c0_i32_0 = arith.constant 0 : i32
    %c0_i32_1 = arith.constant 0 : i32
    return %c0_i32, %c0_i32_0 : i32, i32
  }
  func.func @transform_3(%arg0: i32) -> (i32, i32) {
    %c0_i32 = arith.constant 0 : i32
    %c0_i32_0 = arith.constant 0 : i32
    return %arg0, %c0_i32 : i32, i32
  }
  func.func @transform_4(%arg0: i32) -> (i32, i32) {
    %c0_i32 = arith.constant 0 : i32
    %c0_i32_0 = arith.constant 0 : i32
    return %arg0, %c0_i32 : i32, i32
  }
}

module attributes {stable_mosaic.version = 11 : i64} {
  func.func @_project_kernel(%arg0: i32, %arg1: memref<32x64xf32, #tpu.memory_space<vmem>>, %arg2: memref<64x4xf32, #tpu.memory_space<vmem>>, %arg3: memref<1x4xf32, #tpu.memory_space<vmem>>, %arg4: memref<32x2xf32, #tpu.memory_space<vmem>>, %arg5: memref<32x2xf32, #tpu.memory_space<vmem>>) attributes {dimension_semantics = [#tpu.dimension_semantics<parallel>], iteration_bounds = array<i64: 1>, scalar_prefetch = 0 : i64, scratch_operands = 0 : i64, tpu.core_type = #tpu.core_type<tc>, window_params = [{transform_indices = @transform_0, window_bounds = array<i64: 32, 64>}, {pipeline_mode = #tpu.pipeline_mode<synchronous>, transform_indices = @transform_1, window_bounds = array<i64: 64, 4>}, {pipeline_mode = #tpu.pipeline_mode<synchronous>, transform_indices = @transform_2, window_bounds = array<i64: 1, 4>}, {transform_indices = @transform_3, window_bounds = array<i64: 32, 2>}, {transform_indices = @transform_4, window_bounds = array<i64: 32, 2>}]} {
    %c0 = arith.constant 0 : index
    %c0_0 = arith.constant 0 : index
    %0 = vector.load %arg1[%c0, %c0_0] : memref<32x64xf32, #tpu.memory_space<vmem>>, vector<32x64xf32>
    %c0_1 = arith.constant 0 : index
    %c0_2 = arith.constant 0 : index
    %1 = vector.load %arg2[%c0_1, %c0_2] : memref<64x4xf32, #tpu.memory_space<vmem>>, vector<64x4xf32>
    %cst = arith.constant dense<0.000000e+00> : vector<32x4xf32>
    %2 = tpu.matmul %0, %1, %cst {dimension_numbers = #tpu.dot_dimension_numbers<[1], [0], [0], [1], [0, 0, 1, 1], [], []>} : vector<32x64xf32>, vector<64x4xf32>, vector<32x4xf32> -> vector<32x4xf32>
    %c0_3 = arith.constant 0 : index
    %c0_4 = arith.constant 0 : index
    %3 = vector.load %arg3[%c0_3, %c0_4] : memref<1x4xf32, #tpu.memory_space<vmem>>, vector<1x4xf32>
    %4 = vector.broadcast %3 : vector<1x4xf32> to vector<32x4xf32>
    %5 = arith.addf %2, %4 : vector<32x4xf32>
    %6 = vector.extract_strided_slice %5 {offsets = [0, 0], sizes = [32, 2], strides = [1, 1]} : vector<32x4xf32> to vector<32x2xf32>
    %c0_5 = arith.constant 0 : index
    %c0_6 = arith.constant 0 : index
    %7 = vector.load %arg4[%c0_5, %c0_6] : memref<32x2xf32, #tpu.memory_space<vmem>>, vector<32x2xf32>
    tpu.vector_store %arg4[%c0_5, %c0_6], %6 {strides = array<i32>} : memref<32x2xf32, #tpu.memory_space<vmem>>, vector<32x2xf32>,
    %8 = vector.extract_strided_slice %5 {offsets = [0, 2], sizes = [32, 2], strides = [1, 1]} : vector<32x4xf32> to vector<32x2xf32>
    %c0_7 = arith.constant 0 : index
    %c0_8 = arith.constant 0 : index
    %9 = vector.load %arg5[%c0_7, %c0_8] : memref<32x2xf32, #tpu.memory_space<vmem>>, vector<32x2xf32>
    tpu.vector_store %arg5[%c0_7, %c0_8], %8 {strides = array<i32>} : memref<32x2xf32, #tpu.memory_space<vmem>>, vector<32x2xf32>,
    return
  }
  func.func @transform_0(%arg0: i32) -> (i32, i32) {
    %c0_i32 = arith.constant 0 : i32
    %c0_i32_0 = arith.constant 0 : i32
    return %arg0, %c0_i32 : i32, i32
  }
  func.func @transform_1(%arg0: i32) -> (i32, i32) {
    %c0_i32 = arith.constant 0 : i32
    %c0_i32_0 = arith.constant 0 : i32
    %c0_i32_1 = arith.constant 0 : i32
    return %c0_i32, %c0_i32_0 : i32, i32
  }
  func.func @transform_2(%arg0: i32) -> (i32, i32) {
    %c0_i32 = arith.constant 0 : i32
    %c0_i32_0 = arith.constant 0 : i32
    %c0_i32_1 = arith.constant 0 : i32
    return %c0_i32, %c0_i32_0 : i32, i32
  }
  func.func @transform_3(%arg0: i32) -> (i32, i32) {
    %c0_i32 = arith.constant 0 : i32
    %c0_i32_0 = arith.constant 0 : i32
    return %arg0, %c0_i32 : i32, i32
  }
  func.func @transform_4(%arg0: i32) -> (i32, i32) {
    %c0_i32 = arith.constant 0 : i32
    %c0_i32_0 = arith.constant 0 : i32
    return %arg0, %c0_i32 : i32, i32
  }
}

module attributes {stable_mosaic.version = 11 : i64} {
  func.func @kernel(%arg0: i32, %arg1: memref<32x2xf32, #tpu.memory_space<vmem>>, %arg2: memref<32x2xf32, #tpu.memory_space<vmem>>, %arg3: memref<32x32xf32, #tpu.memory_space<vmem>>, %arg4: memref<2x2xf32, #tpu.memory_space<vmem>>, %arg5: memref<32x2xf32, #tpu.memory_space<vmem>>) attributes {dimension_semantics = [#tpu.dimension_semantics<parallel>], iteration_bounds = array<i64: 1>, scalar_prefetch = 0 : i64, scratch_operands = 0 : i64, tpu.core_type = #tpu.core_type<tc>, window_params = [{transform_indices = @transform_0, window_bounds = array<i64: 32, 2>}, {pipeline_mode = #tpu.pipeline_mode<synchronous>, transform_indices = @transform_1, window_bounds = array<i64: 32, 2>}, {transform_indices = @transform_2, window_bounds = array<i64: 32, 32>}, {pipeline_mode = #tpu.pipeline_mode<synchronous>, transform_indices = @transform_3, window_bounds = array<i64: 2, 2>}, {transform_indices = @transform_4, window_bounds = array<i64: 32, 2>}]} {
    %c0 = arith.constant 0 : index
    %c0_0 = arith.constant 0 : index
    %0 = vector.load %arg2[%c0, %c0_0] : memref<32x2xf32, #tpu.memory_space<vmem>>, vector<32x2xf32>
    %c0_1 = arith.constant 0 : index
    %c0_2 = arith.constant 0 : index
    %1 = vector.load %arg1[%c0_1, %c0_2] : memref<32x2xf32, #tpu.memory_space<vmem>>, vector<32x2xf32>
    %c0_3 = arith.constant 0 : index
    %c0_4 = arith.constant 0 : index
    %2 = vector.load %arg3[%c0_3, %c0_4] : memref<32x32xf32, #tpu.memory_space<vmem>>, vector<32x32xf32>
    %cst = arith.constant 0.000000e+00 : f32
    %3 = vector.broadcast %cst : f32 to vector<32x32xf32>
    %4 = arith.cmpf ogt, %2, %3 : vector<32x32xf32>
    %c0_5 = arith.constant 0 : index
    %c0_6 = arith.constant 0 : index
    %5 = vector.load %arg4[%c0_5, %c0_6] : memref<2x2xf32, #tpu.memory_space<vmem>>, vector<1x2xf32>
    %6 = vector.shape_cast %1 : vector<32x2xf32> to vector<32x1x2xf32>
    %7 = vector.shape_cast %0 : vector<32x2xf32> to vector<1x32x2xf32>
    %8 = vector.broadcast %6 : vector<32x1x2xf32> to vector<32x32x2xf32>
    %9 = vector.broadcast %7 : vector<1x32x2xf32> to vector<32x32x2xf32>
    %10 = arith.addf %8, %9 : vector<32x32x2xf32>
    %cst_7 = arith.constant 0.000000e+00 : f32
    %11 = vector.broadcast %cst_7 : f32 to vector<32x32x2xf32>
    %12 = arith.cmpf ogt, %10, %11 : vector<32x32x2xf32>
    %cst_8 = arith.constant 2.000000e-01 : f32
    %13 = vector.broadcast %cst_8 : f32 to vector<32x32x2xf32>
    %14 = arith.mulf %13, %10 : vector<32x32x2xf32>
    %15 = arith.select %12, %10, %14 : vector<32x32x2xi1>, vector<32x32x2xf32>
    %16 = vector.shape_cast %5 : vector<1x2xf32> to vector<1x1x2xf32>
    %17 = vector.broadcast %16 : vector<1x1x2xf32> to vector<32x32x2xf32>
    %18 = arith.mulf %15, %17 : vector<32x32x2xf32>
    %cst_9 = arith.constant dense<0.000000e+00> : vector<32x32xf32>
    %19 = vector.multi_reduction <add>, %18, %cst_9 [2] : vector<32x32x2xf32> to vector<32x32xf32>
    %cst_10 = arith.constant -1.000000e+30 : f32
    %20 = vector.broadcast %cst_10 : f32 to vector<32x32xf32>
    %21 = arith.select %4, %19, %20 : vector<32x32xi1>, vector<32x32xf32>
    %cst_11 = arith.constant dense<0xFF800000> : vector<32xf32>
    %22 = vector.multi_reduction <maximumf>, %21, %cst_11 [1] : vector<32x32xf32> to vector<32xf32>
    %23 = vector.shape_cast %22 : vector<32xf32> to vector<32x1xf32>
    %24 = vector.broadcast %23 : vector<32x1xf32> to vector<32x32xf32>
    %25 = arith.subf %21, %24 : vector<32x32xf32>
    %26 = math.exp %25 : vector<32x32xf32>
    %cst_12 = arith.constant dense<0.000000e+00> : vector<32xf32>
    %27 = vector.multi_reduction <add>, %26, %cst_12 [1] : vector<32x32xf32> to vector<32xf32>
    %28 = vector.shape_cast %27 : vector<32xf32> to vector<32x1xf32>
    %29 = tpu.reciprocal %28 {approx = true} : vector<32x1xf32> -> vector<32x1xf32>
    %30 = vector.broadcast %29 : vector<32x1xf32> to vector<32x32xf32>
    %31 = arith.mulf %26, %30 : vector<32x32xf32>
    %cst_13 = arith.constant dense<0.000000e+00> : vector<32x2xf32>
    %32 = tpu.matmul %31, %0, %cst_13 {dimension_numbers = #tpu.dot_dimension_numbers<[1], [0], [0], [1], [0, 0, 1, 1], [], []>} : vector<32x32xf32>, vector<32x2xf32>, vector<32x2xf32> -> vector<32x2xf32>
    %c1 = arith.constant 1 : index
    %c0_14 = arith.constant 0 : index
    %33 = vector.load %arg4[%c1, %c0_14] : memref<2x2xf32, #tpu.memory_space<vmem>>, vector<1x2xf32>
    %34 = vector.broadcast %33 : vector<1x2xf32> to vector<32x2xf32>
    %35 = arith.addf %32, %34 : vector<32x2xf32>
    %c0_15 = arith.constant 0 : index
    %c0_16 = arith.constant 0 : index
    %36 = vector.load %arg5[%c0_15, %c0_16] : memref<32x2xf32, #tpu.memory_space<vmem>>, vector<32x2xf32>
    tpu.vector_store %arg5[%c0_15, %c0_16], %35 {strides = array<i32>} : memref<32x2xf32, #tpu.memory_space<vmem>>, vector<32x2xf32>,
    return
  }
  func.func @transform_0(%arg0: i32) -> (i32, i32) {
    %c0_i32 = arith.constant 0 : i32
    %c0_i32_0 = arith.constant 0 : i32
    return %arg0, %c0_i32 : i32, i32
  }
  func.func @transform_1(%arg0: i32) -> (i32, i32) {
    %c0_i32 = arith.constant 0 : i32
    %c0_i32_0 = arith.constant 0 : i32
    %c0_i32_1 = arith.constant 0 : i32
    return %c0_i32, %c0_i32_0 : i32, i32
  }
  func.func @transform_2(%arg0: i32) -> (i32, i32) {
    %c0_i32 = arith.constant 0 : i32
    %c0_i32_0 = arith.constant 0 : i32
    return %arg0, %c0_i32 : i32, i32
  }
  func.func @transform_3(%arg0: i32) -> (i32, i32) {
    %c0_i32 = arith.constant 0 : i32
    %c0_i32_0 = arith.constant 0 : i32
    %c0_i32_1 = arith.constant 0 : i32
    return %c0_i32, %c0_i32_0 : i32, i32
  }
  func.func @transform_4(%arg0: i32) -> (i32, i32) {
    %c0_i32 = arith.constant 0 : i32
    %c0_i32_0 = arith.constant 0 : i32
    return %arg0, %c0_i32 : i32, i32
  }
}

</mosaic_0001>

<llo_original>
// kernel: gat_forward.6
$region0: #{gat_forward.6}
  #allocation0 [shape = 'u32[]', space=smem, size = 0x4, offset = 0x4, fixed_abs, tag = 'smem constant byte address 0x4 - core index']
  #allocation1 [shape = 'u32[144,128]{1,0:T(1,128)}', space=vmem, size = 0x12000, scoped, tag = 'internal scratch']
  %s0 = inlined_call_operand.vmem [shape: f32[32,16], index: 0, kind: input, shape index: {}]
  %s1 = inlined_call_operand.vmem [shape: f32[16,128], index: 1, kind: input, shape index: {}]
  %s2 = inlined_call_operand.vmem [shape: f32[1,128], index: 2, kind: input, shape index: {}]
  %s3 = inlined_call_operand.vmem [shape: f32[32,64], index: 3, kind: output, shape index: {0}]
  %s4 = inlined_call_operand.vmem [shape: f32[32,64], index: 4, kind: output, shape index: {1}]
  %5 = xla_tuple %s3, %s4
  %s6 = sld [smem:[#allocation0]]
  $region30: #{gat_forward.6} parent=0
    _
  %s8 = ssub.s32 1, %s6
  %s9 = scalar_select 0, %s8, %s6
  // Predicated region
  $region2: #{gat_forward.6} parent=0 // pred_check
    _
  $region3: #{gat_forward.6} parent=0 // pred_check_branch
    %11 = sbr.rel (0) target = $region5
  $region4: #{gat_forward.6} parent=0 // pred_region
    _
  $region5: #{gat_forward.6} parent=0 // pred_fallthru
    _
  // Predicated region
  $region6: #{gat_forward.6} parent=0 // pred_check
    _
  $region7: #{gat_forward.6} parent=0 // pred_check_branch
    %13 = sbr.rel (0) target = $region9
  $region8: #{gat_forward.6} parent=0 // pred_region
    _
  $region9: #{gat_forward.6} parent=0 // pred_fallthru
    _
  // Predicated region
  $region10: #{gat_forward.6} parent=0 // pred_check
    _
  $region11: #{gat_forward.6} parent=0 // pred_check_branch
    %15 = sbr.rel (0) target = $region13
  $region12: #{gat_forward.6} parent=0 // pred_region
    _
  $region13: #{gat_forward.6} parent=0 // pred_fallthru
    _
  %v16 = vld [vmem:[%s0] sm:$0xff]
  %v17 = vld [vmem:[%s0 + $0x8] sm:$0xff]
  %v18 = vld [vmem:[%s0 + $0x10] sm:$0xff]
  %v19 = vld [vmem:[%s0 + $0x18] sm:$0xff]
  %v20 = vld [vmem:[%s1] sm:$0xff]
  %v21 = vld [vmem:[%s1 + $0x8] sm:$0xff]
  %v22 = vld [vmem:[%s2] sm:$0x1]
  %v24 = vlaneseq
  %v25 = vshrl.u32 %v24, 7
  %v26 = vsub.s32 0, %v25
  %v27 = vrot.slane %v22, %v26
  %vm29 = vcmask 130048
  %v31 = vsel %vm29, %v16, 0
  %v34 = vsel %vm29, %v17, 0
  %v37 = vsel %vm29, %v18, 0
  %v40 = vsel %vm29, %v19, 0
  %42 = vmatprep.subr.mxu0 0.0
  %43 = vmatpush1.msra.mxu0 0.0
  %44 = vmatprep.subr.mxu0 0.0
  %45 = vmatpush1.msra.mxu0 0.0
  %46 = vmatprep.subr.mxu0 0.0
  %47 = vmatpush1.msra.mxu0 0.0
  %48 = vmatprep.subr.mxu0 0.0
  %49 = vmatpush1.msra.mxu0 0.0
  %50 = vmatprep.subr.mxu0 0.0
  %51 = vmatpush1.msra.mxu0 0.0
  %52 = vmatprep.subr.mxu0 0.0
  %53 = vmatpush1.msra.mxu0 0.0
  %54 = vmatprep.subr.mxu0 0.0
  %55 = vmatpush1.msra.mxu0 0.0
  %56 = vmatprep.subr.mxu0 0.0
  %57 = vmatpush1.msra.mxu0 0.0
  %58 = vmatprep.subr.mxu0 0.0
  %59 = vmatpush1.msra.mxu0 0.0
  %60 = vmatprep.subr.mxu0 0.0
  %61 = vmatpush1.msra.mxu0 0.0
  %62 = vmatprep.subr.mxu0 0.0
  %63 = vmatpush1.msra.mxu0 0.0
  %64 = vmatprep.subr.mxu0 0.0
  %65 = vmatpush1.msra.mxu0 0.0
  %66 = vmatprep.subr.mxu0 0.0
  %67 = vmatpush1.msra.mxu0 0.0
  %68 = vmatprep.subr.mxu0 0.0
  %69 = vmatpush1.msra.mxu0 0.0
  %70 = vmatprep.subr.mxu0 0.0
  %71 = vmatpush1.msra.mxu0 %v21
  %72 = vmatprep.subr.mxu0 0.0
  %73 = vmatpush1.msra.mxu0 %v20
  %74 = vmatprep.subr.mxu0 0.0
  %75 = vmatpush2.msra.mxu0 0.0
  %76 = vmatprep.subr.mxu0 0.0
  %77 = vmatpush2.msra.mxu0 0.0
  %78 = vmatprep.subr.mxu0 0.0
  %79 = vmatpush2.msra.mxu0 0.0
  %80 = vmatprep.subr.mxu0 0.0
  %81 = vmatpush2.msra.mxu0 0.0
  %82 = vmatprep.subr.mxu0 0.0
  %83 = vmatpush2.msra.mxu0 0.0
  %84 = vmatprep.subr.mxu0 0.0
  %85 = vmatpush2.msra.mxu0 0.0
  %86 = vmatprep.subr.mxu0 0.0
  %87 = vmatpush2.msra.mxu0 0.0
  %88 = vmatprep.subr.mxu0 0.0
  %89 = vmatpush2.msra.mxu0 0.0
  %90 = vmatprep.subr.mxu0 0.0
  %91 = vmatpush2.msra.mxu0 0.0
  %92 = vmatprep.subr.mxu0 0.0
  %93 = vmatpush2.msra.mxu0 0.0
  %94 = vmatprep.subr.mxu0 0.0
  %95 = vmatpush2.msra.mxu0 0.0
  %96 = vmatprep.subr.mxu0 0.0
  %97 = vmatpush2.msra.mxu0 0.0
  %98 = vmatprep.subr.mxu0 0.0
  %99 = vmatpush2.msra.mxu0 0.0
  %100 = vmatprep.subr.mxu0 0.0
  %101 = vmatpush2.msra.mxu0 0.0
  %102 = vmatprep.subr.mxu0 0.0
  %103 = vmatpush2.msra.mxu0 0.0
  %104 = vmatprep.subr.mxu0 0.0
  %105 = vmatpush2.msra.mxu0 0.0
  %106 = vmatprep.mubr.f32.mxu0 0.0
  %107 = vmatmul.mubr.f32.gmra.mxu0 %v31
  %v108 = vpop.f32.mrf.mxu0
  %v109 = vadd.f32 %v27, %v108
  %v110 = vpop.f32.mrf.mxu0
  %111 = vmatprep.mubr.f32.mxu0 0.0
  %112 = vmatmul.mubr.f32.gmra.mxu0 %v34
  %v113 = vpop.f32.mrf.mxu0
  %v114 = vadd.f32 %v27, %v113
  %v115 = vpop.f32.mrf.mxu0
  %116 = vmatprep.mubr.f32.mxu0 0.0
  %117 = vmatmul.mubr.f32.gmra.mxu0 %v37
  %v118 = vpop.f32.mrf.mxu0
  %v119 = vadd.f32 %v27, %v118
  %v120 = vpop.f32.mrf.mxu0
  %121 = vmatprep.mubr.f32.mxu0 0.0
  %122 = vmatmul.mubr.f32.gmra.mxu0 %v40
  %v123 = vpop.f32.mrf.mxu0
  %v124 = vadd.f32 %v27, %v123
  %v125 = vpop.f32.mrf.mxu0
  %126 = vdwg.mxu0
  %vm127 = vcmask 523264
  %128 = vst.msk [vmem:[%s3] sm:$0xff] %vm127, %v109
  %129 = vst.msk [vmem:[%s3 + $0x8] sm:$0xff] %vm127, %v114
  %130 = vst.msk [vmem:[%s3 + $0x10] sm:$0xff] %vm127, %v119
  %131 = vst.msk [vmem:[%s3 + $0x18] sm:$0xff] %vm127, %v124
  %136 = vrot.lane.b32.xlu0 %v109, 64
  %v137 = vpop.permute.xlu0 %136
  %138 = vrot.lane.b32.xlu0 %v114, 64
  %v139 = vpop.permute.xlu0 %138
  %140 = vrot.lane.b32.xlu0 %v119, 64
  %v141 = vpop.permute.xlu0 %140
  %142 = vrot.lane.b32.xlu0 %v124, 64
  %v143 = vpop.permute.xlu0 %142
  %148 = vst.msk [vmem:[%s4] sm:$0xff] %vm127, %v137
  %149 = vst.msk [vmem:[%s4 + $0x8] sm:$0xff] %vm127, %v139
  %150 = vst.msk [vmem:[%s4 + $0x10] sm:$0xff] %vm127, %v141
  %151 = vst.msk [vmem:[%s4 + $0x18] sm:$0xff] %vm127, %v143
  // Predicated region
  $region14: #{gat_forward.6} parent=0 // pred_check
    _
  $region15: #{gat_forward.6} parent=0 // pred_check_branch
    %153 = sbr.rel (0) target = $region17
  $region16: #{gat_forward.6} parent=0 // pred_region
    _
  $region17: #{gat_forward.6} parent=0 // pred_fallthru
    _
  // Predicated region
  $region18: #{gat_forward.6} parent=0 // pred_check
    _
  $region19: #{gat_forward.6} parent=0 // pred_check_branch
    %155 = sbr.rel (0) target = $region21
  $region20: #{gat_forward.6} parent=0 // pred_region
    _
  $region21: #{gat_forward.6} parent=0 // pred_fallthru
    _
  // Predicated region
  $region22: #{gat_forward.6} parent=0 // pred_check
    _
  $region23: #{gat_forward.6} parent=0 // pred_check_branch
    %157 = sbr.rel (0) target = $region25
  $region24: #{gat_forward.6} parent=0 // pred_region
    _
  $region25: #{gat_forward.6} parent=0 // pred_fallthru
    _
  // Predicated region
  $region26: #{gat_forward.6} parent=0 // pred_check
    _
  $region27: #{gat_forward.6} parent=0 // pred_check_branch
    %159 = sbr.rel (0) target = $region29
  $region28: #{gat_forward.6} parent=0 // pred_region
    _
  $region29: #{gat_forward.6} parent=0 // pred_fallthru
    _

// kernel: gat_forward.8
$region0: #{gat_forward.8}
  #allocation0 [shape = 'u32[]', space=smem, size = 0x4, offset = 0x4, fixed_abs, tag = 'smem constant byte address 0x4 - core index']
  #allocation1 [shape = 'u32[144,128]{1,0:T(1,128)}', space=vmem, size = 0x12000, scoped, tag = 'internal scratch']
  %s0 = inlined_call_operand.vmem [shape: f32[32,64], index: 0, kind: input, shape index: {}]
  %s1 = inlined_call_operand.vmem [shape: f32[64,128], index: 1, kind: input, shape index: {}]
  %s2 = inlined_call_operand.vmem [shape: f32[1,128], index: 2, kind: input, shape index: {}]
  %s3 = inlined_call_operand.vmem [shape: f32[32,64], index: 3, kind: output, shape index: {0}]
  %s4 = inlined_call_operand.vmem [shape: f32[32,64], index: 4, kind: output, shape index: {1}]
  %5 = xla_tuple %s3, %s4
  %s6 = sld [smem:[#allocation0]]
  $region30: #{gat_forward.8} parent=0
    _
  %s8 = ssub.s32 1, %s6
  %s9 = scalar_select 0, %s8, %s6
  // Predicated region
  $region2: #{gat_forward.8} parent=0 // pred_check
    _
  $region3: #{gat_forward.8} parent=0 // pred_check_branch
    %11 = sbr.rel (0) target = $region5
  $region4: #{gat_forward.8} parent=0 // pred_region
    _
  $region5: #{gat_forward.8} parent=0 // pred_fallthru
    _
  // Predicated region
  $region6: #{gat_forward.8} parent=0 // pred_check
    _
  $region7: #{gat_forward.8} parent=0 // pred_check_branch
    %13 = sbr.rel (0) target = $region9
  $region8: #{gat_forward.8} parent=0 // pred_region
    _
  $region9: #{gat_forward.8} parent=0 // pred_fallthru
    _
  // Predicated region
  $region10: #{gat_forward.8} parent=0 // pred_check
    _
  $region11: #{gat_forward.8} parent=0 // pred_check_branch
    %15 = sbr.rel (0) target = $region13
  $region12: #{gat_forward.8} parent=0 // pred_region
    _
  $region13: #{gat_forward.8} parent=0 // pred_fallthru
    _
  %v16 = vld [vmem:[%s0] sm:$0xff]
  %v17 = vld [vmem:[%s0 + $0x8] sm:$0xff]
  %v18 = vld [vmem:[%s0 + $0x10] sm:$0xff]
  %v19 = vld [vmem:[%s0 + $0x18] sm:$0xff]
  %v20 = vld [vmem:[%s1] sm:$0xff]
  %v21 = vld [vmem:[%s1 + $0x8] sm:$0xff]
  %v22 = vld [vmem:[%s1 + $0x10] sm:$0xff]
  %v23 = vld [vmem:[%s1 + $0x18] sm:$0xff]
  %v24 = vld [vmem:[%s1 + $0x20] sm:$0xff]
  %v25 = vld [vmem:[%s1 + $0x28] sm:$0xff]
  %v26 = vld [vmem:[%s1 + $0x30] sm:$0xff]
  %v27 = vld [vmem:[%s1 + $0x38] sm:$0xff]
  %v28 = vld [vmem:[%s2] sm:$0x1]
  %v30 = vlaneseq
  %v31 = vshrl.u32 %v30, 7
  %v32 = vsub.s32 0, %v31
  %v33 = vrot.slane %v28, %v32
  %vm35 = vcmask 523264
  %v37 = vsel %vm35, %v16, 0
  %v40 = vsel %vm35, %v17, 0
  %v43 = vsel %vm35, %v18, 0
  %v46 = vsel %vm35, %v19, 0
  %48 = vmatprep.subr.mxu0 0.0
  %49 = vmatpush1.msra.mxu0 0.0
  %50 = vmatprep.subr.mxu0 0.0
  %51 = vmatpush1.msra.mxu0 0.0
  %52 = vmatprep.subr.mxu0 0.0
  %53 = vmatpush1.msra.mxu0 0.0
  %54 = vmatprep.subr.mxu0 0.0
  %55 = vmatpush1.msra.mxu0 0.0
  %56 = vmatprep.subr.mxu0 0.0
  %57 = vmatpush1.msra.mxu0 0.0
  %58 = vmatprep.subr.mxu0 0.0
  %59 = vmatpush1.msra.mxu0 0.0
  %60 = vmatprep.subr.mxu0 0.0
  %61 = vmatpush1.msra.mxu0 0.0
  %62 = vmatprep.subr.mxu0 0.0
  %63 = vmatpush1.msra.mxu0 0.0
  %64 = vmatprep.subr.mxu0 0.0
  %65 = vmatpush1.msra.mxu0 %v27
  %66 = vmatprep.subr.mxu0 0.0
  %67 = vmatpush1.msra.mxu0 %v26
  %68 = vmatprep.subr.mxu0 0.0
  %69 = vmatpush1.msra.mxu0 %v25
  %70 = vmatprep.subr.mxu0 0.0
  %71 = vmatpush1.msra.mxu0 %v24
  %72 = vmatprep.subr.mxu0 0.0
  %73 = vmatpush1.msra.mxu0 %v23
  %74 = vmatprep.subr.mxu0 0.0
  %75 = vmatpush1.msra.mxu0 %v22
  %76 = vmatprep.subr.mxu0 0.0
  %77 = vmatpush1.msra.mxu0 %v21
  %78 = vmatprep.subr.mxu0 0.0
  %79 = vmatpush1.msra.mxu0 %v20
  %80 = vmatprep.subr.mxu0 0.0
  %81 = vmatpush2.msra.mxu0 0.0
  %82 = vmatprep.subr.mxu0 0.0
  %83 = vmatpush2.msra.mxu0 0.0
  %84 = vmatprep.subr.mxu0 0.0
  %85 = vmatpush2.msra.mxu0 0.0
  %86 = vmatprep.subr.mxu0 0.0
  %87 = vmatpush2.msra.mxu0 0.0
  %88 = vmatprep.subr.mxu0 0.0
  %89 = vmatpush2.msra.mxu0 0.0
  %90 = vmatprep.subr.mxu0 0.0
  %91 = vmatpush2.msra.mxu0 0.0
  %92 = vmatprep.subr.mxu0 0.0
  %93 = vmatpush2.msra.mxu0 0.0
  %94 = vmatprep.subr.mxu0 0.0
  %95 = vmatpush2.msra.mxu0 0.0
  %96 = vmatprep.subr.mxu0 0.0
  %97 = vmatpush2.msra.mxu0 0.0
  %98 = vmatprep.subr.mxu0 0.0
  %99 = vmatpush2.msra.mxu0 0.0
  %100 = vmatprep.subr.mxu0 0.0
  %101 = vmatpush2.msra.mxu0 0.0
  %102 = vmatprep.subr.mxu0 0.0
  %103 = vmatpush2.msra.mxu0 0.0
  %104 = vmatprep.subr.mxu0 0.0
  %105 = vmatpush2.msra.mxu0 0.0
  %106 = vmatprep.subr.mxu0 0.0
  %107 = vmatpush2.msra.mxu0 0.0
  %108 = vmatprep.subr.mxu0 0.0
  %109 = vmatpush2.msra.mxu0 0.0
  %110 = vmatprep.subr.mxu0 0.0
  %111 = vmatpush2.msra.mxu0 0.0
  %112 = vmatprep.mubr.f32.mxu0 0.0
  %113 = vmatmul.mubr.f32.gmra.mxu0 %v37
  %v114 = vpop.f32.mrf.mxu0
  %v115 = vadd.f32 %v33, %v114
  %v116 = vpop.f32.mrf.mxu0
  %117 = vmatprep.mubr.f32.mxu0 0.0
  %118 = vmatmul.mubr.f32.gmra.mxu0 %v40
  %v119 = vpop.f32.mrf.mxu0
  %v120 = vadd.f32 %v33, %v119
  %v121 = vpop.f32.mrf.mxu0
  %122 = vmatprep.mubr.f32.mxu0 0.0
  %123 = vmatmul.mubr.f32.gmra.mxu0 %v43
  %v124 = vpop.f32.mrf.mxu0
  %v125 = vadd.f32 %v33, %v124
  %v126 = vpop.f32.mrf.mxu0
  %127 = vmatprep.mubr.f32.mxu0 0.0
  %128 = vmatmul.mubr.f32.gmra.mxu0 %v46
  %v129 = vpop.f32.mrf.mxu0
  %v130 = vadd.f32 %v33, %v129
  %v131 = vpop.f32.mrf.mxu0
  %132 = vdwg.mxu0
  %133 = vst.msk [vmem:[%s3] sm:$0xff] %vm35, %v115
  %134 = vst.msk [vmem:[%s3 + $0x8] sm:$0xff] %vm35, %v120
  %135 = vst.msk [vmem:[%s3 + $0x10] sm:$0xff] %vm35, %v125
  %136 = vst.msk [vmem:[%s3 + $0x18] sm:$0xff] %vm35, %v130
  %141 = vrot.lane.b32.xlu0 %v115, 64
  %v142 = vpop.permute.xlu0 %141
  %143 = vrot.lane.b32.xlu0 %v120, 64
  %v144 = vpop.permute.xlu0 %143
  %145 = vrot.lane.b32.xlu0 %v125, 64
  %v146 = vpop.permute.xlu0 %145
  %147 = vrot.lane.b32.xlu0 %v130, 64
  %v148 = vpop.permute.xlu0 %147
  %153 = vst.msk [vmem:[%s4] sm:$0xff] %vm35, %v142
  %154 = vst.msk [vmem:[%s4 + $0x8] sm:$0xff] %vm35, %v144
  %155 = vst.msk [vmem:[%s4 + $0x10] sm:$0xff] %vm35, %v146
  %156 = vst.msk [vmem:[%s4 + $0x18] sm:$0xff] %vm35, %v148
  // Predicated region
  $region14: #{gat_forward.8} parent=0 // pred_check
    _
  $region15: #{gat_forward.8} parent=0 // pred_check_branch
    %158 = sbr.rel (0) target = $region17
  $region16: #{gat_forward.8} parent=0 // pred_region
    _
  $region17: #{gat_forward.8} parent=0 // pred_fallthru
    _
  // Predicated region
  $region18: #{gat_forward.8} parent=0 // pred_check
    _
  $region19: #{gat_forward.8} parent=0 // pred_check_branch
    %160 = sbr.rel (0) target = $region21
  $region20: #{gat_forward.8} parent=0 // pred_region
    _
  $region21: #{gat_forward.8} parent=0 // pred_fallthru
    _
  // Predicated region
  $region22: #{gat_forward.8} parent=0 // pred_check
    _
  $region23: #{gat_forward.8} parent=0 // pred_check_branch
    %162 = sbr.rel (0) target = $region25
  $region24: #{gat_forward.8} parent=0 // pred_region
    _
  $region25: #{gat_forward.8} parent=0 // pred_fallthru
    _
  // Predicated region
  $region26: #{gat_forward.8} parent=0 // pred_check
    _
  $region27: #{gat_forward.8} parent=0 // pred_check_branch
    %164 = sbr.rel (0) target = $region29
  $region28: #{gat_forward.8} parent=0 // pred_region
    _
  $region29: #{gat_forward.8} parent=0 // pred_fallthru
    _

// kernel: gat_forward.10
$region0: #{gat_forward.10}
  #allocation0 [shape = 'u32[]', space=smem, size = 0x4, offset = 0x4, fixed_abs, tag = 'smem constant byte address 0x4 - core index']
  #allocation1 [shape = 'u32[144,128]{1,0:T(1,128)}', space=vmem, size = 0x12000, scoped, tag = 'internal scratch']
  %s0 = inlined_call_operand.vmem [shape: f32[32,64], index: 0, kind: input, shape index: {}]
  %s1 = inlined_call_operand.vmem [shape: f32[64,4], index: 1, kind: input, shape index: {}]
  %s2 = inlined_call_operand.vmem [shape: f32[1,4], index: 2, kind: input, shape index: {}]
  %s3 = inlined_call_operand.vmem [shape: f32[32,2], index: 3, kind: output, shape index: {0}]
  %s4 = inlined_call_operand.vmem [shape: f32[32,2], index: 4, kind: output, shape index: {1}]
  %5 = xla_tuple %s3, %s4
  %s6 = sld [smem:[#allocation0]]
  $region30: #{gat_forward.10} parent=0
    _
  %s8 = ssub.s32 1, %s6
  %s9 = scalar_select 0, %s8, %s6
  // Predicated region
  $region2: #{gat_forward.10} parent=0 // pred_check
    _
  $region3: #{gat_forward.10} parent=0 // pred_check_branch
    %11 = sbr.rel (0) target = $region5
  $region4: #{gat_forward.10} parent=0 // pred_region
    _
  $region5: #{gat_forward.10} parent=0 // pred_fallthru
    _
  // Predicated region
  $region6: #{gat_forward.10} parent=0 // pred_check
    _
  $region7: #{gat_forward.10} parent=0 // pred_check_branch
    %13 = sbr.rel (0) target = $region9
  $region8: #{gat_forward.10} parent=0 // pred_region
    _
  $region9: #{gat_forward.10} parent=0 // pred_fallthru
    _
  // Predicated region
  $region10: #{gat_forward.10} parent=0 // pred_check
    _
  $region11: #{gat_forward.10} parent=0 // pred_check_branch
    %15 = sbr.rel (0) target = $region13
  $region12: #{gat_forward.10} parent=0 // pred_region
    _
  $region13: #{gat_forward.10} parent=0 // pred_fallthru
    _
  %v16 = vld [vmem:[%s0] sm:$0xff]
  %v17 = vld [vmem:[%s0 + $0x8] sm:$0xff]
  %v18 = vld [vmem:[%s0 + $0x10] sm:$0xff]
  %v19 = vld [vmem:[%s0 + $0x18] sm:$0xff]
  %v20 = vld [vmem:[%s1] sm:$0xff]
  %v21 = vld [vmem:[%s1 + $0x8] sm:$0xff]
  %v22 = vld [vmem:[%s1 + $0x10] sm:$0xff]
  %v23 = vld [vmem:[%s1 + $0x18] sm:$0xff]
  %v24 = vld [vmem:[%s1 + $0x20] sm:$0xff]
  %v25 = vld [vmem:[%s1 + $0x28] sm:$0xff]
  %v26 = vld [vmem:[%s1 + $0x30] sm:$0xff]
  %v27 = vld [vmem:[%s1 + $0x38] sm:$0xff]
  %v28 = vld [vmem:[%s2] sm:$0x1]
  %v30 = vlaneseq
  %v31 = vshrl.u32 %v30, 7
  %v32 = vsub.s32 0, %v31
  %v33 = vrot.slane %v28, %v32
  %vm35 = vcmask 523264
  %v37 = vsel %vm35, %v16, 0
  %v40 = vsel %vm35, %v17, 0
  %v43 = vsel %vm35, %v18, 0
  %v46 = vsel %vm35, %v19, 0
  %48 = vmatprep.subr.mxu0 0.0
  %49 = vmatpush1.msra.mxu0 0.0
  %50 = vmatprep.subr.mxu0 0.0
  %51 = vmatpush1.msra.mxu0 0.0
  %52 = vmatprep.subr.mxu0 0.0
  %53 = vmatpush1.msra.mxu0 0.0
  %54 = vmatprep.subr.mxu0 0.0
  %55 = vmatpush1.msra.mxu0 0.0
  %56 = vmatprep.subr.mxu0 0.0
  %57 = vmatpush1.msra.mxu0 0.0
  %58 = vmatprep.subr.mxu0 0.0
  %59 = vmatpush1.msra.mxu0 0.0
  %60 = vmatprep.subr.mxu0 0.0
  %61 = vmatpush1.msra.mxu0 0.0
  %62 = vmatprep.subr.mxu0 0.0
  %63 = vmatpush1.msra.mxu0 0.0
  %64 = vmatprep.subr.mxu0 0.0
  %65 = vmatpush1.msra.mxu0 %v27
  %66 = vmatprep.subr.mxu0 0.0
  %67 = vmatpush1.msra.mxu0 %v26
  %68 = vmatprep.subr.mxu0 0.0
  %69 = vmatpush1.msra.mxu0 %v25
  %70 = vmatprep.subr.mxu0 0.0
  %71 = vmatpush1.msra.mxu0 %v24
  %72 = vmatprep.subr.mxu0 0.0
  %73 = vmatpush1.msra.mxu0 %v23
  %74 = vmatprep.subr.mxu0 0.0
  %75 = vmatpush1.msra.mxu0 %v22
  %76 = vmatprep.subr.mxu0 0.0
  %77 = vmatpush1.msra.mxu0 %v21
  %78 = vmatprep.subr.mxu0 0.0
  %79 = vmatpush1.msra.mxu0 %v20
  %80 = vmatprep.subr.mxu0 0.0
  %81 = vmatpush2.msra.mxu0 0.0
  %82 = vmatprep.subr.mxu0 0.0
  %83 = vmatpush2.msra.mxu0 0.0
  %84 = vmatprep.subr.mxu0 0.0
  %85 = vmatpush2.msra.mxu0 0.0
  %86 = vmatprep.subr.mxu0 0.0
  %87 = vmatpush2.msra.mxu0 0.0
  %88 = vmatprep.subr.mxu0 0.0
  %89 = vmatpush2.msra.mxu0 0.0
  %90 = vmatprep.subr.mxu0 0.0
  %91 = vmatpush2.msra.mxu0 0.0
  %92 = vmatprep.subr.mxu0 0.0
  %93 = vmatpush2.msra.mxu0 0.0
  %94 = vmatprep.subr.mxu0 0.0
  %95 = vmatpush2.msra.mxu0 0.0
  %96 = vmatprep.subr.mxu0 0.0
  %97 = vmatpush2.msra.mxu0 0.0
  %98 = vmatprep.subr.mxu0 0.0
  %99 = vmatpush2.msra.mxu0 0.0
  %100 = vmatprep.subr.mxu0 0.0
  %101 = vmatpush2.msra.mxu0 0.0
  %102 = vmatprep.subr.mxu0 0.0
  %103 = vmatpush2.msra.mxu0 0.0
  %104 = vmatprep.subr.mxu0 0.0
  %105 = vmatpush2.msra.mxu0 0.0
  %106 = vmatprep.subr.mxu0 0.0
  %107 = vmatpush2.msra.mxu0 0.0
  %108 = vmatprep.subr.mxu0 0.0
  %109 = vmatpush2.msra.mxu0 0.0
  %110 = vmatprep.subr.mxu0 0.0
  %111 = vmatpush2.msra.mxu0 0.0
  %112 = vmatprep.mubr.f32.mxu0 0.0
  %113 = vmatmul.mubr.f32.gmra.mxu0 %v37
  %v114 = vpop.f32.mrf.mxu0
  %v115 = vadd.f32 %v33, %v114
  %v116 = vpop.f32.mrf.mxu0
  %117 = vmatprep.mubr.f32.mxu0 0.0
  %118 = vmatmul.mubr.f32.gmra.mxu0 %v40
  %v119 = vpop.f32.mrf.mxu0
  %v120 = vadd.f32 %v33, %v119
  %v121 = vpop.f32.mrf.mxu0
  %122 = vmatprep.mubr.f32.mxu0 0.0
  %123 = vmatmul.mubr.f32.gmra.mxu0 %v43
  %v124 = vpop.f32.mrf.mxu0
  %v125 = vadd.f32 %v33, %v124
  %v126 = vpop.f32.mrf.mxu0
  %127 = vmatprep.mubr.f32.mxu0 0.0
  %128 = vmatmul.mubr.f32.gmra.mxu0 %v46
  %v129 = vpop.f32.mrf.mxu0
  %v130 = vadd.f32 %v33, %v129
  %v131 = vpop.f32.mrf.mxu0
  %132 = vdwg.mxu0
  %vm133 = vcmask 15360
  %134 = vst.msk [vmem:[%s3] sm:$0xff] %vm133, %v115
  %135 = vst.msk [vmem:[%s3 + $0x8] sm:$0xff] %vm133, %v120
  %136 = vst.msk [vmem:[%s3 + $0x10] sm:$0xff] %vm133, %v125
  %137 = vst.msk [vmem:[%s3 + $0x18] sm:$0xff] %vm133, %v130
  %142 = vrot.lane.b32.xlu0 %v115, 126
  %v143 = vpop.permute.xlu0 %142
  %144 = vrot.lane.b32.xlu0 %v120, 126
  %v145 = vpop.permute.xlu0 %144
  %146 = vrot.lane.b32.xlu0 %v125, 126
  %v147 = vpop.permute.xlu0 %146
  %148 = vrot.lane.b32.xlu0 %v130, 126
  %v149 = vpop.permute.xlu0 %148
  %154 = vst.msk [vmem:[%s4] sm:$0xff] %vm133, %v143
  %155 = vst.msk [vmem:[%s4 + $0x8] sm:$0xff] %vm133, %v145
  %156 = vst.msk [vmem:[%s4 + $0x10] sm:$0xff] %vm133, %v147
  %157 = vst.msk [vmem:[%s4 + $0x18] sm:$0xff] %vm133, %v149
  // Predicated region
  $region14: #{gat_forward.10} parent=0 // pred_check
    _
  $region15: #{gat_forward.10} parent=0 // pred_check_branch
    %159 = sbr.rel (0) target = $region17
  $region16: #{gat_forward.10} parent=0 // pred_region
    _
  $region17: #{gat_forward.10} parent=0 // pred_fallthru
    _
  // Predicated region
  $region18: #{gat_forward.10} parent=0 // pred_check
    _
  $region19: #{gat_forward.10} parent=0 // pred_check_branch
    %161 = sbr.rel (0) target = $region21
  $region20: #{gat_forward.10} parent=0 // pred_region
    _
  $region21: #{gat_forward.10} parent=0 // pred_fallthru
    _
  // Predicated region
  $region22: #{gat_forward.10} parent=0 // pred_check
    _
  $region23: #{gat_forward.10} parent=0 // pred_check_branch
    %163 = sbr.rel (0) target = $region25
  $region24: #{gat_forward.10} parent=0 // pred_region
    _
  $region25: #{gat_forward.10} parent=0 // pred_fallthru
    _
  // Predicated region
  $region26: #{gat_forward.10} parent=0 // pred_check
    _
  $region27: #{gat_forward.10} parent=0 // pred_check_branch
    %165 = sbr.rel (0) target = $region29
  $region28: #{gat_forward.10} parent=0 // pred_region
    _
  $region29: #{gat_forward.10} parent=0 // pred_fallthru
    _

// kernel: gat_forward.11
$region0: #{gat_forward.11}
  #allocation0 [shape = 'u32[]', space=smem, size = 0x4, offset = 0x4, fixed_abs, tag = 'smem constant byte address 0x4 - core index']
  #allocation1 [shape = 'u32[144,128]{1,0:T(1,128)}', space=vmem, size = 0x12000, scoped, tag = 'internal scratch']
  %s0 = inlined_call_operand.vmem [shape: f32[32,2], index: 0, kind: input, shape index: {}]
  %s1 = inlined_call_operand.vmem [shape: f32[32,2], index: 1, kind: input, shape index: {}]
  %s2 = inlined_call_operand.vmem [shape: f32[32,32], index: 2, kind: input, shape index: {}]
  %s3 = inlined_call_operand.vmem [shape: f32[2,2], index: 3, kind: input, shape index: {}]
  %s4 = inlined_call_operand.vmem [shape: f32[32,2], index: 4, kind: output, shape index: {}]
  %s5 = sld [smem:[#allocation0]]
  $region26: #{gat_forward.11} parent=0
    _
  %s7 = ssub.s32 1, %s5
  %s8 = scalar_select 0, %s7, %s5
  // Predicated region
  $region2: #{gat_forward.11} parent=0 // pred_check
    _
  $region3: #{gat_forward.11} parent=0 // pred_check_branch
    %10 = sbr.rel (0) target = $region5
  $region4: #{gat_forward.11} parent=0 // pred_region
    _
  $region5: #{gat_forward.11} parent=0 // pred_fallthru
    _
  // Predicated region
  $region6: #{gat_forward.11} parent=0 // pred_check
    _
  $region7: #{gat_forward.11} parent=0 // pred_check_branch
    %12 = sbr.rel (0) target = $region9
  $region8: #{gat_forward.11} parent=0 // pred_region
    _
  $region9: #{gat_forward.11} parent=0 // pred_fallthru
    _
  // Predicated region
  $region10: #{gat_forward.11} parent=0 // pred_check
    _
  $region11: #{gat_forward.11} parent=0 // pred_check_branch
    %14 = sbr.rel (0) target = $region13
  $region12: #{gat_forward.11} parent=0 // pred_region
    _
  $region13: #{gat_forward.11} parent=0 // pred_fallthru
    _
  // Predicated region
  $region14: #{gat_forward.11} parent=0 // pred_check
    _
  $region15: #{gat_forward.11} parent=0 // pred_check_branch
    %16 = sbr.rel (0) target = $region17
  $region16: #{gat_forward.11} parent=0 // pred_region
    _
  $region17: #{gat_forward.11} parent=0 // pred_fallthru
    _
  %v17 = vld [vmem:[%s1] sm:$0xff]
  %v18 = vld [vmem:[%s1 + $0x8] sm:$0xff]
  %v19 = vld [vmem:[%s1 + $0x10] sm:$0xff]
  %v20 = vld [vmem:[%s1 + $0x18] sm:$0xff]
  %v21 = vld [vmem:[%s0] sm:$0xff]
  %v22 = vld [vmem:[%s0 + $0x8] sm:$0xff]
  %v23 = vld [vmem:[%s0 + $0x10] sm:$0xff]
  %v24 = vld [vmem:[%s0 + $0x18] sm:$0xff]
  %v25 = vld [vmem:[%s2] sm:$0xff]
  %v26 = vld [vmem:[%s2 + $0x8] sm:$0xff]
  %v27 = vld [vmem:[%s2 + $0x10] sm:$0xff]
  %v28 = vld [vmem:[%s2 + $0x18] sm:$0xff]
  %vm29 = vcmp.gt.f32.partialorder %v25, 0.0
  %vm30 = vcmp.gt.f32.partialorder %v26, 0.0
  %vm31 = vcmp.gt.f32.partialorder %v27, 0.0
  %vm32 = vcmp.gt.f32.partialorder %v28, 0.0
  %v33 = vld [vmem:[%s3] sm:$0x1]
  %v38 = vcombine.high %v21, %v21
  %v40 = vunpack.c.l.s4 1966171168
  %v41 = vunpack.c.0.s8 %v40
  %v42 = vlaneseq
  %v43 = vshrl.u32 %v42, 7
  %v44 = vsub.s32 %v41, %v43
  %v45 = vrot.slane %v21, %v44
  %v47 = vunpack.c.l.s4 1966171168
  %v48 = vunpack.c.0.s8 %v47
  %v49 = vlaneseq
  %v50 = vshrl.u32 %v49, 7
  %v51 = vsub.s32 %v48, %v50
  %v52 = vrot.slane %v38, %v51
  %v53 = vcombine.high %v45, %v45
  %v54 = vcombine.high %v52, %v52
  %v56 = vunpack.c.l.s4 1966171168
  %v57 = vunpack.c.0.s8 %v56
  %v58 = vlaneseq
  %v59 = vshrl.u32 %v58, 7
  %v60 = vsub.s32 %v57, %v59
  %v61 = vrot.slane %v45, %v60
  %v63 = vunpack.c.l.s4 1966171168
  %v64 = vunpack.c.0.s8 %v63
  %v65 = vlaneseq
  %v66 = vshrl.u32 %v65, 7
  %v67 = vsub.s32 %v64, %v66
  %v68 = vrot.slane %v52, %v67
  %v70 = vunpack.c.l.s4 1966171168
  %v71 = vunpack.c.0.s8 %v70
  %v72 = vlaneseq
  %v73 = vshrl.u32 %v72, 7
  %v74 = vsub.s32 %v71, %v73
  %v75 = vrot.slane %v53, %v74
  %v77 = vunpack.c.l.s4 1966171168
  %v78 = vunpack.c.0.s8 %v77
  %v79 = vlaneseq
  %v80 = vshrl.u32 %v79, 7
  %v81 = vsub.s32 %v78, %v80
  %v82 = vrot.slane %v54, %v81
  %v83 = vcombine.high %v61, %v61
  %v84 = vcombine.high %v68, %v68
  %v85 = vcombine.high %v75, %v75
  %v86 = vcombine.high %v82, %v82
  %v87 = vcombine.high %v22, %v22
  %v89 = vunpack.c.l.s4 1966171168
  %v90 = vunpack.c.0.s8 %v89
  %v91 = vlaneseq
  %v92 = vshrl.u32 %v91, 7
  %v93 = vsub.s32 %v90, %v92
  %v94 = vrot.slane %v22, %v93
  %v96 = vunpack.c.l.s4 1966171168
  %v97 = vunpack.c.0.s8 %v96
  %v98 = vlaneseq
  %v99 = vshrl.u32 %v98, 7
  %v100 = vsub.s32 %v97, %v99
  %v101 = vrot.slane %v87, %v100
  %v102 = vcombine.high %v94, %v94
  %v103 = vcombine.high %v101, %v101
  %v105 = vunpack.c.l.s4 1966171168
  %v106 = vunpack.c.0.s8 %v105
  %v107 = vlaneseq
  %v108 = vshrl.u32 %v107, 7
  %v109 = vsub.s32 %v106, %v108
  %v110 = vrot.slane %v94, %v109
  %v112 = vunpack.c.l.s4 1966171168
  %v113 = vunpack.c.0.s8 %v112
  %v114 = vlaneseq
  %v115 = vshrl.u32 %v114, 7
  %v116 = vsub.s32 %v113, %v115
  %v117 = vrot.slane %v101, %v116
  %v119 = vunpack.c.l.s4 1966171168
  %v120 = vunpack.c.0.s8 %v119
  %v121 = vlaneseq
  %v122 = vshrl.u32 %v121, 7
  %v123 = vsub.s32 %v120, %v122
  %v124 = vrot.slane %v102, %v123
  %v126 = vunpack.c.l.s4 1966171168
  %v127 = vunpack.c.0.s8 %v126
  %v128 = vlaneseq
  %v129 = vshrl.u32 %v128, 7
  %v130 = vsub.s32 %v127, %v129
  %v131 = vrot.slane %v103, %v130
  %v132 = vcombine.high %v110, %v110
  %v133 = vcombine.high %v117, %v117
  %v134 = vcombine.high %v124, %v124
  %v135 = vcombine.high %v131, %v131
  %v136 = vcombine.high %v23, %v23
  %v138 = vunpack.c.l.s4 1966171168
  %v139 = vunpack.c.0.s8 %v138
  %v140 = vlaneseq
  %v141 = vshrl.u32 %v140, 7
  %v142 = vsub.s32 %v139, %v141
  %v143 = vrot.slane %v23, %v142
  %v145 = vunpack.c.l.s4 1966171168
  %v146 = vunpack.c.0.s8 %v145
  %v147 = vlaneseq
  %v148 = vshrl.u32 %v147, 7
  %v149 = vsub.s32 %v146, %v148
  %v150 = vrot.slane %v136, %v149
  %v151 = vcombine.high %v143, %v143
  %v152 = vcombine.high %v150, %v150
  %v154 = vunpack.c.l.s4 1966171168
  %v155 = vunpack.c.0.s8 %v154
  %v156 = vlaneseq
  %v157 = vshrl.u32 %v156, 7
  %v158 = vsub.s32 %v155, %v157
  %v159 = vrot.slane %v143, %v158
  %v161 = vunpack.c.l.s4 1966171168
  %v162 = vunpack.c.0.s8 %v161
  %v163 = vlaneseq
  %v164 = vshrl.u32 %v163, 7
  %v165 = vsub.s32 %v162, %v164
  %v166 = vrot.slane %v150, %v165
  %v168 = vunpack.c.l.s4 1966171168
  %v169 = vunpack.c.0.s8 %v168
  %v170 = vlaneseq
  %v171 = vshrl.u32 %v170, 7
  %v172 = vsub.s32 %v169, %v171
  %v173 = vrot.slane %v151, %v172
  %v175 = vunpack.c.l.s4 1966171168
  %v176 = vunpack.c.0.s8 %v175
  %v177 = vlaneseq
  %v178 = vshrl.u32 %v177, 7
  %v179 = vsub.s32 %v176, %v178
  %v180 = vrot.slane %v152, %v179
  %v181 = vcombine.high %v159, %v159
  %v182 = vcombine.high %v166, %v166
  %v183 = vcombine.high %v173, %v173
  %v184 = vcombine.high %v180, %v180
  %v185 = vcombine.high %v24, %v24
  %v187 = vunpack.c.l.s4 1966171168
  %v188 = vunpack.c.0.s8 %v187
  %v189 = vlaneseq
  %v190 = vshrl.u32 %v189, 7
  %v191 = vsub.s32 %v188, %v190
  %v192 = vrot.slane %v24, %v191
  %v194 = vunpack.c.l.s4 1966171168
  %v195 = vunpack.c.0.s8 %v194
  %v196 = vlaneseq
  %v197 = vshrl.u32 %v196, 7
  %v198 = vsub.s32 %v195, %v197
  %v199 = vrot.slane %v185, %v198
  %v200 = vcombine.high %v192, %v192
  %v201 = vcombine.high %v199, %v199
  %v203 = vunpack.c.l.s4 1966171168
  %v204 = vunpack.c.0.s8 %v203
  %v205 = vlaneseq
  %v206 = vshrl.u32 %v205, 7
  %v207 = vsub.s32 %v204, %v206
  %v208 = vrot.slane %v192, %v207
  %v210 = vunpack.c.l.s4 1966171168
  %v211 = vunpack.c.0.s8 %v210
  %v212 = vlaneseq
  %v213 = vshrl.u32 %v212, 7
  %v214 = vsub.s32 %v211, %v213
  %v215 = vrot.slane %v199, %v214
  %v217 = vunpack.c.l.s4 1966171168
  %v218 = vunpack.c.0.s8 %v217
  %v219 = vlaneseq
  %v220 = vshrl.u32 %v219, 7
  %v221 = vsub.s32 %v218, %v220
  %v222 = vrot.slane %v200, %v221
  %v224 = vunpack.c.l.s4 1966171168
  %v225 = vunpack.c.0.s8 %v224
  %v226 = vlaneseq
  %v227 = vshrl.u32 %v226, 7
  %v228 = vsub.s32 %v225, %v227
  %v229 = vrot.slane %v201, %v228
  %v230 = vcombine.high %v208, %v208
  %v231 = vcombine.high %v215, %v215
  %v232 = vcombine.high %v222, %v222
  %v233 = vcombine.high %v229, %v229
  %v234 = vlaneseq
  %v235 = vshrl.u32 %v234, 7
  %v236 = vsub.s32 0, %v235
  %v237 = vrot.slane %v61, %v236
  %v238 = vlaneseq
  %v239 = vshrl.u32 %v238, 7
  %v240 = vsub.s32 0, %v239
  %v241 = vrot.slane %v75, %v240
  %v242 = vlaneseq
  %v243 = vshrl.u32 %v242, 7
  %v244 = vsub.s32 0, %v243
  %v245 = vrot.slane %v83, %v244
  %v246 = vlaneseq
  %v247 = vshrl.u32 %v246, 7
  %v248 = vsub.s32 0, %v247
  %v249 = vrot.slane %v85, %v248
  %v250 = vlaneseq
  %v251 = vshrl.u32 %v250, 7
  %v252 = vsub.s32 0, %v251
  %v253 = vrot.slane %v68, %v252
  %v254 = vlaneseq
  %v255 = vshrl.u32 %v254, 7
  %v256 = vsub.s32 0, %v255
  %v257 = vrot.slane %v82, %v256
  %v258 = vlaneseq
  %v259 = vshrl.u32 %v258, 7
  %v260 = vsub.s32 0, %v259
  %v261 = vrot.slane %v84, %v260
  %v262 = vlaneseq
  %v263 = vshrl.u32 %v262, 7
  %v264 = vsub.s32 0, %v263
  %v265 = vrot.slane %v86, %v264
  %v266 = vlaneseq
  %v267 = vshrl.u32 %v266, 7
  %v268 = vsub.s32 0, %v267
  %v269 = vrot.slane %v110, %v268
  %v270 = vlaneseq
  %v271 = vshrl.u32 %v270, 7
  %v272 = vsub.s32 0, %v271
  %v273 = vrot.slane %v124, %v272
  %v274 = vlaneseq
  %v275 = vshrl.u32 %v274, 7
  %v276 = vsub.s32 0, %v275
  %v277 = vrot.slane %v132, %v276
  %v278 = vlaneseq
  %v279 = vshrl.u32 %v278, 7
  %v280 = vsub.s32 0, %v279
  %v281 = vrot.slane %v134, %v280
  %v282 = vlaneseq
  %v283 = vshrl.u32 %v282, 7
  %v284 = vsub.s32 0, %v283
  %v285 = vrot.slane %v117, %v284
  %v286 = vlaneseq
  %v287 = vshrl.u32 %v286, 7
  %v288 = vsub.s32 0, %v287
  %v289 = vrot.slane %v131, %v288
  %v290 = vlaneseq
  %v291 = vshrl.u32 %v290, 7
  %v292 = vsub.s32 0, %v291
  %v293 = vrot.slane %v133, %v292
  %v294 = vlaneseq
  %v295 = vshrl.u32 %v294, 7
  %v296 = vsub.s32 0, %v295
  %v297 = vrot.slane %v135, %v296
  %v298 = vlaneseq
  %v299 = vshrl.u32 %v298, 7
  %v300 = vsub.s32 0, %v299
  %v301 = vrot.slane %v159, %v300
  %v302 = vlaneseq
  %v303 = vshrl.u32 %v302, 7
  %v304 = vsub.s32 0, %v303
  %v305 = vrot.slane %v173, %v304
  %v306 = vlaneseq
  %v307 = vshrl.u32 %v306, 7
  %v308 = vsub.s32 0, %v307
  %v309 = vrot.slane %v181, %v308
  %v310 = vlaneseq
  %v311 = vshrl.u32 %v310, 7
  %v312 = vsub.s32 0, %v311
  %v313 = vrot.slane %v183, %v312
  %v314 = vlaneseq
  %v315 = vshrl.u32 %v314, 7
  %v316 = vsub.s32 0, %v315
  %v317 = vrot.slane %v166, %v316
  %v318 = vlaneseq
  %v319 = vshrl.u32 %v318, 7
  %v320 = vsub.s32 0, %v319
  %v321 = vrot.slane %v180, %v320
  %v322 = vlaneseq
  %v323 = vshrl.u32 %v322, 7
  %v324 = vsub.s32 0, %v323
  %v325 = vrot.slane %v182, %v324
  %v326 = vlaneseq
  %v327 = vshrl.u32 %v326, 7
  %v328 = vsub.s32 0, %v327
  %v329 = vrot.slane %v184, %v328
  %v330 = vlaneseq
  %v331 = vshrl.u32 %v330, 7
  %v332 = vsub.s32 0, %v331
  %v333 = vrot.slane %v208, %v332
  %v334 = vlaneseq
  %v335 = vshrl.u32 %v334, 7
  %v336 = vsub.s32 0, %v335
  %v337 = vrot.slane %v222, %v336
  %v338 = vlaneseq
  %v339 = vshrl.u32 %v338, 7
  %v340 = vsub.s32 0, %v339
  %v341 = vrot.slane %v230, %v340
  %v342 = vlaneseq
  %v343 = vshrl.u32 %v342, 7
  %v344 = vsub.s32 0, %v343
  %v345 = vrot.slane %v232, %v344
  %v346 = vlaneseq
  %v347 = vshrl.u32 %v346, 7
  %v348 = vsub.s32 0, %v347
  %v349 = vrot.slane %v215, %v348
  %v350 = vlaneseq
  %v351 = vshrl.u32 %v350, 7
  %v352 = vsub.s32 0, %v351
  %v353 = vrot.slane %v229, %v352
  %v354 = vlaneseq
  %v355 = vshrl.u32 %v354, 7
  %v356 = vsub.s32 0, %v355
  %v357 = vrot.slane %v231, %v356
  %v358 = vlaneseq
  %v359 = vshrl.u32 %v358, 7
  %v360 = vsub.s32 0, %v359
  %v361 = vrot.slane %v233, %v360
  %v394 = vadd.f32 %v237, %v17
  %v395 = vadd.f32 %v237, %v18
  %v396 = vadd.f32 %v237, %v19
  %v397 = vadd.f32 %v237, %v20
  %v398 = vadd.f32 %v241, %v17
  %v399 = vadd.f32 %v241, %v18
  %v400 = vadd.f32 %v241, %v19
  %v401 = vadd.f32 %v241, %v20
  %v402 = vadd.f32 %v245, %v17
  %v403 = vadd.f32 %v245, %v18
  %v404 = vadd.f32 %v245, %v19
  %v405 = vadd.f32 %v245, %v20
  %v406 = vadd.f32 %v249, %v17
  %v407 = vadd.f32 %v249, %v18
  %v408 = vadd.f32 %v249, %v19
  %v409 = vadd.f32 %v249, %v20
  %v410 = vadd.f32 %v253, %v17
  %v411 = vadd.f32 %v253, %v18
  %v412 = vadd.f32 %v253, %v19
  %v413 = vadd.f32 %v253, %v20
  %v414 = vadd.f32 %v257, %v17
  %v415 = vadd.f32 %v257, %v18
  %v416 = vadd.f32 %v257, %v19
  %v417 = vadd.f32 %v257, %v20
  %v418 = vadd.f32 %v261, %v17
  %v419 = vadd.f32 %v261, %v18
  %v420 = vadd.f32 %v261, %v19
  %v421 = vadd.f32 %v261, %v20
  %v422 = vadd.f32 %v265, %v17
  %v423 = vadd.f32 %v265, %v18
  %v424 = vadd.f32 %v265, %v19
  %v425 = vadd.f32 %v265, %v20
  %v426 = vadd.f32 %v269, %v17
  %v427 = vadd.f32 %v269, %v18
  %v428 = vadd.f32 %v269, %v19
  %v429 = vadd.f32 %v269, %v20
  %v430 = vadd.f32 %v273, %v17
  %v431 = vadd.f32 %v273, %v18
  %v432 = vadd.f32 %v273, %v19
  %v433 = vadd.f32 %v273, %v20
  %v434 = vadd.f32 %v277, %v17
  %v435 = vadd.f32 %v277, %v18
  %v436 = vadd.f32 %v277, %v19
  %v437 = vadd.f32 %v277, %v20
  %v438 = vadd.f32 %v281, %v17
  %v439 = vadd.f32 %v281, %v18
  %v440 = vadd.f32 %v281, %v19
  %v441 = vadd.f32 %v281, %v20
  %v442 = vadd.f32 %v285, %v17
  %v443 = vadd.f32 %v285, %v18
  %v444 = vadd.f32 %v285, %v19
  %v445 = vadd.f32 %v285, %v20
  %v446 = vadd.f32 %v289, %v17
  %v447 = vadd.f32 %v289, %v18
  %v448 = vadd.f32 %v289, %v19
  %v449 = vadd.f32 %v289, %v20
  %v450 = vadd.f32 %v293, %v17
  %v451 = vadd.f32 %v293, %v18
  %v452 = vadd.f32 %v293, %v19
  %v453 = vadd.f32 %v293, %v20
  %v454 = vadd.f32 %v297, %v17
  %v455 = vadd.f32 %v297, %v18
  %v456 = vadd.f32 %v297, %v19
  %v457 = vadd.f32 %v297, %v20
  %v458 = vadd.f32 %v301, %v17
  %v459 = vadd.f32 %v301, %v18
  %v460 = vadd.f32 %v301, %v19
  %v461 = vadd.f32 %v301, %v20
  %v462 = vadd.f32 %v305, %v17
  %v463 = vadd.f32 %v305, %v18
  %v464 = vadd.f32 %v305, %v19
  %v465 = vadd.f32 %v305, %v20
  %v466 = vadd.f32 %v309, %v17
  %v467 = vadd.f32 %v309, %v18
  %v468 = vadd.f32 %v309, %v19
  %v469 = vadd.f32 %v309, %v20
  %v470 = vadd.f32 %v313, %v17
  %v471 = vadd.f32 %v313, %v18
  %v472 = vadd.f32 %v313, %v19
  %v473 = vadd.f32 %v313, %v20
  %v474 = vadd.f32 %v317, %v17
  %v475 = vadd.f32 %v317, %v18
  %v476 = vadd.f32 %v317, %v19
  %v477 = vadd.f32 %v317, %v20
  %v478 = vadd.f32 %v321, %v17
  %v479 = vadd.f32 %v321, %v18
  %v480 = vadd.f32 %v321, %v19
  %v481 = vadd.f32 %v321, %v20
  %v482 = vadd.f32 %v325, %v17
  %v483 = vadd.f32 %v325, %v18
  %v484 = vadd.f32 %v325, %v19
  %v485 = vadd.f32 %v325, %v20
  %v486 = vadd.f32 %v329, %v17
  %v487 = vadd.f32 %v329, %v18
  %v488 = vadd.f32 %v329, %v19
  %v489 = vadd.f32 %v329, %v20
  %v490 = vadd.f32 %v333, %v17
  %v491 = vadd.f32 %v333, %v18
  %v492 = vadd.f32 %v333, %v19
  %v493 = vadd.f32 %v333, %v20
  %v494 = vadd.f32 %v337, %v17
  %v495 = vadd.f32 %v337, %v18
  %v496 = vadd.f32 %v337, %v19
  %v497 = vadd.f32 %v337, %v20
  %v498 = vadd.f32 %v341, %v17
  %v499 = vadd.f32 %v341, %v18
  %v500 = vadd.f32 %v341, %v19
  %v501 = vadd.f32 %v341, %v20
  %v502 = vadd.f32 %v345, %v17
  %v503 = vadd.f32 %v345, %v18
  %v504 = vadd.f32 %v345, %v19
  %v505 = vadd.f32 %v345, %v20
  %v506 = vadd.f32 %v349, %v17
  %v507 = vadd.f32 %v349, %v18
  %v508 = vadd.f32 %v349, %v19
  %v509 = vadd.f32 %v349, %v20
  %v510 = vadd.f32 %v353, %v17
  %v511 = vadd.f32 %v353, %v18
  %v512 = vadd.f32 %v353, %v19
  %v513 = vadd.f32 %v353, %v20
  %v514 = vadd.f32 %v357, %v17
  %v515 = vadd.f32 %v357, %v18
  %v516 = vadd.f32 %v357, %v19
  %v517 = vadd.f32 %v357, %v20
  %v518 = vadd.f32 %v361, %v17
  %v519 = vadd.f32 %v361, %v18
  %v520 = vadd.f32 %v361, %v19
  %v521 = vadd.f32 %v361, %v20
  %vm522 = vcmp.gt.f32.partialorder %v394, 0.0
  %vm523 = vcmp.gt.f32.partialorder %v395, 0.0
  %vm524 = vcmp.gt.f32.partialorder %v396, 0.0
  %vm525 = vcmp.gt.f32.partialorder %v397, 0.0
  %vm526 = vcmp.gt.f32.partialorder %v398, 0.0
  %vm527 = vcmp.gt.f32.partialorder %v399, 0.0
  %vm528 = vcmp.gt.f32.partialorder %v400, 0.0
  %vm529 = vcmp.gt.f32.partialorder %v401, 0.0
  %vm530 = vcmp.gt.f32.partialorder %v402, 0.0
  %vm531 = vcmp.gt.f32.partialorder %v403, 0.0
  %vm532 = vcmp.gt.f32.partialorder %v404, 0.0
  %vm533 = vcmp.gt.f32.partialorder %v405, 0.0
  %vm534 = vcmp.gt.f32.partialorder %v406, 0.0
  %vm535 = vcmp.gt.f32.partialorder %v407, 0.0
  %vm536 = vcmp.gt.f32.partialorder %v408, 0.0
  %vm537 = vcmp.gt.f32.partialorder %v409, 0.0
  %vm538 = vcmp.gt.f32.partialorder %v410, 0.0
  %vm539 = vcmp.gt.f32.partialorder %v411, 0.0
  %vm540 = vcmp.gt.f32.partialorder %v412, 0.0
  %vm541 = vcmp.gt.f32.partialorder %v413, 0.0
  %vm542 = vcmp.gt.f32.partialorder %v414, 0.0
  %vm543 = vcmp.gt.f32.partialorder %v415, 0.0
  %vm544 = vcmp.gt.f32.partialorder %v416, 0.0
  %vm545 = vcmp.gt.f32.partialorder %v417, 0.0
  %vm546 = vcmp.gt.f32.partialorder %v418, 0.0
  %vm547 = vcmp.gt.f32.partialorder %v419, 0.0
  %vm548 = vcmp.gt.f32.partialorder %v420, 0.0
  %vm549 = vcmp.gt.f32.partialorder %v421, 0.0
  %vm550 = vcmp.gt.f32.partialorder %v422, 0.0
  %vm551 = vcmp.gt.f32.partialorder %v423, 0.0
  %vm552 = vcmp.gt.f32.partialorder %v424, 0.0
  %vm553 = vcmp.gt.f32.partialorder %v425, 0.0
  %vm554 = vcmp.gt.f32.partialorder %v426, 0.0
  %vm555 = vcmp.gt.f32.partialorder %v427, 0.0
  %vm556 = vcmp.gt.f32.partialorder %v428, 0.0
  %vm557 = vcmp.gt.f32.partialorder %v429, 0.0
  %vm558 = vcmp.gt.f32.partialorder %v430, 0.0
  %vm559 = vcmp.gt.f32.partialorder %v431, 0.0
  %vm560 = vcmp.gt.f32.partialorder %v432, 0.0
  %vm561 = vcmp.gt.f32.partialorder %v433, 0.0
  %vm562 = vcmp.gt.f32.partialorder %v434, 0.0
  %vm563 = vcmp.gt.f32.partialorder %v435, 0.0
  %vm564 = vcmp.gt.f32.partialorder %v436, 0.0
  %vm565 = vcmp.gt.f32.partialorder %v437, 0.0
  %vm566 = vcmp.gt.f32.partialorder %v438, 0.0
  %vm567 = vcmp.gt.f32.partialorder %v439, 0.0
  %vm568 = vcmp.gt.f32.partialorder %v440, 0.0
  %vm569 = vcmp.gt.f32.partialorder %v441, 0.0
  %vm570 = vcmp.gt.f32.partialorder %v442, 0.0
  %vm571 = vcmp.gt.f32.partialorder %v443, 0.0
  %vm572 = vcmp.gt.f32.partialorder %v444, 0.0
  %vm573 = vcmp.gt.f32.partialorder %v445, 0.0
  %vm574 = vcmp.gt.f32.partialorder %v446, 0.0
  %vm575 = vcmp.gt.f32.partialorder %v447, 0.0
  %vm576 = vcmp.gt.f32.partialorder %v448, 0.0
  %vm577 = vcmp.gt.f32.partialorder %v449, 0.0
  %vm578 = vcmp.gt.f32.partialorder %v450, 0.0
  %vm579 = vcmp.gt.f32.partialorder %v451, 0.0
  %vm580 = vcmp.gt.f32.partialorder %v452, 0.0
  %vm581 = vcmp.gt.f32.partialorder %v453, 0.0
  %vm582 = vcmp.gt.f32.partialorder %v454, 0.0
  %vm583 = vcmp.gt.f32.partialorder %v455, 0.0
  %vm584 = vcmp.gt.f32.partialorder %v456, 0.0
  %vm585 = vcmp.gt.f32.partialorder %v457, 0.0
  %vm586 = vcmp.gt.f32.partialorder %v458, 0.0
  %vm587 = vcmp.gt.f32.partialorder %v459, 0.0
  %vm588 = vcmp.gt.f32.partialorder %v460, 0.0
  %vm589 = vcmp.gt.f32.partialorder %v461, 0.0
  %vm590 = vcmp.gt.f32.partialorder %v462, 0.0
  %vm591 = vcmp.gt.f32.partialorder %v463, 0.0
  %vm592 = vcmp.gt.f32.partialorder %v464, 0.0
  %vm593 = vcmp.gt.f32.partialorder %v465, 0.0
  %vm594 = vcmp.gt.f32.partialorder %v466, 0.0
  %vm595 = vcmp.gt.f32.partialorder %v467, 0.0
  %vm596 = vcmp.gt.f32.partialorder %v468, 0.0
  %vm597 = vcmp.gt.f32.partialorder %v469, 0.0
  %vm598 = vcmp.gt.f32.partialorder %v470, 0.0
  %vm599 = vcmp.gt.f32.partialorder %v471, 0.0
  %vm600 = vcmp.gt.f32.partialorder %v472, 0.0
  %vm601 = vcmp.gt.f32.partialorder %v473, 0.0
  %vm602 = vcmp.gt.f32.partialorder %v474, 0.0
  %vm603 = vcmp.gt.f32.partialorder %v475, 0.0
  %vm604 = vcmp.gt.f32.partialorder %v476, 0.0
  %vm605 = vcmp.gt.f32.partialorder %v477, 0.0
  %vm606 = vcmp.gt.f32.partialorder %v478, 0.0
  %vm607 = vcmp.gt.f32.partialorder %v479, 0.0
  %vm608 = vcmp.gt.f32.partialorder %v480, 0.0
  %vm609 = vcmp.gt.f32.partialorder %v481, 0.0
  %vm610 = vcmp.gt.f32.partialorder %v482, 0.0
  %vm611 = vcmp.gt.f32.partialorder %v483, 0.0
  %vm612 = vcmp.gt.f32.partialorder %v484, 0.0
  %vm613 = vcmp.gt.f32.partialorder %v485, 0.0
  %vm614 = vcmp.gt.f32.partialorder %v486, 0.0
  %vm615 = vcmp.gt.f32.partialorder %v487, 0.0
  %vm616 = vcmp.gt.f32.partialorder %v488, 0.0
  %vm617 = vcmp.gt.f32.partialorder %v489, 0.0
  %vm618 = vcmp.gt.f32.partialorder %v490, 0.0
  %vm619 = vcmp.gt.f32.partialorder %v491, 0.0
  %vm620 = vcmp.gt.f32.partialorder %v492, 0.0
  %vm621 = vcmp.gt.f32.partialorder %v493, 0.0
  %vm622 = vcmp.gt.f32.partialorder %v494, 0.0
  %vm623 = vcmp.gt.f32.partialorder %v495, 0.0
  %vm624 = vcmp.gt.f32.partialorder %v496, 0.0
  %vm625 = vcmp.gt.f32.partialorder %v497, 0.0
  %vm626 = vcmp.gt.f32.partialorder %v498, 0.0
  %vm627 = vcmp.gt.f32.partialorder %v499, 0.0
  %vm628 = vcmp.gt.f32.partialorder %v500, 0.0
  %vm629 = vcmp.gt.f32.partialorder %v501, 0.0
  %vm630 = vcmp.gt.f32.partialorder %v502, 0.0
  %vm631 = vcmp.gt.f32.partialorder %v503, 0.0
  %vm632 = vcmp.gt.f32.partialorder %v504, 0.0
  %vm633 = vcmp.gt.f32.partialorder %v505, 0.0
  %vm634 = vcmp.gt.f32.partialorder %v506, 0.0
  %vm635 = vcmp.gt.f32.partialorder %v507, 0.0
  %vm636 = vcmp.gt.f32.partialorder %v508, 0.0
  %vm637 = vcmp.gt.f32.partialorder %v509, 0.0
  %vm638 = vcmp.gt.f32.partialorder %v510, 0.0
  %vm639 = vcmp.gt.f32.partialorder %v511, 0.0
  %vm640 = vcmp.gt.f32.partialorder %v512, 0.0
  %vm641 = vcmp.gt.f32.partialorder %v513, 0.0
  %vm642 = vcmp.gt.f32.partialorder %v514, 0.0
  %vm643 = vcmp.gt.f32.partialorder %v515, 0.0
  %vm644 = vcmp.gt.f32.partialorder %v516, 0.0
  %vm645 = vcmp.gt.f32.partialorder %v517, 0.0
  %vm646 = vcmp.gt.f32.partialorder %v518, 0.0
  %vm647 = vcmp.gt.f32.partialorder %v519, 0.0
  %vm648 = vcmp.gt.f32.partialorder %v520, 0.0
  %vm649 = vcmp.gt.f32.partialorder %v521, 0.0
  %v650 = vmul.f32 %v394, 0.2
  %v651 = vmul.f32 %v395, 0.2
  %v652 = vmul.f32 %v396, 0.2
  %v653 = vmul.f32 %v397, 0.2
  %v654 = vmul.f32 %v398, 0.2
  %v655 = vmul.f32 %v399, 0.2
  %v656 = vmul.f32 %v400, 0.2
  %v657 = vmul.f32 %v401, 0.2
  %v658 = vmul.f32 %v402, 0.2
  %v659 = vmul.f32 %v403, 0.2
  %v660 = vmul.f32 %v404, 0.2
  %v661 = vmul.f32 %v405, 0.2
  %v662 = vmul.f32 %v406, 0.2
  %v663 = vmul.f32 %v407, 0.2
  %v664 = vmul.f32 %v408, 0.2
  %v665 = vmul.f32 %v409, 0.2
  %v666 = vmul.f32 %v410, 0.2
  %v667 = vmul.f32 %v411, 0.2
  %v668 = vmul.f32 %v412, 0.2
  %v669 = vmul.f32 %v413, 0.2
  %v670 = vmul.f32 %v414, 0.2
  %v671 = vmul.f32 %v415, 0.2
  %v672 = vmul.f32 %v416, 0.2
  %v673 = vmul.f32 %v417, 0.2
  %v674 = vmul.f32 %v418, 0.2
  %v675 = vmul.f32 %v419, 0.2
  %v676 = vmul.f32 %v420, 0.2
  %v677 = vmul.f32 %v421, 0.2
  %v678 = vmul.f32 %v422, 0.2
  %v679 = vmul.f32 %v423, 0.2
  %v680 = vmul.f32 %v424, 0.2
  %v681 = vmul.f32 %v425, 0.2
  %v682 = vmul.f32 %v426, 0.2
  %v683 = vmul.f32 %v427, 0.2
  %v684 = vmul.f32 %v428, 0.2
  %v685 = vmul.f32 %v429, 0.2
  %v686 = vmul.f32 %v430, 0.2
  %v687 = vmul.f32 %v431, 0.2
  %v688 = vmul.f32 %v432, 0.2
  %v689 = vmul.f32 %v433, 0.2
  %v690 = vmul.f32 %v434, 0.2
  %v691 = vmul.f32 %v435, 0.2
  %v692 = vmul.f32 %v436, 0.2
  %v693 = vmul.f32 %v437, 0.2
  %v694 = vmul.f32 %v438, 0.2
  %v695 = vmul.f32 %v439, 0.2
  %v696 = vmul.f32 %v440, 0.2
  %v697 = vmul.f32 %v441, 0.2
  %v698 = vmul.f32 %v442, 0.2
  %v699 = vmul.f32 %v443, 0.2
  %v700 = vmul.f32 %v444, 0.2
  %v701 = vmul.f32 %v445, 0.2
  %v702 = vmul.f32 %v446, 0.2
  %v703 = vmul.f32 %v447, 0.2
  %v704 = vmul.f32 %v448, 0.2
  %v705 = vmul.f32 %v449, 0.2
  %v706 = vmul.f32 %v450, 0.2
  %v707 = vmul.f32 %v451, 0.2
  %v708 = vmul.f32 %v452, 0.2
  %v709 = vmul.f32 %v453, 0.2
  %v710 = vmul.f32 %v454, 0.2
  %v711 = vmul.f32 %v455, 0.2
  %v712 = vmul.f32 %v456, 0.2
  %v713 = vmul.f32 %v457, 0.2
  %v714 = vmul.f32 %v458, 0.2
  %v715 = vmul.f32 %v459, 0.2
  %v716 = vmul.f32 %v460, 0.2
  %v717 = vmul.f32 %v461, 0.2
  %v718 = vmul.f32 %v462, 0.2
  %v719 = vmul.f32 %v463, 0.2
  %v720 = vmul.f32 %v464, 0.2
  %v721 = vmul.f32 %v465, 0.2
  %v722 = vmul.f32 %v466, 0.2
  %v723 = vmul.f32 %v467, 0.2
  %v724 = vmul.f32 %v468, 0.2
  %v725 = vmul.f32 %v469, 0.2
  %v726 = vmul.f32 %v470, 0.2
  %v727 = vmul.f32 %v471, 0.2
  %v728 = vmul.f32 %v472, 0.2
  %v729 = vmul.f32 %v473, 0.2
  %v730 = vmul.f32 %v474, 0.2
  %v731 = vmul.f32 %v475, 0.2
  %v732 = vmul.f32 %v476, 0.2
  %v733 = vmul.f32 %v477, 0.2
  %v734 = vmul.f32 %v478, 0.2
  %v735 = vmul.f32 %v479, 0.2
  %v736 = vmul.f32 %v480, 0.2
  %v737 = vmul.f32 %v481, 0.2
  %v738 = vmul.f32 %v482, 0.2
  %v739 = vmul.f32 %v483, 0.2
  %v740 = vmul.f32 %v484, 0.2
  %v741 = vmul.f32 %v485, 0.2
  %v742 = vmul.f32 %v486, 0.2
  %v743 = vmul.f32 %v487, 0.2
  %v744 = vmul.f32 %v488, 0.2
  %v745 = vmul.f32 %v489, 0.2
  %v746 = vmul.f32 %v490, 0.2
  %v747 = vmul.f32 %v491, 0.2
  %v748 = vmul.f32 %v492, 0.2
  %v749 = vmul.f32 %v493, 0.2
  %v750 = vmul.f32 %v494, 0.2
  %v751 = vmul.f32 %v495, 0.2
  %v752 = vmul.f32 %v496, 0.2
  %v753 = vmul.f32 %v497, 0.2
  %v754 = vmul.f32 %v498, 0.2
  %v755 = vmul.f32 %v499, 0.2
  %v756 = vmul.f32 %v500, 0.2
  %v757 = vmul.f32 %v501, 0.2
  %v758 = vmul.f32 %v502, 0.2
  %v759 = vmul.f32 %v503, 0.2
  %v760 = vmul.f32 %v504, 0.2
  %v761 = vmul.f32 %v505, 0.2
  %v762 = vmul.f32 %v506, 0.2
  %v763 = vmul.f32 %v507, 0.2
  %v764 = vmul.f32 %v508, 0.2
  %v765 = vmul.f32 %v509, 0.2
  %v766 = vmul.f32 %v510, 0.2
  %v767 = vmul.f32 %v511, 0.2
  %v768 = vmul.f32 %v512, 0.2
  %v769 = vmul.f32 %v513, 0.2
  %v770 = vmul.f32 %v514, 0.2
  %v771 = vmul.f32 %v515, 0.2
  %v772 = vmul.f32 %v516, 0.2
  %v773 = vmul.f32 %v517, 0.2
  %v774 = vmul.f32 %v518, 0.2
  %v775 = vmul.f32 %v519, 0.2
  %v776 = vmul.f32 %v520, 0.2
  %v777 = vmul.f32 %v521, 0.2
  %v778 = vsel %vm522, %v394, %v650
  %v779 = vsel %vm523, %v395, %v651
  %v780 = vsel %vm524, %v396, %v652
  %v781 = vsel %vm525, %v397, %v653
  %v782 = vsel %vm526, %v398, %v654
  %v783 = vsel %vm527, %v399, %v655
  %v784 = vsel %vm528, %v400, %v656
  %v785 = vsel %vm529, %v401, %v657
  %v786 = vsel %vm530, %v402, %v658
  %v787 = vsel %vm531, %v403, %v659
  %v788 = vsel %vm532, %v404, %v660
  %v789 = vsel %vm533, %v405, %v661
  %v790 = vsel %vm534, %v406, %v662
  %v791 = vsel %vm535, %v407, %v663
  %v792 = vsel %vm536, %v408, %v664
  %v793 = vsel %vm537, %v409, %v665
  %v794 = vsel %vm538, %v410, %v666
  %v795 = vsel %vm539, %v411, %v667
  %v796 = vsel %vm540, %v412, %v668
  %v797 = vsel %vm541, %v413, %v669
  %v798 = vsel %vm542, %v414, %v670
  %v799 = vsel %vm543, %v415, %v671
  %v800 = vsel %vm544, %v416, %v672
  %v801 = vsel %vm545, %v417, %v673
  %v802 = vsel %vm546, %v418, %v674
  %v803 = vsel %vm547, %v419, %v675
  %v804 = vsel %vm548, %v420, %v676
  %v805 = vsel %vm549, %v421, %v677
  %v806 = vsel %vm550, %v422, %v678
  %v807 = vsel %vm551, %v423, %v679
  %v808 = vsel %vm552, %v424, %v680
  %v809 = vsel %vm553, %v425, %v681
  %v810 = vsel %vm554, %v426, %v682
  %v811 = vsel %vm555, %v427, %v683
  %v812 = vsel %vm556, %v428, %v684
  %v813 = vsel %vm557, %v429, %v685
  %v814 = vsel %vm558, %v430, %v686
  %v815 = vsel %vm559, %v431, %v687
  %v816 = vsel %vm560, %v432, %v688
  %v817 = vsel %vm561, %v433, %v689
  %v818 = vsel %vm562, %v434, %v690
  %v819 = vsel %vm563, %v435, %v691
  %v820 = vsel %vm564, %v436, %v692
  %v821 = vsel %vm565, %v437, %v693
  %v822 = vsel %vm566, %v438, %v694
  %v823 = vsel %vm567, %v439, %v695
  %v824 = vsel %vm568, %v440, %v696
  %v825 = vsel %vm569, %v441, %v697
  %v826 = vsel %vm570, %v442, %v698
  %v827 = vsel %vm571, %v443, %v699
  %v828 = vsel %vm572, %v444, %v700
  %v829 = vsel %vm573, %v445, %v701
  %v830 = vsel %vm574, %v446, %v702
  %v831 = vsel %vm575, %v447, %v703
  %v832 = vsel %vm576, %v448, %v704
  %v833 = vsel %vm577, %v449, %v705
  %v834 = vsel %vm578, %v450, %v706
  %v835 = vsel %vm579, %v451, %v707
  %v836 = vsel %vm580, %v452, %v708
  %v837 = vsel %vm581, %v453, %v709
  %v838 = vsel %vm582, %v454, %v710
  %v839 = vsel %vm583, %v455, %v711
  %v840 = vsel %vm584, %v456, %v712
  %v841 = vsel %vm585, %v457, %v713
  %v842 = vsel %vm586, %v458, %v714
  %v843 = vsel %vm587, %v459, %v715
  %v844 = vsel %vm588, %v460, %v716
  %v845 = vsel %vm589, %v461, %v717
  %v846 = vsel %vm590, %v462, %v718
  %v847 = vsel %vm591, %v463, %v719
  %v848 = vsel %vm592, %v464, %v720
  %v849 = vsel %vm593, %v465, %v721
  %v850 = vsel %vm594, %v466, %v722
  %v851 = vsel %vm595, %v467, %v723
  %v852 = vsel %vm596, %v468, %v724
  %v853 = vsel %vm597, %v469, %v725
  %v854 = vsel %vm598, %v470, %v726
  %v855 = vsel %vm599, %v471, %v727
  %v856 = vsel %vm600, %v472, %v728
  %v857 = vsel %vm601, %v473, %v729
  %v858 = vsel %vm602, %v474, %v730
  %v859 = vsel %vm603, %v475, %v731
  %v860 = vsel %vm604, %v476, %v732
  %v861 = vsel %vm605, %v477, %v733
  %v862 = vsel %vm606, %v478, %v734
  %v863 = vsel %vm607, %v479, %v735
  %v864 = vsel %vm608, %v480, %v736
  %v865 = vsel %vm609, %v481, %v737
  %v866 = vsel %vm610, %v482, %v738
  %v867 = vsel %vm611, %v483, %v739
  %v868 = vsel %vm612, %v484, %v740
  %v869 = vsel %vm613, %v485, %v741
  %v870 = vsel %vm614, %v486, %v742
  %v871 = vsel %vm615, %v487, %v743
  %v872 = vsel %vm616, %v488, %v744
  %v873 = vsel %vm617, %v489, %v745
  %v874 = vsel %vm618, %v490, %v746
  %v875 = vsel %vm619, %v491, %v747
  %v876 = vsel %vm620, %v492, %v748
  %v877 = vsel %vm621, %v493, %v749
  %v878 = vsel %vm622, %v494, %v750
  %v879 = vsel %vm623, %v495, %v751
  %v880 = vsel %vm624, %v496, %v752
  %v881 = vsel %vm625, %v497, %v753
  %v882 = vsel %vm626, %v498, %v754
  %v883 = vsel %vm627, %v499, %v755
  %v884 = vsel %vm628, %v500, %v756
  %v885 = vsel %vm629, %v501, %v757
  %v886 = vsel %vm630, %v502, %v758
  %v887 = vsel %vm631, %v503, %v759
  %v888 = vsel %vm632, %v504, %v760
  %v889 = vsel %vm633, %v505, %v761
  %v890 = vsel %vm634, %v506, %v762
  %v891 = vsel %vm635, %v507, %v763
  %v892 = vsel %vm636, %v508, %v764
  %v893 = vsel %vm637, %v509, %v765
  %v894 = vsel %vm638, %v510, %v766
  %v895 = vsel %vm639, %v511, %v767
  %v896 = vsel %vm640, %v512, %v768
  %v897 = vsel %vm641, %v513, %v769
  %v898 = vsel %vm642, %v514, %v770
  %v899 = vsel %vm643, %v515, %v771
  %v900 = vsel %vm644, %v516, %v772
  %v901 = vsel %vm645, %v517, %v773
  %v902 = vsel %vm646, %v518, %v774
  %v903 = vsel %vm647, %v519, %v775
  %v904 = vsel %vm648, %v520, %v776
  %v905 = vsel %vm649, %v521, %v777
  %v906 = vlaneseq
  %v907 = vshrl.u32 %v906, 7
  %v908 = vsub.s32 0, %v907
  %v909 = vrot.slane %v33, %v908
  %v910 = vmul.f32 %v778, %v909
  %v911 = vmul.f32 %v779, %v909
  %v912 = vmul.f32 %v780, %v909
  %v913 = vmul.f32 %v781, %v909
  %v914 = vmul.f32 %v782, %v909
  %v915 = vmul.f32 %v783, %v909
  %v916 = vmul.f32 %v784, %v909
  %v917 = vmul.f32 %v785, %v909
  %v918 = vmul.f32 %v786, %v909
  %v919 = vmul.f32 %v787, %v909
  %v920 = vmul.f32 %v788, %v909
  %v921 = vmul.f32 %v789, %v909
  %v922 = vmul.f32 %v790, %v909
  %v923 = vmul.f32 %v791, %v909
  %v924 = vmul.f32 %v792, %v909
  %v925 = vmul.f32 %v793, %v909
  %v926 = vmul.f32 %v794, %v909
  %v927 = vmul.f32 %v795, %v909
  %v928 = vmul.f32 %v796, %v909
  %v929 = vmul.f32 %v797, %v909
  %v930 = vmul.f32 %v798, %v909
  %v931 = vmul.f32 %v799, %v909
  %v932 = vmul.f32 %v800, %v909
  %v933 = vmul.f32 %v801, %v909
  %v934 = vmul.f32 %v802, %v909
  %v935 = vmul.f32 %v803, %v909
  %v936 = vmul.f32 %v804, %v909
  %v937 = vmul.f32 %v805, %v909
  %v938 = vmul.f32 %v806, %v909
  %v939 = vmul.f32 %v807, %v909
  %v940 = vmul.f32 %v808, %v909
  %v941 = vmul.f32 %v809, %v909
  %v942 = vmul.f32 %v810, %v909
  %v943 = vmul.f32 %v811, %v909
  %v944 = vmul.f32 %v812, %v909
  %v945 = vmul.f32 %v813, %v909
  %v946 = vmul.f32 %v814, %v909
  %v947 = vmul.f32 %v815, %v909
  %v948 = vmul.f32 %v816, %v909
  %v949 = vmul.f32 %v817, %v909
  %v950 = vmul.f32 %v818, %v909
  %v951 = vmul.f32 %v819, %v909
  %v952 = vmul.f32 %v820, %v909
  %v953 = vmul.f32 %v821, %v909
  %v954 = vmul.f32 %v822, %v909
  %v955 = vmul.f32 %v823, %v909
  %v956 = vmul.f32 %v824, %v909
  %v957 = vmul.f32 %v825, %v909
  %v958 = vmul.f32 %v826, %v909
  %v959 = vmul.f32 %v827, %v909
  %v960 = vmul.f32 %v828, %v909
  %v961 = vmul.f32 %v829, %v909
  %v962 = vmul.f32 %v830, %v909
  %v963 = vmul.f32 %v831, %v909
  %v964 = vmul.f32 %v832, %v909
  %v965 = vmul.f32 %v833, %v909
  %v966 = vmul.f32 %v834, %v909
  %v967 = vmul.f32 %v835, %v909
  %v968 = vmul.f32 %v836, %v909
  %v969 = vmul.f32 %v837, %v909
  %v970 = vmul.f32 %v838, %v909
  %v971 = vmul.f32 %v839, %v909
  %v972 = vmul.f32 %v840, %v909
  %v973 = vmul.f32 %v841, %v909
  %v974 = vmul.f32 %v842, %v909
  %v975 = vmul.f32 %v843, %v909
  %v976 = vmul.f32 %v844, %v909
  %v977 = vmul.f32 %v845, %v909
  %v978 = vmul.f32 %v846, %v909
  %v979 = vmul.f32 %v847, %v909
  %v980 = vmul.f32 %v848, %v909
  %v981 = vmul.f32 %v849, %v909
  %v982 = vmul.f32 %v850, %v909
  %v983 = vmul.f32 %v851, %v909
  %v984 = vmul.f32 %v852, %v909
  %v985 = vmul.f32 %v853, %v909
  %v986 = vmul.f32 %v854, %v909
  %v987 = vmul.f32 %v855, %v909
  %v988 = vmul.f32 %v856, %v909
  %v989 = vmul.f32 %v857, %v909
  %v990 = vmul.f32 %v858, %v909
  %v991 = vmul.f32 %v859, %v909
  %v992 = vmul.f32 %v860, %v909
  %v993 = vmul.f32 %v861, %v909
  %v994 = vmul.f32 %v862, %v909
  %v995 = vmul.f32 %v863, %v909
  %v996 = vmul.f32 %v864, %v909
  %v997 = vmul.f32 %v865, %v909
  %v998 = vmul.f32 %v866, %v909
  %v999 = vmul.f32 %v867, %v909
  %v1000 = vmul.f32 %v868, %v909
  %v1001 = vmul.f32 %v869, %v909
  %v1002 = vmul.f32 %v870, %v909
  %v1003 = vmul.f32 %v871, %v909
  %v1004 = vmul.f32 %v872, %v909
  %v1005 = vmul.f32 %v873, %v909
  %v1006 = vmul.f32 %v874, %v909
  %v1007 = vmul.f32 %v875, %v909
  %v1008 = vmul.f32 %v876, %v909
  %v1009 = vmul.f32 %v877, %v909
  %v1010 = vmul.f32 %v878, %v909
  %v1011 = vmul.f32 %v879, %v909
  %v1012 = vmul.f32 %v880, %v909
  %v1013 = vmul.f32 %v881, %v909
  %v1014 = vmul.f32 %v882, %v909
  %v1015 = vmul.f32 %v883, %v909
  %v1016 = vmul.f32 %v884, %v909
  %v1017 = vmul.f32 %v885, %v909
  %v1018 = vmul.f32 %v886, %v909
  %v1019 = vmul.f32 %v887, %v909
  %v1020 = vmul.f32 %v888, %v909
  %v1021 = vmul.f32 %v889, %v909
  %v1022 = vmul.f32 %v890, %v909
  %v1023 = vmul.f32 %v891, %v909
  %v1024 = vmul.f32 %v892, %v909
  %v1025 = vmul.f32 %v893, %v909
  %v1026 = vmul.f32 %v894, %v909
  %v1027 = vmul.f32 %v895, %v909
  %v1028 = vmul.f32 %v896, %v909
  %v1029 = vmul.f32 %v897, %v909
  %v1030 = vmul.f32 %v898, %v909
  %v1031 = vmul.f32 %v899, %v909
  %v1032 = vmul.f32 %v900, %v909
  %v1033 = vmul.f32 %v901, %v909
  %v1034 = vmul.f32 %v902, %v909
  %v1035 = vmul.f32 %v903, %v909
  %v1036 = vmul.f32 %v904, %v909
  %v1037 = vmul.f32 %v905, %v909
  %vm1038 = vcmask 15360
  %v1039 = vsel %vm1038, %v910, 0.0
  %1040 = vadd.xlane.f32.xlu0 %v1039
  %v1041 = vpop.xlane.xlu0 %1040
  %v1042 = vsel %vm1038, %v911, 0.0
  %1043 = vadd.xlane.f32.xlu0 %v1042
  %v1044 = vpop.xlane.xlu0 %1043
  %v1045 = vsel %vm1038, %v912, 0.0
  %1046 = vadd.xlane.f32.xlu0 %v1045
  %v1047 = vpop.xlane.xlu0 %1046
  %v1048 = vsel %vm1038, %v913, 0.0
  %1049 = vadd.xlane.f32.xlu0 %v1048
  %v1050 = vpop.xlane.xlu0 %1049
  %v1051 = vsel %vm1038, %v914, 0.0
  %1052 = vadd.xlane.f32.xlu0 %v1051
  %v1053 = vpop.xlane.xlu0 %1052
  %v1054 = vsel %vm1038, %v915, 0.0
  %1055 = vadd.xlane.f32.xlu0 %v1054
  %v1056 = vpop.xlane.xlu0 %1055
  %v1057 = vsel %vm1038, %v916, 0.0
  %1058 = vadd.xlane.f32.xlu0 %v1057
  %v1059 = vpop.xlane.xlu0 %1058
  %v1060 = vsel %vm1038, %v917, 0.0
  %1061 = vadd.xlane.f32.xlu0 %v1060
  %v1062 = vpop.xlane.xlu0 %1061
  %v1063 = vsel %vm1038, %v918, 0.0
  %1064 = vadd.xlane.f32.xlu0 %v1063
  %v1065 = vpop.xlane.xlu0 %1064
  %v1066 = vsel %vm1038, %v919, 0.0
  %1067 = vadd.xlane.f32.xlu0 %v1066
  %v1068 = vpop.xlane.xlu0 %1067
  %v1069 = vsel %vm1038, %v920, 0.0
  %1070 = vadd.xlane.f32.xlu0 %v1069
  %v1071 = vpop.xlane.xlu0 %1070
  %v1072 = vsel %vm1038, %v921, 0.0
  %1073 = vadd.xlane.f32.xlu0 %v1072
  %v1074 = vpop.xlane.xlu0 %1073
  %v1075 = vsel %vm1038, %v922, 0.0
  %1076 = vadd.xlane.f32.xlu0 %v1075
  %v1077 = vpop.xlane.xlu0 %1076
  %v1078 = vsel %vm1038, %v923, 0.0
  %1079 = vadd.xlane.f32.xlu0 %v1078
  %v1080 = vpop.xlane.xlu0 %1079
  %v1081 = vsel %vm1038, %v924, 0.0
  %1082 = vadd.xlane.f32.xlu0 %v1081
  %v1083 = vpop.xlane.xlu0 %1082
  %v1084 = vsel %vm1038, %v925, 0.0
  %1085 = vadd.xlane.f32.xlu0 %v1084
  %v1086 = vpop.xlane.xlu0 %1085
  %v1087 = vsel %vm1038, %v926, 0.0
  %1088 = vadd.xlane.f32.xlu0 %v1087
  %v1089 = vpop.xlane.xlu0 %1088
  %v1090 = vsel %vm1038, %v927, 0.0
  %1091 = vadd.xlane.f32.xlu0 %v1090
  %v1092 = vpop.xlane.xlu0 %1091
  %v1093 = vsel %vm1038, %v928, 0.0
  %1094 = vadd.xlane.f32.xlu0 %v1093
  %v1095 = vpop.xlane.xlu0 %1094
  %v1096 = vsel %vm1038, %v929, 0.0
  %1097 = vadd.xlane.f32.xlu0 %v1096
  %v1098 = vpop.xlane.xlu0 %1097
  %v1099 = vsel %vm1038, %v930, 0.0
  %1100 = vadd.xlane.f32.xlu0 %v1099
  %v1101 = vpop.xlane.xlu0 %1100
  %v1102 = vsel %vm1038, %v931, 0.0
  %1103 = vadd.xlane.f32.xlu0 %v1102
  %v1104 = vpop.xlane.xlu0 %1103
  %v1105 = vsel %vm1038, %v932, 0.0
  %1106 = vadd.xlane.f32.xlu0 %v1105
  %v1107 = vpop.xlane.xlu0 %1106
  %v1108 = vsel %vm1038, %v933, 0.0
  %1109 = vadd.xlane.f32.xlu0 %v1108
  %v1110 = vpop.xlane.xlu0 %1109
  %v1111 = vsel %vm1038, %v934, 0.0
  %1112 = vadd.xlane.f32.xlu0 %v1111
  %v1113 = vpop.xlane.xlu0 %1112
  %v1114 = vsel %vm1038, %v935, 0.0
  %1115 = vadd.xlane.f32.xlu0 %v1114
  %v1116 = vpop.xlane.xlu0 %1115
  %v1117 = vsel %vm1038, %v936, 0.0
  %1118 = vadd.xlane.f32.xlu0 %v1117
  %v1119 = vpop.xlane.xlu0 %1118
  %v1120 = vsel %vm1038, %v937, 0.0
  %1121 = vadd.xlane.f32.xlu0 %v1120
  %v1122 = vpop.xlane.xlu0 %1121
  %v1123 = vsel %vm1038, %v938, 0.0
  %1124 = vadd.xlane.f32.xlu0 %v1123
  %v1125 = vpop.xlane.xlu0 %1124
  %v1126 = vsel %vm1038, %v939, 0.0
  %1127 = vadd.xlane.f32.xlu0 %v1126
  %v1128 = vpop.xlane.xlu0 %1127
  %v1129 = vsel %vm1038, %v940, 0.0
  %1130 = vadd.xlane.f32.xlu0 %v1129
  %v1131 = vpop.xlane.xlu0 %1130
  %v1132 = vsel %vm1038, %v941, 0.0
  %1133 = vadd.xlane.f32.xlu0 %v1132
  %v1134 = vpop.xlane.xlu0 %1133
  %v1135 = vsel %vm1038, %v942, 0.0
  %1136 = vadd.xlane.f32.xlu0 %v1135
  %v1137 = vpop.xlane.xlu0 %1136
  %v1138 = vsel %vm1038, %v943, 0.0
  %1139 = vadd.xlane.f32.xlu0 %v1138
  %v1140 = vpop.xlane.xlu0 %1139
  %v1141 = vsel %vm1038, %v944, 0.0
  %1142 = vadd.xlane.f32.xlu0 %v1141
  %v1143 = vpop.xlane.xlu0 %1142
  %v1144 = vsel %vm1038, %v945, 0.0
  %1145 = vadd.xlane.f32.xlu0 %v1144
  %v1146 = vpop.xlane.xlu0 %1145
  %v1147 = vsel %vm1038, %v946, 0.0
  %1148 = vadd.xlane.f32.xlu0 %v1147
  %v1149 = vpop.xlane.xlu0 %1148
  %v1150 = vsel %vm1038, %v947, 0.0
  %1151 = vadd.xlane.f32.xlu0 %v1150
  %v1152 = vpop.xlane.xlu0 %1151
  %v1153 = vsel %vm1038, %v948, 0.0
  %1154 = vadd.xlane.f32.xlu0 %v1153
  %v1155 = vpop.xlane.xlu0 %1154
  %v1156 = vsel %vm1038, %v949, 0.0
  %1157 = vadd.xlane.f32.xlu0 %v1156
  %v1158 = vpop.xlane.xlu0 %1157
  %v1159 = vsel %vm1038, %v950, 0.0
  %1160 = vadd.xlane.f32.xlu0 %v1159
  %v1161 = vpop.xlane.xlu0 %1160
  %v1162 = vsel %vm1038, %v951, 0.0
  %1163 = vadd.xlane.f32.xlu0 %v1162
  %v1164 = vpop.xlane.xlu0 %1163
  %v1165 = vsel %vm1038, %v952, 0.0
  %1166 = vadd.xlane.f32.xlu0 %v1165
  %v1167 = vpop.xlane.xlu0 %1166
  %v1168 = vsel %vm1038, %v953, 0.0
  %1169 = vadd.xlane.f32.xlu0 %v1168
  %v1170 = vpop.xlane.xlu0 %1169
  %v1171 = vsel %vm1038, %v954, 0.0
  %1172 = vadd.xlane.f32.xlu0 %v1171
  %v1173 = vpop.xlane.xlu0 %1172
  %v1174 = vsel %vm1038, %v955, 0.0
  %1175 = vadd.xlane.f32.xlu0 %v1174
  %v1176 = vpop.xlane.xlu0 %1175
  %v1177 = vsel %vm1038, %v956, 0.0
  %1178 = vadd.xlane.f32.xlu0 %v1177
  %v1179 = vpop.xlane.xlu0 %1178
  %v1180 = vsel %vm1038, %v957, 0.0
  %1181 = vadd.xlane.f32.xlu0 %v1180
  %v1182 = vpop.xlane.xlu0 %1181
  %v1183 = vsel %vm1038, %v958, 0.0
  %1184 = vadd.xlane.f32.xlu0 %v1183
  %v1185 = vpop.xlane.xlu0 %1184
  %v1186 = vsel %vm1038, %v959, 0.0
  %1187 = vadd.xlane.f32.xlu0 %v1186
  %v1188 = vpop.xlane.xlu0 %1187
  %v1189 = vsel %vm1038, %v960, 0.0
  %1190 = vadd.xlane.f32.xlu0 %v1189
  %v1191 = vpop.xlane.xlu0 %1190
  %v1192 = vsel %vm1038, %v961, 0.0
  %1193 = vadd.xlane.f32.xlu0 %v1192
  %v1194 = vpop.xlane.xlu0 %1193
  %v1195 = vsel %vm1038, %v962, 0.0
  %1196 = vadd.xlane.f32.xlu0 %v1195
  %v1197 = vpop.xlane.xlu0 %1196
  %v1198 = vsel %vm1038, %v963, 0.0
  %1199 = vadd.xlane.f32.xlu0 %v1198
  %v1200 = vpop.xlane.xlu0 %1199
  %v1201 = vsel %vm1038, %v964, 0.0
  %1202 = vadd.xlane.f32.xlu0 %v1201
  %v1203 = vpop.xlane.xlu0 %1202
  %v1204 = vsel %vm1038, %v965, 0.0
  %1205 = vadd.xlane.f32.xlu0 %v1204
  %v1206 = vpop.xlane.xlu0 %1205
  %v1207 = vsel %vm1038, %v966, 0.0
  %1208 = vadd.xlane.f32.xlu0 %v1207
  %v1209 = vpop.xlane.xlu0 %1208
  %v1210 = vsel %vm1038, %v967, 0.0
  %1211 = vadd.xlane.f32.xlu0 %v1210
  %v1212 = vpop.xlane.xlu0 %1211
  %v1213 = vsel %vm1038, %v968, 0.0
  %1214 = vadd.xlane.f32.xlu0 %v1213
  %v1215 = vpop.xlane.xlu0 %1214
  %v1216 = vsel %vm1038, %v969, 0.0
  %1217 = vadd.xlane.f32.xlu0 %v1216
  %v1218 = vpop.xlane.xlu0 %1217
  %v1219 = vsel %vm1038, %v970, 0.0
  %1220 = vadd.xlane.f32.xlu0 %v1219
  %v1221 = vpop.xlane.xlu0 %1220
  %v1222 = vsel %vm1038, %v971, 0.0
  %1223 = vadd.xlane.f32.xlu0 %v1222
  %v1224 = vpop.xlane.xlu0 %1223
  %v1225 = vsel %vm1038, %v972, 0.0
  %1226 = vadd.xlane.f32.xlu0 %v1225
  %v1227 = vpop.xlane.xlu0 %1226
  %v1228 = vsel %vm1038, %v973, 0.0
  %1229 = vadd.xlane.f32.xlu0 %v1228
  %v1230 = vpop.xlane.xlu0 %1229
  %v1231 = vsel %vm1038, %v974, 0.0
  %1232 = vadd.xlane.f32.xlu0 %v1231
  %v1233 = vpop.xlane.xlu0 %1232
  %v1234 = vsel %vm1038, %v975, 0.0
  %1235 = vadd.xlane.f32.xlu0 %v1234
  %v1236 = vpop.xlane.xlu0 %1235
  %v1237 = vsel %vm1038, %v976, 0.0
  %1238 = vadd.xlane.f32.xlu0 %v1237
  %v1239 = vpop.xlane.xlu0 %1238
  %v1240 = vsel %vm1038, %v977, 0.0
  %1241 = vadd.xlane.f32.xlu0 %v1240
  %v1242 = vpop.xlane.xlu0 %1241
  %v1243 = vsel %vm1038, %v978, 0.0
  %1244 = vadd.xlane.f32.xlu0 %v1243
  %v1245 = vpop.xlane.xlu0 %1244
  %v1246 = vsel %vm1038, %v979, 0.0
  %1247 = vadd.xlane.f32.xlu0 %v1246
  %v1248 = vpop.xlane.xlu0 %1247
  %v1249 = vsel %vm1038, %v980, 0.0
  %1250 = vadd.xlane.f32.xlu0 %v1249
  %v1251 = vpop.xlane.xlu0 %1250
  %v1252 = vsel %vm1038, %v981, 0.0
  %1253 = vadd.xlane.f32.xlu0 %v1252
  %v1254 = vpop.xlane.xlu0 %1253
  %v1255 = vsel %vm1038, %v982, 0.0
  %1256 = vadd.xlane.f32.xlu0 %v1255
  %v1257 = vpop.xlane.xlu0 %1256
  %v1258 = vsel %vm1038, %v983, 0.0
  %1259 = vadd.xlane.f32.xlu0 %v1258
  %v1260 = vpop.xlane.xlu0 %1259
  %v1261 = vsel %vm1038, %v984, 0.0
  %1262 = vadd.xlane.f32.xlu0 %v1261
  %v1263 = vpop.xlane.xlu0 %1262
  %v1264 = vsel %vm1038, %v985, 0.0
  %1265 = vadd.xlane.f32.xlu0 %v1264
  %v1266 = vpop.xlane.xlu0 %1265
  %v1267 = vsel %vm1038, %v986, 0.0
  %1268 = vadd.xlane.f32.xlu0 %v1267
  %v1269 = vpop.xlane.xlu0 %1268
  %v1270 = vsel %vm1038, %v987, 0.0
  %1271 = vadd.xlane.f32.xlu0 %v1270
  %v1272 = vpop.xlane.xlu0 %1271
  %v1273 = vsel %vm1038, %v988, 0.0
  %1274 = vadd.xlane.f32.xlu0 %v1273
  %v1275 = vpop.xlane.xlu0 %1274
  %v1276 = vsel %vm1038, %v989, 0.0
  %1277 = vadd.xlane.f32.xlu0 %v1276
  %v1278 = vpop.xlane.xlu0 %1277
  %v1279 = vsel %vm1038, %v990, 0.0
  %1280 = vadd.xlane.f32.xlu0 %v1279
  %v1281 = vpop.xlane.xlu0 %1280
  %v1282 = vsel %vm1038, %v991, 0.0
  %1283 = vadd.xlane.f32.xlu0 %v1282
  %v1284 = vpop.xlane.xlu0 %1283
  %v1285 = vsel %vm1038, %v992, 0.0
  %1286 = vadd.xlane.f32.xlu0 %v1285
  %v1287 = vpop.xlane.xlu0 %1286
  %v1288 = vsel %vm1038, %v993, 0.0
  %1289 = vadd.xlane.f32.xlu0 %v1288
  %v1290 = vpop.xlane.xlu0 %1289
  %v1291 = vsel %vm1038, %v994, 0.0
  %1292 = vadd.xlane.f32.xlu0 %v1291
  %v1293 = vpop.xlane.xlu0 %1292
  %v1294 = vsel %vm1038, %v995, 0.0
  %1295 = vadd.xlane.f32.xlu0 %v1294
  %v1296 = vpop.xlane.xlu0 %1295
  %v1297 = vsel %vm1038, %v996, 0.0
  %1298 = vadd.xlane.f32.xlu0 %v1297
  %v1299 = vpop.xlane.xlu0 %1298
  %v1300 = vsel %vm1038, %v997, 0.0
  %1301 = vadd.xlane.f32.xlu0 %v1300
  %v1302 = vpop.xlane.xlu0 %1301
  %v1303 = vsel %vm1038, %v998, 0.0
  %1304 = vadd.xlane.f32.xlu0 %v1303
  %v1305 = vpop.xlane.xlu0 %1304
  %v1306 = vsel %vm1038, %v999, 0.0
  %1307 = vadd.xlane.f32.xlu0 %v1306
  %v1308 = vpop.xlane.xlu0 %1307
  %v1309 = vsel %vm1038, %v1000, 0.0
  %1310 = vadd.xlane.f32.xlu0 %v1309
  %v1311 = vpop.xlane.xlu0 %1310
  %v1312 = vsel %vm1038, %v1001, 0.0
  %1313 = vadd.xlane.f32.xlu0 %v1312
  %v1314 = vpop.xlane.xlu0 %1313
  %v1315 = vsel %vm1038, %v1002, 0.0
  %1316 = vadd.xlane.f32.xlu0 %v1315
  %v1317 = vpop.xlane.xlu0 %1316
  %v1318 = vsel %vm1038, %v1003, 0.0
  %1319 = vadd.xlane.f32.xlu0 %v1318
  %v1320 = vpop.xlane.xlu0 %1319
  %v1321 = vsel %vm1038, %v1004, 0.0
  %1322 = vadd.xlane.f32.xlu0 %v1321
  %v1323 = vpop.xlane.xlu0 %1322
  %v1324 = vsel %vm1038, %v1005, 0.0
  %1325 = vadd.xlane.f32.xlu0 %v1324
  %v1326 = vpop.xlane.xlu0 %1325
  %v1327 = vsel %vm1038, %v1006, 0.0
  %1328 = vadd.xlane.f32.xlu0 %v1327
  %v1329 = vpop.xlane.xlu0 %1328
  %v1330 = vsel %vm1038, %v1007, 0.0
  %1331 = vadd.xlane.f32.xlu0 %v1330
  %v1332 = vpop.xlane.xlu0 %1331
  %v1333 = vsel %vm1038, %v1008, 0.0
  %1334 = vadd.xlane.f32.xlu0 %v1333
  %v1335 = vpop.xlane.xlu0 %1334
  %v1336 = vsel %vm1038, %v1009, 0.0
  %1337 = vadd.xlane.f32.xlu0 %v1336
  %v1338 = vpop.xlane.xlu0 %1337
  %v1339 = vsel %vm1038, %v1010, 0.0
  %1340 = vadd.xlane.f32.xlu0 %v1339
  %v1341 = vpop.xlane.xlu0 %1340
  %v1342 = vsel %vm1038, %v1011, 0.0
  %1343 = vadd.xlane.f32.xlu0 %v1342
  %v1344 = vpop.xlane.xlu0 %1343
  %v1345 = vsel %vm1038, %v1012, 0.0
  %1346 = vadd.xlane.f32.xlu0 %v1345
  %v1347 = vpop.xlane.xlu0 %1346
  %v1348 = vsel %vm1038, %v1013, 0.0
  %1349 = vadd.xlane.f32.xlu0 %v1348
  %v1350 = vpop.xlane.xlu0 %1349
  %v1351 = vsel %vm1038, %v1014, 0.0
  %1352 = vadd.xlane.f32.xlu0 %v1351
  %v1353 = vpop.xlane.xlu0 %1352
  %v1354 = vsel %vm1038, %v1015, 0.0
  %1355 = vadd.xlane.f32.xlu0 %v1354
  %v1356 = vpop.xlane.xlu0 %1355
  %v1357 = vsel %vm1038, %v1016, 0.0
  %1358 = vadd.xlane.f32.xlu0 %v1357
  %v1359 = vpop.xlane.xlu0 %1358
  %v1360 = vsel %vm1038, %v1017, 0.0
  %1361 = vadd.xlane.f32.xlu0 %v1360
  %v1362 = vpop.xlane.xlu0 %1361
  %v1363 = vsel %vm1038, %v1018, 0.0
  %1364 = vadd.xlane.f32.xlu0 %v1363
  %v1365 = vpop.xlane.xlu0 %1364
  %v1366 = vsel %vm1038, %v1019, 0.0
  %1367 = vadd.xlane.f32.xlu0 %v1366
  %v1368 = vpop.xlane.xlu0 %1367
  %v1369 = vsel %vm1038, %v1020, 0.0
  %1370 = vadd.xlane.f32.xlu0 %v1369
  %v1371 = vpop.xlane.xlu0 %1370
  %v1372 = vsel %vm1038, %v1021, 0.0
  %1373 = vadd.xlane.f32.xlu0 %v1372
  %v1374 = vpop.xlane.xlu0 %1373
  %v1375 = vsel %vm1038, %v1022, 0.0
  %1376 = vadd.xlane.f32.xlu0 %v1375
  %v1377 = vpop.xlane.xlu0 %1376
  %v1378 = vsel %vm1038, %v1023, 0.0
  %1379 = vadd.xlane.f32.xlu0 %v1378
  %v1380 = vpop.xlane.xlu0 %1379
  %v1381 = vsel %vm1038, %v1024, 0.0
  %1382 = vadd.xlane.f32.xlu0 %v1381
  %v1383 = vpop.xlane.xlu0 %1382
  %v1384 = vsel %vm1038, %v1025, 0.0
  %1385 = vadd.xlane.f32.xlu0 %v1384
  %v1386 = vpop.xlane.xlu0 %1385
  %v1387 = vsel %vm1038, %v1026, 0.0
  %1388 = vadd.xlane.f32.xlu0 %v1387
  %v1389 = vpop.xlane.xlu0 %1388
  %v1390 = vsel %vm1038, %v1027, 0.0
  %1391 = vadd.xlane.f32.xlu0 %v1390
  %v1392 = vpop.xlane.xlu0 %1391
  %v1393 = vsel %vm1038, %v1028, 0.0
  %1394 = vadd.xlane.f32.xlu0 %v1393
  %v1395 = vpop.xlane.xlu0 %1394
  %v1396 = vsel %vm1038, %v1029, 0.0
  %1397 = vadd.xlane.f32.xlu0 %v1396
  %v1398 = vpop.xlane.xlu0 %1397
  %v1399 = vsel %vm1038, %v1030, 0.0
  %1400 = vadd.xlane.f32.xlu0 %v1399
  %v1401 = vpop.xlane.xlu0 %1400
  %v1402 = vsel %vm1038, %v1031, 0.0
  %1403 = vadd.xlane.f32.xlu0 %v1402
  %v1404 = vpop.xlane.xlu0 %1403
  %v1405 = vsel %vm1038, %v1032, 0.0
  %1406 = vadd.xlane.f32.xlu0 %v1405
  %v1407 = vpop.xlane.xlu0 %1406
  %v1408 = vsel %vm1038, %v1033, 0.0
  %1409 = vadd.xlane.f32.xlu0 %v1408
  %v1410 = vpop.xlane.xlu0 %1409
  %v1411 = vsel %vm1038, %v1034, 0.0
  %1412 = vadd.xlane.f32.xlu0 %v1411
  %v1413 = vpop.xlane.xlu0 %1412
  %v1414 = vsel %vm1038, %v1035, 0.0
  %1415 = vadd.xlane.f32.xlu0 %v1414
  %v1416 = vpop.xlane.xlu0 %1415
  %v1417 = vsel %vm1038, %v1036, 0.0
  %1418 = vadd.xlane.f32.xlu0 %v1417
  %v1419 = vpop.xlane.xlu0 %1418
  %v1420 = vsel %vm1038, %v1037, 0.0
  %1421 = vadd.xlane.f32.xlu0 %v1420
  %v1422 = vpop.xlane.xlu0 %1421
  %v1551 = vlaneseq
  %v1552 = vand.u32 %v1551, 127
  %v1553 = vlaneseq
  %v1554 = vshrl.u32 %v1553, 7
  %v1555 = vsub.s32 %v1552, %v1554
  %v1556 = vrot.slane %v1041, %v1555
  %v1557 = vadd.s32 %v1552, 4294967288
  %v1558 = vlaneseq
  %v1559 = vshrl.u32 %v1558, 7
  %v1560 = vsub.s32 %v1557, %v1559
  %v1561 = vrot.slane %v1044, %v1560
  %vm1562 = vcmask 130112
  %v1563 = vsel %vm1562, %v1561, %v1556
  %v1564 = vadd.s32 %v1552, 4294967280
  %v1565 = vlaneseq
  %v1566 = vshrl.u32 %v1565, 7
  %v1567 = vsub.s32 %v1564, %v1566
  %v1568 = vrot.slane %v1047, %v1567
  %vm1569 = vcmask 195712
  %v1570 = vsel %vm1569, %v1568, %v1563
  %v1571 = vadd.s32 %v1552, 4294967272
  %v1572 = vlaneseq
  %v1573 = vshrl.u32 %v1572, 7
  %v1574 = vsub.s32 %v1571, %v1573
  %v1575 = vrot.slane %v1050, %v1574
  %vm1576 = vcmask 261312
  %v1577 = vsel %vm1576, %v1575, %v1570
  %v1578 = vlaneseq
  %v1579 = vshrl.u32 %v1578, 7
  %v1580 = vsub.s32 %v1552, %v1579
  %v1581 = vrot.slane %v1053, %v1580
  %v1582 = vlaneseq
  %v1583 = vshrl.u32 %v1582, 7
  %v1584 = vsub.s32 %v1557, %v1583
  %v1585 = vrot.slane %v1056, %v1584
  %v1586 = vsel %vm1562, %v1585, %v1581
  %v1587 = vlaneseq
  %v1588 = vshrl.u32 %v1587, 7
  %v1589 = vsub.s32 %v1564, %v1588
  %v1590 = vrot.slane %v1059, %v1589
  %v1591 = vsel %vm1569, %v1590, %v1586
  %v1592 = vlaneseq
  %v1593 = vshrl.u32 %v1592, 7
  %v1594 = vsub.s32 %v1571, %v1593
  %v1595 = vrot.slane %v1062, %v1594
  %v1596 = vsel %vm1576, %v1595, %v1591
  %v1597 = vlaneseq
  %v1598 = vshrl.u32 %v1597, 7
  %v1599 = vsub.s32 %v1552, %v1598
  %v1600 = vrot.slane %v1065, %v1599
  %v1601 = vlaneseq
  %v1602 = vshrl.u32 %v1601, 7
  %v1603 = vsub.s32 %v1557, %v1602
  %v1604 = vrot.slane %v1068, %v1603
  %v1605 = vsel %vm1562, %v1604, %v1600
  %v1606 = vlaneseq
  %v1607 = vshrl.u32 %v1606, 7
  %v1608 = vsub.s32 %v1564, %v1607
  %v1609 = vrot.slane %v1071, %v1608
  %v1610 = vsel %vm1569, %v1609, %v1605
  %v1611 = vlaneseq
  %v1612 = vshrl.u32 %v1611, 7
  %v1613 = vsub.s32 %v1571, %v1612
  %v1614 = vrot.slane %v1074, %v1613
  %v1615 = vsel %vm1576, %v1614, %v1610
  %v1616 = vlaneseq
  %v1617 = vshrl.u32 %v1616, 7
  %v1618 = vsub.s32 %v1552, %v1617
  %v1619 = vrot.slane %v1077, %v1618
  %v1620 = vlaneseq
  %v1621 = vshrl.u32 %v1620, 7
  %v1622 = vsub.s32 %v1557, %v1621
  %v1623 = vrot.slane %v1080, %v1622
  %v1624 = vsel %vm1562, %v1623, %v1619
  %v1625 = vlaneseq
  %v1626 = vshrl.u32 %v1625, 7
  %v1627 = vsub.s32 %v1564, %v1626
  %v1628 = vrot.slane %v1083, %v1627
  %v1629 = vsel %vm1569, %v1628, %v1624
  %v1630 = vlaneseq
  %v1631 = vshrl.u32 %v1630, 7
  %v1632 = vsub.s32 %v1571, %v1631
  %v1633 = vrot.slane %v1086, %v1632
  %v1634 = vsel %vm1576, %v1633, %v1629
  %v1635 = vlaneseq
  %v1636 = vshrl.u32 %v1635, 7
  %v1637 = vsub.s32 %v1552, %v1636
  %v1638 = vrot.slane %v1089, %v1637
  %v1639 = vlaneseq
  %v1640 = vshrl.u32 %v1639, 7
  %v1641 = vsub.s32 %v1557, %v1640
  %v1642 = vrot.slane %v1092, %v1641
  %v1643 = vsel %vm1562, %v1642, %v1638
  %v1644 = vlaneseq
  %v1645 = vshrl.u32 %v1644, 7
  %v1646 = vsub.s32 %v1564, %v1645
  %v1647 = vrot.slane %v1095, %v1646
  %v1648 = vsel %vm1569, %v1647, %v1643
  %v1649 = vlaneseq
  %v1650 = vshrl.u32 %v1649, 7
  %v1651 = vsub.s32 %v1571, %v1650
  %v1652 = vrot.slane %v1098, %v1651
  %v1653 = vsel %vm1576, %v1652, %v1648
  %v1654 = vlaneseq
  %v1655 = vshrl.u32 %v1654, 7
  %v1656 = vsub.s32 %v1552, %v1655
  %v1657 = vrot.slane %v1101, %v1656
  %v1658 = vlaneseq
  %v1659 = vshrl.u32 %v1658, 7
  %v1660 = vsub.s32 %v1557, %v1659
  %v1661 = vrot.slane %v1104, %v1660
  %v1662 = vsel %vm1562, %v1661, %v1657
  %v1663 = vlaneseq
  %v1664 = vshrl.u32 %v1663, 7
  %v1665 = vsub.s32 %v1564, %v1664
  %v1666 = vrot.slane %v1107, %v1665
  %v1667 = vsel %vm1569, %v1666, %v1662
  %v1668 = vlaneseq
  %v1669 = vshrl.u32 %v1668, 7
  %v1670 = vsub.s32 %v1571, %v1669
  %v1671 = vrot.slane %v1110, %v1670
  %v1672 = vsel %vm1576, %v1671, %v1667
  %v1673 = vlaneseq
  %v1674 = vshrl.u32 %v1673, 7
  %v1675 = vsub.s32 %v1552, %v1674
  %v1676 = vrot.slane %v1113, %v1675
  %v1677 = vlaneseq
  %v1678 = vshrl.u32 %v1677, 7
  %v1679 = vsub.s32 %v1557, %v1678
  %v1680 = vrot.slane %v1116, %v1679
  %v1681 = vsel %vm1562, %v1680, %v1676
  %v1682 = vlaneseq
  %v1683 = vshrl.u32 %v1682, 7
  %v1684 = vsub.s32 %v1564, %v1683
  %v1685 = vrot.slane %v1119, %v1684
  %v1686 = vsel %vm1569, %v1685, %v1681
  %v1687 = vlaneseq
  %v1688 = vshrl.u32 %v1687, 7
  %v1689 = vsub.s32 %v1571, %v1688
  %v1690 = vrot.slane %v1122, %v1689
  %v1691 = vsel %vm1576, %v1690, %v1686
  %v1692 = vlaneseq
  %v1693 = vshrl.u32 %v1692, 7
  %v1694 = vsub.s32 %v1552, %v1693
  %v1695 = vrot.slane %v1125, %v1694
  %v1696 = vlaneseq
  %v1697 = vshrl.u32 %v1696, 7
  %v1698 = vsub.s32 %v1557, %v1697
  %v1699 = vrot.slane %v1128, %v1698
  %v1700 = vsel %vm1562, %v1699, %v1695
  %v1701 = vlaneseq
  %v1702 = vshrl.u32 %v1701, 7
  %v1703 = vsub.s32 %v1564, %v1702
  %v1704 = vrot.slane %v1131, %v1703
  %v1705 = vsel %vm1569, %v1704, %v1700
  %v1706 = vlaneseq
  %v1707 = vshrl.u32 %v1706, 7
  %v1708 = vsub.s32 %v1571, %v1707
  %v1709 = vrot.slane %v1134, %v1708
  %v1710 = vsel %vm1576, %v1709, %v1705
  %v1711 = vlaneseq
  %v1712 = vshrl.u32 %v1711, 7
  %v1713 = vsub.s32 %v1552, %v1712
  %v1714 = vrot.slane %v1137, %v1713
  %v1715 = vlaneseq
  %v1716 = vshrl.u32 %v1715, 7
  %v1717 = vsub.s32 %v1557, %v1716
  %v1718 = vrot.slane %v1140, %v1717
  %v1719 = vsel %vm1562, %v1718, %v1714
  %v1720 = vlaneseq
  %v1721 = vshrl.u32 %v1720, 7
  %v1722 = vsub.s32 %v1564, %v1721
  %v1723 = vrot.slane %v1143, %v1722
  %v1724 = vsel %vm1569, %v1723, %v1719
  %v1725 = vlaneseq
  %v1726 = vshrl.u32 %v1725, 7
  %v1727 = vsub.s32 %v1571, %v1726
  %v1728 = vrot.slane %v1146, %v1727
  %v1729 = vsel %vm1576, %v1728, %v1724
  %v1730 = vlaneseq
  %v1731 = vshrl.u32 %v1730, 7
  %v1732 = vsub.s32 %v1552, %v1731
  %v1733 = vrot.slane %v1149, %v1732
  %v1734 = vlaneseq
  %v1735 = vshrl.u32 %v1734, 7
  %v1736 = vsub.s32 %v1557, %v1735
  %v1737 = vrot.slane %v1152, %v1736
  %v1738 = vsel %vm1562, %v1737, %v1733
  %v1739 = vlaneseq
  %v1740 = vshrl.u32 %v1739, 7
  %v1741 = vsub.s32 %v1564, %v1740
  %v1742 = vrot.slane %v1155, %v1741
  %v1743 = vsel %vm1569, %v1742, %v1738
  %v1744 = vlaneseq
  %v1745 = vshrl.u32 %v1744, 7
  %v1746 = vsub.s32 %v1571, %v1745
  %v1747 = vrot.slane %v1158, %v1746
  %v1748 = vsel %vm1576, %v1747, %v1743
  %v1749 = vlaneseq
  %v1750 = vshrl.u32 %v1749, 7
  %v1751 = vsub.s32 %v1552, %v1750
  %v1752 = vrot.slane %v1161, %v1751
  %v1753 = vlaneseq
  %v1754 = vshrl.u32 %v1753, 7
  %v1755 = vsub.s32 %v1557, %v1754
  %v1756 = vrot.slane %v1164, %v1755
  %v1757 = vsel %vm1562, %v1756, %v1752
  %v1758 = vlaneseq
  %v1759 = vshrl.u32 %v1758, 7
  %v1760 = vsub.s32 %v1564, %v1759
  %v1761 = vrot.slane %v1167, %v1760
  %v1762 = vsel %vm1569, %v1761, %v1757
  %v1763 = vlaneseq
  %v1764 = vshrl.u32 %v1763, 7
  %v1765 = vsub.s32 %v1571, %v1764
  %v1766 = vrot.slane %v1170, %v1765
  %v1767 = vsel %vm1576, %v1766, %v1762
  %v1768 = vlaneseq
  %v1769 = vshrl.u32 %v1768, 7
  %v1770 = vsub.s32 %v1552, %v1769
  %v1771 = vrot.slane %v1173, %v1770
  %v1772 = vlaneseq
  %v1773 = vshrl.u32 %v1772, 7
  %v1774 = vsub.s32 %v1557, %v1773
  %v1775 = vrot.slane %v1176, %v1774
  %v1776 = vsel %vm1562, %v1775, %v1771
  %v1777 = vlaneseq
  %v1778 = vshrl.u32 %v1777, 7
  %v1779 = vsub.s32 %v1564, %v1778
  %v1780 = vrot.slane %v1179, %v1779
  %v1781 = vsel %vm1569, %v1780, %v1776
  %v1782 = vlaneseq
  %v1783 = vshrl.u32 %v1782, 7
  %v1784 = vsub.s32 %v1571, %v1783
  %v1785 = vrot.slane %v1182, %v1784
  %v1786 = vsel %vm1576, %v1785, %v1781
  %v1787 = vlaneseq
  %v1788 = vshrl.u32 %v1787, 7
  %v1789 = vsub.s32 %v1552, %v1788
  %v1790 = vrot.slane %v1185, %v1789
  %v1791 = vlaneseq
  %v1792 = vshrl.u32 %v1791, 7
  %v1793 = vsub.s32 %v1557, %v1792
  %v1794 = vrot.slane %v1188, %v1793
  %v1795 = vsel %vm1562, %v1794, %v1790
  %v1796 = vlaneseq
  %v1797 = vshrl.u32 %v1796, 7
  %v1798 = vsub.s32 %v1564, %v1797
  %v1799 = vrot.slane %v1191, %v1798
  %v1800 = vsel %vm1569, %v1799, %v1795
  %v1801 = vlaneseq
  %v1802 = vshrl.u32 %v1801, 7
  %v1803 = vsub.s32 %v1571, %v1802
  %v1804 = vrot.slane %v1194, %v1803
  %v1805 = vsel %vm1576, %v1804, %v1800
  %v1806 = vlaneseq
  %v1807 = vshrl.u32 %v1806, 7
  %v1808 = vsub.s32 %v1552, %v1807
  %v1809 = vrot.slane %v1197, %v1808
  %v1810 = vlaneseq
  %v1811 = vshrl.u32 %v1810, 7
  %v1812 = vsub.s32 %v1557, %v1811
  %v1813 = vrot.slane %v1200, %v1812
  %v1814 = vsel %vm1562, %v1813, %v1809
  %v1815 = vlaneseq
  %v1816 = vshrl.u32 %v1815, 7
  %v1817 = vsub.s32 %v1564, %v1816
  %v1818 = vrot.slane %v1203, %v1817
  %v1819 = vsel %vm1569, %v1818, %v1814
  %v1820 = vlaneseq
  %v1821 = vshrl.u32 %v1820, 7
  %v1822 = vsub.s32 %v1571, %v1821
  %v1823 = vrot.slane %v1206, %v1822
  %v1824 = vsel %vm1576, %v1823, %v1819
  %v1825 = vlaneseq
  %v1826 = vshrl.u32 %v1825, 7
  %v1827 = vsub.s32 %v1552, %v1826
  %v1828 = vrot.slane %v1209, %v1827
  %v1829 = vlaneseq
  %v1830 = vshrl.u32 %v1829, 7
  %v1831 = vsub.s32 %v1557, %v1830
  %v1832 = vrot.slane %v1212, %v1831
  %v1833 = vsel %vm1562, %v1832, %v1828
  %v1834 = vlaneseq
  %v1835 = vshrl.u32 %v1834, 7
  %v1836 = vsub.s32 %v1564, %v1835
  %v1837 = vrot.slane %v1215, %v1836
  %v1838 = vsel %vm1569, %v1837, %v1833
  %v1839 = vlaneseq
  %v1840 = vshrl.u32 %v1839, 7
  %v1841 = vsub.s32 %v1571, %v1840
  %v1842 = vrot.slane %v1218, %v1841
  %v1843 = vsel %vm1576, %v1842, %v1838
  %v1844 = vlaneseq
  %v1845 = vshrl.u32 %v1844, 7
  %v1846 = vsub.s32 %v1552, %v1845
  %v1847 = vrot.slane %v1221, %v1846
  %v1848 = vlaneseq
  %v1849 = vshrl.u32 %v1848, 7
  %v1850 = vsub.s32 %v1557, %v1849
  %v1851 = vrot.slane %v1224, %v1850
  %v1852 = vsel %vm1562, %v1851, %v1847
  %v1853 = vlaneseq
  %v1854 = vshrl.u32 %v1853, 7
  %v1855 = vsub.s32 %v1564, %v1854
  %v1856 = vrot.slane %v1227, %v1855
  %v1857 = vsel %vm1569, %v1856, %v1852
  %v1858 = vlaneseq
  %v1859 = vshrl.u32 %v1858, 7
  %v1860 = vsub.s32 %v1571, %v1859
  %v1861 = vrot.slane %v1230, %v1860
  %v1862 = vsel %vm1576, %v1861, %v1857
  %v1863 = vlaneseq
  %v1864 = vshrl.u32 %v1863, 7
  %v1865 = vsub.s32 %v1552, %v1864
  %v1866 = vrot.slane %v1233, %v1865
  %v1867 = vlaneseq
  %v1868 = vshrl.u32 %v1867, 7
  %v1869 = vsub.s32 %v1557, %v1868
  %v1870 = vrot.slane %v1236, %v1869
  %v1871 = vsel %vm1562, %v1870, %v1866
  %v1872 = vlaneseq
  %v1873 = vshrl.u32 %v1872, 7
  %v1874 = vsub.s32 %v1564, %v1873
  %v1875 = vrot.slane %v1239, %v1874
  %v1876 = vsel %vm1569, %v1875, %v1871
  %v1877 = vlaneseq
  %v1878 = vshrl.u32 %v1877, 7
  %v1879 = vsub.s32 %v1571, %v1878
  %v1880 = vrot.slane %v1242, %v1879
  %v1881 = vsel %vm1576, %v1880, %v1876
  %v1882 = vlaneseq
  %v1883 = vshrl.u32 %v1882, 7
  %v1884 = vsub.s32 %v1552, %v1883
  %v1885 = vrot.slane %v1245, %v1884
  %v1886 = vlaneseq
  %v1887 = vshrl.u32 %v1886, 7
  %v1888 = vsub.s32 %v1557, %v1887
  %v1889 = vrot.slane %v1248, %v1888
  %v1890 = vsel %vm1562, %v1889, %v1885
  %v1891 = vlaneseq
  %v1892 = vshrl.u32 %v1891, 7
  %v1893 = vsub.s32 %v1564, %v1892
  %v1894 = vrot.slane %v1251, %v1893
  %v1895 = vsel %vm1569, %v1894, %v1890
  %v1896 = vlaneseq
  %v1897 = vshrl.u32 %v1896, 7
  %v1898 = vsub.s32 %v1571, %v1897
  %v1899 = vrot.slane %v1254, %v1898
  %v1900 = vsel %vm1576, %v1899, %v1895
  %v1901 = vlaneseq
  %v1902 = vshrl.u32 %v1901, 7
  %v1903 = vsub.s32 %v1552, %v1902
  %v1904 = vrot.slane %v1257, %v1903
  %v1905 = vlaneseq
  %v1906 = vshrl.u32 %v1905, 7
  %v1907 = vsub.s32 %v1557, %v1906
  %v1908 = vrot.slane %v1260, %v1907
  %v1909 = vsel %vm1562, %v1908, %v1904
  %v1910 = vlaneseq
  %v1911 = vshrl.u32 %v1910, 7
  %v1912 = vsub.s32 %v1564, %v1911
  %v1913 = vrot.slane %v1263, %v1912
  %v1914 = vsel %vm1569, %v1913, %v1909
  %v1915 = vlaneseq
  %v1916 = vshrl.u32 %v1915, 7
  %v1917 = vsub.s32 %v1571, %v1916
  %v1918 = vrot.slane %v1266, %v1917
  %v1919 = vsel %vm1576, %v1918, %v1914
  %v1920 = vlaneseq
  %v1921 = vshrl.u32 %v1920, 7
  %v1922 = vsub.s32 %v1552, %v1921
  %v1923 = vrot.slane %v1269, %v1922
  %v1924 = vlaneseq
  %v1925 = vshrl.u32 %v1924, 7
  %v1926 = vsub.s32 %v1557, %v1925
  %v1927 = vrot.slane %v1272, %v1926
  %v1928 = vsel %vm1562, %v1927, %v1923
  %v1929 = vlaneseq
  %v1930 = vshrl.u32 %v1929, 7
  %v1931 = vsub.s32 %v1564, %v1930
  %v1932 = vrot.slane %v1275, %v1931
  %v1933 = vsel %vm1569, %v1932, %v1928
  %v1934 = vlaneseq
  %v1935 = vshrl.u32 %v1934, 7
  %v1936 = vsub.s32 %v1571, %v1935
  %v1937 = vrot.slane %v1278, %v1936
  %v1938 = vsel %vm1576, %v1937, %v1933
  %v1939 = vlaneseq
  %v1940 = vshrl.u32 %v1939, 7
  %v1941 = vsub.s32 %v1552, %v1940
  %v1942 = vrot.slane %v1281, %v1941
  %v1943 = vlaneseq
  %v1944 = vshrl.u32 %v1943, 7
  %v1945 = vsub.s32 %v1557, %v1944
  %v1946 = vrot.slane %v1284, %v1945
  %v1947 = vsel %vm1562, %v1946, %v1942
  %v1948 = vlaneseq
  %v1949 = vshrl.u32 %v1948, 7
  %v1950 = vsub.s32 %v1564, %v1949
  %v1951 = vrot.slane %v1287, %v1950
  %v1952 = vsel %vm1569, %v1951, %v1947
  %v1953 = vlaneseq
  %v1954 = vshrl.u32 %v1953, 7
  %v1955 = vsub.s32 %v1571, %v1954
  %v1956 = vrot.slane %v1290, %v1955
  %v1957 = vsel %vm1576, %v1956, %v1952
  %v1958 = vlaneseq
  %v1959 = vshrl.u32 %v1958, 7
  %v1960 = vsub.s32 %v1552, %v1959
  %v1961 = vrot.slane %v1293, %v1960
  %v1962 = vlaneseq
  %v1963 = vshrl.u32 %v1962, 7
  %v1964 = vsub.s32 %v1557, %v1963
  %v1965 = vrot.slane %v1296, %v1964
  %v1966 = vsel %vm1562, %v1965, %v1961
  %v1967 = vlaneseq
  %v1968 = vshrl.u32 %v1967, 7
  %v1969 = vsub.s32 %v1564, %v1968
  %v1970 = vrot.slane %v1299, %v1969
  %v1971 = vsel %vm1569, %v1970, %v1966
  %v1972 = vlaneseq
  %v1973 = vshrl.u32 %v1972, 7
  %v1974 = vsub.s32 %v1571, %v1973
  %v1975 = vrot.slane %v1302, %v1974
  %v1976 = vsel %vm1576, %v1975, %v1971
  %v1977 = vlaneseq
  %v1978 = vshrl.u32 %v1977, 7
  %v1979 = vsub.s32 %v1552, %v1978
  %v1980 = vrot.slane %v1305, %v1979
  %v1981 = vlaneseq
  %v1982 = vshrl.u32 %v1981, 7
  %v1983 = vsub.s32 %v1557, %v1982
  %v1984 = vrot.slane %v1308, %v1983
  %v1985 = vsel %vm1562, %v1984, %v1980
  %v1986 = vlaneseq
  %v1987 = vshrl.u32 %v1986, 7
  %v1988 = vsub.s32 %v1564, %v1987
  %v1989 = vrot.slane %v1311, %v1988
  %v1990 = vsel %vm1569, %v1989, %v1985
  %v1991 = vlaneseq
  %v1992 = vshrl.u32 %v1991, 7
  %v1993 = vsub.s32 %v1571, %v1992
  %v1994 = vrot.slane %v1314, %v1993
  %v1995 = vsel %vm1576, %v1994, %v1990
  %v1996 = vlaneseq
  %v1997 = vshrl.u32 %v1996, 7
  %v1998 = vsub.s32 %v1552, %v1997
  %v1999 = vrot.slane %v1317, %v1998
  %v2000 = vlaneseq
  %v2001 = vshrl.u32 %v2000, 7
  %v2002 = vsub.s32 %v1557, %v2001
  %v2003 = vrot.slane %v1320, %v2002
  %v2004 = vsel %vm1562, %v2003, %v1999
  %v2005 = vlaneseq
  %v2006 = vshrl.u32 %v2005, 7
  %v2007 = vsub.s32 %v1564, %v2006
  %v2008 = vrot.slane %v1323, %v2007
  %v2009 = vsel %vm1569, %v2008, %v2004
  %v2010 = vlaneseq
  %v2011 = vshrl.u32 %v2010, 7
  %v2012 = vsub.s32 %v1571, %v2011
  %v2013 = vrot.slane %v1326, %v2012
  %v2014 = vsel %vm1576, %v2013, %v2009
  %v2015 = vlaneseq
  %v2016 = vshrl.u32 %v2015, 7
  %v2017 = vsub.s32 %v1552, %v2016
  %v2018 = vrot.slane %v1329, %v2017
  %v2019 = vlaneseq
  %v2020 = vshrl.u32 %v2019, 7
  %v2021 = vsub.s32 %v1557, %v2020
  %v2022 = vrot.slane %v1332, %v2021
  %v2023 = vsel %vm1562, %v2022, %v2018
  %v2024 = vlaneseq
  %v2025 = vshrl.u32 %v2024, 7
  %v2026 = vsub.s32 %v1564, %v2025
  %v2027 = vrot.slane %v1335, %v2026
  %v2028 = vsel %vm1569, %v2027, %v2023
  %v2029 = vlaneseq
  %v2030 = vshrl.u32 %v2029, 7
  %v2031 = vsub.s32 %v1571, %v2030
  %v2032 = vrot.slane %v1338, %v2031
  %v2033 = vsel %vm1576, %v2032, %v2028
  %v2034 = vlaneseq
  %v2035 = vshrl.u32 %v2034, 7
  %v2036 = vsub.s32 %v1552, %v2035
  %v2037 = vrot.slane %v1341, %v2036
  %v2038 = vlaneseq
  %v2039 = vshrl.u32 %v2038, 7
  %v2040 = vsub.s32 %v1557, %v2039
  %v2041 = vrot.slane %v1344, %v2040
  %v2042 = vsel %vm1562, %v2041, %v2037
  %v2043 = vlaneseq
  %v2044 = vshrl.u32 %v2043, 7
  %v2045 = vsub.s32 %v1564, %v2044
  %v2046 = vrot.slane %v1347, %v2045
  %v2047 = vsel %vm1569, %v2046, %v2042
  %v2048 = vlaneseq
  %v2049 = vshrl.u32 %v2048, 7
  %v2050 = vsub.s32 %v1571, %v2049
  %v2051 = vrot.slane %v1350, %v2050
  %v2052 = vsel %vm1576, %v2051, %v2047
  %v2053 = vlaneseq
  %v2054 = vshrl.u32 %v2053, 7
  %v2055 = vsub.s32 %v1552, %v2054
  %v2056 = vrot.slane %v1353, %v2055
  %v2057 = vlaneseq
  %v2058 = vshrl.u32 %v2057, 7
  %v2059 = vsub.s32 %v1557, %v2058
  %v2060 = vrot.slane %v1356, %v2059
  %v2061 = vsel %vm1562, %v2060, %v2056
  %v2062 = vlaneseq
  %v2063 = vshrl.u32 %v2062, 7
  %v2064 = vsub.s32 %v1564, %v2063
  %v2065 = vrot.slane %v1359, %v2064
  %v2066 = vsel %vm1569, %v2065, %v2061
  %v2067 = vlaneseq
  %v2068 = vshrl.u32 %v2067, 7
  %v2069 = vsub.s32 %v1571, %v2068
  %v2070 = vrot.slane %v1362, %v2069
  %v2071 = vsel %vm1576, %v2070, %v2066
  %v2072 = vlaneseq
  %v2073 = vshrl.u32 %v2072, 7
  %v2074 = vsub.s32 %v1552, %v2073
  %v2075 = vrot.slane %v1365, %v2074
  %v2076 = vlaneseq
  %v2077 = vshrl.u32 %v2076, 7
  %v2078 = vsub.s32 %v1557, %v2077
  %v2079 = vrot.slane %v1368, %v2078
  %v2080 = vsel %vm1562, %v2079, %v2075
  %v2081 = vlaneseq
  %v2082 = vshrl.u32 %v2081, 7
  %v2083 = vsub.s32 %v1564, %v2082
  %v2084 = vrot.slane %v1371, %v2083
  %v2085 = vsel %vm1569, %v2084, %v2080
  %v2086 = vlaneseq
  %v2087 = vshrl.u32 %v2086, 7
  %v2088 = vsub.s32 %v1571, %v2087
  %v2089 = vrot.slane %v1374, %v2088
  %v2090 = vsel %vm1576, %v2089, %v2085
  %v2091 = vlaneseq
  %v2092 = vshrl.u32 %v2091, 7
  %v2093 = vsub.s32 %v1552, %v2092
  %v2094 = vrot.slane %v1377, %v2093
  %v2095 = vlaneseq
  %v2096 = vshrl.u32 %v2095, 7
  %v2097 = vsub.s32 %v1557, %v2096
  %v2098 = vrot.slane %v1380, %v2097
  %v2099 = vsel %vm1562, %v2098, %v2094
  %v2100 = vlaneseq
  %v2101 = vshrl.u32 %v2100, 7
  %v2102 = vsub.s32 %v1564, %v2101
  %v2103 = vrot.slane %v1383, %v2102
  %v2104 = vsel %vm1569, %v2103, %v2099
  %v2105 = vlaneseq
  %v2106 = vshrl.u32 %v2105, 7
  %v2107 = vsub.s32 %v1571, %v2106
  %v2108 = vrot.slane %v1386, %v2107
  %v2109 = vsel %vm1576, %v2108, %v2104
  %v2110 = vlaneseq
  %v2111 = vshrl.u32 %v2110, 7
  %v2112 = vsub.s32 %v1552, %v2111
  %v2113 = vrot.slane %v1389, %v2112
  %v2114 = vlaneseq
  %v2115 = vshrl.u32 %v2114, 7
  %v2116 = vsub.s32 %v1557, %v2115
  %v2117 = vrot.slane %v1392, %v2116
  %v2118 = vsel %vm1562, %v2117, %v2113
  %v2119 = vlaneseq
  %v2120 = vshrl.u32 %v2119, 7
  %v2121 = vsub.s32 %v1564, %v2120
  %v2122 = vrot.slane %v1395, %v2121
  %v2123 = vsel %vm1569, %v2122, %v2118
  %v2124 = vlaneseq
  %v2125 = vshrl.u32 %v2124, 7
  %v2126 = vsub.s32 %v1571, %v2125
  %v2127 = vrot.slane %v1398, %v2126
  %v2128 = vsel %vm1576, %v2127, %v2123
  %v2129 = vlaneseq
  %v2130 = vshrl.u32 %v2129, 7
  %v2131 = vsub.s32 %v1552, %v2130
  %v2132 = vrot.slane %v1401, %v2131
  %v2133 = vlaneseq
  %v2134 = vshrl.u32 %v2133, 7
  %v2135 = vsub.s32 %v1557, %v2134
  %v2136 = vrot.slane %v1404, %v2135
  %v2137 = vsel %vm1562, %v2136, %v2132
  %v2138 = vlaneseq
  %v2139 = vshrl.u32 %v2138, 7
  %v2140 = vsub.s32 %v1564, %v2139
  %v2141 = vrot.slane %v1407, %v2140
  %v2142 = vsel %vm1569, %v2141, %v2137
  %v2143 = vlaneseq
  %v2144 = vshrl.u32 %v2143, 7
  %v2145 = vsub.s32 %v1571, %v2144
  %v2146 = vrot.slane %v1410, %v2145
  %v2147 = vsel %vm1576, %v2146, %v2142
  %v2148 = vlaneseq
  %v2149 = vshrl.u32 %v2148, 7
  %v2150 = vsub.s32 %v1552, %v2149
  %v2151 = vrot.slane %v1413, %v2150
  %v2152 = vlaneseq
  %v2153 = vshrl.u32 %v2152, 7
  %v2154 = vsub.s32 %v1557, %v2153
  %v2155 = vrot.slane %v1416, %v2154
  %v2156 = vsel %vm1562, %v2155, %v2151
  %v2157 = vlaneseq
  %v2158 = vshrl.u32 %v2157, 7
  %v2159 = vsub.s32 %v1564, %v2158
  %v2160 = vrot.slane %v1419, %v2159
  %v2161 = vsel %vm1569, %v2160, %v2156
  %v2162 = vlaneseq
  %v2163 = vshrl.u32 %v2162, 7
  %v2164 = vsub.s32 %v1571, %v2163
  %v2165 = vrot.slane %v1422, %v2164
  %v2166 = vsel %vm1576, %v2165, %v2161
  %vm2167 = vcmask 1041409
  %v2168 = vsel %vm2167, %v1596, %v1577
  %vm2169 = vcmask 1042434
  %v2170 = vsel %vm2169, %v1615, %v2168
  %vm2171 = vcmask 1043459
  %v2172 = vsel %vm2171, %v1634, %v2170
  %vm2173 = vcmask 1044484
  %v2174 = vsel %vm2173, %v1653, %v2172
  %vm2175 = vcmask 1045509
  %v2176 = vsel %vm2175, %v1672, %v2174
  %vm2177 = vcmask 1046534
  %v2178 = vsel %vm2177, %v1691, %v2176
  %vm2179 = vcmask 1047559
  %v2180 = vsel %vm2179, %v1710, %v2178
  %v2181 = vsel %vm2167, %v1748, %v1729
  %v2182 = vsel %vm2169, %v1767, %v2181
  %v2183 = vsel %vm2171, %v1786, %v2182
  %v2184 = vsel %vm2173, %v1805, %v2183
  %v2185 = vsel %vm2175, %v1824, %v2184
  %v2186 = vsel %vm2177, %v1843, %v2185
  %v2187 = vsel %vm2179, %v1862, %v2186
  %v2188 = vsel %vm2167, %v1900, %v1881
  %v2189 = vsel %vm2169, %v1919, %v2188
  %v2190 = vsel %vm2171, %v1938, %v2189
  %v2191 = vsel %vm2173, %v1957, %v2190
  %v2192 = vsel %vm2175, %v1976, %v2191
  %v2193 = vsel %vm2177, %v1995, %v2192
  %v2194 = vsel %vm2179, %v2014, %v2193
  %v2195 = vsel %vm2167, %v2052, %v2033
  %v2196 = vsel %vm2169, %v2071, %v2195
  %v2197 = vsel %vm2171, %v2090, %v2196
  %v2198 = vsel %vm2173, %v2109, %v2197
  %v2199 = vsel %vm2175, %v2128, %v2198
  %v2200 = vsel %vm2177, %v2147, %v2199
  %v2201 = vsel %vm2179, %v2166, %v2200
  %v2206 = vsel %vm29, %v2180, -1e+30
  %v2207 = vsel %vm30, %v2187, -1e+30
  %v2208 = vsel %vm31, %v2194, -1e+30
  %v2209 = vsel %vm32, %v2201, -1e+30
  %vm2210 = vcmask 261120
  %v2211 = vsel %vm2210, %v2206, -inf
  %2212 = vmax.xlane.f32.xlu0 %v2211
  %v2213 = vpop.xlane.xlu0 %2212
  %v2214 = vsel %vm2210, %v2207, -inf
  %2215 = vmax.xlane.f32.xlu0 %v2214
  %v2216 = vpop.xlane.xlu0 %2215
  %v2217 = vsel %vm2210, %v2208, -inf
  %2218 = vmax.xlane.f32.xlu0 %v2217
  %v2219 = vpop.xlane.xlu0 %2218
  %v2220 = vsel %vm2210, %v2209, -inf
  %2221 = vmax.xlane.f32.xlu0 %v2220
  %v2222 = vpop.xlane.xlu0 %2221
  %v2223 = vsub.f32 %v2206, %v2213
  %v2224 = vsub.f32 %v2207, %v2216
  %v2225 = vsub.f32 %v2208, %v2219
  %v2226 = vsub.f32 %v2209, %v2222
  %v2227 = vmul.f32 %v2223, 1.442695
  %v2228 = vpow.pop %v2227
  %v2229 = vmul.f32 %v2224, 1.442695
  %v2230 = vpow.pop %v2229
  %v2231 = vmul.f32 %v2225, 1.442695
  %v2232 = vpow.pop %v2231
  %v2233 = vmul.f32 %v2226, 1.442695
  %v2234 = vpow.pop %v2233
  %v2235 = vsel %vm2210, %v2228, 0.0
  %2236 = vadd.xlane.f32.xlu0 %v2235
  %v2237 = vpop.xlane.xlu0 %2236
  %v2238 = vsel %vm2210, %v2230, 0.0
  %2239 = vadd.xlane.f32.xlu0 %v2238
  %v2240 = vpop.xlane.xlu0 %2239
  %v2241 = vsel %vm2210, %v2232, 0.0
  %2242 = vadd.xlane.f32.xlu0 %v2241
  %v2243 = vpop.xlane.xlu0 %2242
  %v2244 = vsel %vm2210, %v2234, 0.0
  %2245 = vadd.xlane.f32.xlu0 %v2244
  %v2246 = vpop.xlane.xlu0 %2245
  %v2247 = vrcp.pop %v2237
  %v2248 = vrcp.pop %v2240
  %v2249 = vrcp.pop %v2243
  %v2250 = vrcp.pop %v2246
  %v2251 = vmul.f32 %v2228, %v2247
  %v2252 = vmul.f32 %v2230, %v2248
  %v2253 = vmul.f32 %v2232, %v2249
  %v2254 = vmul.f32 %v2234, %v2250
  %v2255 = vld [vmem:[%s3 + $0x1] sm:$0x1]
  %v2256 = vlaneseq
  %v2257 = vshrl.u32 %v2256, 7
  %v2258 = vsub.s32 0, %v2257
  %v2259 = vrot.slane %v2255, %v2258
  %v2261 = vsel %vm2210, %v2251, 0
  %v2264 = vsel %vm2210, %v2252, 0
  %v2267 = vsel %vm2210, %v2253, 0
  %v2270 = vsel %vm2210, %v2254, 0
  %2272 = vmatprep.subr.mxu0 0.0
  %2273 = vmatpush1.msra.mxu0 0.0
  %2274 = vmatprep.subr.mxu0 0.0
  %2275 = vmatpush1.msra.mxu0 0.0
  %2276 = vmatprep.subr.mxu0 0.0
  %2277 = vmatpush1.msra.mxu0 0.0
  %2278 = vmatprep.subr.mxu0 0.0
  %2279 = vmatpush1.msra.mxu0 0.0
  %2280 = vmatprep.subr.mxu0 0.0
  %2281 = vmatpush1.msra.mxu0 0.0
  %2282 = vmatprep.subr.mxu0 0.0
  %2283 = vmatpush1.msra.mxu0 0.0
  %2284 = vmatprep.subr.mxu0 0.0
  %2285 = vmatpush1.msra.mxu0 0.0
  %2286 = vmatprep.subr.mxu0 0.0
  %2287 = vmatpush1.msra.mxu0 0.0
  %2288 = vmatprep.subr.mxu0 0.0
  %2289 = vmatpush1.msra.mxu0 0.0
  %2290 = vmatprep.subr.mxu0 0.0
  %2291 = vmatpush1.msra.mxu0 0.0
  %2292 = vmatprep.subr.mxu0 0.0
  %2293 = vmatpush1.msra.mxu0 0.0
  %2294 = vmatprep.subr.mxu0 0.0
  %2295 = vmatpush1.msra.mxu0 0.0
  %2296 = vmatprep.subr.mxu0 0.0
  %2297 = vmatpush1.msra.mxu0 %v20
  %2298 = vmatprep.subr.mxu0 0.0
  %2299 = vmatpush1.msra.mxu0 %v19
  %2300 = vmatprep.subr.mxu0 0.0
  %2301 = vmatpush1.msra.mxu0 %v18
  %2302 = vmatprep.subr.mxu0 0.0
  %2303 = vmatpush1.msra.mxu0 %v17
  %2304 = vmatprep.subr.mxu0 0.0
  %2305 = vmatpush2.msra.mxu0 0.0
  %2306 = vmatprep.subr.mxu0 0.0
  %2307 = vmatpush2.msra.mxu0 0.0
  %2308 = vmatprep.subr.mxu0 0.0
  %2309 = vmatpush2.msra.mxu0 0.0
  %2310 = vmatprep.subr.mxu0 0.0
  %2311 = vmatpush2.msra.mxu0 0.0
  %2312 = vmatprep.subr.mxu0 0.0
  %2313 = vmatpush2.msra.mxu0 0.0
  %2314 = vmatprep.subr.mxu0 0.0
  %2315 = vmatpush2.msra.mxu0 0.0
  %2316 = vmatprep.subr.mxu0 0.0
  %2317 = vmatpush2.msra.mxu0 0.0
  %2318 = vmatprep.subr.mxu0 0.0
  %2319 = vmatpush2.msra.mxu0 0.0
  %2320 = vmatprep.subr.mxu0 0.0
  %2321 = vmatpush2.msra.mxu0 0.0
  %2322 = vmatprep.subr.mxu0 0.0
  %2323 = vmatpush2.msra.mxu0 0.0
  %2324 = vmatprep.subr.mxu0 0.0
  %2325 = vmatpush2.msra.mxu0 0.0
  %2326 = vmatprep.subr.mxu0 0.0
  %2327 = vmatpush2.msra.mxu0 0.0
  %2328 = vmatprep.subr.mxu0 0.0
  %2329 = vmatpush2.msra.mxu0 0.0
  %2330 = vmatprep.subr.mxu0 0.0
  %2331 = vmatpush2.msra.mxu0 0.0
  %2332 = vmatprep.subr.mxu0 0.0
  %2333 = vmatpush2.msra.mxu0 0.0
  %2334 = vmatprep.subr.mxu0 0.0
  %2335 = vmatpush2.msra.mxu0 0.0
  %2336 = vmatprep.mubr.f32.mxu0 0.0
  %2337 = vmatmul.mubr.f32.gmra.mxu0 %v2261
  %v2338 = vpop.f32.mrf.mxu0
  %v2339 = vadd.f32 %v2259, %v2338
  %v2340 = vpop.f32.mrf.mxu0
  %2341 = vmatprep.mubr.f32.mxu0 0.0
  %2342 = vmatmul.mubr.f32.gmra.mxu0 %v2264
  %v2343 = vpop.f32.mrf.mxu0
  %v2344 = vadd.f32 %v2259, %v2343
  %v2345 = vpop.f32.mrf.mxu0
  %2346 = vmatprep.mubr.f32.mxu0 0.0
  %2347 = vmatmul.mubr.f32.gmra.mxu0 %v2267
  %v2348 = vpop.f32.mrf.mxu0
  %v2349 = vadd.f32 %v2259, %v2348
  %v2350 = vpop.f32.mrf.mxu0
  %2351 = vmatprep.mubr.f32.mxu0 0.0
  %2352 = vmatmul.mubr.f32.gmra.mxu0 %v2270
  %v2353 = vpop.f32.mrf.mxu0
  %v2354 = vadd.f32 %v2259, %v2353
  %v2355 = vpop.f32.mrf.mxu0
  %2356 = vdwg.mxu0
  %2357 = vst.msk [vmem:[%s4] sm:$0xff] %vm1038, %v2339
  %2358 = vst.msk [vmem:[%s4 + $0x8] sm:$0xff] %vm1038, %v2344
  %2359 = vst.msk [vmem:[%s4 + $0x10] sm:$0xff] %vm1038, %v2349
  %2360 = vst.msk [vmem:[%s4 + $0x18] sm:$0xff] %vm1038, %v2354
  // Predicated region
  $region18: #{gat_forward.11} parent=0 // pred_check
    _
  $region19: #{gat_forward.11} parent=0 // pred_check_branch
    %2362 = sbr.rel (0) target = $region21
  $region20: #{gat_forward.11} parent=0 // pred_region
    _
  $region21: #{gat_forward.11} parent=0 // pred_fallthru
    _
  // Predicated region
  $region22: #{gat_forward.11} parent=0 // pred_check
    _
  $region23: #{gat_forward.11} parent=0 // pred_check_branch
    %2364 = sbr.rel (0) target = $region25
  $region24: #{gat_forward.11} parent=0 // pred_region
    _
  $region25: #{gat_forward.11} parent=0 // pred_fallthru
    _

// kernel: gat_forward.7
$region0: #{gat_forward.7}
  #allocation0 [shape = 'u32[]', space=smem, size = 0x4, offset = 0x4, fixed_abs, tag = 'smem constant byte address 0x4 - core index']
  #allocation1 [shape = 'u32[144,128]{1,0:T(1,128)}', space=vmem, size = 0x12000, scoped, tag = 'internal scratch']
  %s0 = inlined_call_operand.vmem [shape: f32[32,64], index: 0, kind: input, shape index: {}]
  %s1 = inlined_call_operand.vmem [shape: f32[32,64], index: 1, kind: input, shape index: {}]
  %s2 = inlined_call_operand.vmem [shape: f32[32,32], index: 2, kind: input, shape index: {}]
  %s3 = inlined_call_operand.vmem [shape: f32[2,64], index: 3, kind: input, shape index: {}]
  %s4 = inlined_call_operand.vmem [shape: f32[32,64], index: 4, kind: output, shape index: {}]
  %s5 = sld [smem:[#allocation0]]
  $region26: #{gat_forward.7} parent=0
    _
  %s7 = ssub.s32 1, %s5
  %s8 = scalar_select 0, %s7, %s5
  // Predicated region
  $region2: #{gat_forward.7} parent=0 // pred_check
    _
  $region3: #{gat_forward.7} parent=0 // pred_check_branch
    %10 = sbr.rel (0) target = $region5
  $region4: #{gat_forward.7} parent=0 // pred_region
    _
  $region5: #{gat_forward.7} parent=0 // pred_fallthru
    _
  // Predicated region
  $region6: #{gat_forward.7} parent=0 // pred_check
    _
  $region7: #{gat_forward.7} parent=0 // pred_check_branch
    %12 = sbr.rel (0) target = $region9
  $region8: #{gat_forward.7} parent=0 // pred_region
    _
  $region9: #{gat_forward.7} parent=0 // pred_fallthru
    _
  // Predicated region
  $region10: #{gat_forward.7} parent=0 // pred_check
    _
  $region11: #{gat_forward.7} parent=0 // pred_check_branch
    %14 = sbr.rel (0) target = $region13
  $region12: #{gat_forward.7} parent=0 // pred_region
    _
  $region13: #{gat_forward.7} parent=0 // pred_fallthru
    _
  // Predicated region
  $region14: #{gat_forward.7} parent=0 // pred_check
    _
  $region15: #{gat_forward.7} parent=0 // pred_check_branch
    %16 = sbr.rel (0) target = $region17
  $region16: #{gat_forward.7} parent=0 // pred_region
    _
  $region17: #{gat_forward.7} parent=0 // pred_fallthru
    _
  %v17 = vld [vmem:[%s1] sm:$0xff]
  %v18 = vld [vmem:[%s1 + $0x8] sm:$0xff]
  %v19 = vld [vmem:[%s1 + $0x10] sm:$0xff]
  %v20 = vld [vmem:[%s1 + $0x18] sm:$0xff]
  %v21 = vld [vmem:[%s0] sm:$0xff]
  %v22 = vld [vmem:[%s0 + $0x8] sm:$0xff]
  %v23 = vld [vmem:[%s0 + $0x10] sm:$0xff]
  %v24 = vld [vmem:[%s0 + $0x18] sm:$0xff]
  %v25 = vld [vmem:[%s2] sm:$0xff]
  %v26 = vld [vmem:[%s2 + $0x8] sm:$0xff]
  %v27 = vld [vmem:[%s2 + $0x10] sm:$0xff]
  %v28 = vld [vmem:[%s2 + $0x18] sm:$0xff]
  %vm29 = vcmp.gt.f32.partialorder %v25, 0.0
  %vm30 = vcmp.gt.f32.partialorder %v26, 0.0
  %vm31 = vcmp.gt.f32.partialorder %v27, 0.0
  %vm32 = vcmp.gt.f32.partialorder %v28, 0.0
  %v33 = vld [vmem:[%s3] sm:$0x1]
  %v38 = vcombine.high %v21, %v21
  %v40 = vunpack.c.l.s4 1966171168
  %v41 = vunpack.c.0.s8 %v40
  %v42 = vlaneseq
  %v43 = vshrl.u32 %v42, 7
  %v44 = vsub.s32 %v41, %v43
  %v45 = vrot.slane %v21, %v44
  %v47 = vunpack.c.l.s4 1966171168
  %v48 = vunpack.c.0.s8 %v47
  %v49 = vlaneseq
  %v50 = vshrl.u32 %v49, 7
  %v51 = vsub.s32 %v48, %v50
  %v52 = vrot.slane %v38, %v51
  %v53 = vcombine.high %v45, %v45
  %v54 = vcombine.high %v52, %v52
  %v56 = vunpack.c.l.s4 1966171168
  %v57 = vunpack.c.0.s8 %v56
  %v58 = vlaneseq
  %v59 = vshrl.u32 %v58, 7
  %v60 = vsub.s32 %v57, %v59
  %v61 = vrot.slane %v45, %v60
  %v63 = vunpack.c.l.s4 1966171168
  %v64 = vunpack.c.0.s8 %v63
  %v65 = vlaneseq
  %v66 = vshrl.u32 %v65, 7
  %v67 = vsub.s32 %v64, %v66
  %v68 = vrot.slane %v52, %v67
  %v70 = vunpack.c.l.s4 1966171168
  %v71 = vunpack.c.0.s8 %v70
  %v72 = vlaneseq
  %v73 = vshrl.u32 %v72, 7
  %v74 = vsub.s32 %v71, %v73
  %v75 = vrot.slane %v53, %v74
  %v77 = vunpack.c.l.s4 1966171168
  %v78 = vunpack.c.0.s8 %v77
  %v79 = vlaneseq
  %v80 = vshrl.u32 %v79, 7
  %v81 = vsub.s32 %v78, %v80
  %v82 = vrot.slane %v54, %v81
  %v83 = vcombine.high %v61, %v61
  %v84 = vcombine.high %v68, %v68
  %v85 = vcombine.high %v75, %v75
  %v86 = vcombine.high %v82, %v82
  %v87 = vcombine.high %v22, %v22
  %v89 = vunpack.c.l.s4 1966171168
  %v90 = vunpack.c.0.s8 %v89
  %v91 = vlaneseq
  %v92 = vshrl.u32 %v91, 7
  %v93 = vsub.s32 %v90, %v92
  %v94 = vrot.slane %v22, %v93
  %v96 = vunpack.c.l.s4 1966171168
  %v97 = vunpack.c.0.s8 %v96
  %v98 = vlaneseq
  %v99 = vshrl.u32 %v98, 7
  %v100 = vsub.s32 %v97, %v99
  %v101 = vrot.slane %v87, %v100
  %v102 = vcombine.high %v94, %v94
  %v103 = vcombine.high %v101, %v101
  %v105 = vunpack.c.l.s4 1966171168
  %v106 = vunpack.c.0.s8 %v105
  %v107 = vlaneseq
  %v108 = vshrl.u32 %v107, 7
  %v109 = vsub.s32 %v106, %v108
  %v110 = vrot.slane %v94, %v109
  %v112 = vunpack.c.l.s4 1966171168
  %v113 = vunpack.c.0.s8 %v112
  %v114 = vlaneseq
  %v115 = vshrl.u32 %v114, 7
  %v116 = vsub.s32 %v113, %v115
  %v117 = vrot.slane %v101, %v116
  %v119 = vunpack.c.l.s4 1966171168
  %v120 = vunpack.c.0.s8 %v119
  %v121 = vlaneseq
  %v122 = vshrl.u32 %v121, 7
  %v123 = vsub.s32 %v120, %v122
  %v124 = vrot.slane %v102, %v123
  %v126 = vunpack.c.l.s4 1966171168
  %v127 = vunpack.c.0.s8 %v126
  %v128 = vlaneseq
  %v129 = vshrl.u32 %v128, 7
  %v130 = vsub.s32 %v127, %v129
  %v131 = vrot.slane %v103, %v130
  %v132 = vcombine.high %v110, %v110
  %v133 = vcombine.high %v117, %v117
  %v134 = vcombine.high %v124, %v124
  %v135 = vcombine.high %v131, %v131
  %v136 = vcombine.high %v23, %v23
  %v138 = vunpack.c.l.s4 1966171168
  %v139 = vunpack.c.0.s8 %v138
  %v140 = vlaneseq
  %v141 = vshrl.u32 %v140, 7
  %v142 = vsub.s32 %v139, %v141
  %v143 = vrot.slane %v23, %v142
  %v145 = vunpack.c.l.s4 1966171168
  %v146 = vunpack.c.0.s8 %v145
  %v147 = vlaneseq
  %v148 = vshrl.u32 %v147, 7
  %v149 = vsub.s32 %v146, %v148
  %v150 = vrot.slane %v136, %v149
  %v151 = vcombine.high %v143, %v143
  %v152 = vcombine.high %v150, %v150
  %v154 = vunpack.c.l.s4 1966171168
  %v155 = vunpack.c.0.s8 %v154
  %v156 = vlaneseq
  %v157 = vshrl.u32 %v156, 7
  %v158 = vsub.s32 %v155, %v157
  %v159 = vrot.slane %v143, %v158
  %v161 = vunpack.c.l.s4 1966171168
  %v162 = vunpack.c.0.s8 %v161
  %v163 = vlaneseq
  %v164 = vshrl.u32 %v163, 7
  %v165 = vsub.s32 %v162, %v164
  %v166 = vrot.slane %v150, %v165
  %v168 = vunpack.c.l.s4 1966171168
  %v169 = vunpack.c.0.s8 %v168
  %v170 = vlaneseq
  %v171 = vshrl.u32 %v170, 7
  %v172 = vsub.s32 %v169, %v171
  %v173 = vrot.slane %v151, %v172
  %v175 = vunpack.c.l.s4 1966171168
  %v176 = vunpack.c.0.s8 %v175
  %v177 = vlaneseq
  %v178 = vshrl.u32 %v177, 7
  %v179 = vsub.s32 %v176, %v178
  %v180 = vrot.slane %v152, %v179
  %v181 = vcombine.high %v159, %v159
  %v182 = vcombine.high %v166, %v166
  %v183 = vcombine.high %v173, %v173
  %v184 = vcombine.high %v180, %v180
  %v185 = vcombine.high %v24, %v24
  %v187 = vunpack.c.l.s4 1966171168
  %v188 = vunpack.c.0.s8 %v187
  %v189 = vlaneseq
  %v190 = vshrl.u32 %v189, 7
  %v191 = vsub.s32 %v188, %v190
  %v192 = vrot.slane %v24, %v191
  %v194 = vunpack.c.l.s4 1966171168
  %v195 = vunpack.c.0.s8 %v194
  %v196 = vlaneseq
  %v197 = vshrl.u32 %v196, 7
  %v198 = vsub.s32 %v195, %v197
  %v199 = vrot.slane %v185, %v198
  %v200 = vcombine.high %v192, %v192
  %v201 = vcombine.high %v199, %v199
  %v203 = vunpack.c.l.s4 1966171168
  %v204 = vunpack.c.0.s8 %v203
  %v205 = vlaneseq
  %v206 = vshrl.u32 %v205, 7
  %v207 = vsub.s32 %v204, %v206
  %v208 = vrot.slane %v192, %v207
  %v210 = vunpack.c.l.s4 1966171168
  %v211 = vunpack.c.0.s8 %v210
  %v212 = vlaneseq
  %v213 = vshrl.u32 %v212, 7
  %v214 = vsub.s32 %v211, %v213
  %v215 = vrot.slane %v199, %v214
  %v217 = vunpack.c.l.s4 1966171168
  %v218 = vunpack.c.0.s8 %v217
  %v219 = vlaneseq
  %v220 = vshrl.u32 %v219, 7
  %v221 = vsub.s32 %v218, %v220
  %v222 = vrot.slane %v200, %v221
  %v224 = vunpack.c.l.s4 1966171168
  %v225 = vunpack.c.0.s8 %v224
  %v226 = vlaneseq
  %v227 = vshrl.u32 %v226, 7
  %v228 = vsub.s32 %v225, %v227
  %v229 = vrot.slane %v201, %v228
  %v230 = vcombine.high %v208, %v208
  %v231 = vcombine.high %v215, %v215
  %v232 = vcombine.high %v222, %v222
  %v233 = vcombine.high %v229, %v229
  %v234 = vlaneseq
  %v235 = vshrl.u32 %v234, 7
  %v236 = vsub.s32 0, %v235
  %v237 = vrot.slane %v61, %v236
  %v238 = vlaneseq
  %v239 = vshrl.u32 %v238, 7
  %v240 = vsub.s32 0, %v239
  %v241 = vrot.slane %v75, %v240
  %v242 = vlaneseq
  %v243 = vshrl.u32 %v242, 7
  %v244 = vsub.s32 0, %v243
  %v245 = vrot.slane %v83, %v244
  %v246 = vlaneseq
  %v247 = vshrl.u32 %v246, 7
  %v248 = vsub.s32 0, %v247
  %v249 = vrot.slane %v85, %v248
  %v250 = vlaneseq
  %v251 = vshrl.u32 %v250, 7
  %v252 = vsub.s32 0, %v251
  %v253 = vrot.slane %v68, %v252
  %v254 = vlaneseq
  %v255 = vshrl.u32 %v254, 7
  %v256 = vsub.s32 0, %v255
  %v257 = vrot.slane %v82, %v256
  %v258 = vlaneseq
  %v259 = vshrl.u32 %v258, 7
  %v260 = vsub.s32 0, %v259
  %v261 = vrot.slane %v84, %v260
  %v262 = vlaneseq
  %v263 = vshrl.u32 %v262, 7
  %v264 = vsub.s32 0, %v263
  %v265 = vrot.slane %v86, %v264
  %v266 = vlaneseq
  %v267 = vshrl.u32 %v266, 7
  %v268 = vsub.s32 0, %v267
  %v269 = vrot.slane %v110, %v268
  %v270 = vlaneseq
  %v271 = vshrl.u32 %v270, 7
  %v272 = vsub.s32 0, %v271
  %v273 = vrot.slane %v124, %v272
  %v274 = vlaneseq
  %v275 = vshrl.u32 %v274, 7
  %v276 = vsub.s32 0, %v275
  %v277 = vrot.slane %v132, %v276
  %v278 = vlaneseq
  %v279 = vshrl.u32 %v278, 7
  %v280 = vsub.s32 0, %v279
  %v281 = vrot.slane %v134, %v280
  %v282 = vlaneseq
  %v283 = vshrl.u32 %v282, 7
  %v284 = vsub.s32 0, %v283
  %v285 = vrot.slane %v117, %v284
  %v286 = vlaneseq
  %v287 = vshrl.u32 %v286, 7
  %v288 = vsub.s32 0, %v287
  %v289 = vrot.slane %v131, %v288
  %v290 = vlaneseq
  %v291 = vshrl.u32 %v290, 7
  %v292 = vsub.s32 0, %v291
  %v293 = vrot.slane %v133, %v292
  %v294 = vlaneseq
  %v295 = vshrl.u32 %v294, 7
  %v296 = vsub.s32 0, %v295
  %v297 = vrot.slane %v135, %v296
  %v298 = vlaneseq
  %v299 = vshrl.u32 %v298, 7
  %v300 = vsub.s32 0, %v299
  %v301 = vrot.slane %v159, %v300
  %v302 = vlaneseq
  %v303 = vshrl.u32 %v302, 7
  %v304 = vsub.s32 0, %v303
  %v305 = vrot.slane %v173, %v304
  %v306 = vlaneseq
  %v307 = vshrl.u32 %v306, 7
  %v308 = vsub.s32 0, %v307
  %v309 = vrot.slane %v181, %v308
  %v310 = vlaneseq
  %v311 = vshrl.u32 %v310, 7
  %v312 = vsub.s32 0, %v311
  %v313 = vrot.slane %v183, %v312
  %v314 = vlaneseq
  %v315 = vshrl.u32 %v314, 7
  %v316 = vsub.s32 0, %v315
  %v317 = vrot.slane %v166, %v316
  %v318 = vlaneseq
  %v319 = vshrl.u32 %v318, 7
  %v320 = vsub.s32 0, %v319
  %v321 = vrot.slane %v180, %v320
  %v322 = vlaneseq
  %v323 = vshrl.u32 %v322, 7
  %v324 = vsub.s32 0, %v323
  %v325 = vrot.slane %v182, %v324
  %v326 = vlaneseq
  %v327 = vshrl.u32 %v326, 7
  %v328 = vsub.s32 0, %v327
  %v329 = vrot.slane %v184, %v328
  %v330 = vlaneseq
  %v331 = vshrl.u32 %v330, 7
  %v332 = vsub.s32 0, %v331
  %v333 = vrot.slane %v208, %v332
  %v334 = vlaneseq
  %v335 = vshrl.u32 %v334, 7
  %v336 = vsub.s32 0, %v335
  %v337 = vrot.slane %v222, %v336
  %v338 = vlaneseq
  %v339 = vshrl.u32 %v338, 7
  %v340 = vsub.s32 0, %v339
  %v341 = vrot.slane %v230, %v340
  %v342 = vlaneseq
  %v343 = vshrl.u32 %v342, 7
  %v344 = vsub.s32 0, %v343
  %v345 = vrot.slane %v232, %v344
  %v346 = vlaneseq
  %v347 = vshrl.u32 %v346, 7
  %v348 = vsub.s32 0, %v347
  %v349 = vrot.slane %v215, %v348
  %v350 = vlaneseq
  %v351 = vshrl.u32 %v350, 7
  %v352 = vsub.s32 0, %v351
  %v353 = vrot.slane %v229, %v352
  %v354 = vlaneseq
  %v355 = vshrl.u32 %v354, 7
  %v356 = vsub.s32 0, %v355
  %v357 = vrot.slane %v231, %v356
  %v358 = vlaneseq
  %v359 = vshrl.u32 %v358, 7
  %v360 = vsub.s32 0, %v359
  %v361 = vrot.slane %v233, %v360
  %v394 = vadd.f32 %v237, %v17
  %v395 = vadd.f32 %v237, %v18
  %v396 = vadd.f32 %v237, %v19
  %v397 = vadd.f32 %v237, %v20
  %v398 = vadd.f32 %v241, %v17
  %v399 = vadd.f32 %v241, %v18
  %v400 = vadd.f32 %v241, %v19
  %v401 = vadd.f32 %v241, %v20
  %v402 = vadd.f32 %v245, %v17
  %v403 = vadd.f32 %v245, %v18
  %v404 = vadd.f32 %v245, %v19
  %v405 = vadd.f32 %v245, %v20
  %v406 = vadd.f32 %v249, %v17
  %v407 = vadd.f32 %v249, %v18
  %v408 = vadd.f32 %v249, %v19
  %v409 = vadd.f32 %v249, %v20
  %v410 = vadd.f32 %v253, %v17
  %v411 = vadd.f32 %v253, %v18
  %v412 = vadd.f32 %v253, %v19
  %v413 = vadd.f32 %v253, %v20
  %v414 = vadd.f32 %v257, %v17
  %v415 = vadd.f32 %v257, %v18
  %v416 = vadd.f32 %v257, %v19
  %v417 = vadd.f32 %v257, %v20
  %v418 = vadd.f32 %v261, %v17
  %v419 = vadd.f32 %v261, %v18
  %v420 = vadd.f32 %v261, %v19
  %v421 = vadd.f32 %v261, %v20
  %v422 = vadd.f32 %v265, %v17
  %v423 = vadd.f32 %v265, %v18
  %v424 = vadd.f32 %v265, %v19
  %v425 = vadd.f32 %v265, %v20
  %v426 = vadd.f32 %v269, %v17
  %v427 = vadd.f32 %v269, %v18
  %v428 = vadd.f32 %v269, %v19
  %v429 = vadd.f32 %v269, %v20
  %v430 = vadd.f32 %v273, %v17
  %v431 = vadd.f32 %v273, %v18
  %v432 = vadd.f32 %v273, %v19
  %v433 = vadd.f32 %v273, %v20
  %v434 = vadd.f32 %v277, %v17
  %v435 = vadd.f32 %v277, %v18
  %v436 = vadd.f32 %v277, %v19
  %v437 = vadd.f32 %v277, %v20
  %v438 = vadd.f32 %v281, %v17
  %v439 = vadd.f32 %v281, %v18
  %v440 = vadd.f32 %v281, %v19
  %v441 = vadd.f32 %v281, %v20
  %v442 = vadd.f32 %v285, %v17
  %v443 = vadd.f32 %v285, %v18
  %v444 = vadd.f32 %v285, %v19
  %v445 = vadd.f32 %v285, %v20
  %v446 = vadd.f32 %v289, %v17
  %v447 = vadd.f32 %v289, %v18
  %v448 = vadd.f32 %v289, %v19
  %v449 = vadd.f32 %v289, %v20
  %v450 = vadd.f32 %v293, %v17
  %v451 = vadd.f32 %v293, %v18
  %v452 = vadd.f32 %v293, %v19
  %v453 = vadd.f32 %v293, %v20
  %v454 = vadd.f32 %v297, %v17
  %v455 = vadd.f32 %v297, %v18
  %v456 = vadd.f32 %v297, %v19
  %v457 = vadd.f32 %v297, %v20
  %v458 = vadd.f32 %v301, %v17
  %v459 = vadd.f32 %v301, %v18
  %v460 = vadd.f32 %v301, %v19
  %v461 = vadd.f32 %v301, %v20
  %v462 = vadd.f32 %v305, %v17
  %v463 = vadd.f32 %v305, %v18
  %v464 = vadd.f32 %v305, %v19
  %v465 = vadd.f32 %v305, %v20
  %v466 = vadd.f32 %v309, %v17
  %v467 = vadd.f32 %v309, %v18
  %v468 = vadd.f32 %v309, %v19
  %v469 = vadd.f32 %v309, %v20
  %v470 = vadd.f32 %v313, %v17
  %v471 = vadd.f32 %v313, %v18
  %v472 = vadd.f32 %v313, %v19
  %v473 = vadd.f32 %v313, %v20
  %v474 = vadd.f32 %v317, %v17
  %v475 = vadd.f32 %v317, %v18
  %v476 = vadd.f32 %v317, %v19
  %v477 = vadd.f32 %v317, %v20
  %v478 = vadd.f32 %v321, %v17
  %v479 = vadd.f32 %v321, %v18
  %v480 = vadd.f32 %v321, %v19
  %v481 = vadd.f32 %v321, %v20
  %v482 = vadd.f32 %v325, %v17
  %v483 = vadd.f32 %v325, %v18
  %v484 = vadd.f32 %v325, %v19
  %v485 = vadd.f32 %v325, %v20
  %v486 = vadd.f32 %v329, %v17
  %v487 = vadd.f32 %v329, %v18
  %v488 = vadd.f32 %v329, %v19
  %v489 = vadd.f32 %v329, %v20
  %v490 = vadd.f32 %v333, %v17
  %v491 = vadd.f32 %v333, %v18
  %v492 = vadd.f32 %v333, %v19
  %v493 = vadd.f32 %v333, %v20
  %v494 = vadd.f32 %v337, %v17
  %v495 = vadd.f32 %v337, %v18
  %v496 = vadd.f32 %v337, %v19
  %v497 = vadd.f32 %v337, %v20
  %v498 = vadd.f32 %v341, %v17
  %v499 = vadd.f32 %v341, %v18
  %v500 = vadd.f32 %v341, %v19
  %v501 = vadd.f32 %v341, %v20
  %v502 = vadd.f32 %v345, %v17
  %v503 = vadd.f32 %v345, %v18
  %v504 = vadd.f32 %v345, %v19
  %v505 = vadd.f32 %v345, %v20
  %v506 = vadd.f32 %v349, %v17
  %v507 = vadd.f32 %v349, %v18
  %v508 = vadd.f32 %v349, %v19
  %v509 = vadd.f32 %v349, %v20
  %v510 = vadd.f32 %v353, %v17
  %v511 = vadd.f32 %v353, %v18
  %v512 = vadd.f32 %v353, %v19
  %v513 = vadd.f32 %v353, %v20
  %v514 = vadd.f32 %v357, %v17
  %v515 = vadd.f32 %v357, %v18
  %v516 = vadd.f32 %v357, %v19
  %v517 = vadd.f32 %v357, %v20
  %v518 = vadd.f32 %v361, %v17
  %v519 = vadd.f32 %v361, %v18
  %v520 = vadd.f32 %v361, %v19
  %v521 = vadd.f32 %v361, %v20
  %vm522 = vcmp.gt.f32.partialorder %v394, 0.0
  %vm523 = vcmp.gt.f32.partialorder %v395, 0.0
  %vm524 = vcmp.gt.f32.partialorder %v396, 0.0
  %vm525 = vcmp.gt.f32.partialorder %v397, 0.0
  %vm526 = vcmp.gt.f32.partialorder %v398, 0.0
  %vm527 = vcmp.gt.f32.partialorder %v399, 0.0
  %vm528 = vcmp.gt.f32.partialorder %v400, 0.0
  %vm529 = vcmp.gt.f32.partialorder %v401, 0.0
  %vm530 = vcmp.gt.f32.partialorder %v402, 0.0
  %vm531 = vcmp.gt.f32.partialorder %v403, 0.0
  %vm532 = vcmp.gt.f32.partialorder %v404, 0.0
  %vm533 = vcmp.gt.f32.partialorder %v405, 0.0
  %vm534 = vcmp.gt.f32.partialorder %v406, 0.0
  %vm535 = vcmp.gt.f32.partialorder %v407, 0.0
  %vm536 = vcmp.gt.f32.partialorder %v408, 0.0
  %vm537 = vcmp.gt.f32.partialorder %v409, 0.0
  %vm538 = vcmp.gt.f32.partialorder %v410, 0.0
  %vm539 = vcmp.gt.f32.partialorder %v411, 0.0
  %vm540 = vcmp.gt.f32.partialorder %v412, 0.0
  %vm541 = vcmp.gt.f32.partialorder %v413, 0.0
  %vm542 = vcmp.gt.f32.partialorder %v414, 0.0
  %vm543 = vcmp.gt.f32.partialorder %v415, 0.0
  %vm544 = vcmp.gt.f32.partialorder %v416, 0.0
  %vm545 = vcmp.gt.f32.partialorder %v417, 0.0
  %vm546 = vcmp.gt.f32.partialorder %v418, 0.0
  %vm547 = vcmp.gt.f32.partialorder %v419, 0.0
  %vm548 = vcmp.gt.f32.partialorder %v420, 0.0
  %vm549 = vcmp.gt.f32.partialorder %v421, 0.0
  %vm550 = vcmp.gt.f32.partialorder %v422, 0.0
  %vm551 = vcmp.gt.f32.partialorder %v423, 0.0
  %vm552 = vcmp.gt.f32.partialorder %v424, 0.0
  %vm553 = vcmp.gt.f32.partialorder %v425, 0.0
  %vm554 = vcmp.gt.f32.partialorder %v426, 0.0
  %vm555 = vcmp.gt.f32.partialorder %v427, 0.0
  %vm556 = vcmp.gt.f32.partialorder %v428, 0.0
  %vm557 = vcmp.gt.f32.partialorder %v429, 0.0
  %vm558 = vcmp.gt.f32.partialorder %v430, 0.0
  %vm559 = vcmp.gt.f32.partialorder %v431, 0.0
  %vm560 = vcmp.gt.f32.partialorder %v432, 0.0
  %vm561 = vcmp.gt.f32.partialorder %v433, 0.0
  %vm562 = vcmp.gt.f32.partialorder %v434, 0.0
  %vm563 = vcmp.gt.f32.partialorder %v435, 0.0
  %vm564 = vcmp.gt.f32.partialorder %v436, 0.0
  %vm565 = vcmp.gt.f32.partialorder %v437, 0.0
  %vm566 = vcmp.gt.f32.partialorder %v438, 0.0
  %vm567 = vcmp.gt.f32.partialorder %v439, 0.0
  %vm568 = vcmp.gt.f32.partialorder %v440, 0.0
  %vm569 = vcmp.gt.f32.partialorder %v441, 0.0
  %vm570 = vcmp.gt.f32.partialorder %v442, 0.0
  %vm571 = vcmp.gt.f32.partialorder %v443, 0.0
  %vm572 = vcmp.gt.f32.partialorder %v444, 0.0
  %vm573 = vcmp.gt.f32.partialorder %v445, 0.0
  %vm574 = vcmp.gt.f32.partialorder %v446, 0.0
  %vm575 = vcmp.gt.f32.partialorder %v447, 0.0
  %vm576 = vcmp.gt.f32.partialorder %v448, 0.0
  %vm577 = vcmp.gt.f32.partialorder %v449, 0.0
  %vm578 = vcmp.gt.f32.partialorder %v450, 0.0
  %vm579 = vcmp.gt.f32.partialorder %v451, 0.0
  %vm580 = vcmp.gt.f32.partialorder %v452, 0.0
  %vm581 = vcmp.gt.f32.partialorder %v453, 0.0
  %vm582 = vcmp.gt.f32.partialorder %v454, 0.0
  %vm583 = vcmp.gt.f32.partialorder %v455, 0.0
  %vm584 = vcmp.gt.f32.partialorder %v456, 0.0
  %vm585 = vcmp.gt.f32.partialorder %v457, 0.0
  %vm586 = vcmp.gt.f32.partialorder %v458, 0.0
  %vm587 = vcmp.gt.f32.partialorder %v459, 0.0
  %vm588 = vcmp.gt.f32.partialorder %v460, 0.0
  %vm589 = vcmp.gt.f32.partialorder %v461, 0.0
  %vm590 = vcmp.gt.f32.partialorder %v462, 0.0
  %vm591 = vcmp.gt.f32.partialorder %v463, 0.0
  %vm592 = vcmp.gt.f32.partialorder %v464, 0.0
  %vm593 = vcmp.gt.f32.partialorder %v465, 0.0
  %vm594 = vcmp.gt.f32.partialorder %v466, 0.0
  %vm595 = vcmp.gt.f32.partialorder %v467, 0.0
  %vm596 = vcmp.gt.f32.partialorder %v468, 0.0
  %vm597 = vcmp.gt.f32.partialorder %v469, 0.0
  %vm598 = vcmp.gt.f32.partialorder %v470, 0.0
  %vm599 = vcmp.gt.f32.partialorder %v471, 0.0
  %vm600 = vcmp.gt.f32.partialorder %v472, 0.0
  %vm601 = vcmp.gt.f32.partialorder %v473, 0.0
  %vm602 = vcmp.gt.f32.partialorder %v474, 0.0
  %vm603 = vcmp.gt.f32.partialorder %v475, 0.0
  %vm604 = vcmp.gt.f32.partialorder %v476, 0.0
  %vm605 = vcmp.gt.f32.partialorder %v477, 0.0
  %vm606 = vcmp.gt.f32.partialorder %v478, 0.0
  %vm607 = vcmp.gt.f32.partialorder %v479, 0.0
  %vm608 = vcmp.gt.f32.partialorder %v480, 0.0
  %vm609 = vcmp.gt.f32.partialorder %v481, 0.0
  %vm610 = vcmp.gt.f32.partialorder %v482, 0.0
  %vm611 = vcmp.gt.f32.partialorder %v483, 0.0
  %vm612 = vcmp.gt.f32.partialorder %v484, 0.0
  %vm613 = vcmp.gt.f32.partialorder %v485, 0.0
  %vm614 = vcmp.gt.f32.partialorder %v486, 0.0
  %vm615 = vcmp.gt.f32.partialorder %v487, 0.0
  %vm616 = vcmp.gt.f32.partialorder %v488, 0.0
  %vm617 = vcmp.gt.f32.partialorder %v489, 0.0
  %vm618 = vcmp.gt.f32.partialorder %v490, 0.0
  %vm619 = vcmp.gt.f32.partialorder %v491, 0.0
  %vm620 = vcmp.gt.f32.partialorder %v492, 0.0
  %vm621 = vcmp.gt.f32.partialorder %v493, 0.0
  %vm622 = vcmp.gt.f32.partialorder %v494, 0.0
  %vm623 = vcmp.gt.f32.partialorder %v495, 0.0
  %vm624 = vcmp.gt.f32.partialorder %v496, 0.0
  %vm625 = vcmp.gt.f32.partialorder %v497, 0.0
  %vm626 = vcmp.gt.f32.partialorder %v498, 0.0
  %vm627 = vcmp.gt.f32.partialorder %v499, 0.0
  %vm628 = vcmp.gt.f32.partialorder %v500, 0.0
  %vm629 = vcmp.gt.f32.partialorder %v501, 0.0
  %vm630 = vcmp.gt.f32.partialorder %v502, 0.0
  %vm631 = vcmp.gt.f32.partialorder %v503, 0.0
  %vm632 = vcmp.gt.f32.partialorder %v504, 0.0
  %vm633 = vcmp.gt.f32.partialorder %v505, 0.0
  %vm634 = vcmp.gt.f32.partialorder %v506, 0.0
  %vm635 = vcmp.gt.f32.partialorder %v507, 0.0
  %vm636 = vcmp.gt.f32.partialorder %v508, 0.0
  %vm637 = vcmp.gt.f32.partialorder %v509, 0.0
  %vm638 = vcmp.gt.f32.partialorder %v510, 0.0
  %vm639 = vcmp.gt.f32.partialorder %v511, 0.0
  %vm640 = vcmp.gt.f32.partialorder %v512, 0.0
  %vm641 = vcmp.gt.f32.partialorder %v513, 0.0
  %vm642 = vcmp.gt.f32.partialorder %v514, 0.0
  %vm643 = vcmp.gt.f32.partialorder %v515, 0.0
  %vm644 = vcmp.gt.f32.partialorder %v516, 0.0
  %vm645 = vcmp.gt.f32.partialorder %v517, 0.0
  %vm646 = vcmp.gt.f32.partialorder %v518, 0.0
  %vm647 = vcmp.gt.f32.partialorder %v519, 0.0
  %vm648 = vcmp.gt.f32.partialorder %v520, 0.0
  %vm649 = vcmp.gt.f32.partialorder %v521, 0.0
  %v650 = vmul.f32 %v394, 0.2
  %v651 = vmul.f32 %v395, 0.2
  %v652 = vmul.f32 %v396, 0.2
  %v653 = vmul.f32 %v397, 0.2
  %v654 = vmul.f32 %v398, 0.2
  %v655 = vmul.f32 %v399, 0.2
  %v656 = vmul.f32 %v400, 0.2
  %v657 = vmul.f32 %v401, 0.2
  %v658 = vmul.f32 %v402, 0.2
  %v659 = vmul.f32 %v403, 0.2
  %v660 = vmul.f32 %v404, 0.2
  %v661 = vmul.f32 %v405, 0.2
  %v662 = vmul.f32 %v406, 0.2
  %v663 = vmul.f32 %v407, 0.2
  %v664 = vmul.f32 %v408, 0.2
  %v665 = vmul.f32 %v409, 0.2
  %v666 = vmul.f32 %v410, 0.2
  %v667 = vmul.f32 %v411, 0.2
  %v668 = vmul.f32 %v412, 0.2
  %v669 = vmul.f32 %v413, 0.2
  %v670 = vmul.f32 %v414, 0.2
  %v671 = vmul.f32 %v415, 0.2
  %v672 = vmul.f32 %v416, 0.2
  %v673 = vmul.f32 %v417, 0.2
  %v674 = vmul.f32 %v418, 0.2
  %v675 = vmul.f32 %v419, 0.2
  %v676 = vmul.f32 %v420, 0.2
  %v677 = vmul.f32 %v421, 0.2
  %v678 = vmul.f32 %v422, 0.2
  %v679 = vmul.f32 %v423, 0.2
  %v680 = vmul.f32 %v424, 0.2
  %v681 = vmul.f32 %v425, 0.2
  %v682 = vmul.f32 %v426, 0.2
  %v683 = vmul.f32 %v427, 0.2
  %v684 = vmul.f32 %v428, 0.2
  %v685 = vmul.f32 %v429, 0.2
  %v686 = vmul.f32 %v430, 0.2
  %v687 = vmul.f32 %v431, 0.2
  %v688 = vmul.f32 %v432, 0.2
  %v689 = vmul.f32 %v433, 0.2
  %v690 = vmul.f32 %v434, 0.2
  %v691 = vmul.f32 %v435, 0.2
  %v692 = vmul.f32 %v436, 0.2
  %v693 = vmul.f32 %v437, 0.2
  %v694 = vmul.f32 %v438, 0.2
  %v695 = vmul.f32 %v439, 0.2
  %v696 = vmul.f32 %v440, 0.2
  %v697 = vmul.f32 %v441, 0.2
  %v698 = vmul.f32 %v442, 0.2
  %v699 = vmul.f32 %v443, 0.2
  %v700 = vmul.f32 %v444, 0.2
  %v701 = vmul.f32 %v445, 0.2
  %v702 = vmul.f32 %v446, 0.2
  %v703 = vmul.f32 %v447, 0.2
  %v704 = vmul.f32 %v448, 0.2
  %v705 = vmul.f32 %v449, 0.2
  %v706 = vmul.f32 %v450, 0.2
  %v707 = vmul.f32 %v451, 0.2
  %v708 = vmul.f32 %v452, 0.2
  %v709 = vmul.f32 %v453, 0.2
  %v710 = vmul.f32 %v454, 0.2
  %v711 = vmul.f32 %v455, 0.2
  %v712 = vmul.f32 %v456, 0.2
  %v713 = vmul.f32 %v457, 0.2
  %v714 = vmul.f32 %v458, 0.2
  %v715 = vmul.f32 %v459, 0.2
  %v716 = vmul.f32 %v460, 0.2
  %v717 = vmul.f32 %v461, 0.2
  %v718 = vmul.f32 %v462, 0.2
  %v719 = vmul.f32 %v463, 0.2
  %v720 = vmul.f32 %v464, 0.2
  %v721 = vmul.f32 %v465, 0.2
  %v722 = vmul.f32 %v466, 0.2
  %v723 = vmul.f32 %v467, 0.2
  %v724 = vmul.f32 %v468, 0.2
  %v725 = vmul.f32 %v469, 0.2
  %v726 = vmul.f32 %v470, 0.2
  %v727 = vmul.f32 %v471, 0.2
  %v728 = vmul.f32 %v472, 0.2
  %v729 = vmul.f32 %v473, 0.2
  %v730 = vmul.f32 %v474, 0.2
  %v731 = vmul.f32 %v475, 0.2
  %v732 = vmul.f32 %v476, 0.2
  %v733 = vmul.f32 %v477, 0.2
  %v734 = vmul.f32 %v478, 0.2
  %v735 = vmul.f32 %v479, 0.2
  %v736 = vmul.f32 %v480, 0.2
  %v737 = vmul.f32 %v481, 0.2
  %v738 = vmul.f32 %v482, 0.2
  %v739 = vmul.f32 %v483, 0.2
  %v740 = vmul.f32 %v484, 0.2
  %v741 = vmul.f32 %v485, 0.2
  %v742 = vmul.f32 %v486, 0.2
  %v743 = vmul.f32 %v487, 0.2
  %v744 = vmul.f32 %v488, 0.2
  %v745 = vmul.f32 %v489, 0.2
  %v746 = vmul.f32 %v490, 0.2
  %v747 = vmul.f32 %v491, 0.2
  %v748 = vmul.f32 %v492, 0.2
  %v749 = vmul.f32 %v493, 0.2
  %v750 = vmul.f32 %v494, 0.2
  %v751 = vmul.f32 %v495, 0.2
  %v752 = vmul.f32 %v496, 0.2
  %v753 = vmul.f32 %v497, 0.2
  %v754 = vmul.f32 %v498, 0.2
  %v755 = vmul.f32 %v499, 0.2
  %v756 = vmul.f32 %v500, 0.2
  %v757 = vmul.f32 %v501, 0.2
  %v758 = vmul.f32 %v502, 0.2
  %v759 = vmul.f32 %v503, 0.2
  %v760 = vmul.f32 %v504, 0.2
  %v761 = vmul.f32 %v505, 0.2
  %v762 = vmul.f32 %v506, 0.2
  %v763 = vmul.f32 %v507, 0.2
  %v764 = vmul.f32 %v508, 0.2
  %v765 = vmul.f32 %v509, 0.2
  %v766 = vmul.f32 %v510, 0.2
  %v767 = vmul.f32 %v511, 0.2
  %v768 = vmul.f32 %v512, 0.2
  %v769 = vmul.f32 %v513, 0.2
  %v770 = vmul.f32 %v514, 0.2
  %v771 = vmul.f32 %v515, 0.2
  %v772 = vmul.f32 %v516, 0.2
  %v773 = vmul.f32 %v517, 0.2
  %v774 = vmul.f32 %v518, 0.2
  %v775 = vmul.f32 %v519, 0.2
  %v776 = vmul.f32 %v520, 0.2
  %v777 = vmul.f32 %v521, 0.2
  %v778 = vsel %vm522, %v394, %v650
  %v779 = vsel %vm523, %v395, %v651
  %v780 = vsel %vm524, %v396, %v652
  %v781 = vsel %vm525, %v397, %v653
  %v782 = vsel %vm526, %v398, %v654
  %v783 = vsel %vm527, %v399, %v655
  %v784 = vsel %vm528, %v400, %v656
  %v785 = vsel %vm529, %v401, %v657
  %v786 = vsel %vm530, %v402, %v658
  %v787 = vsel %vm531, %v403, %v659
  %v788 = vsel %vm532, %v404, %v660
  %v789 = vsel %vm533, %v405, %v661
  %v790 = vsel %vm534, %v406, %v662
  %v791 = vsel %vm535, %v407, %v663
  %v792 = vsel %vm536, %v408, %v664
  %v793 = vsel %vm537, %v409, %v665
  %v794 = vsel %vm538, %v410, %v666
  %v795 = vsel %vm539, %v411, %v667
  %v796 = vsel %vm540, %v412, %v668
  %v797 = vsel %vm541, %v413, %v669
  %v798 = vsel %vm542, %v414, %v670
  %v799 = vsel %vm543, %v415, %v671
  %v800 = vsel %vm544, %v416, %v672
  %v801 = vsel %vm545, %v417, %v673
  %v802 = vsel %vm546, %v418, %v674
  %v803 = vsel %vm547, %v419, %v675
  %v804 = vsel %vm548, %v420, %v676
  %v805 = vsel %vm549, %v421, %v677
  %v806 = vsel %vm550, %v422, %v678
  %v807 = vsel %vm551, %v423, %v679
  %v808 = vsel %vm552, %v424, %v680
  %v809 = vsel %vm553, %v425, %v681
  %v810 = vsel %vm554, %v426, %v682
  %v811 = vsel %vm555, %v427, %v683
  %v812 = vsel %vm556, %v428, %v684
  %v813 = vsel %vm557, %v429, %v685
  %v814 = vsel %vm558, %v430, %v686
  %v815 = vsel %vm559, %v431, %v687
  %v816 = vsel %vm560, %v432, %v688
  %v817 = vsel %vm561, %v433, %v689
  %v818 = vsel %vm562, %v434, %v690
  %v819 = vsel %vm563, %v435, %v691
  %v820 = vsel %vm564, %v436, %v692
  %v821 = vsel %vm565, %v437, %v693
  %v822 = vsel %vm566, %v438, %v694
  %v823 = vsel %vm567, %v439, %v695
  %v824 = vsel %vm568, %v440, %v696
  %v825 = vsel %vm569, %v441, %v697
  %v826 = vsel %vm570, %v442, %v698
  %v827 = vsel %vm571, %v443, %v699
  %v828 = vsel %vm572, %v444, %v700
  %v829 = vsel %vm573, %v445, %v701
  %v830 = vsel %vm574, %v446, %v702
  %v831 = vsel %vm575, %v447, %v703
  %v832 = vsel %vm576, %v448, %v704
  %v833 = vsel %vm577, %v449, %v705
  %v834 = vsel %vm578, %v450, %v706
  %v835 = vsel %vm579, %v451, %v707
  %v836 = vsel %vm580, %v452, %v708
  %v837 = vsel %vm581, %v453, %v709
  %v838 = vsel %vm582, %v454, %v710
  %v839 = vsel %vm583, %v455, %v711
  %v840 = vsel %vm584, %v456, %v712
  %v841 = vsel %vm585, %v457, %v713
  %v842 = vsel %vm586, %v458, %v714
  %v843 = vsel %vm587, %v459, %v715
  %v844 = vsel %vm588, %v460, %v716
  %v845 = vsel %vm589, %v461, %v717
  %v846 = vsel %vm590, %v462, %v718
  %v847 = vsel %vm591, %v463, %v719
  %v848 = vsel %vm592, %v464, %v720
  %v849 = vsel %vm593, %v465, %v721
  %v850 = vsel %vm594, %v466, %v722
  %v851 = vsel %vm595, %v467, %v723
  %v852 = vsel %vm596, %v468, %v724
  %v853 = vsel %vm597, %v469, %v725
  %v854 = vsel %vm598, %v470, %v726
  %v855 = vsel %vm599, %v471, %v727
  %v856 = vsel %vm600, %v472, %v728
  %v857 = vsel %vm601, %v473, %v729
  %v858 = vsel %vm602, %v474, %v730
  %v859 = vsel %vm603, %v475, %v731
  %v860 = vsel %vm604, %v476, %v732
  %v861 = vsel %vm605, %v477, %v733
  %v862 = vsel %vm606, %v478, %v734
  %v863 = vsel %vm607, %v479, %v735
  %v864 = vsel %vm608, %v480, %v736
  %v865 = vsel %vm609, %v481, %v737
  %v866 = vsel %vm610, %v482, %v738
  %v867 = vsel %vm611, %v483, %v739
  %v868 = vsel %vm612, %v484, %v740
  %v869 = vsel %vm613, %v485, %v741
  %v870 = vsel %vm614, %v486, %v742
  %v871 = vsel %vm615, %v487, %v743
  %v872 = vsel %vm616, %v488, %v744
  %v873 = vsel %vm617, %v489, %v745
  %v874 = vsel %vm618, %v490, %v746
  %v875 = vsel %vm619, %v491, %v747
  %v876 = vsel %vm620, %v492, %v748
  %v877 = vsel %vm621, %v493, %v749
  %v878 = vsel %vm622, %v494, %v750
  %v879 = vsel %vm623, %v495, %v751
  %v880 = vsel %vm624, %v496, %v752
  %v881 = vsel %vm625, %v497, %v753
  %v882 = vsel %vm626, %v498, %v754
  %v883 = vsel %vm627, %v499, %v755
  %v884 = vsel %vm628, %v500, %v756
  %v885 = vsel %vm629, %v501, %v757
  %v886 = vsel %vm630, %v502, %v758
  %v887 = vsel %vm631, %v503, %v759
  %v888 = vsel %vm632, %v504, %v760
  %v889 = vsel %vm633, %v505, %v761
  %v890 = vsel %vm634, %v506, %v762
  %v891 = vsel %vm635, %v507, %v763
  %v892 = vsel %vm636, %v508, %v764
  %v893 = vsel %vm637, %v509, %v765
  %v894 = vsel %vm638, %v510, %v766
  %v895 = vsel %vm639, %v511, %v767
  %v896 = vsel %vm640, %v512, %v768
  %v897 = vsel %vm641, %v513, %v769
  %v898 = vsel %vm642, %v514, %v770
  %v899 = vsel %vm643, %v515, %v771
  %v900 = vsel %vm644, %v516, %v772
  %v901 = vsel %vm645, %v517, %v773
  %v902 = vsel %vm646, %v518, %v774
  %v903 = vsel %vm647, %v519, %v775
  %v904 = vsel %vm648, %v520, %v776
  %v905 = vsel %vm649, %v521, %v777
  %v906 = vlaneseq
  %v907 = vshrl.u32 %v906, 7
  %v908 = vsub.s32 0, %v907
  %v909 = vrot.slane %v33, %v908
  %v910 = vmul.f32 %v778, %v909
  %v911 = vmul.f32 %v779, %v909
  %v912 = vmul.f32 %v780, %v909
  %v913 = vmul.f32 %v781, %v909
  %v914 = vmul.f32 %v782, %v909
  %v915 = vmul.f32 %v783, %v909
  %v916 = vmul.f32 %v784, %v909
  %v917 = vmul.f32 %v785, %v909
  %v918 = vmul.f32 %v786, %v909
  %v919 = vmul.f32 %v787, %v909
  %v920 = vmul.f32 %v788, %v909
  %v921 = vmul.f32 %v789, %v909
  %v922 = vmul.f32 %v790, %v909
  %v923 = vmul.f32 %v791, %v909
  %v924 = vmul.f32 %v792, %v909
  %v925 = vmul.f32 %v793, %v909
  %v926 = vmul.f32 %v794, %v909
  %v927 = vmul.f32 %v795, %v909
  %v928 = vmul.f32 %v796, %v909
  %v929 = vmul.f32 %v797, %v909
  %v930 = vmul.f32 %v798, %v909
  %v931 = vmul.f32 %v799, %v909
  %v932 = vmul.f32 %v800, %v909
  %v933 = vmul.f32 %v801, %v909
  %v934 = vmul.f32 %v802, %v909
  %v935 = vmul.f32 %v803, %v909
  %v936 = vmul.f32 %v804, %v909
  %v937 = vmul.f32 %v805, %v909
  %v938 = vmul.f32 %v806, %v909
  %v939 = vmul.f32 %v807, %v909
  %v940 = vmul.f32 %v808, %v909
  %v941 = vmul.f32 %v809, %v909
  %v942 = vmul.f32 %v810, %v909
  %v943 = vmul.f32 %v811, %v909
  %v944 = vmul.f32 %v812, %v909
  %v945 = vmul.f32 %v813, %v909
  %v946 = vmul.f32 %v814, %v909
  %v947 = vmul.f32 %v815, %v909
  %v948 = vmul.f32 %v816, %v909
  %v949 = vmul.f32 %v817, %v909
  %v950 = vmul.f32 %v818, %v909
  %v951 = vmul.f32 %v819, %v909
  %v952 = vmul.f32 %v820, %v909
  %v953 = vmul.f32 %v821, %v909
  %v954 = vmul.f32 %v822, %v909
  %v955 = vmul.f32 %v823, %v909
  %v956 = vmul.f32 %v824, %v909
  %v957 = vmul.f32 %v825, %v909
  %v958 = vmul.f32 %v826, %v909
  %v959 = vmul.f32 %v827, %v909
  %v960 = vmul.f32 %v828, %v909
  %v961 = vmul.f32 %v829, %v909
  %v962 = vmul.f32 %v830, %v909
  %v963 = vmul.f32 %v831, %v909
  %v964 = vmul.f32 %v832, %v909
  %v965 = vmul.f32 %v833, %v909
  %v966 = vmul.f32 %v834, %v909
  %v967 = vmul.f32 %v835, %v909
  %v968 = vmul.f32 %v836, %v909
  %v969 = vmul.f32 %v837, %v909
  %v970 = vmul.f32 %v838, %v909
  %v971 = vmul.f32 %v839, %v909
  %v972 = vmul.f32 %v840, %v909
  %v973 = vmul.f32 %v841, %v909
  %v974 = vmul.f32 %v842, %v909
  %v975 = vmul.f32 %v843, %v909
  %v976 = vmul.f32 %v844, %v909
  %v977 = vmul.f32 %v845, %v909
  %v978 = vmul.f32 %v846, %v909
  %v979 = vmul.f32 %v847, %v909
  %v980 = vmul.f32 %v848, %v909
  %v981 = vmul.f32 %v849, %v909
  %v982 = vmul.f32 %v850, %v909
  %v983 = vmul.f32 %v851, %v909
  %v984 = vmul.f32 %v852, %v909
  %v985 = vmul.f32 %v853, %v909
  %v986 = vmul.f32 %v854, %v909
  %v987 = vmul.f32 %v855, %v909
  %v988 = vmul.f32 %v856, %v909
  %v989 = vmul.f32 %v857, %v909
  %v990 = vmul.f32 %v858, %v909
  %v991 = vmul.f32 %v859, %v909
  %v992 = vmul.f32 %v860, %v909
  %v993 = vmul.f32 %v861, %v909
  %v994 = vmul.f32 %v862, %v909
  %v995 = vmul.f32 %v863, %v909
  %v996 = vmul.f32 %v864, %v909
  %v997 = vmul.f32 %v865, %v909
  %v998 = vmul.f32 %v866, %v909
  %v999 = vmul.f32 %v867, %v909
  %v1000 = vmul.f32 %v868, %v909
  %v1001 = vmul.f32 %v869, %v909
  %v1002 = vmul.f32 %v870, %v909
  %v1003 = vmul.f32 %v871, %v909
  %v1004 = vmul.f32 %v872, %v909
  %v1005 = vmul.f32 %v873, %v909
  %v1006 = vmul.f32 %v874, %v909
  %v1007 = vmul.f32 %v875, %v909
  %v1008 = vmul.f32 %v876, %v909
  %v1009 = vmul.f32 %v877, %v909
  %v1010 = vmul.f32 %v878, %v909
  %v1011 = vmul.f32 %v879, %v909
  %v1012 = vmul.f32 %v880, %v909
  %v1013 = vmul.f32 %v881, %v909
  %v1014 = vmul.f32 %v882, %v909
  %v1015 = vmul.f32 %v883, %v909
  %v1016 = vmul.f32 %v884, %v909
  %v1017 = vmul.f32 %v885, %v909
  %v1018 = vmul.f32 %v886, %v909
  %v1019 = vmul.f32 %v887, %v909
  %v1020 = vmul.f32 %v888, %v909
  %v1021 = vmul.f32 %v889, %v909
  %v1022 = vmul.f32 %v890, %v909
  %v1023 = vmul.f32 %v891, %v909
  %v1024 = vmul.f32 %v892, %v909
  %v1025 = vmul.f32 %v893, %v909
  %v1026 = vmul.f32 %v894, %v909
  %v1027 = vmul.f32 %v895, %v909
  %v1028 = vmul.f32 %v896, %v909
  %v1029 = vmul.f32 %v897, %v909
  %v1030 = vmul.f32 %v898, %v909
  %v1031 = vmul.f32 %v899, %v909
  %v1032 = vmul.f32 %v900, %v909
  %v1033 = vmul.f32 %v901, %v909
  %v1034 = vmul.f32 %v902, %v909
  %v1035 = vmul.f32 %v903, %v909
  %v1036 = vmul.f32 %v904, %v909
  %v1037 = vmul.f32 %v905, %v909
  %vm1038 = vcmask 130048
  %v1039 = vsel %vm1038, %v910, 0.0
  %1040 = vadd.xlane.f32.xlu0 %v1039
  %v1041 = vpop.xlane.xlu0 %1040
  %v1042 = vsel %vm1038, %v911, 0.0
  %1043 = vadd.xlane.f32.xlu0 %v1042
  %v1044 = vpop.xlane.xlu0 %1043
  %v1045 = vsel %vm1038, %v912, 0.0
  %1046 = vadd.xlane.f32.xlu0 %v1045
  %v1047 = vpop.xlane.xlu0 %1046
  %v1048 = vsel %vm1038, %v913, 0.0
  %1049 = vadd.xlane.f32.xlu0 %v1048
  %v1050 = vpop.xlane.xlu0 %1049
  %v1051 = vsel %vm1038, %v914, 0.0
  %1052 = vadd.xlane.f32.xlu0 %v1051
  %v1053 = vpop.xlane.xlu0 %1052
  %v1054 = vsel %vm1038, %v915, 0.0
  %1055 = vadd.xlane.f32.xlu0 %v1054
  %v1056 = vpop.xlane.xlu0 %1055
  %v1057 = vsel %vm1038, %v916, 0.0
  %1058 = vadd.xlane.f32.xlu0 %v1057
  %v1059 = vpop.xlane.xlu0 %1058
  %v1060 = vsel %vm1038, %v917, 0.0
  %1061 = vadd.xlane.f32.xlu0 %v1060
  %v1062 = vpop.xlane.xlu0 %1061
  %v1063 = vsel %vm1038, %v918, 0.0
  %1064 = vadd.xlane.f32.xlu0 %v1063
  %v1065 = vpop.xlane.xlu0 %1064
  %v1066 = vsel %vm1038, %v919, 0.0
  %1067 = vadd.xlane.f32.xlu0 %v1066
  %v1068 = vpop.xlane.xlu0 %1067
  %v1069 = vsel %vm1038, %v920, 0.0
  %1070 = vadd.xlane.f32.xlu0 %v1069
  %v1071 = vpop.xlane.xlu0 %1070
  %v1072 = vsel %vm1038, %v921, 0.0
  %1073 = vadd.xlane.f32.xlu0 %v1072
  %v1074 = vpop.xlane.xlu0 %1073
  %v1075 = vsel %vm1038, %v922, 0.0
  %1076 = vadd.xlane.f32.xlu0 %v1075
  %v1077 = vpop.xlane.xlu0 %1076
  %v1078 = vsel %vm1038, %v923, 0.0
  %1079 = vadd.xlane.f32.xlu0 %v1078
  %v1080 = vpop.xlane.xlu0 %1079
  %v1081 = vsel %vm1038, %v924, 0.0
  %1082 = vadd.xlane.f32.xlu0 %v1081
  %v1083 = vpop.xlane.xlu0 %1082
  %v1084 = vsel %vm1038, %v925, 0.0
  %1085 = vadd.xlane.f32.xlu0 %v1084
  %v1086 = vpop.xlane.xlu0 %1085
  %v1087 = vsel %vm1038, %v926, 0.0
  %1088 = vadd.xlane.f32.xlu0 %v1087
  %v1089 = vpop.xlane.xlu0 %1088
  %v1090 = vsel %vm1038, %v927, 0.0
  %1091 = vadd.xlane.f32.xlu0 %v1090
  %v1092 = vpop.xlane.xlu0 %1091
  %v1093 = vsel %vm1038, %v928, 0.0
  %1094 = vadd.xlane.f32.xlu0 %v1093
  %v1095 = vpop.xlane.xlu0 %1094
  %v1096 = vsel %vm1038, %v929, 0.0
  %1097 = vadd.xlane.f32.xlu0 %v1096
  %v1098 = vpop.xlane.xlu0 %1097
  %v1099 = vsel %vm1038, %v930, 0.0
  %1100 = vadd.xlane.f32.xlu0 %v1099
  %v1101 = vpop.xlane.xlu0 %1100
  %v1102 = vsel %vm1038, %v931, 0.0
  %1103 = vadd.xlane.f32.xlu0 %v1102
  %v1104 = vpop.xlane.xlu0 %1103
  %v1105 = vsel %vm1038, %v932, 0.0
  %1106 = vadd.xlane.f32.xlu0 %v1105
  %v1107 = vpop.xlane.xlu0 %1106
  %v1108 = vsel %vm1038, %v933, 0.0
  %1109 = vadd.xlane.f32.xlu0 %v1108
  %v1110 = vpop.xlane.xlu0 %1109
  %v1111 = vsel %vm1038, %v934, 0.0
  %1112 = vadd.xlane.f32.xlu0 %v1111
  %v1113 = vpop.xlane.xlu0 %1112
  %v1114 = vsel %vm1038, %v935, 0.0
  %1115 = vadd.xlane.f32.xlu0 %v1114
  %v1116 = vpop.xlane.xlu0 %1115
  %v1117 = vsel %vm1038, %v936, 0.0
  %1118 = vadd.xlane.f32.xlu0 %v1117
  %v1119 = vpop.xlane.xlu0 %1118
  %v1120 = vsel %vm1038, %v937, 0.0
  %1121 = vadd.xlane.f32.xlu0 %v1120
  %v1122 = vpop.xlane.xlu0 %1121
  %v1123 = vsel %vm1038, %v938, 0.0
  %1124 = vadd.xlane.f32.xlu0 %v1123
  %v1125 = vpop.xlane.xlu0 %1124
  %v1126 = vsel %vm1038, %v939, 0.0
  %1127 = vadd.xlane.f32.xlu0 %v1126
  %v1128 = vpop.xlane.xlu0 %1127
  %v1129 = vsel %vm1038, %v940, 0.0
  %1130 = vadd.xlane.f32.xlu0 %v1129
  %v1131 = vpop.xlane.xlu0 %1130
  %v1132 = vsel %vm1038, %v941, 0.0
  %1133 = vadd.xlane.f32.xlu0 %v1132
  %v1134 = vpop.xlane.xlu0 %1133
  %v1135 = vsel %vm1038, %v942, 0.0
  %1136 = vadd.xlane.f32.xlu0 %v1135
  %v1137 = vpop.xlane.xlu0 %1136
  %v1138 = vsel %vm1038, %v943, 0.0
  %1139 = vadd.xlane.f32.xlu0 %v1138
  %v1140 = vpop.xlane.xlu0 %1139
  %v1141 = vsel %vm1038, %v944, 0.0
  %1142 = vadd.xlane.f32.xlu0 %v1141
  %v1143 = vpop.xlane.xlu0 %1142
  %v1144 = vsel %vm1038, %v945, 0.0
  %1145 = vadd.xlane.f32.xlu0 %v1144
  %v1146 = vpop.xlane.xlu0 %1145
  %v1147 = vsel %vm1038, %v946, 0.0
  %1148 = vadd.xlane.f32.xlu0 %v1147
  %v1149 = vpop.xlane.xlu0 %1148
  %v1150 = vsel %vm1038, %v947, 0.0
  %1151 = vadd.xlane.f32.xlu0 %v1150
  %v1152 = vpop.xlane.xlu0 %1151
  %v1153 = vsel %vm1038, %v948, 0.0
  %1154 = vadd.xlane.f32.xlu0 %v1153
  %v1155 = vpop.xlane.xlu0 %1154
  %v1156 = vsel %vm1038, %v949, 0.0
  %1157 = vadd.xlane.f32.xlu0 %v1156
  %v1158 = vpop.xlane.xlu0 %1157
  %v1159 = vsel %vm1038, %v950, 0.0
  %1160 = vadd.xlane.f32.xlu0 %v1159
  %v1161 = vpop.xlane.xlu0 %1160
  %v1162 = vsel %vm1038, %v951, 0.0
  %1163 = vadd.xlane.f32.xlu0 %v1162
  %v1164 = vpop.xlane.xlu0 %1163
  %v1165 = vsel %vm1038, %v952, 0.0
  %1166 = vadd.xlane.f32.xlu0 %v1165
  %v1167 = vpop.xlane.xlu0 %1166
  %v1168 = vsel %vm1038, %v953, 0.0
  %1169 = vadd.xlane.f32.xlu0 %v1168
  %v1170 = vpop.xlane.xlu0 %1169
  %v1171 = vsel %vm1038, %v954, 0.0
  %1172 = vadd.xlane.f32.xlu0 %v1171
  %v1173 = vpop.xlane.xlu0 %1172
  %v1174 = vsel %vm1038, %v955, 0.0
  %1175 = vadd.xlane.f32.xlu0 %v1174
  %v1176 = vpop.xlane.xlu0 %1175
  %v1177 = vsel %vm1038, %v956, 0.0
  %1178 = vadd.xlane.f32.xlu0 %v1177
  %v1179 = vpop.xlane.xlu0 %1178
  %v1180 = vsel %vm1038, %v957, 0.0
  %1181 = vadd.xlane.f32.xlu0 %v1180
  %v1182 = vpop.xlane.xlu0 %1181
  %v1183 = vsel %vm1038, %v958, 0.0
  %1184 = vadd.xlane.f32.xlu0 %v1183
  %v1185 = vpop.xlane.xlu0 %1184
  %v1186 = vsel %vm1038, %v959, 0.0
  %1187 = vadd.xlane.f32.xlu0 %v1186
  %v1188 = vpop.xlane.xlu0 %1187
  %v1189 = vsel %vm1038, %v960, 0.0
  %1190 = vadd.xlane.f32.xlu0 %v1189
  %v1191 = vpop.xlane.xlu0 %1190
  %v1192 = vsel %vm1038, %v961, 0.0
  %1193 = vadd.xlane.f32.xlu0 %v1192
  %v1194 = vpop.xlane.xlu0 %1193
  %v1195 = vsel %vm1038, %v962, 0.0
  %1196 = vadd.xlane.f32.xlu0 %v1195
  %v1197 = vpop.xlane.xlu0 %1196
  %v1198 = vsel %vm1038, %v963, 0.0
  %1199 = vadd.xlane.f32.xlu0 %v1198
  %v1200 = vpop.xlane.xlu0 %1199
  %v1201 = vsel %vm1038, %v964, 0.0
  %1202 = vadd.xlane.f32.xlu0 %v1201
  %v1203 = vpop.xlane.xlu0 %1202
  %v1204 = vsel %vm1038, %v965, 0.0
  %1205 = vadd.xlane.f32.xlu0 %v1204
  %v1206 = vpop.xlane.xlu0 %1205
  %v1207 = vsel %vm1038, %v966, 0.0
  %1208 = vadd.xlane.f32.xlu0 %v1207
  %v1209 = vpop.xlane.xlu0 %1208
  %v1210 = vsel %vm1038, %v967, 0.0
  %1211 = vadd.xlane.f32.xlu0 %v1210
  %v1212 = vpop.xlane.xlu0 %1211
  %v1213 = vsel %vm1038, %v968, 0.0
  %1214 = vadd.xlane.f32.xlu0 %v1213
  %v1215 = vpop.xlane.xlu0 %1214
  %v1216 = vsel %vm1038, %v969, 0.0
  %1217 = vadd.xlane.f32.xlu0 %v1216
  %v1218 = vpop.xlane.xlu0 %1217
  %v1219 = vsel %vm1038, %v970, 0.0
  %1220 = vadd.xlane.f32.xlu0 %v1219
  %v1221 = vpop.xlane.xlu0 %1220
  %v1222 = vsel %vm1038, %v971, 0.0
  %1223 = vadd.xlane.f32.xlu0 %v1222
  %v1224 = vpop.xlane.xlu0 %1223
  %v1225 = vsel %vm1038, %v972, 0.0
  %1226 = vadd.xlane.f32.xlu0 %v1225
  %v1227 = vpop.xlane.xlu0 %1226
  %v1228 = vsel %vm1038, %v973, 0.0
  %1229 = vadd.xlane.f32.xlu0 %v1228
  %v1230 = vpop.xlane.xlu0 %1229
  %v1231 = vsel %vm1038, %v974, 0.0
  %1232 = vadd.xlane.f32.xlu0 %v1231
  %v1233 = vpop.xlane.xlu0 %1232
  %v1234 = vsel %vm1038, %v975, 0.0
  %1235 = vadd.xlane.f32.xlu0 %v1234
  %v1236 = vpop.xlane.xlu0 %1235
  %v1237 = vsel %vm1038, %v976, 0.0
  %1238 = vadd.xlane.f32.xlu0 %v1237
  %v1239 = vpop.xlane.xlu0 %1238
  %v1240 = vsel %vm1038, %v977, 0.0
  %1241 = vadd.xlane.f32.xlu0 %v1240
  %v1242 = vpop.xlane.xlu0 %1241
  %v1243 = vsel %vm1038, %v978, 0.0
  %1244 = vadd.xlane.f32.xlu0 %v1243
  %v1245 = vpop.xlane.xlu0 %1244
  %v1246 = vsel %vm1038, %v979, 0.0
  %1247 = vadd.xlane.f32.xlu0 %v1246
  %v1248 = vpop.xlane.xlu0 %1247
  %v1249 = vsel %vm1038, %v980, 0.0
  %1250 = vadd.xlane.f32.xlu0 %v1249
  %v1251 = vpop.xlane.xlu0 %1250
  %v1252 = vsel %vm1038, %v981, 0.0
  %1253 = vadd.xlane.f32.xlu0 %v1252
  %v1254 = vpop.xlane.xlu0 %1253
  %v1255 = vsel %vm1038, %v982, 0.0
  %1256 = vadd.xlane.f32.xlu0 %v1255
  %v1257 = vpop.xlane.xlu0 %1256
  %v1258 = vsel %vm1038, %v983, 0.0
  %1259 = vadd.xlane.f32.xlu0 %v1258
  %v1260 = vpop.xlane.xlu0 %1259
  %v1261 = vsel %vm1038, %v984, 0.0
  %1262 = vadd.xlane.f32.xlu0 %v1261
  %v1263 = vpop.xlane.xlu0 %1262
  %v1264 = vsel %vm1038, %v985, 0.0
  %1265 = vadd.xlane.f32.xlu0 %v1264
  %v1266 = vpop.xlane.xlu0 %1265
  %v1267 = vsel %vm1038, %v986, 0.0
  %1268 = vadd.xlane.f32.xlu0 %v1267
  %v1269 = vpop.xlane.xlu0 %1268
  %v1270 = vsel %vm1038, %v987, 0.0
  %1271 = vadd.xlane.f32.xlu0 %v1270
  %v1272 = vpop.xlane.xlu0 %1271
  %v1273 = vsel %vm1038, %v988, 0.0
  %1274 = vadd.xlane.f32.xlu0 %v1273
  %v1275 = vpop.xlane.xlu0 %1274
  %v1276 = vsel %vm1038, %v989, 0.0
  %1277 = vadd.xlane.f32.xlu0 %v1276
  %v1278 = vpop.xlane.xlu0 %1277
  %v1279 = vsel %vm1038, %v990, 0.0
  %1280 = vadd.xlane.f32.xlu0 %v1279
  %v1281 = vpop.xlane.xlu0 %1280
  %v1282 = vsel %vm1038, %v991, 0.0
  %1283 = vadd.xlane.f32.xlu0 %v1282
  %v1284 = vpop.xlane.xlu0 %1283
  %v1285 = vsel %vm1038, %v992, 0.0
  %1286 = vadd.xlane.f32.xlu0 %v1285
  %v1287 = vpop.xlane.xlu0 %1286
  %v1288 = vsel %vm1038, %v993, 0.0
  %1289 = vadd.xlane.f32.xlu0 %v1288
  %v1290 = vpop.xlane.xlu0 %1289
  %v1291 = vsel %vm1038, %v994, 0.0
  %1292 = vadd.xlane.f32.xlu0 %v1291
  %v1293 = vpop.xlane.xlu0 %1292
  %v1294 = vsel %vm1038, %v995, 0.0
  %1295 = vadd.xlane.f32.xlu0 %v1294
  %v1296 = vpop.xlane.xlu0 %1295
  %v1297 = vsel %vm1038, %v996, 0.0
  %1298 = vadd.xlane.f32.xlu0 %v1297
  %v1299 = vpop.xlane.xlu0 %1298
  %v1300 = vsel %vm1038, %v997, 0.0
  %1301 = vadd.xlane.f32.xlu0 %v1300
  %v1302 = vpop.xlane.xlu0 %1301
  %v1303 = vsel %vm1038, %v998, 0.0
  %1304 = vadd.xlane.f32.xlu0 %v1303
  %v1305 = vpop.xlane.xlu0 %1304
  %v1306 = vsel %vm1038, %v999, 0.0
  %1307 = vadd.xlane.f32.xlu0 %v1306
  %v1308 = vpop.xlane.xlu0 %1307
  %v1309 = vsel %vm1038, %v1000, 0.0
  %1310 = vadd.xlane.f32.xlu0 %v1309
  %v1311 = vpop.xlane.xlu0 %1310
  %v1312 = vsel %vm1038, %v1001, 0.0
  %1313 = vadd.xlane.f32.xlu0 %v1312
  %v1314 = vpop.xlane.xlu0 %1313
  %v1315 = vsel %vm1038, %v1002, 0.0
  %1316 = vadd.xlane.f32.xlu0 %v1315
  %v1317 = vpop.xlane.xlu0 %1316
  %v1318 = vsel %vm1038, %v1003, 0.0
  %1319 = vadd.xlane.f32.xlu0 %v1318
  %v1320 = vpop.xlane.xlu0 %1319
  %v1321 = vsel %vm1038, %v1004, 0.0
  %1322 = vadd.xlane.f32.xlu0 %v1321
  %v1323 = vpop.xlane.xlu0 %1322
  %v1324 = vsel %vm1038, %v1005, 0.0
  %1325 = vadd.xlane.f32.xlu0 %v1324
  %v1326 = vpop.xlane.xlu0 %1325
  %v1327 = vsel %vm1038, %v1006, 0.0
  %1328 = vadd.xlane.f32.xlu0 %v1327
  %v1329 = vpop.xlane.xlu0 %1328
  %v1330 = vsel %vm1038, %v1007, 0.0
  %1331 = vadd.xlane.f32.xlu0 %v1330
  %v1332 = vpop.xlane.xlu0 %1331
  %v1333 = vsel %vm1038, %v1008, 0.0
  %1334 = vadd.xlane.f32.xlu0 %v1333
  %v1335 = vpop.xlane.xlu0 %1334
  %v1336 = vsel %vm1038, %v1009, 0.0
  %1337 = vadd.xlane.f32.xlu0 %v1336
  %v1338 = vpop.xlane.xlu0 %1337
  %v1339 = vsel %vm1038, %v1010, 0.0
  %1340 = vadd.xlane.f32.xlu0 %v1339
  %v1341 = vpop.xlane.xlu0 %1340
  %v1342 = vsel %vm1038, %v1011, 0.0
  %1343 = vadd.xlane.f32.xlu0 %v1342
  %v1344 = vpop.xlane.xlu0 %1343
  %v1345 = vsel %vm1038, %v1012, 0.0
  %1346 = vadd.xlane.f32.xlu0 %v1345
  %v1347 = vpop.xlane.xlu0 %1346
  %v1348 = vsel %vm1038, %v1013, 0.0
  %1349 = vadd.xlane.f32.xlu0 %v1348
  %v1350 = vpop.xlane.xlu0 %1349
  %v1351 = vsel %vm1038, %v1014, 0.0
  %1352 = vadd.xlane.f32.xlu0 %v1351
  %v1353 = vpop.xlane.xlu0 %1352
  %v1354 = vsel %vm1038, %v1015, 0.0
  %1355 = vadd.xlane.f32.xlu0 %v1354
  %v1356 = vpop.xlane.xlu0 %1355
  %v1357 = vsel %vm1038, %v1016, 0.0
  %1358 = vadd.xlane.f32.xlu0 %v1357
  %v1359 = vpop.xlane.xlu0 %1358
  %v1360 = vsel %vm1038, %v1017, 0.0
  %1361 = vadd.xlane.f32.xlu0 %v1360
  %v1362 = vpop.xlane.xlu0 %1361
  %v1363 = vsel %vm1038, %v1018, 0.0
  %1364 = vadd.xlane.f32.xlu0 %v1363
  %v1365 = vpop.xlane.xlu0 %1364
  %v1366 = vsel %vm1038, %v1019, 0.0
  %1367 = vadd.xlane.f32.xlu0 %v1366
  %v1368 = vpop.xlane.xlu0 %1367
  %v1369 = vsel %vm1038, %v1020, 0.0
  %1370 = vadd.xlane.f32.xlu0 %v1369
  %v1371 = vpop.xlane.xlu0 %1370
  %v1372 = vsel %vm1038, %v1021, 0.0
  %1373 = vadd.xlane.f32.xlu0 %v1372
  %v1374 = vpop.xlane.xlu0 %1373
  %v1375 = vsel %vm1038, %v1022, 0.0
  %1376 = vadd.xlane.f32.xlu0 %v1375
  %v1377 = vpop.xlane.xlu0 %1376
  %v1378 = vsel %vm1038, %v1023, 0.0
  %1379 = vadd.xlane.f32.xlu0 %v1378
  %v1380 = vpop.xlane.xlu0 %1379
  %v1381 = vsel %vm1038, %v1024, 0.0
  %1382 = vadd.xlane.f32.xlu0 %v1381
  %v1383 = vpop.xlane.xlu0 %1382
  %v1384 = vsel %vm1038, %v1025, 0.0
  %1385 = vadd.xlane.f32.xlu0 %v1384
  %v1386 = vpop.xlane.xlu0 %1385
  %v1387 = vsel %vm1038, %v1026, 0.0
  %1388 = vadd.xlane.f32.xlu0 %v1387
  %v1389 = vpop.xlane.xlu0 %1388
  %v1390 = vsel %vm1038, %v1027, 0.0
  %1391 = vadd.xlane.f32.xlu0 %v1390
  %v1392 = vpop.xlane.xlu0 %1391
  %v1393 = vsel %vm1038, %v1028, 0.0
  %1394 = vadd.xlane.f32.xlu0 %v1393
  %v1395 = vpop.xlane.xlu0 %1394
  %v1396 = vsel %vm1038, %v1029, 0.0
  %1397 = vadd.xlane.f32.xlu0 %v1396
  %v1398 = vpop.xlane.xlu0 %1397
  %v1399 = vsel %vm1038, %v1030, 0.0
  %1400 = vadd.xlane.f32.xlu0 %v1399
  %v1401 = vpop.xlane.xlu0 %1400
  %v1402 = vsel %vm1038, %v1031, 0.0
  %1403 = vadd.xlane.f32.xlu0 %v1402
  %v1404 = vpop.xlane.xlu0 %1403
  %v1405 = vsel %vm1038, %v1032, 0.0
  %1406 = vadd.xlane.f32.xlu0 %v1405
  %v1407 = vpop.xlane.xlu0 %1406
  %v1408 = vsel %vm1038, %v1033, 0.0
  %1409 = vadd.xlane.f32.xlu0 %v1408
  %v1410 = vpop.xlane.xlu0 %1409
  %v1411 = vsel %vm1038, %v1034, 0.0
  %1412 = vadd.xlane.f32.xlu0 %v1411
  %v1413 = vpop.xlane.xlu0 %1412
  %v1414 = vsel %vm1038, %v1035, 0.0
  %1415 = vadd.xlane.f32.xlu0 %v1414
  %v1416 = vpop.xlane.xlu0 %1415
  %v1417 = vsel %vm1038, %v1036, 0.0
  %1418 = vadd.xlane.f32.xlu0 %v1417
  %v1419 = vpop.xlane.xlu0 %1418
  %v1420 = vsel %vm1038, %v1037, 0.0
  %1421 = vadd.xlane.f32.xlu0 %v1420
  %v1422 = vpop.xlane.xlu0 %1421
  %v1551 = vlaneseq
  %v1552 = vand.u32 %v1551, 127
  %v1553 = vlaneseq
  %v1554 = vshrl.u32 %v1553, 7
  %v1555 = vsub.s32 %v1552, %v1554
  %v1556 = vrot.slane %v1041, %v1555
  %v1557 = vadd.s32 %v1552, 4294967288
  %v1558 = vlaneseq
  %v1559 = vshrl.u32 %v1558, 7
  %v1560 = vsub.s32 %v1557, %v1559
  %v1561 = vrot.slane %v1044, %v1560
  %vm1562 = vcmask 130112
  %v1563 = vsel %vm1562, %v1561, %v1556
  %v1564 = vadd.s32 %v1552, 4294967280
  %v1565 = vlaneseq
  %v1566 = vshrl.u32 %v1565, 7
  %v1567 = vsub.s32 %v1564, %v1566
  %v1568 = vrot.slane %v1047, %v1567
  %vm1569 = vcmask 195712
  %v1570 = vsel %vm1569, %v1568, %v1563
  %v1571 = vadd.s32 %v1552, 4294967272
  %v1572 = vlaneseq
  %v1573 = vshrl.u32 %v1572, 7
  %v1574 = vsub.s32 %v1571, %v1573
  %v1575 = vrot.slane %v1050, %v1574
  %vm1576 = vcmask 261312
  %v1577 = vsel %vm1576, %v1575, %v1570
  %v1578 = vlaneseq
  %v1579 = vshrl.u32 %v1578, 7
  %v1580 = vsub.s32 %v1552, %v1579
  %v1581 = vrot.slane %v1053, %v1580
  %v1582 = vlaneseq
  %v1583 = vshrl.u32 %v1582, 7
  %v1584 = vsub.s32 %v1557, %v1583
  %v1585 = vrot.slane %v1056, %v1584
  %v1586 = vsel %vm1562, %v1585, %v1581
  %v1587 = vlaneseq
  %v1588 = vshrl.u32 %v1587, 7
  %v1589 = vsub.s32 %v1564, %v1588
  %v1590 = vrot.slane %v1059, %v1589
  %v1591 = vsel %vm1569, %v1590, %v1586
  %v1592 = vlaneseq
  %v1593 = vshrl.u32 %v1592, 7
  %v1594 = vsub.s32 %v1571, %v1593
  %v1595 = vrot.slane %v1062, %v1594
  %v1596 = vsel %vm1576, %v1595, %v1591
  %v1597 = vlaneseq
  %v1598 = vshrl.u32 %v1597, 7
  %v1599 = vsub.s32 %v1552, %v1598
  %v1600 = vrot.slane %v1065, %v1599
  %v1601 = vlaneseq
  %v1602 = vshrl.u32 %v1601, 7
  %v1603 = vsub.s32 %v1557, %v1602
  %v1604 = vrot.slane %v1068, %v1603
  %v1605 = vsel %vm1562, %v1604, %v1600
  %v1606 = vlaneseq
  %v1607 = vshrl.u32 %v1606, 7
  %v1608 = vsub.s32 %v1564, %v1607
  %v1609 = vrot.slane %v1071, %v1608
  %v1610 = vsel %vm1569, %v1609, %v1605
  %v1611 = vlaneseq
  %v1612 = vshrl.u32 %v1611, 7
  %v1613 = vsub.s32 %v1571, %v1612
  %v1614 = vrot.slane %v1074, %v1613
  %v1615 = vsel %vm1576, %v1614, %v1610
  %v1616 = vlaneseq
  %v1617 = vshrl.u32 %v1616, 7
  %v1618 = vsub.s32 %v1552, %v1617
  %v1619 = vrot.slane %v1077, %v1618
  %v1620 = vlaneseq
  %v1621 = vshrl.u32 %v1620, 7
  %v1622 = vsub.s32 %v1557, %v1621
  %v1623 = vrot.slane %v1080, %v1622
  %v1624 = vsel %vm1562, %v1623, %v1619
  %v1625 = vlaneseq
  %v1626 = vshrl.u32 %v1625, 7
  %v1627 = vsub.s32 %v1564, %v1626
  %v1628 = vrot.slane %v1083, %v1627
  %v1629 = vsel %vm1569, %v1628, %v1624
  %v1630 = vlaneseq
  %v1631 = vshrl.u32 %v1630, 7
  %v1632 = vsub.s32 %v1571, %v1631
  %v1633 = vrot.slane %v1086, %v1632
  %v1634 = vsel %vm1576, %v1633, %v1629
  %v1635 = vlaneseq
  %v1636 = vshrl.u32 %v1635, 7
  %v1637 = vsub.s32 %v1552, %v1636
  %v1638 = vrot.slane %v1089, %v1637
  %v1639 = vlaneseq
  %v1640 = vshrl.u32 %v1639, 7
  %v1641 = vsub.s32 %v1557, %v1640
  %v1642 = vrot.slane %v1092, %v1641
  %v1643 = vsel %vm1562, %v1642, %v1638
  %v1644 = vlaneseq
  %v1645 = vshrl.u32 %v1644, 7
  %v1646 = vsub.s32 %v1564, %v1645
  %v1647 = vrot.slane %v1095, %v1646
  %v1648 = vsel %vm1569, %v1647, %v1643
  %v1649 = vlaneseq
  %v1650 = vshrl.u32 %v1649, 7
  %v1651 = vsub.s32 %v1571, %v1650
  %v1652 = vrot.slane %v1098, %v1651
  %v1653 = vsel %vm1576, %v1652, %v1648
  %v1654 = vlaneseq
  %v1655 = vshrl.u32 %v1654, 7
  %v1656 = vsub.s32 %v1552, %v1655
  %v1657 = vrot.slane %v1101, %v1656
  %v1658 = vlaneseq
  %v1659 = vshrl.u32 %v1658, 7
  %v1660 = vsub.s32 %v1557, %v1659
  %v1661 = vrot.slane %v1104, %v1660
  %v1662 = vsel %vm1562, %v1661, %v1657
  %v1663 = vlaneseq
  %v1664 = vshrl.u32 %v1663, 7
  %v1665 = vsub.s32 %v1564, %v1664
  %v1666 = vrot.slane %v1107, %v1665
  %v1667 = vsel %vm1569, %v1666, %v1662
  %v1668 = vlaneseq
  %v1669 = vshrl.u32 %v1668, 7
  %v1670 = vsub.s32 %v1571, %v1669
  %v1671 = vrot.slane %v1110, %v1670
  %v1672 = vsel %vm1576, %v1671, %v1667
  %v1673 = vlaneseq
  %v1674 = vshrl.u32 %v1673, 7
  %v1675 = vsub.s32 %v1552, %v1674
  %v1676 = vrot.slane %v1113, %v1675
  %v1677 = vlaneseq
  %v1678 = vshrl.u32 %v1677, 7
  %v1679 = vsub.s32 %v1557, %v1678
  %v1680 = vrot.slane %v1116, %v1679
  %v1681 = vsel %vm1562, %v1680, %v1676
  %v1682 = vlaneseq
  %v1683 = vshrl.u32 %v1682, 7
  %v1684 = vsub.s32 %v1564, %v1683
  %v1685 = vrot.slane %v1119, %v1684
  %v1686 = vsel %vm1569, %v1685, %v1681
  %v1687 = vlaneseq
  %v1688 = vshrl.u32 %v1687, 7
  %v1689 = vsub.s32 %v1571, %v1688
  %v1690 = vrot.slane %v1122, %v1689
  %v1691 = vsel %vm1576, %v1690, %v1686
  %v1692 = vlaneseq
  %v1693 = vshrl.u32 %v1692, 7
  %v1694 = vsub.s32 %v1552, %v1693
  %v1695 = vrot.slane %v1125, %v1694
  %v1696 = vlaneseq
  %v1697 = vshrl.u32 %v1696, 7
  %v1698 = vsub.s32 %v1557, %v1697
  %v1699 = vrot.slane %v1128, %v1698
  %v1700 = vsel %vm1562, %v1699, %v1695
  %v1701 = vlaneseq
  %v1702 = vshrl.u32 %v1701, 7
  %v1703 = vsub.s32 %v1564, %v1702
  %v1704 = vrot.slane %v1131, %v1703
  %v1705 = vsel %vm1569, %v1704, %v1700
  %v1706 = vlaneseq
  %v1707 = vshrl.u32 %v1706, 7
  %v1708 = vsub.s32 %v1571, %v1707
  %v1709 = vrot.slane %v1134, %v1708
  %v1710 = vsel %vm1576, %v1709, %v1705
  %v1711 = vlaneseq
  %v1712 = vshrl.u32 %v1711, 7
  %v1713 = vsub.s32 %v1552, %v1712
  %v1714 = vrot.slane %v1137, %v1713
  %v1715 = vlaneseq
  %v1716 = vshrl.u32 %v1715, 7
  %v1717 = vsub.s32 %v1557, %v1716
  %v1718 = vrot.slane %v1140, %v1717
  %v1719 = vsel %vm1562, %v1718, %v1714
  %v1720 = vlaneseq
  %v1721 = vshrl.u32 %v1720, 7
  %v1722 = vsub.s32 %v1564, %v1721
  %v1723 = vrot.slane %v1143, %v1722
  %v1724 = vsel %vm1569, %v1723, %v1719
  %v1725 = vlaneseq
  %v1726 = vshrl.u32 %v1725, 7
  %v1727 = vsub.s32 %v1571, %v1726
  %v1728 = vrot.slane %v1146, %v1727
  %v1729 = vsel %vm1576, %v1728, %v1724
  %v1730 = vlaneseq
  %v1731 = vshrl.u32 %v1730, 7
  %v1732 = vsub.s32 %v1552, %v1731
  %v1733 = vrot.slane %v1149, %v1732
  %v1734 = vlaneseq
  %v1735 = vshrl.u32 %v1734, 7
  %v1736 = vsub.s32 %v1557, %v1735
  %v1737 = vrot.slane %v1152, %v1736
  %v1738 = vsel %vm1562, %v1737, %v1733
  %v1739 = vlaneseq
  %v1740 = vshrl.u32 %v1739, 7
  %v1741 = vsub.s32 %v1564, %v1740
  %v1742 = vrot.slane %v1155, %v1741
  %v1743 = vsel %vm1569, %v1742, %v1738
  %v1744 = vlaneseq
  %v1745 = vshrl.u32 %v1744, 7
  %v1746 = vsub.s32 %v1571, %v1745
  %v1747 = vrot.slane %v1158, %v1746
  %v1748 = vsel %vm1576, %v1747, %v1743
  %v1749 = vlaneseq
  %v1750 = vshrl.u32 %v1749, 7
  %v1751 = vsub.s32 %v1552, %v1750
  %v1752 = vrot.slane %v1161, %v1751
  %v1753 = vlaneseq
  %v1754 = vshrl.u32 %v1753, 7
  %v1755 = vsub.s32 %v1557, %v1754
  %v1756 = vrot.slane %v1164, %v1755
  %v1757 = vsel %vm1562, %v1756, %v1752
  %v1758 = vlaneseq
  %v1759 = vshrl.u32 %v1758, 7
  %v1760 = vsub.s32 %v1564, %v1759
  %v1761 = vrot.slane %v1167, %v1760
  %v1762 = vsel %vm1569, %v1761, %v1757
  %v1763 = vlaneseq
  %v1764 = vshrl.u32 %v1763, 7
  %v1765 = vsub.s32 %v1571, %v1764
  %v1766 = vrot.slane %v1170, %v1765
  %v1767 = vsel %vm1576, %v1766, %v1762
  %v1768 = vlaneseq
  %v1769 = vshrl.u32 %v1768, 7
  %v1770 = vsub.s32 %v1552, %v1769
  %v1771 = vrot.slane %v1173, %v1770
  %v1772 = vlaneseq
  %v1773 = vshrl.u32 %v1772, 7
  %v1774 = vsub.s32 %v1557, %v1773
  %v1775 = vrot.slane %v1176, %v1774
  %v1776 = vsel %vm1562, %v1775, %v1771
  %v1777 = vlaneseq
  %v1778 = vshrl.u32 %v1777, 7
  %v1779 = vsub.s32 %v1564, %v1778
  %v1780 = vrot.slane %v1179, %v1779
  %v1781 = vsel %vm1569, %v1780, %v1776
  %v1782 = vlaneseq
  %v1783 = vshrl.u32 %v1782, 7
  %v1784 = vsub.s32 %v1571, %v1783
  %v1785 = vrot.slane %v1182, %v1784
  %v1786 = vsel %vm1576, %v1785, %v1781
  %v1787 = vlaneseq
  %v1788 = vshrl.u32 %v1787, 7
  %v1789 = vsub.s32 %v1552, %v1788
  %v1790 = vrot.slane %v1185, %v1789
  %v1791 = vlaneseq
  %v1792 = vshrl.u32 %v1791, 7
  %v1793 = vsub.s32 %v1557, %v1792
  %v1794 = vrot.slane %v1188, %v1793
  %v1795 = vsel %vm1562, %v1794, %v1790
  %v1796 = vlaneseq
  %v1797 = vshrl.u32 %v1796, 7
  %v1798 = vsub.s32 %v1564, %v1797
  %v1799 = vrot.slane %v1191, %v1798
  %v1800 = vsel %vm1569, %v1799, %v1795
  %v1801 = vlaneseq
  %v1802 = vshrl.u32 %v1801, 7
  %v1803 = vsub.s32 %v1571, %v1802
  %v1804 = vrot.slane %v1194, %v1803
  %v1805 = vsel %vm1576, %v1804, %v1800
  %v1806 = vlaneseq
  %v1807 = vshrl.u32 %v1806, 7
  %v1808 = vsub.s32 %v1552, %v1807
  %v1809 = vrot.slane %v1197, %v1808
  %v1810 = vlaneseq
  %v1811 = vshrl.u32 %v1810, 7
  %v1812 = vsub.s32 %v1557, %v1811
  %v1813 = vrot.slane %v1200, %v1812
  %v1814 = vsel %vm1562, %v1813, %v1809
  %v1815 = vlaneseq
  %v1816 = vshrl.u32 %v1815, 7
  %v1817 = vsub.s32 %v1564, %v1816
  %v1818 = vrot.slane %v1203, %v1817
  %v1819 = vsel %vm1569, %v1818, %v1814
  %v1820 = vlaneseq
  %v1821 = vshrl.u32 %v1820, 7
  %v1822 = vsub.s32 %v1571, %v1821
  %v1823 = vrot.slane %v1206, %v1822
  %v1824 = vsel %vm1576, %v1823, %v1819
  %v1825 = vlaneseq
  %v1826 = vshrl.u32 %v1825, 7
  %v1827 = vsub.s32 %v1552, %v1826
  %v1828 = vrot.slane %v1209, %v1827
  %v1829 = vlaneseq
  %v1830 = vshrl.u32 %v1829, 7
  %v1831 = vsub.s32 %v1557, %v1830
  %v1832 = vrot.slane %v1212, %v1831
  %v1833 = vsel %vm1562, %v1832, %v1828
  %v1834 = vlaneseq
  %v1835 = vshrl.u32 %v1834, 7
  %v1836 = vsub.s32 %v1564, %v1835
  %v1837 = vrot.slane %v1215, %v1836
  %v1838 = vsel %vm1569, %v1837, %v1833
  %v1839 = vlaneseq
  %v1840 = vshrl.u32 %v1839, 7
  %v1841 = vsub.s32 %v1571, %v1840
  %v1842 = vrot.slane %v1218, %v1841
  %v1843 = vsel %vm1576, %v1842, %v1838
  %v1844 = vlaneseq
  %v1845 = vshrl.u32 %v1844, 7
  %v1846 = vsub.s32 %v1552, %v1845
  %v1847 = vrot.slane %v1221, %v1846
  %v1848 = vlaneseq
  %v1849 = vshrl.u32 %v1848, 7
  %v1850 = vsub.s32 %v1557, %v1849
  %v1851 = vrot.slane %v1224, %v1850
  %v1852 = vsel %vm1562, %v1851, %v1847
  %v1853 = vlaneseq
  %v1854 = vshrl.u32 %v1853, 7
  %v1855 = vsub.s32 %v1564, %v1854
  %v1856 = vrot.slane %v1227, %v1855
  %v1857 = vsel %vm1569, %v1856, %v1852
  %v1858 = vlaneseq
  %v1859 = vshrl.u32 %v1858, 7
  %v1860 = vsub.s32 %v1571, %v1859
  %v1861 = vrot.slane %v1230, %v1860
  %v1862 = vsel %vm1576, %v1861, %v1857
  %v1863 = vlaneseq
  %v1864 = vshrl.u32 %v1863, 7
  %v1865 = vsub.s32 %v1552, %v1864
  %v1866 = vrot.slane %v1233, %v1865
  %v1867 = vlaneseq
  %v1868 = vshrl.u32 %v1867, 7
  %v1869 = vsub.s32 %v1557, %v1868
  %v1870 = vrot.slane %v1236, %v1869
  %v1871 = vsel %vm1562, %v1870, %v1866
  %v1872 = vlaneseq
  %v1873 = vshrl.u32 %v1872, 7
  %v1874 = vsub.s32 %v1564, %v1873
  %v1875 = vrot.slane %v1239, %v1874
  %v1876 = vsel %vm1569, %v1875, %v1871
  %v1877 = vlaneseq
  %v1878 = vshrl.u32 %v1877, 7
  %v1879 = vsub.s32 %v1571, %v1878
  %v1880 = vrot.slane %v1242, %v1879
  %v1881 = vsel %vm1576, %v1880, %v1876
  %v1882 = vlaneseq
  %v1883 = vshrl.u32 %v1882, 7
  %v1884 = vsub.s32 %v1552, %v1883
  %v1885 = vrot.slane %v1245, %v1884
  %v1886 = vlaneseq
  %v1887 = vshrl.u32 %v1886, 7
  %v1888 = vsub.s32 %v1557, %v1887
  %v1889 = vrot.slane %v1248, %v1888
  %v1890 = vsel %vm1562, %v1889, %v1885
  %v1891 = vlaneseq
  %v1892 = vshrl.u32 %v1891, 7
  %v1893 = vsub.s32 %v1564, %v1892
  %v1894 = vrot.slane %v1251, %v1893
  %v1895 = vsel %vm1569, %v1894, %v1890
  %v1896 = vlaneseq
  %v1897 = vshrl.u32 %v1896, 7
  %v1898 = vsub.s32 %v1571, %v1897
  %v1899 = vrot.slane %v1254, %v1898
  %v1900 = vsel %vm1576, %v1899, %v1895
  %v1901 = vlaneseq
  %v1902 = vshrl.u32 %v1901, 7
  %v1903 = vsub.s32 %v1552, %v1902
  %v1904 = vrot.slane %v1257, %v1903
  %v1905 = vlaneseq
  %v1906 = vshrl.u32 %v1905, 7
  %v1907 = vsub.s32 %v1557, %v1906
  %v1908 = vrot.slane %v1260, %v1907
  %v1909 = vsel %vm1562, %v1908, %v1904
  %v1910 = vlaneseq
  %v1911 = vshrl.u32 %v1910, 7
  %v1912 = vsub.s32 %v1564, %v1911
  %v1913 = vrot.slane %v1263, %v1912
  %v1914 = vsel %vm1569, %v1913, %v1909
  %v1915 = vlaneseq
  %v1916 = vshrl.u32 %v1915, 7
  %v1917 = vsub.s32 %v1571, %v1916
  %v1918 = vrot.slane %v1266, %v1917
  %v1919 = vsel %vm1576, %v1918, %v1914
  %v1920 = vlaneseq
  %v1921 = vshrl.u32 %v1920, 7
  %v1922 = vsub.s32 %v1552, %v1921
  %v1923 = vrot.slane %v1269, %v1922
  %v1924 = vlaneseq
  %v1925 = vshrl.u32 %v1924, 7
  %v1926 = vsub.s32 %v1557, %v1925
  %v1927 = vrot.slane %v1272, %v1926
  %v1928 = vsel %vm1562, %v1927, %v1923
  %v1929 = vlaneseq
  %v1930 = vshrl.u32 %v1929, 7
  %v1931 = vsub.s32 %v1564, %v1930
  %v1932 = vrot.slane %v1275, %v1931
  %v1933 = vsel %vm1569, %v1932, %v1928
  %v1934 = vlaneseq
  %v1935 = vshrl.u32 %v1934, 7
  %v1936 = vsub.s32 %v1571, %v1935
  %v1937 = vrot.slane %v1278, %v1936
  %v1938 = vsel %vm1576, %v1937, %v1933
  %v1939 = vlaneseq
  %v1940 = vshrl.u32 %v1939, 7
  %v1941 = vsub.s32 %v1552, %v1940
  %v1942 = vrot.slane %v1281, %v1941
  %v1943 = vlaneseq
  %v1944 = vshrl.u32 %v1943, 7
  %v1945 = vsub.s32 %v1557, %v1944
  %v1946 = vrot.slane %v1284, %v1945
  %v1947 = vsel %vm1562, %v1946, %v1942
  %v1948 = vlaneseq
  %v1949 = vshrl.u32 %v1948, 7
  %v1950 = vsub.s32 %v1564, %v1949
  %v1951 = vrot.slane %v1287, %v1950
  %v1952 = vsel %vm1569, %v1951, %v1947
  %v1953 = vlaneseq
  %v1954 = vshrl.u32 %v1953, 7
  %v1955 = vsub.s32 %v1571, %v1954
  %v1956 = vrot.slane %v1290, %v1955
  %v1957 = vsel %vm1576, %v1956, %v1952
  %v1958 = vlaneseq
  %v1959 = vshrl.u32 %v1958, 7
  %v1960 = vsub.s32 %v1552, %v1959
  %v1961 = vrot.slane %v1293, %v1960
  %v1962 = vlaneseq
  %v1963 = vshrl.u32 %v1962, 7
  %v1964 = vsub.s32 %v1557, %v1963
  %v1965 = vrot.slane %v1296, %v1964
  %v1966 = vsel %vm1562, %v1965, %v1961
  %v1967 = vlaneseq
  %v1968 = vshrl.u32 %v1967, 7
  %v1969 = vsub.s32 %v1564, %v1968
  %v1970 = vrot.slane %v1299, %v1969
  %v1971 = vsel %vm1569, %v1970, %v1966
  %v1972 = vlaneseq
  %v1973 = vshrl.u32 %v1972, 7
  %v1974 = vsub.s32 %v1571, %v1973
  %v1975 = vrot.slane %v1302, %v1974
  %v1976 = vsel %vm1576, %v1975, %v1971
  %v1977 = vlaneseq
  %v1978 = vshrl.u32 %v1977, 7
  %v1979 = vsub.s32 %v1552, %v1978
  %v1980 = vrot.slane %v1305, %v1979
  %v1981 = vlaneseq
  %v1982 = vshrl.u32 %v1981, 7
  %v1983 = vsub.s32 %v1557, %v1982
  %v1984 = vrot.slane %v1308, %v1983
  %v1985 = vsel %vm1562, %v1984, %v1980
  %v1986 = vlaneseq
  %v1987 = vshrl.u32 %v1986, 7
  %v1988 = vsub.s32 %v1564, %v1987
  %v1989 = vrot.slane %v1311, %v1988
  %v1990 = vsel %vm1569, %v1989, %v1985
  %v1991 = vlaneseq
  %v1992 = vshrl.u32 %v1991, 7
  %v1993 = vsub.s32 %v1571, %v1992
  %v1994 = vrot.slane %v1314, %v1993
  %v1995 = vsel %vm1576, %v1994, %v1990
  %v1996 = vlaneseq
  %v1997 = vshrl.u32 %v1996, 7
  %v1998 = vsub.s32 %v1552, %v1997
  %v1999 = vrot.slane %v1317, %v1998
  %v2000 = vlaneseq
  %v2001 = vshrl.u32 %v2000, 7
  %v2002 = vsub.s32 %v1557, %v2001
  %v2003 = vrot.slane %v1320, %v2002
  %v2004 = vsel %vm1562, %v2003, %v1999
  %v2005 = vlaneseq
  %v2006 = vshrl.u32 %v2005, 7
  %v2007 = vsub.s32 %v1564, %v2006
  %v2008 = vrot.slane %v1323, %v2007
  %v2009 = vsel %vm1569, %v2008, %v2004
  %v2010 = vlaneseq
  %v2011 = vshrl.u32 %v2010, 7
  %v2012 = vsub.s32 %v1571, %v2011
  %v2013 = vrot.slane %v1326, %v2012
  %v2014 = vsel %vm1576, %v2013, %v2009
  %v2015 = vlaneseq
  %v2016 = vshrl.u32 %v2015, 7
  %v2017 = vsub.s32 %v1552, %v2016
  %v2018 = vrot.slane %v1329, %v2017
  %v2019 = vlaneseq
  %v2020 = vshrl.u32 %v2019, 7
  %v2021 = vsub.s32 %v1557, %v2020
  %v2022 = vrot.slane %v1332, %v2021
  %v2023 = vsel %vm1562, %v2022, %v2018
  %v2024 = vlaneseq
  %v2025 = vshrl.u32 %v2024, 7
  %v2026 = vsub.s32 %v1564, %v2025
  %v2027 = vrot.slane %v1335, %v2026
  %v2028 = vsel %vm1569, %v2027, %v2023
  %v2029 = vlaneseq
  %v2030 = vshrl.u32 %v2029, 7
  %v2031 = vsub.s32 %v1571, %v2030
  %v2032 = vrot.slane %v1338, %v2031
  %v2033 = vsel %vm1576, %v2032, %v2028
  %v2034 = vlaneseq
  %v2035 = vshrl.u32 %v2034, 7
  %v2036 = vsub.s32 %v1552, %v2035
  %v2037 = vrot.slane %v1341, %v2036
  %v2038 = vlaneseq
  %v2039 = vshrl.u32 %v2038, 7
  %v2040 = vsub.s32 %v1557, %v2039
  %v2041 = vrot.slane %v1344, %v2040
  %v2042 = vsel %vm1562, %v2041, %v2037
  %v2043 = vlaneseq
  %v2044 = vshrl.u32 %v2043, 7
  %v2045 = vsub.s32 %v1564, %v2044
  %v2046 = vrot.slane %v1347, %v2045
  %v2047 = vsel %vm1569, %v2046, %v2042
  %v2048 = vlaneseq
  %v2049 = vshrl.u32 %v2048, 7
  %v2050 = vsub.s32 %v1571, %v2049
  %v2051 = vrot.slane %v1350, %v2050
  %v2052 = vsel %vm1576, %v2051, %v2047
  %v2053 = vlaneseq
  %v2054 = vshrl.u32 %v2053, 7
  %v2055 = vsub.s32 %v1552, %v2054
  %v2056 = vrot.slane %v1353, %v2055
  %v2057 = vlaneseq
  %v2058 = vshrl.u32 %v2057, 7
  %v2059 = vsub.s32 %v1557, %v2058
  %v2060 = vrot.slane %v1356, %v2059
  %v2061 = vsel %vm1562, %v2060, %v2056
  %v2062 = vlaneseq
  %v2063 = vshrl.u32 %v2062, 7
  %v2064 = vsub.s32 %v1564, %v2063
  %v2065 = vrot.slane %v1359, %v2064
  %v2066 = vsel %vm1569, %v2065, %v2061
  %v2067 = vlaneseq
  %v2068 = vshrl.u32 %v2067, 7
  %v2069 = vsub.s32 %v1571, %v2068
  %v2070 = vrot.slane %v1362, %v2069
  %v2071 = vsel %vm1576, %v2070, %v2066
  %v2072 = vlaneseq
  %v2073 = vshrl.u32 %v2072, 7
  %v2074 = vsub.s32 %v1552, %v2073
  %v2075 = vrot.slane %v1365, %v2074
  %v2076 = vlaneseq
  %v2077 = vshrl.u32 %v2076, 7
  %v2078 = vsub.s32 %v1557, %v2077
  %v2079 = vrot.slane %v1368, %v2078
  %v2080 = vsel %vm1562, %v2079, %v2075
  %v2081 = vlaneseq
  %v2082 = vshrl.u32 %v2081, 7
  %v2083 = vsub.s32 %v1564, %v2082
  %v2084 = vrot.slane %v1371, %v2083
  %v2085 = vsel %vm1569, %v2084, %v2080
  %v2086 = vlaneseq
  %v2087 = vshrl.u32 %v2086, 7
  %v2088 = vsub.s32 %v1571, %v2087
  %v2089 = vrot.slane %v1374, %v2088
  %v2090 = vsel %vm1576, %v2089, %v2085
  %v2091 = vlaneseq
  %v2092 = vshrl.u32 %v2091, 7
  %v2093 = vsub.s32 %v1552, %v2092
  %v2094 = vrot.slane %v1377, %v2093
  %v2095 = vlaneseq
  %v2096 = vshrl.u32 %v2095, 7
  %v2097 = vsub.s32 %v1557, %v2096
  %v2098 = vrot.slane %v1380, %v2097
  %v2099 = vsel %vm1562, %v2098, %v2094
  %v2100 = vlaneseq
  %v2101 = vshrl.u32 %v2100, 7
  %v2102 = vsub.s32 %v1564, %v2101
  %v2103 = vrot.slane %v1383, %v2102
  %v2104 = vsel %vm1569, %v2103, %v2099
  %v2105 = vlaneseq
  %v2106 = vshrl.u32 %v2105, 7
  %v2107 = vsub.s32 %v1571, %v2106
  %v2108 = vrot.slane %v1386, %v2107
  %v2109 = vsel %vm1576, %v2108, %v2104
  %v2110 = vlaneseq
  %v2111 = vshrl.u32 %v2110, 7
  %v2112 = vsub.s32 %v1552, %v2111
  %v2113 = vrot.slane %v1389, %v2112
  %v2114 = vlaneseq
  %v2115 = vshrl.u32 %v2114, 7
  %v2116 = vsub.s32 %v1557, %v2115
  %v2117 = vrot.slane %v1392, %v2116
  %v2118 = vsel %vm1562, %v2117, %v2113
  %v2119 = vlaneseq
  %v2120 = vshrl.u32 %v2119, 7
  %v2121 = vsub.s32 %v1564, %v2120
  %v2122 = vrot.slane %v1395, %v2121
  %v2123 = vsel %vm1569, %v2122, %v2118
  %v2124 = vlaneseq
  %v2125 = vshrl.u32 %v2124, 7
  %v2126 = vsub.s32 %v1571, %v2125
  %v2127 = vrot.slane %v1398, %v2126
  %v2128 = vsel %vm1576, %v2127, %v2123
  %v2129 = vlaneseq
  %v2130 = vshrl.u32 %v2129, 7
  %v2131 = vsub.s32 %v1552, %v2130
  %v2132 = vrot.slane %v1401, %v2131
  %v2133 = vlaneseq
  %v2134 = vshrl.u32 %v2133, 7
  %v2135 = vsub.s32 %v1557, %v2134
  %v2136 = vrot.slane %v1404, %v2135
  %v2137 = vsel %vm1562, %v2136, %v2132
  %v2138 = vlaneseq
  %v2139 = vshrl.u32 %v2138, 7
  %v2140 = vsub.s32 %v1564, %v2139
  %v2141 = vrot.slane %v1407, %v2140
  %v2142 = vsel %vm1569, %v2141, %v2137
  %v2143 = vlaneseq
  %v2144 = vshrl.u32 %v2143, 7
  %v2145 = vsub.s32 %v1571, %v2144
  %v2146 = vrot.slane %v1410, %v2145
  %v2147 = vsel %vm1576, %v2146, %v2142
  %v2148 = vlaneseq
  %v2149 = vshrl.u32 %v2148, 7
  %v2150 = vsub.s32 %v1552, %v2149
  %v2151 = vrot.slane %v1413, %v2150
  %v2152 = vlaneseq
  %v2153 = vshrl.u32 %v2152, 7
  %v2154 = vsub.s32 %v1557, %v2153
  %v2155 = vrot.slane %v1416, %v2154
  %v2156 = vsel %vm1562, %v2155, %v2151
  %v2157 = vlaneseq
  %v2158 = vshrl.u32 %v2157, 7
  %v2159 = vsub.s32 %v1564, %v2158
  %v2160 = vrot.slane %v1419, %v2159
  %v2161 = vsel %vm1569, %v2160, %v2156
  %v2162 = vlaneseq
  %v2163 = vshrl.u32 %v2162, 7
  %v2164 = vsub.s32 %v1571, %v2163
  %v2165 = vrot.slane %v1422, %v2164
  %v2166 = vsel %vm1576, %v2165, %v2161
  %vm2167 = vcmask 1041409
  %v2168 = vsel %vm2167, %v1596, %v1577
  %vm2169 = vcmask 1042434
  %v2170 = vsel %vm2169, %v1615, %v2168
  %vm2171 = vcmask 1043459
  %v2172 = vsel %vm2171, %v1634, %v2170
  %vm2173 = vcmask 1044484
  %v2174 = vsel %vm2173, %v1653, %v2172
  %vm2175 = vcmask 1045509
  %v2176 = vsel %vm2175, %v1672, %v2174
  %vm2177 = vcmask 1046534
  %v2178 = vsel %vm2177, %v1691, %v2176
  %vm2179 = vcmask 1047559
  %v2180 = vsel %vm2179, %v1710, %v2178
  %v2181 = vsel %vm2167, %v1748, %v1729
  %v2182 = vsel %vm2169, %v1767, %v2181
  %v2183 = vsel %vm2171, %v1786, %v2182
  %v2184 = vsel %vm2173, %v1805, %v2183
  %v2185 = vsel %vm2175, %v1824, %v2184
  %v2186 = vsel %vm2177, %v1843, %v2185
  %v2187 = vsel %vm2179, %v1862, %v2186
  %v2188 = vsel %vm2167, %v1900, %v1881
  %v2189 = vsel %vm2169, %v1919, %v2188
  %v2190 = vsel %vm2171, %v1938, %v2189
  %v2191 = vsel %vm2173, %v1957, %v2190
  %v2192 = vsel %vm2175, %v1976, %v2191
  %v2193 = vsel %vm2177, %v1995, %v2192
  %v2194 = vsel %vm2179, %v2014, %v2193
  %v2195 = vsel %vm2167, %v2052, %v2033
  %v2196 = vsel %vm2169, %v2071, %v2195
  %v2197 = vsel %vm2171, %v2090, %v2196
  %v2198 = vsel %vm2173, %v2109, %v2197
  %v2199 = vsel %vm2175, %v2128, %v2198
  %v2200 = vsel %vm2177, %v2147, %v2199
  %v2201 = vsel %vm2179, %v2166, %v2200
  %v2206 = vsel %vm29, %v2180, -1e+30
  %v2207 = vsel %vm30, %v2187, -1e+30
  %v2208 = vsel %vm31, %v2194, -1e+30
  %v2209 = vsel %vm32, %v2201, -1e+30
  %vm2210 = vcmask 261120
  %v2211 = vsel %vm2210, %v2206, -inf
  %2212 = vmax.xlane.f32.xlu0 %v2211
  %v2213 = vpop.xlane.xlu0 %2212
  %v2214 = vsel %vm2210, %v2207, -inf
  %2215 = vmax.xlane.f32.xlu0 %v2214
  %v2216 = vpop.xlane.xlu0 %2215
  %v2217 = vsel %vm2210, %v2208, -inf
  %2218 = vmax.xlane.f32.xlu0 %v2217
  %v2219 = vpop.xlane.xlu0 %2218
  %v2220 = vsel %vm2210, %v2209, -inf
  %2221 = vmax.xlane.f32.xlu0 %v2220
  %v2222 = vpop.xlane.xlu0 %2221
  %v2223 = vsub.f32 %v2206, %v2213
  %v2224 = vsub.f32 %v2207, %v2216
  %v2225 = vsub.f32 %v2208, %v2219
  %v2226 = vsub.f32 %v2209, %v2222
  %v2227 = vmul.f32 %v2223, 1.442695
  %v2228 = vpow.pop %v2227
  %v2229 = vmul.f32 %v2224, 1.442695
  %v2230 = vpow.pop %v2229
  %v2231 = vmul.f32 %v2225, 1.442695
  %v2232 = vpow.pop %v2231
  %v2233 = vmul.f32 %v2226, 1.442695
  %v2234 = vpow.pop %v2233
  %v2235 = vsel %vm2210, %v2228, 0.0
  %2236 = vadd.xlane.f32.xlu0 %v2235
  %v2237 = vpop.xlane.xlu0 %2236
  %v2238 = vsel %vm2210, %v2230, 0.0
  %2239 = vadd.xlane.f32.xlu0 %v2238
  %v2240 = vpop.xlane.xlu0 %2239
  %v2241 = vsel %vm2210, %v2232, 0.0
  %2242 = vadd.xlane.f32.xlu0 %v2241
  %v2243 = vpop.xlane.xlu0 %2242
  %v2244 = vsel %vm2210, %v2234, 0.0
  %2245 = vadd.xlane.f32.xlu0 %v2244
  %v2246 = vpop.xlane.xlu0 %2245
  %v2247 = vrcp.pop %v2237
  %v2248 = vrcp.pop %v2240
  %v2249 = vrcp.pop %v2243
  %v2250 = vrcp.pop %v2246
  %v2251 = vmul.f32 %v2228, %v2247
  %v2252 = vmul.f32 %v2230, %v2248
  %v2253 = vmul.f32 %v2232, %v2249
  %v2254 = vmul.f32 %v2234, %v2250
  %v2256 = vsel %vm2210, %v2251, 0
  %v2259 = vsel %vm2210, %v2252, 0
  %v2262 = vsel %vm2210, %v2253, 0
  %v2265 = vsel %vm2210, %v2254, 0
  %2267 = vmatprep.subr.mxu0 0.0
  %2268 = vmatpush1.msra.mxu0 0.0
  %2269 = vmatprep.subr.mxu0 0.0
  %2270 = vmatpush1.msra.mxu0 0.0
  %2271 = vmatprep.subr.mxu0 0.0
  %2272 = vmatpush1.msra.mxu0 0.0
  %2273 = vmatprep.subr.mxu0 0.0
  %2274 = vmatpush1.msra.mxu0 0.0
  %2275 = vmatprep.subr.mxu0 0.0
  %2276 = vmatpush1.msra.mxu0 0.0
  %2277 = vmatprep.subr.mxu0 0.0
  %2278 = vmatpush1.msra.mxu0 0.0
  %2279 = vmatprep.subr.mxu0 0.0
  %2280 = vmatpush1.msra.mxu0 0.0
  %2281 = vmatprep.subr.mxu0 0.0
  %2282 = vmatpush1.msra.mxu0 0.0
  %2283 = vmatprep.subr.mxu0 0.0
  %2284 = vmatpush1.msra.mxu0 0.0
  %2285 = vmatprep.subr.mxu0 0.0
  %2286 = vmatpush1.msra.mxu0 0.0
  %2287 = vmatprep.subr.mxu0 0.0
  %2288 = vmatpush1.msra.mxu0 0.0
  %2289 = vmatprep.subr.mxu0 0.0
  %2290 = vmatpush1.msra.mxu0 0.0
  %2291 = vmatprep.subr.mxu0 0.0
  %2292 = vmatpush1.msra.mxu0 %v20
  %2293 = vmatprep.subr.mxu0 0.0
  %2294 = vmatpush1.msra.mxu0 %v19
  %2295 = vmatprep.subr.mxu0 0.0
  %2296 = vmatpush1.msra.mxu0 %v18
  %2297 = vmatprep.subr.mxu0 0.0
  %2298 = vmatpush1.msra.mxu0 %v17
  %2299 = vmatprep.subr.mxu0 0.0
  %2300 = vmatpush2.msra.mxu0 0.0
  %2301 = vmatprep.subr.mxu0 0.0
  %2302 = vmatpush2.msra.mxu0 0.0
  %2303 = vmatprep.subr.mxu0 0.0
  %2304 = vmatpush2.msra.mxu0 0.0
  %2305 = vmatprep.subr.mxu0 0.0
  %2306 = vmatpush2.msra.mxu0 0.0
  %2307 = vmatprep.subr.mxu0 0.0
  %2308 = vmatpush2.msra.mxu0 0.0
  %2309 = vmatprep.subr.mxu0 0.0
  %2310 = vmatpush2.msra.mxu0 0.0
  %2311 = vmatprep.subr.mxu0 0.0
  %2312 = vmatpush2.msra.mxu0 0.0
  %2313 = vmatprep.subr.mxu0 0.0
  %2314 = vmatpush2.msra.mxu0 0.0
  %2315 = vmatprep.subr.mxu0 0.0
  %2316 = vmatpush2.msra.mxu0 0.0
  %2317 = vmatprep.subr.mxu0 0.0
  %2318 = vmatpush2.msra.mxu0 0.0
  %2319 = vmatprep.subr.mxu0 0.0
  %2320 = vmatpush2.msra.mxu0 0.0
  %2321 = vmatprep.subr.mxu0 0.0
  %2322 = vmatpush2.msra.mxu0 0.0
  %2323 = vmatprep.subr.mxu0 0.0
  %2324 = vmatpush2.msra.mxu0 0.0
  %2325 = vmatprep.subr.mxu0 0.0
  %2326 = vmatpush2.msra.mxu0 0.0
  %2327 = vmatprep.subr.mxu0 0.0
  %2328 = vmatpush2.msra.mxu0 0.0
  %2329 = vmatprep.subr.mxu0 0.0
  %2330 = vmatpush2.msra.mxu0 0.0
  %2331 = vmatprep.mubr.f32.mxu0 0.0
  %2332 = vmatmul.mubr.f32.gmra.mxu0 %v2256
  %v2333 = vpop.f32.mrf.mxu0
  %v2334 = vadd.f32 0.0, %v2333
  %v2335 = vpop.f32.mrf.mxu0
  %2336 = vmatprep.mubr.f32.mxu0 0.0
  %2337 = vmatmul.mubr.f32.gmra.mxu0 %v2259
  %v2338 = vpop.f32.mrf.mxu0
  %v2339 = vadd.f32 0.0, %v2338
  %v2340 = vpop.f32.mrf.mxu0
  %2341 = vmatprep.mubr.f32.mxu0 0.0
  %2342 = vmatmul.mubr.f32.gmra.mxu0 %v2262
  %v2343 = vpop.f32.mrf.mxu0
  %v2344 = vadd.f32 0.0, %v2343
  %v2345 = vpop.f32.mrf.mxu0
  %2346 = vmatprep.mubr.f32.mxu0 0.0
  %2347 = vmatmul.mubr.f32.gmra.mxu0 %v2265
  %v2348 = vpop.f32.mrf.mxu0
  %v2349 = vadd.f32 0.0, %v2348
  %v2350 = vpop.f32.mrf.mxu0
  %2351 = vdwg.mxu0
  %2480 = vrot.lane.b32.xlu0 %v910, 112
  %v2481 = vpop.permute.xlu0 %2480
  %2482 = vrot.lane.b32.xlu0 %v911, 112
  %v2483 = vpop.permute.xlu0 %2482
  %2484 = vrot.lane.b32.xlu0 %v912, 112
  %v2485 = vpop.permute.xlu0 %2484
  %2486 = vrot.lane.b32.xlu0 %v913, 112
  %v2487 = vpop.permute.xlu0 %2486
  %2488 = vrot.lane.b32.xlu0 %v914, 112
  %v2489 = vpop.permute.xlu0 %2488
  %2490 = vrot.lane.b32.xlu0 %v915, 112
  %v2491 = vpop.permute.xlu0 %2490
  %2492 = vrot.lane.b32.xlu0 %v916, 112
  %v2493 = vpop.permute.xlu0 %2492
  %2494 = vrot.lane.b32.xlu0 %v917, 112
  %v2495 = vpop.permute.xlu0 %2494
  %2496 = vrot.lane.b32.xlu0 %v918, 112
  %v2497 = vpop.permute.xlu0 %2496
  %2498 = vrot.lane.b32.xlu0 %v919, 112
  %v2499 = vpop.permute.xlu0 %2498
  %2500 = vrot.lane.b32.xlu0 %v920, 112
  %v2501 = vpop.permute.xlu0 %2500
  %2502 = vrot.lane.b32.xlu0 %v921, 112
  %v2503 = vpop.permute.xlu0 %2502
  %2504 = vrot.lane.b32.xlu0 %v922, 112
  %v2505 = vpop.permute.xlu0 %2504
  %2506 = vrot.lane.b32.xlu0 %v923, 112
  %v2507 = vpop.permute.xlu0 %2506
  %2508 = vrot.lane.b32.xlu0 %v924, 112
  %v2509 = vpop.permute.xlu0 %2508
  %2510 = vrot.lane.b32.xlu0 %v925, 112
  %v2511 = vpop.permute.xlu0 %2510
  %2512 = vrot.lane.b32.xlu0 %v926, 112
  %v2513 = vpop.permute.xlu0 %2512
  %2514 = vrot.lane.b32.xlu0 %v927, 112
  %v2515 = vpop.permute.xlu0 %2514
  %2516 = vrot.lane.b32.xlu0 %v928, 112
  %v2517 = vpop.permute.xlu0 %2516
  %2518 = vrot.lane.b32.xlu0 %v929, 112
  %v2519 = vpop.permute.xlu0 %2518
  %2520 = vrot.lane.b32.xlu0 %v930, 112
  %v2521 = vpop.permute.xlu0 %2520
  %2522 = vrot.lane.b32.xlu0 %v931, 112
  %v2523 = vpop.permute.xlu0 %2522
  %2524 = vrot.lane.b32.xlu0 %v932, 112
  %v2525 = vpop.permute.xlu0 %2524
  %2526 = vrot.lane.b32.xlu0 %v933, 112
  %v2527 = vpop.permute.xlu0 %2526
  %2528 = vrot.lane.b32.xlu0 %v934, 112
  %v2529 = vpop.permute.xlu0 %2528
  %2530 = vrot.lane.b32.xlu0 %v935, 112
  %v2531 = vpop.permute.xlu0 %2530
  %2532 = vrot.lane.b32.xlu0 %v936, 112
  %v2533 = vpop.permute.xlu0 %2532
  %2534 = vrot.lane.b32.xlu0 %v937, 112
  %v2535 = vpop.permute.xlu0 %2534
  %2536 = vrot.lane.b32.xlu0 %v938, 112
  %v2537 = vpop.permute.xlu0 %2536
  %2538 = vrot.lane.b32.xlu0 %v939, 112
  %v2539 = vpop.permute.xlu0 %2538
  %2540 = vrot.lane.b32.xlu0 %v940, 112
  %v2541 = vpop.permute.xlu0 %2540
  %2542 = vrot.lane.b32.xlu0 %v941, 112
  %v2543 = vpop.permute.xlu0 %2542
  %2544 = vrot.lane.b32.xlu0 %v942, 112
  %v2545 = vpop.permute.xlu0 %2544
  %2546 = vrot.lane.b32.xlu0 %v943, 112
  %v2547 = vpop.permute.xlu0 %2546
  %2548 = vrot.lane.b32.xlu0 %v944, 112
  %v2549 = vpop.permute.xlu0 %2548
  %2550 = vrot.lane.b32.xlu0 %v945, 112
  %v2551 = vpop.permute.xlu0 %2550
  %2552 = vrot.lane.b32.xlu0 %v946, 112
  %v2553 = vpop.permute.xlu0 %2552
  %2554 = vrot.lane.b32.xlu0 %v947, 112
  %v2555 = vpop.permute.xlu0 %2554
  %2556 = vrot.lane.b32.xlu0 %v948, 112
  %v2557 = vpop.permute.xlu0 %2556
  %2558 = vrot.lane.b32.xlu0 %v949, 112
  %v2559 = vpop.permute.xlu0 %2558
  %2560 = vrot.lane.b32.xlu0 %v950, 112
  %v2561 = vpop.permute.xlu0 %2560
  %2562 = vrot.lane.b32.xlu0 %v951, 112
  %v2563 = vpop.permute.xlu0 %2562
  %2564 = vrot.lane.b32.xlu0 %v952, 112
  %v2565 = vpop.permute.xlu0 %2564
  %2566 = vrot.lane.b32.xlu0 %v953, 112
  %v2567 = vpop.permute.xlu0 %2566
  %2568 = vrot.lane.b32.xlu0 %v954, 112
  %v2569 = vpop.permute.xlu0 %2568
  %2570 = vrot.lane.b32.xlu0 %v955, 112
  %v2571 = vpop.permute.xlu0 %2570
  %2572 = vrot.lane.b32.xlu0 %v956, 112
  %v2573 = vpop.permute.xlu0 %2572
  %2574 = vrot.lane.b32.xlu0 %v957, 112
  %v2575 = vpop.permute.xlu0 %2574
  %2576 = vrot.lane.b32.xlu0 %v958, 112
  %v2577 = vpop.permute.xlu0 %2576
  %2578 = vrot.lane.b32.xlu0 %v959, 112
  %v2579 = vpop.permute.xlu0 %2578
  %2580 = vrot.lane.b32.xlu0 %v960, 112
  %v2581 = vpop.permute.xlu0 %2580
  %2582 = vrot.lane.b32.xlu0 %v961, 112
  %v2583 = vpop.permute.xlu0 %2582
  %2584 = vrot.lane.b32.xlu0 %v962, 112
  %v2585 = vpop.permute.xlu0 %2584
  %2586 = vrot.lane.b32.xlu0 %v963, 112
  %v2587 = vpop.permute.xlu0 %2586
  %2588 = vrot.lane.b32.xlu0 %v964, 112
  %v2589 = vpop.permute.xlu0 %2588
  %2590 = vrot.lane.b32.xlu0 %v965, 112
  %v2591 = vpop.permute.xlu0 %2590
  %2592 = vrot.lane.b32.xlu0 %v966, 112
  %v2593 = vpop.permute.xlu0 %2592
  %2594 = vrot.lane.b32.xlu0 %v967, 112
  %v2595 = vpop.permute.xlu0 %2594
  %2596 = vrot.lane.b32.xlu0 %v968, 112
  %v2597 = vpop.permute.xlu0 %2596
  %2598 = vrot.lane.b32.xlu0 %v969, 112
  %v2599 = vpop.permute.xlu0 %2598
  %2600 = vrot.lane.b32.xlu0 %v970, 112
  %v2601 = vpop.permute.xlu0 %2600
  %2602 = vrot.lane.b32.xlu0 %v971, 112
  %v2603 = vpop.permute.xlu0 %2602
  %2604 = vrot.lane.b32.xlu0 %v972, 112
  %v2605 = vpop.permute.xlu0 %2604
  %2606 = vrot.lane.b32.xlu0 %v973, 112
  %v2607 = vpop.permute.xlu0 %2606
  %2608 = vrot.lane.b32.xlu0 %v974, 112
  %v2609 = vpop.permute.xlu0 %2608
  %2610 = vrot.lane.b32.xlu0 %v975, 112
  %v2611 = vpop.permute.xlu0 %2610
  %2612 = vrot.lane.b32.xlu0 %v976, 112
  %v2613 = vpop.permute.xlu0 %2612
  %2614 = vrot.lane.b32.xlu0 %v977, 112
  %v2615 = vpop.permute.xlu0 %2614
  %2616 = vrot.lane.b32.xlu0 %v978, 112
  %v2617 = vpop.permute.xlu0 %2616
  %2618 = vrot.lane.b32.xlu0 %v979, 112
  %v2619 = vpop.permute.xlu0 %2618
  %2620 = vrot.lane.b32.xlu0 %v980, 112
  %v2621 = vpop.permute.xlu0 %2620
  %2622 = vrot.lane.b32.xlu0 %v981, 112
  %v2623 = vpop.permute.xlu0 %2622
  %2624 = vrot.lane.b32.xlu0 %v982, 112
  %v2625 = vpop.permute.xlu0 %2624
  %2626 = vrot.lane.b32.xlu0 %v983, 112
  %v2627 = vpop.permute.xlu0 %2626
  %2628 = vrot.lane.b32.xlu0 %v984, 112
  %v2629 = vpop.permute.xlu0 %2628
  %2630 = vrot.lane.b32.xlu0 %v985, 112
  %v2631 = vpop.permute.xlu0 %2630
  %2632 = vrot.lane.b32.xlu0 %v986, 112
  %v2633 = vpop.permute.xlu0 %2632
  %2634 = vrot.lane.b32.xlu0 %v987, 112
  %v2635 = vpop.permute.xlu0 %2634
  %2636 = vrot.lane.b32.xlu0 %v988, 112
  %v2637 = vpop.permute.xlu0 %2636
  %2638 = vrot.lane.b32.xlu0 %v989, 112
  %v2639 = vpop.permute.xlu0 %2638
  %2640 = vrot.lane.b32.xlu0 %v990, 112
  %v2641 = vpop.permute.xlu0 %2640
  %2642 = vrot.lane.b32.xlu0 %v991, 112
  %v2643 = vpop.permute.xlu0 %2642
  %2644 = vrot.lane.b32.xlu0 %v992, 112
  %v2645 = vpop.permute.xlu0 %2644
  %2646 = vrot.lane.b32.xlu0 %v993, 112
  %v2647 = vpop.permute.xlu0 %2646
  %2648 = vrot.lane.b32.xlu0 %v994, 112
  %v2649 = vpop.permute.xlu0 %2648
  %2650 = vrot.lane.b32.xlu0 %v995, 112
  %v2651 = vpop.permute.xlu0 %2650
  %2652 = vrot.lane.b32.xlu0 %v996, 112
  %v2653 = vpop.permute.xlu0 %2652
  %2654 = vrot.lane.b32.xlu0 %v997, 112
  %v2655 = vpop.permute.xlu0 %2654
  %2656 = vrot.lane.b32.xlu0 %v998, 112
  %v2657 = vpop.permute.xlu0 %2656
  %2658 = vrot.lane.b32.xlu0 %v999, 112
  %v2659 = vpop.permute.xlu0 %2658
  %2660 = vrot.lane.b32.xlu0 %v1000, 112
  %v2661 = vpop.permute.xlu0 %2660
  %2662 = vrot.lane.b32.xlu0 %v1001, 112
  %v2663 = vpop.permute.xlu0 %2662
  %2664 = vrot.lane.b32.xlu0 %v1002, 112
  %v2665 = vpop.permute.xlu0 %2664
  %2666 = vrot.lane.b32.xlu0 %v1003, 112
  %v2667 = vpop.permute.xlu0 %2666
  %2668 = vrot.lane.b32.xlu0 %v1004, 112
  %v2669 = vpop.permute.xlu0 %2668
  %2670 = vrot.lane.b32.xlu0 %v1005, 112
  %v2671 = vpop.permute.xlu0 %2670
  %2672 = vrot.lane.b32.xlu0 %v1006, 112
  %v2673 = vpop.permute.xlu0 %2672
  %2674 = vrot.lane.b32.xlu0 %v1007, 112
  %v2675 = vpop.permute.xlu0 %2674
  %2676 = vrot.lane.b32.xlu0 %v1008, 112
  %v2677 = vpop.permute.xlu0 %2676
  %2678 = vrot.lane.b32.xlu0 %v1009, 112
  %v2679 = vpop.permute.xlu0 %2678
  %2680 = vrot.lane.b32.xlu0 %v1010, 112
  %v2681 = vpop.permute.xlu0 %2680
  %2682 = vrot.lane.b32.xlu0 %v1011, 112
  %v2683 = vpop.permute.xlu0 %2682
  %2684 = vrot.lane.b32.xlu0 %v1012, 112
  %v2685 = vpop.permute.xlu0 %2684
  %2686 = vrot.lane.b32.xlu0 %v1013, 112
  %v2687 = vpop.permute.xlu0 %2686
  %2688 = vrot.lane.b32.xlu0 %v1014, 112
  %v2689 = vpop.permute.xlu0 %2688
  %2690 = vrot.lane.b32.xlu0 %v1015, 112
  %v2691 = vpop.permute.xlu0 %2690
  %2692 = vrot.lane.b32.xlu0 %v1016, 112
  %v2693 = vpop.permute.xlu0 %2692
  %2694 = vrot.lane.b32.xlu0 %v1017, 112
  %v2695 = vpop.permute.xlu0 %2694
  %2696 = vrot.lane.b32.xlu0 %v1018, 112
  %v2697 = vpop.permute.xlu0 %2696
  %2698 = vrot.lane.b32.xlu0 %v1019, 112
  %v2699 = vpop.permute.xlu0 %2698
  %2700 = vrot.lane.b32.xlu0 %v1020, 112
  %v2701 = vpop.permute.xlu0 %2700
  %2702 = vrot.lane.b32.xlu0 %v1021, 112
  %v2703 = vpop.permute.xlu0 %2702
  %2704 = vrot.lane.b32.xlu0 %v1022, 112
  %v2705 = vpop.permute.xlu0 %2704
  %2706 = vrot.lane.b32.xlu0 %v1023, 112
  %v2707 = vpop.permute.xlu0 %2706
  %2708 = vrot.lane.b32.xlu0 %v1024, 112
  %v2709 = vpop.permute.xlu0 %2708
  %2710 = vrot.lane.b32.xlu0 %v1025, 112
  %v2711 = vpop.permute.xlu0 %2710
  %2712 = vrot.lane.b32.xlu0 %v1026, 112
  %v2713 = vpop.permute.xlu0 %2712
  %2714 = vrot.lane.b32.xlu0 %v1027, 112
  %v2715 = vpop.permute.xlu0 %2714
  %2716 = vrot.lane.b32.xlu0 %v1028, 112
  %v2717 = vpop.permute.xlu0 %2716
  %2718 = vrot.lane.b32.xlu0 %v1029, 112
  %v2719 = vpop.permute.xlu0 %2718
  %2720 = vrot.lane.b32.xlu0 %v1030, 112
  %v2721 = vpop.permute.xlu0 %2720
  %2722 = vrot.lane.b32.xlu0 %v1031, 112
  %v2723 = vpop.permute.xlu0 %2722
  %2724 = vrot.lane.b32.xlu0 %v1032, 112
  %v2725 = vpop.permute.xlu0 %2724
  %2726 = vrot.lane.b32.xlu0 %v1033, 112
  %v2727 = vpop.permute.xlu0 %2726
  %2728 = vrot.lane.b32.xlu0 %v1034, 112
  %v2729 = vpop.permute.xlu0 %2728
  %2730 = vrot.lane.b32.xlu0 %v1035, 112
  %v2731 = vpop.permute.xlu0 %2730
  %2732 = vrot.lane.b32.xlu0 %v1036, 112
  %v2733 = vpop.permute.xlu0 %2732
  %2734 = vrot.lane.b32.xlu0 %v1037, 112
  %v2735 = vpop.permute.xlu0 %2734
  %v2864 = vsel %vm1038, %v2481, 0.0
  %2865 = vadd.xlane.f32.xlu0 %v2864
  %v2866 = vpop.xlane.xlu0 %2865
  %v2867 = vsel %vm1038, %v2483, 0.0
  %2868 = vadd.xlane.f32.xlu0 %v2867
  %v2869 = vpop.xlane.xlu0 %2868
  %v2870 = vsel %vm1038, %v2485, 0.0
  %2871 = vadd.xlane.f32.xlu0 %v2870
  %v2872 = vpop.xlane.xlu0 %2871
  %v2873 = vsel %vm1038, %v2487, 0.0
  %2874 = vadd.xlane.f32.xlu0 %v2873
  %v2875 = vpop.xlane.xlu0 %2874
  %v2876 = vsel %vm1038, %v2489, 0.0
  %2877 = vadd.xlane.f32.xlu0 %v2876
  %v2878 = vpop.xlane.xlu0 %2877
  %v2879 = vsel %vm1038, %v2491, 0.0
  %2880 = vadd.xlane.f32.xlu0 %v2879
  %v2881 = vpop.xlane.xlu0 %2880
  %v2882 = vsel %vm1038, %v2493, 0.0
  %2883 = vadd.xlane.f32.xlu0 %v2882
  %v2884 = vpop.xlane.xlu0 %2883
  %v2885 = vsel %vm1038, %v2495, 0.0
  %2886 = vadd.xlane.f32.xlu0 %v2885
  %v2887 = vpop.xlane.xlu0 %2886
  %v2888 = vsel %vm1038, %v2497, 0.0
  %2889 = vadd.xlane.f32.xlu0 %v2888
  %v2890 = vpop.xlane.xlu0 %2889
  %v2891 = vsel %vm1038, %v2499, 0.0
  %2892 = vadd.xlane.f32.xlu0 %v2891
  %v2893 = vpop.xlane.xlu0 %2892
  %v2894 = vsel %vm1038, %v2501, 0.0
  %2895 = vadd.xlane.f32.xlu0 %v2894
  %v2896 = vpop.xlane.xlu0 %2895
  %v2897 = vsel %vm1038, %v2503, 0.0
  %2898 = vadd.xlane.f32.xlu0 %v2897
  %v2899 = vpop.xlane.xlu0 %2898
  %v2900 = vsel %vm1038, %v2505, 0.0
  %2901 = vadd.xlane.f32.xlu0 %v2900
  %v2902 = vpop.xlane.xlu0 %2901
  %v2903 = vsel %vm1038, %v2507, 0.0
  %2904 = vadd.xlane.f32.xlu0 %v2903
  %v2905 = vpop.xlane.xlu0 %2904
  %v2906 = vsel %vm1038, %v2509, 0.0
  %2907 = vadd.xlane.f32.xlu0 %v2906
  %v2908 = vpop.xlane.xlu0 %2907
  %v2909 = vsel %vm1038, %v2511, 0.0
  %2910 = vadd.xlane.f32.xlu0 %v2909
  %v2911 = vpop.xlane.xlu0 %2910
  %v2912 = vsel %vm1038, %v2513, 0.0
  %2913 = vadd.xlane.f32.xlu0 %v2912
  %v2914 = vpop.xlane.xlu0 %2913
  %v2915 = vsel %vm1038, %v2515, 0.0
  %2916 = vadd.xlane.f32.xlu0 %v2915
  %v2917 = vpop.xlane.xlu0 %2916
  %v2918 = vsel %vm1038, %v2517, 0.0
  %2919 = vadd.xlane.f32.xlu0 %v2918
  %v2920 = vpop.xlane.xlu0 %2919
  %v2921 = vsel %vm1038, %v2519, 0.0
  %2922 = vadd.xlane.f32.xlu0 %v2921
  %v2923 = vpop.xlane.xlu0 %2922
  %v2924 = vsel %vm1038, %v2521, 0.0
  %2925 = vadd.xlane.f32.xlu0 %v2924
  %v2926 = vpop.xlane.xlu0 %2925
  %v2927 = vsel %vm1038, %v2523, 0.0
  %2928 = vadd.xlane.f32.xlu0 %v2927
  %v2929 = vpop.xlane.xlu0 %2928
  %v2930 = vsel %vm1038, %v2525, 0.0
  %2931 = vadd.xlane.f32.xlu0 %v2930
  %v2932 = vpop.xlane.xlu0 %2931
  %v2933 = vsel %vm1038, %v2527, 0.0
  %2934 = vadd.xlane.f32.xlu0 %v2933
  %v2935 = vpop.xlane.xlu0 %2934
  %v2936 = vsel %vm1038, %v2529, 0.0
  %2937 = vadd.xlane.f32.xlu0 %v2936
  %v2938 = vpop.xlane.xlu0 %2937
  %v2939 = vsel %vm1038, %v2531, 0.0
  %2940 = vadd.xlane.f32.xlu0 %v2939
  %v2941 = vpop.xlane.xlu0 %2940
  %v2942 = vsel %vm1038, %v2533, 0.0
  %2943 = vadd.xlane.f32.xlu0 %v2942
  %v2944 = vpop.xlane.xlu0 %2943
  %v2945 = vsel %vm1038, %v2535, 0.0
  %2946 = vadd.xlane.f32.xlu0 %v2945
  %v2947 = vpop.xlane.xlu0 %2946
  %v2948 = vsel %vm1038, %v2537, 0.0
  %2949 = vadd.xlane.f32.xlu0 %v2948
  %v2950 = vpop.xlane.xlu0 %2949
  %v2951 = vsel %vm1038, %v2539, 0.0
  %2952 = vadd.xlane.f32.xlu0 %v2951
  %v2953 = vpop.xlane.xlu0 %2952
  %v2954 = vsel %vm1038, %v2541, 0.0
  %2955 = vadd.xlane.f32.xlu0 %v2954
  %v2956 = vpop.xlane.xlu0 %2955
  %v2957 = vsel %vm1038, %v2543, 0.0
  %2958 = vadd.xlane.f32.xlu0 %v2957
  %v2959 = vpop.xlane.xlu0 %2958
  %v2960 = vsel %vm1038, %v2545, 0.0
  %2961 = vadd.xlane.f32.xlu0 %v2960
  %v2962 = vpop.xlane.xlu0 %2961
  %v2963 = vsel %vm1038, %v2547, 0.0
  %2964 = vadd.xlane.f32.xlu0 %v2963
  %v2965 = vpop.xlane.xlu0 %2964
  %v2966 = vsel %vm1038, %v2549, 0.0
  %2967 = vadd.xlane.f32.xlu0 %v2966
  %v2968 = vpop.xlane.xlu0 %2967
  %v2969 = vsel %vm1038, %v2551, 0.0
  %2970 = vadd.xlane.f32.xlu0 %v2969
  %v2971 = vpop.xlane.xlu0 %2970
  %v2972 = vsel %vm1038, %v2553, 0.0
  %2973 = vadd.xlane.f32.xlu0 %v2972
  %v2974 = vpop.xlane.xlu0 %2973
  %v2975 = vsel %vm1038, %v2555, 0.0
  %2976 = vadd.xlane.f32.xlu0 %v2975
  %v2977 = vpop.xlane.xlu0 %2976
  %v2978 = vsel %vm1038, %v2557, 0.0
  %2979 = vadd.xlane.f32.xlu0 %v2978
  %v2980 = vpop.xlane.xlu0 %2979
  %v2981 = vsel %vm1038, %v2559, 0.0
  %2982 = vadd.xlane.f32.xlu0 %v2981
  %v2983 = vpop.xlane.xlu0 %2982
  %v2984 = vsel %vm1038, %v2561, 0.0
  %2985 = vadd.xlane.f32.xlu0 %v2984
  %v2986 = vpop.xlane.xlu0 %2985
  %v2987 = vsel %vm1038, %v2563, 0.0
  %2988 = vadd.xlane.f32.xlu0 %v2987
  %v2989 = vpop.xlane.xlu0 %2988
  %v2990 = vsel %vm1038, %v2565, 0.0
  %2991 = vadd.xlane.f32.xlu0 %v2990
  %v2992 = vpop.xlane.xlu0 %2991
  %v2993 = vsel %vm1038, %v2567, 0.0
  %2994 = vadd.xlane.f32.xlu0 %v2993
  %v2995 = vpop.xlane.xlu0 %2994
  %v2996 = vsel %vm1038, %v2569, 0.0
  %2997 = vadd.xlane.f32.xlu0 %v2996
  %v2998 = vpop.xlane.xlu0 %2997
  %v2999 = vsel %vm1038, %v2571, 0.0
  %3000 = vadd.xlane.f32.xlu0 %v2999
  %v3001 = vpop.xlane.xlu0 %3000
  %v3002 = vsel %vm1038, %v2573, 0.0
  %3003 = vadd.xlane.f32.xlu0 %v3002
  %v3004 = vpop.xlane.xlu0 %3003
  %v3005 = vsel %vm1038, %v2575, 0.0
  %3006 = vadd.xlane.f32.xlu0 %v3005
  %v3007 = vpop.xlane.xlu0 %3006
  %v3008 = vsel %vm1038, %v2577, 0.0
  %3009 = vadd.xlane.f32.xlu0 %v3008
  %v3010 = vpop.xlane.xlu0 %3009
  %v3011 = vsel %vm1038, %v2579, 0.0
  %3012 = vadd.xlane.f32.xlu0 %v3011
  %v3013 = vpop.xlane.xlu0 %3012
  %v3014 = vsel %vm1038, %v2581, 0.0
  %3015 = vadd.xlane.f32.xlu0 %v3014
  %v3016 = vpop.xlane.xlu0 %3015
  %v3017 = vsel %vm1038, %v2583, 0.0
  %3018 = vadd.xlane.f32.xlu0 %v3017
  %v3019 = vpop.xlane.xlu0 %3018
  %v3020 = vsel %vm1038, %v2585, 0.0
  %3021 = vadd.xlane.f32.xlu0 %v3020
  %v3022 = vpop.xlane.xlu0 %3021
  %v3023 = vsel %vm1038, %v2587, 0.0
  %3024 = vadd.xlane.f32.xlu0 %v3023
  %v3025 = vpop.xlane.xlu0 %3024
  %v3026 = vsel %vm1038, %v2589, 0.0
  %3027 = vadd.xlane.f32.xlu0 %v3026
  %v3028 = vpop.xlane.xlu0 %3027
  %v3029 = vsel %vm1038, %v2591, 0.0
  %3030 = vadd.xlane.f32.xlu0 %v3029
  %v3031 = vpop.xlane.xlu0 %3030
  %v3032 = vsel %vm1038, %v2593, 0.0
  %3033 = vadd.xlane.f32.xlu0 %v3032
  %v3034 = vpop.xlane.xlu0 %3033
  %v3035 = vsel %vm1038, %v2595, 0.0
  %3036 = vadd.xlane.f32.xlu0 %v3035
  %v3037 = vpop.xlane.xlu0 %3036
  %v3038 = vsel %vm1038, %v2597, 0.0
  %3039 = vadd.xlane.f32.xlu0 %v3038
  %v3040 = vpop.xlane.xlu0 %3039
  %v3041 = vsel %vm1038, %v2599, 0.0
  %3042 = vadd.xlane.f32.xlu0 %v3041
  %v3043 = vpop.xlane.xlu0 %3042
  %v3044 = vsel %vm1038, %v2601, 0.0
  %3045 = vadd.xlane.f32.xlu0 %v3044
  %v3046 = vpop.xlane.xlu0 %3045
  %v3047 = vsel %vm1038, %v2603, 0.0
  %3048 = vadd.xlane.f32.xlu0 %v3047
  %v3049 = vpop.xlane.xlu0 %3048
  %v3050 = vsel %vm1038, %v2605, 0.0
  %3051 = vadd.xlane.f32.xlu0 %v3050
  %v3052 = vpop.xlane.xlu0 %3051
  %v3053 = vsel %vm1038, %v2607, 0.0
  %3054 = vadd.xlane.f32.xlu0 %v3053
  %v3055 = vpop.xlane.xlu0 %3054
  %v3056 = vsel %vm1038, %v2609, 0.0
  %3057 = vadd.xlane.f32.xlu0 %v3056
  %v3058 = vpop.xlane.xlu0 %3057
  %v3059 = vsel %vm1038, %v2611, 0.0
  %3060 = vadd.xlane.f32.xlu0 %v3059
  %v3061 = vpop.xlane.xlu0 %3060
  %v3062 = vsel %vm1038, %v2613, 0.0
  %3063 = vadd.xlane.f32.xlu0 %v3062
  %v3064 = vpop.xlane.xlu0 %3063
  %v3065 = vsel %vm1038, %v2615, 0.0
  %3066 = vadd.xlane.f32.xlu0 %v3065
  %v3067 = vpop.xlane.xlu0 %3066
  %v3068 = vsel %vm1038, %v2617, 0.0
  %3069 = vadd.xlane.f32.xlu0 %v3068
  %v3070 = vpop.xlane.xlu0 %3069
  %v3071 = vsel %vm1038, %v2619, 0.0
  %3072 = vadd.xlane.f32.xlu0 %v3071
  %v3073 = vpop.xlane.xlu0 %3072
  %v3074 = vsel %vm1038, %v2621, 0.0
  %3075 = vadd.xlane.f32.xlu0 %v3074
  %v3076 = vpop.xlane.xlu0 %3075
  %v3077 = vsel %vm1038, %v2623, 0.0
  %3078 = vadd.xlane.f32.xlu0 %v3077
  %v3079 = vpop.xlane.xlu0 %3078
  %v3080 = vsel %vm1038, %v2625, 0.0
  %3081 = vadd.xlane.f32.xlu0 %v3080
  %v3082 = vpop.xlane.xlu0 %3081
  %v3083 = vsel %vm1038, %v2627, 0.0
  %3084 = vadd.xlane.f32.xlu0 %v3083
  %v3085 = vpop.xlane.xlu0 %3084
  %v3086 = vsel %vm1038, %v2629, 0.0
  %3087 = vadd.xlane.f32.xlu0 %v3086
  %v3088 = vpop.xlane.xlu0 %3087
  %v3089 = vsel %vm1038, %v2631, 0.0
  %3090 = vadd.xlane.f32.xlu0 %v3089
  %v3091 = vpop.xlane.xlu0 %3090
  %v3092 = vsel %vm1038, %v2633, 0.0
  %3093 = vadd.xlane.f32.xlu0 %v3092
  %v3094 = vpop.xlane.xlu0 %3093
  %v3095 = vsel %vm1038, %v2635, 0.0
  %3096 = vadd.xlane.f32.xlu0 %v3095
  %v3097 = vpop.xlane.xlu0 %3096
  %v3098 = vsel %vm1038, %v2637, 0.0
  %3099 = vadd.xlane.f32.xlu0 %v3098
  %v3100 = vpop.xlane.xlu0 %3099
  %v3101 = vsel %vm1038, %v2639, 0.0
  %3102 = vadd.xlane.f32.xlu0 %v3101
  %v3103 = vpop.xlane.xlu0 %3102
  %v3104 = vsel %vm1038, %v2641, 0.0
  %3105 = vadd.xlane.f32.xlu0 %v3104
  %v3106 = vpop.xlane.xlu0 %3105
  %v3107 = vsel %vm1038, %v2643, 0.0
  %3108 = vadd.xlane.f32.xlu0 %v3107
  %v3109 = vpop.xlane.xlu0 %3108
  %v3110 = vsel %vm1038, %v2645, 0.0
  %3111 = vadd.xlane.f32.xlu0 %v3110
  %v3112 = vpop.xlane.xlu0 %3111
  %v3113 = vsel %vm1038, %v2647, 0.0
  %3114 = vadd.xlane.f32.xlu0 %v3113
  %v3115 = vpop.xlane.xlu0 %3114
  %v3116 = vsel %vm1038, %v2649, 0.0
  %3117 = vadd.xlane.f32.xlu0 %v3116
  %v3118 = vpop.xlane.xlu0 %3117
  %v3119 = vsel %vm1038, %v2651, 0.0
  %3120 = vadd.xlane.f32.xlu0 %v3119
  %v3121 = vpop.xlane.xlu0 %3120
  %v3122 = vsel %vm1038, %v2653, 0.0
  %3123 = vadd.xlane.f32.xlu0 %v3122
  %v3124 = vpop.xlane.xlu0 %3123
  %v3125 = vsel %vm1038, %v2655, 0.0
  %3126 = vadd.xlane.f32.xlu0 %v3125
  %v3127 = vpop.xlane.xlu0 %3126
  %v3128 = vsel %vm1038, %v2657, 0.0
  %3129 = vadd.xlane.f32.xlu0 %v3128
  %v3130 = vpop.xlane.xlu0 %3129
  %v3131 = vsel %vm1038, %v2659, 0.0
  %3132 = vadd.xlane.f32.xlu0 %v3131
  %v3133 = vpop.xlane.xlu0 %3132
  %v3134 = vsel %vm1038, %v2661, 0.0
  %3135 = vadd.xlane.f32.xlu0 %v3134
  %v3136 = vpop.xlane.xlu0 %3135
  %v3137 = vsel %vm1038, %v2663, 0.0
  %3138 = vadd.xlane.f32.xlu0 %v3137
  %v3139 = vpop.xlane.xlu0 %3138
  %v3140 = vsel %vm1038, %v2665, 0.0
  %3141 = vadd.xlane.f32.xlu0 %v3140
  %v3142 = vpop.xlane.xlu0 %3141
  %v3143 = vsel %vm1038, %v2667, 0.0
  %3144 = vadd.xlane.f32.xlu0 %v3143
  %v3145 = vpop.xlane.xlu0 %3144
  %v3146 = vsel %vm1038, %v2669, 0.0
  %3147 = vadd.xlane.f32.xlu0 %v3146
  %v3148 = vpop.xlane.xlu0 %3147
  %v3149 = vsel %vm1038, %v2671, 0.0
  %3150 = vadd.xlane.f32.xlu0 %v3149
  %v3151 = vpop.xlane.xlu0 %3150
  %v3152 = vsel %vm1038, %v2673, 0.0
  %3153 = vadd.xlane.f32.xlu0 %v3152
  %v3154 = vpop.xlane.xlu0 %3153
  %v3155 = vsel %vm1038, %v2675, 0.0
  %3156 = vadd.xlane.f32.xlu0 %v3155
  %v3157 = vpop.xlane.xlu0 %3156
  %v3158 = vsel %vm1038, %v2677, 0.0
  %3159 = vadd.xlane.f32.xlu0 %v3158
  %v3160 = vpop.xlane.xlu0 %3159
  %v3161 = vsel %vm1038, %v2679, 0.0
  %3162 = vadd.xlane.f32.xlu0 %v3161
  %v3163 = vpop.xlane.xlu0 %3162
  %v3164 = vsel %vm1038, %v2681, 0.0
  %3165 = vadd.xlane.f32.xlu0 %v3164
  %v3166 = vpop.xlane.xlu0 %3165
  %v3167 = vsel %vm1038, %v2683, 0.0
  %3168 = vadd.xlane.f32.xlu0 %v3167
  %v3169 = vpop.xlane.xlu0 %3168
  %v3170 = vsel %vm1038, %v2685, 0.0
  %3171 = vadd.xlane.f32.xlu0 %v3170
  %v3172 = vpop.xlane.xlu0 %3171
  %v3173 = vsel %vm1038, %v2687, 0.0
  %3174 = vadd.xlane.f32.xlu0 %v3173
  %v3175 = vpop.xlane.xlu0 %3174
  %v3176 = vsel %vm1038, %v2689, 0.0
  %3177 = vadd.xlane.f32.xlu0 %v3176
  %v3178 = vpop.xlane.xlu0 %3177
  %v3179 = vsel %vm1038, %v2691, 0.0
  %3180 = vadd.xlane.f32.xlu0 %v3179
  %v3181 = vpop.xlane.xlu0 %3180
  %v3182 = vsel %vm1038, %v2693, 0.0
  %3183 = vadd.xlane.f32.xlu0 %v3182
  %v3184 = vpop.xlane.xlu0 %3183
  %v3185 = vsel %vm1038, %v2695, 0.0
  %3186 = vadd.xlane.f32.xlu0 %v3185
  %v3187 = vpop.xlane.xlu0 %3186
  %v3188 = vsel %vm1038, %v2697, 0.0
  %3189 = vadd.xlane.f32.xlu0 %v3188
  %v3190 = vpop.xlane.xlu0 %3189
  %v3191 = vsel %vm1038, %v2699, 0.0
  %3192 = vadd.xlane.f32.xlu0 %v3191
  %v3193 = vpop.xlane.xlu0 %3192
  %v3194 = vsel %vm1038, %v2701, 0.0
  %3195 = vadd.xlane.f32.xlu0 %v3194
  %v3196 = vpop.xlane.xlu0 %3195
  %v3197 = vsel %vm1038, %v2703, 0.0
  %3198 = vadd.xlane.f32.xlu0 %v3197
  %v3199 = vpop.xlane.xlu0 %3198
  %v3200 = vsel %vm1038, %v2705, 0.0
  %3201 = vadd.xlane.f32.xlu0 %v3200
  %v3202 = vpop.xlane.xlu0 %3201
  %v3203 = vsel %vm1038, %v2707, 0.0
  %3204 = vadd.xlane.f32.xlu0 %v3203
  %v3205 = vpop.xlane.xlu0 %3204
  %v3206 = vsel %vm1038, %v2709, 0.0
  %3207 = vadd.xlane.f32.xlu0 %v3206
  %v3208 = vpop.xlane.xlu0 %3207
  %v3209 = vsel %vm1038, %v2711, 0.0
  %3210 = vadd.xlane.f32.xlu0 %v3209
  %v3211 = vpop.xlane.xlu0 %3210
  %v3212 = vsel %vm1038, %v2713, 0.0
  %3213 = vadd.xlane.f32.xlu0 %v3212
  %v3214 = vpop.xlane.xlu0 %3213
  %v3215 = vsel %vm1038, %v2715, 0.0
  %3216 = vadd.xlane.f32.xlu0 %v3215
  %v3217 = vpop.xlane.xlu0 %3216
  %v3218 = vsel %vm1038, %v2717, 0.0
  %3219 = vadd.xlane.f32.xlu0 %v3218
  %v3220 = vpop.xlane.xlu0 %3219
  %v3221 = vsel %vm1038, %v2719, 0.0
  %3222 = vadd.xlane.f32.xlu0 %v3221
  %v3223 = vpop.xlane.xlu0 %3222
  %v3224 = vsel %vm1038, %v2721, 0.0
  %3225 = vadd.xlane.f32.xlu0 %v3224
  %v3226 = vpop.xlane.xlu0 %3225
  %v3227 = vsel %vm1038, %v2723, 0.0
  %3228 = vadd.xlane.f32.xlu0 %v3227
  %v3229 = vpop.xlane.xlu0 %3228
  %v3230 = vsel %vm1038, %v2725, 0.0
  %3231 = vadd.xlane.f32.xlu0 %v3230
  %v3232 = vpop.xlane.xlu0 %3231
  %v3233 = vsel %vm1038, %v2727, 0.0
  %3234 = vadd.xlane.f32.xlu0 %v3233
  %v3235 = vpop.xlane.xlu0 %3234
  %v3236 = vsel %vm1038, %v2729, 0.0
  %3237 = vadd.xlane.f32.xlu0 %v3236
  %v3238 = vpop.xlane.xlu0 %3237
  %v3239 = vsel %vm1038, %v2731, 0.0
  %3240 = vadd.xlane.f32.xlu0 %v3239
  %v3241 = vpop.xlane.xlu0 %3240
  %v3242 = vsel %vm1038, %v2733, 0.0
  %3243 = vadd.xlane.f32.xlu0 %v3242
  %v3244 = vpop.xlane.xlu0 %3243
  %v3245 = vsel %vm1038, %v2735, 0.0
  %3246 = vadd.xlane.f32.xlu0 %v3245
  %v3247 = vpop.xlane.xlu0 %3246
  %v3376 = vlaneseq
  %v3377 = vshrl.u32 %v3376, 7
  %v3378 = vsub.s32 %v1552, %v3377
  %v3379 = vrot.slane %v2866, %v3378
  %v3380 = vlaneseq
  %v3381 = vshrl.u32 %v3380, 7
  %v3382 = vsub.s32 %v1557, %v3381
  %v3383 = vrot.slane %v2869, %v3382
  %v3384 = vsel %vm1562, %v3383, %v3379
  %v3385 = vlaneseq
  %v3386 = vshrl.u32 %v3385, 7
  %v3387 = vsub.s32 %v1564, %v3386
  %v3388 = vrot.slane %v2872, %v3387
  %v3389 = vsel %vm1569, %v3388, %v3384
  %v3390 = vlaneseq
  %v3391 = vshrl.u32 %v3390, 7
  %v3392 = vsub.s32 %v1571, %v3391
  %v3393 = vrot.slane %v2875, %v3392
  %v3394 = vsel %vm1576, %v3393, %v3389
  %v3395 = vlaneseq
  %v3396 = vshrl.u32 %v3395, 7
  %v3397 = vsub.s32 %v1552, %v3396
  %v3398 = vrot.slane %v2878, %v3397
  %v3399 = vlaneseq
  %v3400 = vshrl.u32 %v3399, 7
  %v3401 = vsub.s32 %v1557, %v3400
  %v3402 = vrot.slane %v2881, %v3401
  %v3403 = vsel %vm1562, %v3402, %v3398
  %v3404 = vlaneseq
  %v3405 = vshrl.u32 %v3404, 7
  %v3406 = vsub.s32 %v1564, %v3405
  %v3407 = vrot.slane %v2884, %v3406
  %v3408 = vsel %vm1569, %v3407, %v3403
  %v3409 = vlaneseq
  %v3410 = vshrl.u32 %v3409, 7
  %v3411 = vsub.s32 %v1571, %v3410
  %v3412 = vrot.slane %v2887, %v3411
  %v3413 = vsel %vm1576, %v3412, %v3408
  %v3414 = vlaneseq
  %v3415 = vshrl.u32 %v3414, 7
  %v3416 = vsub.s32 %v1552, %v3415
  %v3417 = vrot.slane %v2890, %v3416
  %v3418 = vlaneseq
  %v3419 = vshrl.u32 %v3418, 7
  %v3420 = vsub.s32 %v1557, %v3419
  %v3421 = vrot.slane %v2893, %v3420
  %v3422 = vsel %vm1562, %v3421, %v3417
  %v3423 = vlaneseq
  %v3424 = vshrl.u32 %v3423, 7
  %v3425 = vsub.s32 %v1564, %v3424
  %v3426 = vrot.slane %v2896, %v3425
  %v3427 = vsel %vm1569, %v3426, %v3422
  %v3428 = vlaneseq
  %v3429 = vshrl.u32 %v3428, 7
  %v3430 = vsub.s32 %v1571, %v3429
  %v3431 = vrot.slane %v2899, %v3430
  %v3432 = vsel %vm1576, %v3431, %v3427
  %v3433 = vlaneseq
  %v3434 = vshrl.u32 %v3433, 7
  %v3435 = vsub.s32 %v1552, %v3434
  %v3436 = vrot.slane %v2902, %v3435
  %v3437 = vlaneseq
  %v3438 = vshrl.u32 %v3437, 7
  %v3439 = vsub.s32 %v1557, %v3438
  %v3440 = vrot.slane %v2905, %v3439
  %v3441 = vsel %vm1562, %v3440, %v3436
  %v3442 = vlaneseq
  %v3443 = vshrl.u32 %v3442, 7
  %v3444 = vsub.s32 %v1564, %v3443
  %v3445 = vrot.slane %v2908, %v3444
  %v3446 = vsel %vm1569, %v3445, %v3441
  %v3447 = vlaneseq
  %v3448 = vshrl.u32 %v3447, 7
  %v3449 = vsub.s32 %v1571, %v3448
  %v3450 = vrot.slane %v2911, %v3449
  %v3451 = vsel %vm1576, %v3450, %v3446
  %v3452 = vlaneseq
  %v3453 = vshrl.u32 %v3452, 7
  %v3454 = vsub.s32 %v1552, %v3453
  %v3455 = vrot.slane %v2914, %v3454
  %v3456 = vlaneseq
  %v3457 = vshrl.u32 %v3456, 7
  %v3458 = vsub.s32 %v1557, %v3457
  %v3459 = vrot.slane %v2917, %v3458
  %v3460 = vsel %vm1562, %v3459, %v3455
  %v3461 = vlaneseq
  %v3462 = vshrl.u32 %v3461, 7
  %v3463 = vsub.s32 %v1564, %v3462
  %v3464 = vrot.slane %v2920, %v3463
  %v3465 = vsel %vm1569, %v3464, %v3460
  %v3466 = vlaneseq
  %v3467 = vshrl.u32 %v3466, 7
  %v3468 = vsub.s32 %v1571, %v3467
  %v3469 = vrot.slane %v2923, %v3468
  %v3470 = vsel %vm1576, %v3469, %v3465
  %v3471 = vlaneseq
  %v3472 = vshrl.u32 %v3471, 7
  %v3473 = vsub.s32 %v1552, %v3472
  %v3474 = vrot.slane %v2926, %v3473
  %v3475 = vlaneseq
  %v3476 = vshrl.u32 %v3475, 7
  %v3477 = vsub.s32 %v1557, %v3476
  %v3478 = vrot.slane %v2929, %v3477
  %v3479 = vsel %vm1562, %v3478, %v3474
  %v3480 = vlaneseq
  %v3481 = vshrl.u32 %v3480, 7
  %v3482 = vsub.s32 %v1564, %v3481
  %v3483 = vrot.slane %v2932, %v3482
  %v3484 = vsel %vm1569, %v3483, %v3479
  %v3485 = vlaneseq
  %v3486 = vshrl.u32 %v3485, 7
  %v3487 = vsub.s32 %v1571, %v3486
  %v3488 = vrot.slane %v2935, %v3487
  %v3489 = vsel %vm1576, %v3488, %v3484
  %v3490 = vlaneseq
  %v3491 = vshrl.u32 %v3490, 7
  %v3492 = vsub.s32 %v1552, %v3491
  %v3493 = vrot.slane %v2938, %v3492
  %v3494 = vlaneseq
  %v3495 = vshrl.u32 %v3494, 7
  %v3496 = vsub.s32 %v1557, %v3495
  %v3497 = vrot.slane %v2941, %v3496
  %v3498 = vsel %vm1562, %v3497, %v3493
  %v3499 = vlaneseq
  %v3500 = vshrl.u32 %v3499, 7
  %v3501 = vsub.s32 %v1564, %v3500
  %v3502 = vrot.slane %v2944, %v3501
  %v3503 = vsel %vm1569, %v3502, %v3498
  %v3504 = vlaneseq
  %v3505 = vshrl.u32 %v3504, 7
  %v3506 = vsub.s32 %v1571, %v3505
  %v3507 = vrot.slane %v2947, %v3506
  %v3508 = vsel %vm1576, %v3507, %v3503
  %v3509 = vlaneseq
  %v3510 = vshrl.u32 %v3509, 7
  %v3511 = vsub.s32 %v1552, %v3510
  %v3512 = vrot.slane %v2950, %v3511
  %v3513 = vlaneseq
  %v3514 = vshrl.u32 %v3513, 7
  %v3515 = vsub.s32 %v1557, %v3514
  %v3516 = vrot.slane %v2953, %v3515
  %v3517 = vsel %vm1562, %v3516, %v3512
  %v3518 = vlaneseq
  %v3519 = vshrl.u32 %v3518, 7
  %v3520 = vsub.s32 %v1564, %v3519
  %v3521 = vrot.slane %v2956, %v3520
  %v3522 = vsel %vm1569, %v3521, %v3517
  %v3523 = vlaneseq
  %v3524 = vshrl.u32 %v3523, 7
  %v3525 = vsub.s32 %v1571, %v3524
  %v3526 = vrot.slane %v2959, %v3525
  %v3527 = vsel %vm1576, %v3526, %v3522
  %v3528 = vlaneseq
  %v3529 = vshrl.u32 %v3528, 7
  %v3530 = vsub.s32 %v1552, %v3529
  %v3531 = vrot.slane %v2962, %v3530
  %v3532 = vlaneseq
  %v3533 = vshrl.u32 %v3532, 7
  %v3534 = vsub.s32 %v1557, %v3533
  %v3535 = vrot.slane %v2965, %v3534
  %v3536 = vsel %vm1562, %v3535, %v3531
  %v3537 = vlaneseq
  %v3538 = vshrl.u32 %v3537, 7
  %v3539 = vsub.s32 %v1564, %v3538
  %v3540 = vrot.slane %v2968, %v3539
  %v3541 = vsel %vm1569, %v3540, %v3536
  %v3542 = vlaneseq
  %v3543 = vshrl.u32 %v3542, 7
  %v3544 = vsub.s32 %v1571, %v3543
  %v3545 = vrot.slane %v2971, %v3544
  %v3546 = vsel %vm1576, %v3545, %v3541
  %v3547 = vlaneseq
  %v3548 = vshrl.u32 %v3547, 7
  %v3549 = vsub.s32 %v1552, %v3548
  %v3550 = vrot.slane %v2974, %v3549
  %v3551 = vlaneseq
  %v3552 = vshrl.u32 %v3551, 7
  %v3553 = vsub.s32 %v1557, %v3552
  %v3554 = vrot.slane %v2977, %v3553
  %v3555 = vsel %vm1562, %v3554, %v3550
  %v3556 = vlaneseq
  %v3557 = vshrl.u32 %v3556, 7
  %v3558 = vsub.s32 %v1564, %v3557
  %v3559 = vrot.slane %v2980, %v3558
  %v3560 = vsel %vm1569, %v3559, %v3555
  %v3561 = vlaneseq
  %v3562 = vshrl.u32 %v3561, 7
  %v3563 = vsub.s32 %v1571, %v3562
  %v3564 = vrot.slane %v2983, %v3563
  %v3565 = vsel %vm1576, %v3564, %v3560
  %v3566 = vlaneseq
  %v3567 = vshrl.u32 %v3566, 7
  %v3568 = vsub.s32 %v1552, %v3567
  %v3569 = vrot.slane %v2986, %v3568
  %v3570 = vlaneseq
  %v3571 = vshrl.u32 %v3570, 7
  %v3572 = vsub.s32 %v1557, %v3571
  %v3573 = vrot.slane %v2989, %v3572
  %v3574 = vsel %vm1562, %v3573, %v3569
  %v3575 = vlaneseq
  %v3576 = vshrl.u32 %v3575, 7
  %v3577 = vsub.s32 %v1564, %v3576
  %v3578 = vrot.slane %v2992, %v3577
  %v3579 = vsel %vm1569, %v3578, %v3574
  %v3580 = vlaneseq
  %v3581 = vshrl.u32 %v3580, 7
  %v3582 = vsub.s32 %v1571, %v3581
  %v3583 = vrot.slane %v2995, %v3582
  %v3584 = vsel %vm1576, %v3583, %v3579
  %v3585 = vlaneseq
  %v3586 = vshrl.u32 %v3585, 7
  %v3587 = vsub.s32 %v1552, %v3586
  %v3588 = vrot.slane %v2998, %v3587
  %v3589 = vlaneseq
  %v3590 = vshrl.u32 %v3589, 7
  %v3591 = vsub.s32 %v1557, %v3590
  %v3592 = vrot.slane %v3001, %v3591
  %v3593 = vsel %vm1562, %v3592, %v3588
  %v3594 = vlaneseq
  %v3595 = vshrl.u32 %v3594, 7
  %v3596 = vsub.s32 %v1564, %v3595
  %v3597 = vrot.slane %v3004, %v3596
  %v3598 = vsel %vm1569, %v3597, %v3593
  %v3599 = vlaneseq
  %v3600 = vshrl.u32 %v3599, 7
  %v3601 = vsub.s32 %v1571, %v3600
  %v3602 = vrot.slane %v3007, %v3601
  %v3603 = vsel %vm1576, %v3602, %v3598
  %v3604 = vlaneseq
  %v3605 = vshrl.u32 %v3604, 7
  %v3606 = vsub.s32 %v1552, %v3605
  %v3607 = vrot.slane %v3010, %v3606
  %v3608 = vlaneseq
  %v3609 = vshrl.u32 %v3608, 7
  %v3610 = vsub.s32 %v1557, %v3609
  %v3611 = vrot.slane %v3013, %v3610
  %v3612 = vsel %vm1562, %v3611, %v3607
  %v3613 = vlaneseq
  %v3614 = vshrl.u32 %v3613, 7
  %v3615 = vsub.s32 %v1564, %v3614
  %v3616 = vrot.slane %v3016, %v3615
  %v3617 = vsel %vm1569, %v3616, %v3612
  %v3618 = vlaneseq
  %v3619 = vshrl.u32 %v3618, 7
  %v3620 = vsub.s32 %v1571, %v3619
  %v3621 = vrot.slane %v3019, %v3620
  %v3622 = vsel %vm1576, %v3621, %v3617
  %v3623 = vlaneseq
  %v3624 = vshrl.u32 %v3623, 7
  %v3625 = vsub.s32 %v1552, %v3624
  %v3626 = vrot.slane %v3022, %v3625
  %v3627 = vlaneseq
  %v3628 = vshrl.u32 %v3627, 7
  %v3629 = vsub.s32 %v1557, %v3628
  %v3630 = vrot.slane %v3025, %v3629
  %v3631 = vsel %vm1562, %v3630, %v3626
  %v3632 = vlaneseq
  %v3633 = vshrl.u32 %v3632, 7
  %v3634 = vsub.s32 %v1564, %v3633
  %v3635 = vrot.slane %v3028, %v3634
  %v3636 = vsel %vm1569, %v3635, %v3631
  %v3637 = vlaneseq
  %v3638 = vshrl.u32 %v3637, 7
  %v3639 = vsub.s32 %v1571, %v3638
  %v3640 = vrot.slane %v3031, %v3639
  %v3641 = vsel %vm1576, %v3640, %v3636
  %v3642 = vlaneseq
  %v3643 = vshrl.u32 %v3642, 7
  %v3644 = vsub.s32 %v1552, %v3643
  %v3645 = vrot.slane %v3034, %v3644
  %v3646 = vlaneseq
  %v3647 = vshrl.u32 %v3646, 7
  %v3648 = vsub.s32 %v1557, %v3647
  %v3649 = vrot.slane %v3037, %v3648
  %v3650 = vsel %vm1562, %v3649, %v3645
  %v3651 = vlaneseq
  %v3652 = vshrl.u32 %v3651, 7
  %v3653 = vsub.s32 %v1564, %v3652
  %v3654 = vrot.slane %v3040, %v3653
  %v3655 = vsel %vm1569, %v3654, %v3650
  %v3656 = vlaneseq
  %v3657 = vshrl.u32 %v3656, 7
  %v3658 = vsub.s32 %v1571, %v3657
  %v3659 = vrot.slane %v3043, %v3658
  %v3660 = vsel %vm1576, %v3659, %v3655
  %v3661 = vlaneseq
  %v3662 = vshrl.u32 %v3661, 7
  %v3663 = vsub.s32 %v1552, %v3662
  %v3664 = vrot.slane %v3046, %v3663
  %v3665 = vlaneseq
  %v3666 = vshrl.u32 %v3665, 7
  %v3667 = vsub.s32 %v1557, %v3666
  %v3668 = vrot.slane %v3049, %v3667
  %v3669 = vsel %vm1562, %v3668, %v3664
  %v3670 = vlaneseq
  %v3671 = vshrl.u32 %v3670, 7
  %v3672 = vsub.s32 %v1564, %v3671
  %v3673 = vrot.slane %v3052, %v3672
  %v3674 = vsel %vm1569, %v3673, %v3669
  %v3675 = vlaneseq
  %v3676 = vshrl.u32 %v3675, 7
  %v3677 = vsub.s32 %v1571, %v3676
  %v3678 = vrot.slane %v3055, %v3677
  %v3679 = vsel %vm1576, %v3678, %v3674
  %v3680 = vlaneseq
  %v3681 = vshrl.u32 %v3680, 7
  %v3682 = vsub.s32 %v1552, %v3681
  %v3683 = vrot.slane %v3058, %v3682
  %v3684 = vlaneseq
  %v3685 = vshrl.u32 %v3684, 7
  %v3686 = vsub.s32 %v1557, %v3685
  %v3687 = vrot.slane %v3061, %v3686
  %v3688 = vsel %vm1562, %v3687, %v3683
  %v3689 = vlaneseq
  %v3690 = vshrl.u32 %v3689, 7
  %v3691 = vsub.s32 %v1564, %v3690
  %v3692 = vrot.slane %v3064, %v3691
  %v3693 = vsel %vm1569, %v3692, %v3688
  %v3694 = vlaneseq
  %v3695 = vshrl.u32 %v3694, 7
  %v3696 = vsub.s32 %v1571, %v3695
  %v3697 = vrot.slane %v3067, %v3696
  %v3698 = vsel %vm1576, %v3697, %v3693
  %v3699 = vlaneseq
  %v3700 = vshrl.u32 %v3699, 7
  %v3701 = vsub.s32 %v1552, %v3700
  %v3702 = vrot.slane %v3070, %v3701
  %v3703 = vlaneseq
  %v3704 = vshrl.u32 %v3703, 7
  %v3705 = vsub.s32 %v1557, %v3704
  %v3706 = vrot.slane %v3073, %v3705
  %v3707 = vsel %vm1562, %v3706, %v3702
  %v3708 = vlaneseq
  %v3709 = vshrl.u32 %v3708, 7
  %v3710 = vsub.s32 %v1564, %v3709
  %v3711 = vrot.slane %v3076, %v3710
  %v3712 = vsel %vm1569, %v3711, %v3707
  %v3713 = vlaneseq
  %v3714 = vshrl.u32 %v3713, 7
  %v3715 = vsub.s32 %v1571, %v3714
  %v3716 = vrot.slane %v3079, %v3715
  %v3717 = vsel %vm1576, %v3716, %v3712
  %v3718 = vlaneseq
  %v3719 = vshrl.u32 %v3718, 7
  %v3720 = vsub.s32 %v1552, %v3719
  %v3721 = vrot.slane %v3082, %v3720
  %v3722 = vlaneseq
  %v3723 = vshrl.u32 %v3722, 7
  %v3724 = vsub.s32 %v1557, %v3723
  %v3725 = vrot.slane %v3085, %v3724
  %v3726 = vsel %vm1562, %v3725, %v3721
  %v3727 = vlaneseq
  %v3728 = vshrl.u32 %v3727, 7
  %v3729 = vsub.s32 %v1564, %v3728
  %v3730 = vrot.slane %v3088, %v3729
  %v3731 = vsel %vm1569, %v3730, %v3726
  %v3732 = vlaneseq
  %v3733 = vshrl.u32 %v3732, 7
  %v3734 = vsub.s32 %v1571, %v3733
  %v3735 = vrot.slane %v3091, %v3734
  %v3736 = vsel %vm1576, %v3735, %v3731
  %v3737 = vlaneseq
  %v3738 = vshrl.u32 %v3737, 7
  %v3739 = vsub.s32 %v1552, %v3738
  %v3740 = vrot.slane %v3094, %v3739
  %v3741 = vlaneseq
  %v3742 = vshrl.u32 %v3741, 7
  %v3743 = vsub.s32 %v1557, %v3742
  %v3744 = vrot.slane %v3097, %v3743
  %v3745 = vsel %vm1562, %v3744, %v3740
  %v3746 = vlaneseq
  %v3747 = vshrl.u32 %v3746, 7
  %v3748 = vsub.s32 %v1564, %v3747
  %v3749 = vrot.slane %v3100, %v3748
  %v3750 = vsel %vm1569, %v3749, %v3745
  %v3751 = vlaneseq
  %v3752 = vshrl.u32 %v3751, 7
  %v3753 = vsub.s32 %v1571, %v3752
  %v3754 = vrot.slane %v3103, %v3753
  %v3755 = vsel %vm1576, %v3754, %v3750
  %v3756 = vlaneseq
  %v3757 = vshrl.u32 %v3756, 7
  %v3758 = vsub.s32 %v1552, %v3757
  %v3759 = vrot.slane %v3106, %v3758
  %v3760 = vlaneseq
  %v3761 = vshrl.u32 %v3760, 7
  %v3762 = vsub.s32 %v1557, %v3761
  %v3763 = vrot.slane %v3109, %v3762
  %v3764 = vsel %vm1562, %v3763, %v3759
  %v3765 = vlaneseq
  %v3766 = vshrl.u32 %v3765, 7
  %v3767 = vsub.s32 %v1564, %v3766
  %v3768 = vrot.slane %v3112, %v3767
  %v3769 = vsel %vm1569, %v3768, %v3764
  %v3770 = vlaneseq
  %v3771 = vshrl.u32 %v3770, 7
  %v3772 = vsub.s32 %v1571, %v3771
  %v3773 = vrot.slane %v3115, %v3772
  %v3774 = vsel %vm1576, %v3773, %v3769
  %v3775 = vlaneseq
  %v3776 = vshrl.u32 %v3775, 7
  %v3777 = vsub.s32 %v1552, %v3776
  %v3778 = vrot.slane %v3118, %v3777
  %v3779 = vlaneseq
  %v3780 = vshrl.u32 %v3779, 7
  %v3781 = vsub.s32 %v1557, %v3780
  %v3782 = vrot.slane %v3121, %v3781
  %v3783 = vsel %vm1562, %v3782, %v3778
  %v3784 = vlaneseq
  %v3785 = vshrl.u32 %v3784, 7
  %v3786 = vsub.s32 %v1564, %v3785
  %v3787 = vrot.slane %v3124, %v3786
  %v3788 = vsel %vm1569, %v3787, %v3783
  %v3789 = vlaneseq
  %v3790 = vshrl.u32 %v3789, 7
  %v3791 = vsub.s32 %v1571, %v3790
  %v3792 = vrot.slane %v3127, %v3791
  %v3793 = vsel %vm1576, %v3792, %v3788
  %v3794 = vlaneseq
  %v3795 = vshrl.u32 %v3794, 7
  %v3796 = vsub.s32 %v1552, %v3795
  %v3797 = vrot.slane %v3130, %v3796
  %v3798 = vlaneseq
  %v3799 = vshrl.u32 %v3798, 7
  %v3800 = vsub.s32 %v1557, %v3799
  %v3801 = vrot.slane %v3133, %v3800
  %v3802 = vsel %vm1562, %v3801, %v3797
  %v3803 = vlaneseq
  %v3804 = vshrl.u32 %v3803, 7
  %v3805 = vsub.s32 %v1564, %v3804
  %v3806 = vrot.slane %v3136, %v3805
  %v3807 = vsel %vm1569, %v3806, %v3802
  %v3808 = vlaneseq
  %v3809 = vshrl.u32 %v3808, 7
  %v3810 = vsub.s32 %v1571, %v3809
  %v3811 = vrot.slane %v3139, %v3810
  %v3812 = vsel %vm1576, %v3811, %v3807
  %v3813 = vlaneseq
  %v3814 = vshrl.u32 %v3813, 7
  %v3815 = vsub.s32 %v1552, %v3814
  %v3816 = vrot.slane %v3142, %v3815
  %v3817 = vlaneseq
  %v3818 = vshrl.u32 %v3817, 7
  %v3819 = vsub.s32 %v1557, %v3818
  %v3820 = vrot.slane %v3145, %v3819
  %v3821 = vsel %vm1562, %v3820, %v3816
  %v3822 = vlaneseq
  %v3823 = vshrl.u32 %v3822, 7
  %v3824 = vsub.s32 %v1564, %v3823
  %v3825 = vrot.slane %v3148, %v3824
  %v3826 = vsel %vm1569, %v3825, %v3821
  %v3827 = vlaneseq
  %v3828 = vshrl.u32 %v3827, 7
  %v3829 = vsub.s32 %v1571, %v3828
  %v3830 = vrot.slane %v3151, %v3829
  %v3831 = vsel %vm1576, %v3830, %v3826
  %v3832 = vlaneseq
  %v3833 = vshrl.u32 %v3832, 7
  %v3834 = vsub.s32 %v1552, %v3833
  %v3835 = vrot.slane %v3154, %v3834
  %v3836 = vlaneseq
  %v3837 = vshrl.u32 %v3836, 7
  %v3838 = vsub.s32 %v1557, %v3837
  %v3839 = vrot.slane %v3157, %v3838
  %v3840 = vsel %vm1562, %v3839, %v3835
  %v3841 = vlaneseq
  %v3842 = vshrl.u32 %v3841, 7
  %v3843 = vsub.s32 %v1564, %v3842
  %v3844 = vrot.slane %v3160, %v3843
  %v3845 = vsel %vm1569, %v3844, %v3840
  %v3846 = vlaneseq
  %v3847 = vshrl.u32 %v3846, 7
  %v3848 = vsub.s32 %v1571, %v3847
  %v3849 = vrot.slane %v3163, %v3848
  %v3850 = vsel %vm1576, %v3849, %v3845
  %v3851 = vlaneseq
  %v3852 = vshrl.u32 %v3851, 7
  %v3853 = vsub.s32 %v1552, %v3852
  %v3854 = vrot.slane %v3166, %v3853
  %v3855 = vlaneseq
  %v3856 = vshrl.u32 %v3855, 7
  %v3857 = vsub.s32 %v1557, %v3856
  %v3858 = vrot.slane %v3169, %v3857
  %v3859 = vsel %vm1562, %v3858, %v3854
  %v3860 = vlaneseq
  %v3861 = vshrl.u32 %v3860, 7
  %v3862 = vsub.s32 %v1564, %v3861
  %v3863 = vrot.slane %v3172, %v3862
  %v3864 = vsel %vm1569, %v3863, %v3859
  %v3865 = vlaneseq
  %v3866 = vshrl.u32 %v3865, 7
  %v3867 = vsub.s32 %v1571, %v3866
  %v3868 = vrot.slane %v3175, %v3867
  %v3869 = vsel %vm1576, %v3868, %v3864
  %v3870 = vlaneseq
  %v3871 = vshrl.u32 %v3870, 7
  %v3872 = vsub.s32 %v1552, %v3871
  %v3873 = vrot.slane %v3178, %v3872
  %v3874 = vlaneseq
  %v3875 = vshrl.u32 %v3874, 7
  %v3876 = vsub.s32 %v1557, %v3875
  %v3877 = vrot.slane %v3181, %v3876
  %v3878 = vsel %vm1562, %v3877, %v3873
  %v3879 = vlaneseq
  %v3880 = vshrl.u32 %v3879, 7
  %v3881 = vsub.s32 %v1564, %v3880
  %v3882 = vrot.slane %v3184, %v3881
  %v3883 = vsel %vm1569, %v3882, %v3878
  %v3884 = vlaneseq
  %v3885 = vshrl.u32 %v3884, 7
  %v3886 = vsub.s32 %v1571, %v3885
  %v3887 = vrot.slane %v3187, %v3886
  %v3888 = vsel %vm1576, %v3887, %v3883
  %v3889 = vlaneseq
  %v3890 = vshrl.u32 %v3889, 7
  %v3891 = vsub.s32 %v1552, %v3890
  %v3892 = vrot.slane %v3190, %v3891
  %v3893 = vlaneseq
  %v3894 = vshrl.u32 %v3893, 7
  %v3895 = vsub.s32 %v1557, %v3894
  %v3896 = vrot.slane %v3193, %v3895
  %v3897 = vsel %vm1562, %v3896, %v3892
  %v3898 = vlaneseq
  %v3899 = vshrl.u32 %v3898, 7
  %v3900 = vsub.s32 %v1564, %v3899
  %v3901 = vrot.slane %v3196, %v3900
  %v3902 = vsel %vm1569, %v3901, %v3897
  %v3903 = vlaneseq
  %v3904 = vshrl.u32 %v3903, 7
  %v3905 = vsub.s32 %v1571, %v3904
  %v3906 = vrot.slane %v3199, %v3905
  %v3907 = vsel %vm1576, %v3906, %v3902
  %v3908 = vlaneseq
  %v3909 = vshrl.u32 %v3908, 7
  %v3910 = vsub.s32 %v1552, %v3909
  %v3911 = vrot.slane %v3202, %v3910
  %v3912 = vlaneseq
  %v3913 = vshrl.u32 %v3912, 7
  %v3914 = vsub.s32 %v1557, %v3913
  %v3915 = vrot.slane %v3205, %v3914
  %v3916 = vsel %vm1562, %v3915, %v3911
  %v3917 = vlaneseq
  %v3918 = vshrl.u32 %v3917, 7
  %v3919 = vsub.s32 %v1564, %v3918
  %v3920 = vrot.slane %v3208, %v3919
  %v3921 = vsel %vm1569, %v3920, %v3916
  %v3922 = vlaneseq
  %v3923 = vshrl.u32 %v3922, 7
  %v3924 = vsub.s32 %v1571, %v3923
  %v3925 = vrot.slane %v3211, %v3924
  %v3926 = vsel %vm1576, %v3925, %v3921
  %v3927 = vlaneseq
  %v3928 = vshrl.u32 %v3927, 7
  %v3929 = vsub.s32 %v1552, %v3928
  %v3930 = vrot.slane %v3214, %v3929
  %v3931 = vlaneseq
  %v3932 = vshrl.u32 %v3931, 7
  %v3933 = vsub.s32 %v1557, %v3932
  %v3934 = vrot.slane %v3217, %v3933
  %v3935 = vsel %vm1562, %v3934, %v3930
  %v3936 = vlaneseq
  %v3937 = vshrl.u32 %v3936, 7
  %v3938 = vsub.s32 %v1564, %v3937
  %v3939 = vrot.slane %v3220, %v3938
  %v3940 = vsel %vm1569, %v3939, %v3935
  %v3941 = vlaneseq
  %v3942 = vshrl.u32 %v3941, 7
  %v3943 = vsub.s32 %v1571, %v3942
  %v3944 = vrot.slane %v3223, %v3943
  %v3945 = vsel %vm1576, %v3944, %v3940
  %v3946 = vlaneseq
  %v3947 = vshrl.u32 %v3946, 7
  %v3948 = vsub.s32 %v1552, %v3947
  %v3949 = vrot.slane %v3226, %v3948
  %v3950 = vlaneseq
  %v3951 = vshrl.u32 %v3950, 7
  %v3952 = vsub.s32 %v1557, %v3951
  %v3953 = vrot.slane %v3229, %v3952
  %v3954 = vsel %vm1562, %v3953, %v3949
  %v3955 = vlaneseq
  %v3956 = vshrl.u32 %v3955, 7
  %v3957 = vsub.s32 %v1564, %v3956
  %v3958 = vrot.slane %v3232, %v3957
  %v3959 = vsel %vm1569, %v3958, %v3954
  %v3960 = vlaneseq
  %v3961 = vshrl.u32 %v3960, 7
  %v3962 = vsub.s32 %v1571, %v3961
  %v3963 = vrot.slane %v3235, %v3962
  %v3964 = vsel %vm1576, %v3963, %v3959
  %v3965 = vlaneseq
  %v3966 = vshrl.u32 %v3965, 7
  %v3967 = vsub.s32 %v1552, %v3966
  %v3968 = vrot.slane %v3238, %v3967
  %v3969 = vlaneseq
  %v3970 = vshrl.u32 %v3969, 7
  %v3971 = vsub.s32 %v1557, %v3970
  %v3972 = vrot.slane %v3241, %v3971
  %v3973 = vsel %vm1562, %v3972, %v3968
  %v3974 = vlaneseq
  %v3975 = vshrl.u32 %v3974, 7
  %v3976 = vsub.s32 %v1564, %v3975
  %v3977 = vrot.slane %v3244, %v3976
  %v3978 = vsel %vm1569, %v3977, %v3973
  %v3979 = vlaneseq
  %v3980 = vshrl.u32 %v3979, 7
  %v3981 = vsub.s32 %v1571, %v3980
  %v3982 = vrot.slane %v3247, %v3981
  %v3983 = vsel %vm1576, %v3982, %v3978
  %v3984 = vsel %vm2167, %v3413, %v3394
  %v3985 = vsel %vm2169, %v3432, %v3984
  %v3986 = vsel %vm2171, %v3451, %v3985
  %v3987 = vsel %vm2173, %v3470, %v3986
  %v3988 = vsel %vm2175, %v3489, %v3987
  %v3989 = vsel %vm2177, %v3508, %v3988
  %v3990 = vsel %vm2179, %v3527, %v3989
  %v3991 = vsel %vm2167, %v3565, %v3546
  %v3992 = vsel %vm2169, %v3584, %v3991
  %v3993 = vsel %vm2171, %v3603, %v3992
  %v3994 = vsel %vm2173, %v3622, %v3993
  %v3995 = vsel %vm2175, %v3641, %v3994
  %v3996 = vsel %vm2177, %v3660, %v3995
  %v3997 = vsel %vm2179, %v3679, %v3996
  %v3998 = vsel %vm2167, %v3717, %v3698
  %v3999 = vsel %vm2169, %v3736, %v3998
  %v4000 = vsel %vm2171, %v3755, %v3999
  %v4001 = vsel %vm2173, %v3774, %v4000
  %v4002 = vsel %vm2175, %v3793, %v4001
  %v4003 = vsel %vm2177, %v3812, %v4002
  %v4004 = vsel %vm2179, %v3831, %v4003
  %v4005 = vsel %vm2167, %v3869, %v3850
  %v4006 = vsel %vm2169, %v3888, %v4005
  %v4007 = vsel %vm2171, %v3907, %v4006
  %v4008 = vsel %vm2173, %v3926, %v4007
  %v4009 = vsel %vm2175, %v3945, %v4008
  %v4010 = vsel %vm2177, %v3964, %v4009
  %v4011 = vsel %vm2179, %v3983, %v4010
  %v4016 = vsel %vm29, %v3990, -1e+30
  %v4017 = vsel %vm30, %v3997, -1e+30
  %v4018 = vsel %vm31, %v4004, -1e+30
  %v4019 = vsel %vm32, %v4011, -1e+30
  %v4020 = vsel %vm2210, %v4016, -inf
  %4021 = vmax.xlane.f32.xlu0 %v4020
  %v4022 = vpop.xlane.xlu0 %4021
  %v4023 = vsel %vm2210, %v4017, -inf
  %4024 = vmax.xlane.f32.xlu0 %v4023
  %v4025 = vpop.xlane.xlu0 %4024
  %v4026 = vsel %vm2210, %v4018, -inf
  %4027 = vmax.xlane.f32.xlu0 %v4026
  %v4028 = vpop.xlane.xlu0 %4027
  %v4029 = vsel %vm2210, %v4019, -inf
  %4030 = vmax.xlane.f32.xlu0 %v4029
  %v4031 = vpop.xlane.xlu0 %4030
  %v4032 = vsub.f32 %v4016, %v4022
  %v4033 = vsub.f32 %v4017, %v4025
  %v4034 = vsub.f32 %v4018, %v4028
  %v4035 = vsub.f32 %v4019, %v4031
  %v4036 = vmul.f32 %v4032, 1.442695
  %v4037 = vpow.pop %v4036
  %v4038 = vmul.f32 %v4033, 1.442695
  %v4039 = vpow.pop %v4038
  %v4040 = vmul.f32 %v4034, 1.442695
  %v4041 = vpow.pop %v4040
  %v4042 = vmul.f32 %v4035, 1.442695
  %v4043 = vpow.pop %v4042
  %v4044 = vsel %vm2210, %v4037, 0.0
  %4045 = vadd.xlane.f32.xlu0 %v4044
  %v4046 = vpop.xlane.xlu0 %4045
  %v4047 = vsel %vm2210, %v4039, 0.0
  %4048 = vadd.xlane.f32.xlu0 %v4047
  %v4049 = vpop.xlane.xlu0 %4048
  %v4050 = vsel %vm2210, %v4041, 0.0
  %4051 = vadd.xlane.f32.xlu0 %v4050
  %v4052 = vpop.xlane.xlu0 %4051
  %v4053 = vsel %vm2210, %v4043, 0.0
  %4054 = vadd.xlane.f32.xlu0 %v4053
  %v4055 = vpop.xlane.xlu0 %4054
  %v4056 = vrcp.pop %v4046
  %v4057 = vrcp.pop %v4049
  %v4058 = vrcp.pop %v4052
  %v4059 = vrcp.pop %v4055
  %v4060 = vmul.f32 %v4037, %v4056
  %v4061 = vmul.f32 %v4039, %v4057
  %v4062 = vmul.f32 %v4041, %v4058
  %v4063 = vmul.f32 %v4043, %v4059
  %4068 = vrot.lane.b32.xlu0 %v17, 112
  %v4069 = vpop.permute.xlu0 %4068
  %4070 = vrot.lane.b32.xlu0 %v18, 112
  %v4071 = vpop.permute.xlu0 %4070
  %4072 = vrot.lane.b32.xlu0 %v19, 112
  %v4073 = vpop.permute.xlu0 %4072
  %4074 = vrot.lane.b32.xlu0 %v20, 112
  %v4075 = vpop.permute.xlu0 %4074
  %v4081 = vsel %vm2210, %v4060, 0
  %v4084 = vsel %vm2210, %v4061, 0
  %v4087 = vsel %vm2210, %v4062, 0
  %v4090 = vsel %vm2210, %v4063, 0
  %4092 = vmatprep.subr.mxu0 0.0
  %4093 = vmatpush1.msra.mxu0 0.0
  %4094 = vmatprep.subr.mxu0 0.0
  %4095 = vmatpush1.msra.mxu0 0.0
  %4096 = vmatprep.subr.mxu0 0.0
  %4097 = vmatpush1.msra.mxu0 0.0
  %4098 = vmatprep.subr.mxu0 0.0
  %4099 = vmatpush1.msra.mxu0 0.0
  %4100 = vmatprep.subr.mxu0 0.0
  %4101 = vmatpush1.msra.mxu0 0.0
  %4102 = vmatprep.subr.mxu0 0.0
  %4103 = vmatpush1.msra.mxu0 0.0
  %4104 = vmatprep.subr.mxu0 0.0
  %4105 = vmatpush1.msra.mxu0 0.0
  %4106 = vmatprep.subr.mxu0 0.0
  %4107 = vmatpush1.msra.mxu0 0.0
  %4108 = vmatprep.subr.mxu0 0.0
  %4109 = vmatpush1.msra.mxu0 0.0
  %4110 = vmatprep.subr.mxu0 0.0
  %4111 = vmatpush1.msra.mxu0 0.0
  %4112 = vmatprep.subr.mxu0 0.0
  %4113 = vmatpush1.msra.mxu0 0.0
  %4114 = vmatprep.subr.mxu0 0.0
  %4115 = vmatpush1.msra.mxu0 0.0
  %4116 = vmatprep.subr.mxu0 0.0
  %4117 = vmatpush1.msra.mxu0 %v4075
  %4118 = vmatprep.subr.mxu0 0.0
  %4119 = vmatpush1.msra.mxu0 %v4073
  %4120 = vmatprep.subr.mxu0 0.0
  %4121 = vmatpush1.msra.mxu0 %v4071
  %4122 = vmatprep.subr.mxu0 0.0
  %4123 = vmatpush1.msra.mxu0 %v4069
  %4124 = vmatprep.subr.mxu0 0.0
  %4125 = vmatpush2.msra.mxu0 0.0
  %4126 = vmatprep.subr.mxu0 0.0
  %4127 = vmatpush2.msra.mxu0 0.0
  %4128 = vmatprep.subr.mxu0 0.0
  %4129 = vmatpush2.msra.mxu0 0.0
  %4130 = vmatprep.subr.mxu0 0.0
  %4131 = vmatpush2.msra.mxu0 0.0
  %4132 = vmatprep.subr.mxu0 0.0
  %4133 = vmatpush2.msra.mxu0 0.0
  %4134 = vmatprep.subr.mxu0 0.0
  %4135 = vmatpush2.msra.mxu0 0.0
  %4136 = vmatprep.subr.mxu0 0.0
  %4137 = vmatpush2.msra.mxu0 0.0
  %4138 = vmatprep.subr.mxu0 0.0
  %4139 = vmatpush2.msra.mxu0 0.0
  %4140 = vmatprep.subr.mxu0 0.0
  %4141 = vmatpush2.msra.mxu0 0.0
  %4142 = vmatprep.subr.mxu0 0.0
  %4143 = vmatpush2.msra.mxu0 0.0
  %4144 = vmatprep.subr.mxu0 0.0
  %4145 = vmatpush2.msra.mxu0 0.0
  %4146 = vmatprep.subr.mxu0 0.0
  %4147 = vmatpush2.msra.mxu0 0.0
  %4148 = vmatprep.subr.mxu0 0.0
  %4149 = vmatpush2.msra.mxu0 0.0
  %4150 = vmatprep.subr.mxu0 0.0
  %4151 = vmatpush2.msra.mxu0 0.0
  %4152 = vmatprep.subr.mxu0 0.0
  %4153 = vmatpush2.msra.mxu0 0.0
  %4154 = vmatprep.subr.mxu0 0.0
  %4155 = vmatpush2.msra.mxu0 0.0
  %4156 = vmatprep.mubr.f32.mxu0 0.0
  %4157 = vmatmul.mubr.f32.gmra.mxu0 %v4081
  %v4158 = vpop.f32.mrf.mxu0
  %v4159 = vadd.f32 0.0, %v4158
  %v4160 = vpop.f32.mrf.mxu0
  %4161 = vmatprep.mubr.f32.mxu0 0.0
  %4162 = vmatmul.mubr.f32.gmra.mxu0 %v4084
  %v4163 = vpop.f32.mrf.mxu0
  %v4164 = vadd.f32 0.0, %v4163
  %v4165 = vpop.f32.mrf.mxu0
  %4166 = vmatprep.mubr.f32.mxu0 0.0
  %4167 = vmatmul.mubr.f32.gmra.mxu0 %v4087
  %v4168 = vpop.f32.mrf.mxu0
  %v4169 = vadd.f32 0.0, %v4168
  %v4170 = vpop.f32.mrf.mxu0
  %4171 = vmatprep.mubr.f32.mxu0 0.0
  %4172 = vmatmul.mubr.f32.gmra.mxu0 %v4090
  %v4173 = vpop.f32.mrf.mxu0
  %v4174 = vadd.f32 0.0, %v4173
  %v4175 = vpop.f32.mrf.mxu0
  %4176 = vdwg.mxu0
  %4177 = vrot.lane.b32.xlu0 %v910, 96
  %v4178 = vpop.permute.xlu0 %4177
  %4179 = vrot.lane.b32.xlu0 %v911, 96
  %v4180 = vpop.permute.xlu0 %4179
  %4181 = vrot.lane.b32.xlu0 %v912, 96
  %v4182 = vpop.permute.xlu0 %4181
  %4183 = vrot.lane.b32.xlu0 %v913, 96
  %v4184 = vpop.permute.xlu0 %4183
  %4185 = vrot.lane.b32.xlu0 %v914, 96
  %v4186 = vpop.permute.xlu0 %4185
  %4187 = vrot.lane.b32.xlu0 %v915, 96
  %v4188 = vpop.permute.xlu0 %4187
  %4189 = vrot.lane.b32.xlu0 %v916, 96
  %v4190 = vpop.permute.xlu0 %4189
  %4191 = vrot.lane.b32.xlu0 %v917, 96
  %v4192 = vpop.permute.xlu0 %4191
  %4193 = vrot.lane.b32.xlu0 %v918, 96
  %v4194 = vpop.permute.xlu0 %4193
  %4195 = vrot.lane.b32.xlu0 %v919, 96
  %v4196 = vpop.permute.xlu0 %4195
  %4197 = vrot.lane.b32.xlu0 %v920, 96
  %v4198 = vpop.permute.xlu0 %4197
  %4199 = vrot.lane.b32.xlu0 %v921, 96
  %v4200 = vpop.permute.xlu0 %4199
  %4201 = vrot.lane.b32.xlu0 %v922, 96
  %v4202 = vpop.permute.xlu0 %4201
  %4203 = vrot.lane.b32.xlu0 %v923, 96
  %v4204 = vpop.permute.xlu0 %4203
  %4205 = vrot.lane.b32.xlu0 %v924, 96
  %v4206 = vpop.permute.xlu0 %4205
  %4207 = vrot.lane.b32.xlu0 %v925, 96
  %v4208 = vpop.permute.xlu0 %4207
  %4209 = vrot.lane.b32.xlu0 %v926, 96
  %v4210 = vpop.permute.xlu0 %4209
  %4211 = vrot.lane.b32.xlu0 %v927, 96
  %v4212 = vpop.permute.xlu0 %4211
  %4213 = vrot.lane.b32.xlu0 %v928, 96
  %v4214 = vpop.permute.xlu0 %4213
  %4215 = vrot.lane.b32.xlu0 %v929, 96
  %v4216 = vpop.permute.xlu0 %4215
  %4217 = vrot.lane.b32.xlu0 %v930, 96
  %v4218 = vpop.permute.xlu0 %4217
  %4219 = vrot.lane.b32.xlu0 %v931, 96
  %v4220 = vpop.permute.xlu0 %4219
  %4221 = vrot.lane.b32.xlu0 %v932, 96
  %v4222 = vpop.permute.xlu0 %4221
  %4223 = vrot.lane.b32.xlu0 %v933, 96
  %v4224 = vpop.permute.xlu0 %4223
  %4225 = vrot.lane.b32.xlu0 %v934, 96
  %v4226 = vpop.permute.xlu0 %4225
  %4227 = vrot.lane.b32.xlu0 %v935, 96
  %v4228 = vpop.permute.xlu0 %4227
  %4229 = vrot.lane.b32.xlu0 %v936, 96
  %v4230 = vpop.permute.xlu0 %4229
  %4231 = vrot.lane.b32.xlu0 %v937, 96
  %v4232 = vpop.permute.xlu0 %4231
  %4233 = vrot.lane.b32.xlu0 %v938, 96
  %v4234 = vpop.permute.xlu0 %4233
  %4235 = vrot.lane.b32.xlu0 %v939, 96
  %v4236 = vpop.permute.xlu0 %4235
  %4237 = vrot.lane.b32.xlu0 %v940, 96
  %v4238 = vpop.permute.xlu0 %4237
  %4239 = vrot.lane.b32.xlu0 %v941, 96
  %v4240 = vpop.permute.xlu0 %4239
  %4241 = vrot.lane.b32.xlu0 %v942, 96
  %v4242 = vpop.permute.xlu0 %4241
  %4243 = vrot.lane.b32.xlu0 %v943, 96
  %v4244 = vpop.permute.xlu0 %4243
  %4245 = vrot.lane.b32.xlu0 %v944, 96
  %v4246 = vpop.permute.xlu0 %4245
  %4247 = vrot.lane.b32.xlu0 %v945, 96
  %v4248 = vpop.permute.xlu0 %4247
  %4249 = vrot.lane.b32.xlu0 %v946, 96
  %v4250 = vpop.permute.xlu0 %4249
  %4251 = vrot.lane.b32.xlu0 %v947, 96
  %v4252 = vpop.permute.xlu0 %4251
  %4253 = vrot.lane.b32.xlu0 %v948, 96
  %v4254 = vpop.permute.xlu0 %4253
  %4255 = vrot.lane.b32.xlu0 %v949, 96
  %v4256 = vpop.permute.xlu0 %4255
  %4257 = vrot.lane.b32.xlu0 %v950, 96
  %v4258 = vpop.permute.xlu0 %4257
  %4259 = vrot.lane.b32.xlu0 %v951, 96
  %v4260 = vpop.permute.xlu0 %4259
  %4261 = vrot.lane.b32.xlu0 %v952, 96
  %v4262 = vpop.permute.xlu0 %4261
  %4263 = vrot.lane.b32.xlu0 %v953, 96
  %v4264 = vpop.permute.xlu0 %4263
  %4265 = vrot.lane.b32.xlu0 %v954, 96
  %v4266 = vpop.permute.xlu0 %4265
  %4267 = vrot.lane.b32.xlu0 %v955, 96
  %v4268 = vpop.permute.xlu0 %4267
  %4269 = vrot.lane.b32.xlu0 %v956, 96
  %v4270 = vpop.permute.xlu0 %4269
  %4271 = vrot.lane.b32.xlu0 %v957, 96
  %v4272 = vpop.permute.xlu0 %4271
  %4273 = vrot.lane.b32.xlu0 %v958, 96
  %v4274 = vpop.permute.xlu0 %4273
  %4275 = vrot.lane.b32.xlu0 %v959, 96
  %v4276 = vpop.permute.xlu0 %4275
  %4277 = vrot.lane.b32.xlu0 %v960, 96
  %v4278 = vpop.permute.xlu0 %4277
  %4279 = vrot.lane.b32.xlu0 %v961, 96
  %v4280 = vpop.permute.xlu0 %4279
  %4281 = vrot.lane.b32.xlu0 %v962, 96
  %v4282 = vpop.permute.xlu0 %4281
  %4283 = vrot.lane.b32.xlu0 %v963, 96
  %v4284 = vpop.permute.xlu0 %4283
  %4285 = vrot.lane.b32.xlu0 %v964, 96
  %v4286 = vpop.permute.xlu0 %4285
  %4287 = vrot.lane.b32.xlu0 %v965, 96
  %v4288 = vpop.permute.xlu0 %4287
  %4289 = vrot.lane.b32.xlu0 %v966, 96
  %v4290 = vpop.permute.xlu0 %4289
  %4291 = vrot.lane.b32.xlu0 %v967, 96
  %v4292 = vpop.permute.xlu0 %4291
  %4293 = vrot.lane.b32.xlu0 %v968, 96
  %v4294 = vpop.permute.xlu0 %4293
  %4295 = vrot.lane.b32.xlu0 %v969, 96
  %v4296 = vpop.permute.xlu0 %4295
  %4297 = vrot.lane.b32.xlu0 %v970, 96
  %v4298 = vpop.permute.xlu0 %4297
  %4299 = vrot.lane.b32.xlu0 %v971, 96
  %v4300 = vpop.permute.xlu0 %4299
  %4301 = vrot.lane.b32.xlu0 %v972, 96
  %v4302 = vpop.permute.xlu0 %4301
  %4303 = vrot.lane.b32.xlu0 %v973, 96
  %v4304 = vpop.permute.xlu0 %4303
  %4305 = vrot.lane.b32.xlu0 %v974, 96
  %v4306 = vpop.permute.xlu0 %4305
  %4307 = vrot.lane.b32.xlu0 %v975, 96
  %v4308 = vpop.permute.xlu0 %4307
  %4309 = vrot.lane.b32.xlu0 %v976, 96
  %v4310 = vpop.permute.xlu0 %4309
  %4311 = vrot.lane.b32.xlu0 %v977, 96
  %v4312 = vpop.permute.xlu0 %4311
  %4313 = vrot.lane.b32.xlu0 %v978, 96
  %v4314 = vpop.permute.xlu0 %4313
  %4315 = vrot.lane.b32.xlu0 %v979, 96
  %v4316 = vpop.permute.xlu0 %4315
  %4317 = vrot.lane.b32.xlu0 %v980, 96
  %v4318 = vpop.permute.xlu0 %4317
  %4319 = vrot.lane.b32.xlu0 %v981, 96
  %v4320 = vpop.permute.xlu0 %4319
  %4321 = vrot.lane.b32.xlu0 %v982, 96
  %v4322 = vpop.permute.xlu0 %4321
  %4323 = vrot.lane.b32.xlu0 %v983, 96
  %v4324 = vpop.permute.xlu0 %4323
  %4325 = vrot.lane.b32.xlu0 %v984, 96
  %v4326 = vpop.permute.xlu0 %4325
  %4327 = vrot.lane.b32.xlu0 %v985, 96
  %v4328 = vpop.permute.xlu0 %4327
  %4329 = vrot.lane.b32.xlu0 %v986, 96
  %v4330 = vpop.permute.xlu0 %4329
  %4331 = vrot.lane.b32.xlu0 %v987, 96
  %v4332 = vpop.permute.xlu0 %4331
  %4333 = vrot.lane.b32.xlu0 %v988, 96
  %v4334 = vpop.permute.xlu0 %4333
  %4335 = vrot.lane.b32.xlu0 %v989, 96
  %v4336 = vpop.permute.xlu0 %4335
  %4337 = vrot.lane.b32.xlu0 %v990, 96
  %v4338 = vpop.permute.xlu0 %4337
  %4339 = vrot.lane.b32.xlu0 %v991, 96
  %v4340 = vpop.permute.xlu0 %4339
  %4341 = vrot.lane.b32.xlu0 %v992, 96
  %v4342 = vpop.permute.xlu0 %4341
  %4343 = vrot.lane.b32.xlu0 %v993, 96
  %v4344 = vpop.permute.xlu0 %4343
  %4345 = vrot.lane.b32.xlu0 %v994, 96
  %v4346 = vpop.permute.xlu0 %4345
  %4347 = vrot.lane.b32.xlu0 %v995, 96
  %v4348 = vpop.permute.xlu0 %4347
  %4349 = vrot.lane.b32.xlu0 %v996, 96
  %v4350 = vpop.permute.xlu0 %4349
  %4351 = vrot.lane.b32.xlu0 %v997, 96
  %v4352 = vpop.permute.xlu0 %4351
  %4353 = vrot.lane.b32.xlu0 %v998, 96
  %v4354 = vpop.permute.xlu0 %4353
  %4355 = vrot.lane.b32.xlu0 %v999, 96
  %v4356 = vpop.permute.xlu0 %4355
  %4357 = vrot.lane.b32.xlu0 %v1000, 96
  %v4358 = vpop.permute.xlu0 %4357
  %4359 = vrot.lane.b32.xlu0 %v1001, 96
  %v4360 = vpop.permute.xlu0 %4359
  %4361 = vrot.lane.b32.xlu0 %v1002, 96
  %v4362 = vpop.permute.xlu0 %4361
  %4363 = vrot.lane.b32.xlu0 %v1003, 96
  %v4364 = vpop.permute.xlu0 %4363
  %4365 = vrot.lane.b32.xlu0 %v1004, 96
  %v4366 = vpop.permute.xlu0 %4365
  %4367 = vrot.lane.b32.xlu0 %v1005, 96
  %v4368 = vpop.permute.xlu0 %4367
  %4369 = vrot.lane.b32.xlu0 %v1006, 96
  %v4370 = vpop.permute.xlu0 %4369
  %4371 = vrot.lane.b32.xlu0 %v1007, 96
  %v4372 = vpop.permute.xlu0 %4371
  %4373 = vrot.lane.b32.xlu0 %v1008, 96
  %v4374 = vpop.permute.xlu0 %4373
  %4375 = vrot.lane.b32.xlu0 %v1009, 96
  %v4376 = vpop.permute.xlu0 %4375
  %4377 = vrot.lane.b32.xlu0 %v1010, 96
  %v4378 = vpop.permute.xlu0 %4377
  %4379 = vrot.lane.b32.xlu0 %v1011, 96
  %v4380 = vpop.permute.xlu0 %4379
  %4381 = vrot.lane.b32.xlu0 %v1012, 96
  %v4382 = vpop.permute.xlu0 %4381
  %4383 = vrot.lane.b32.xlu0 %v1013, 96
  %v4384 = vpop.permute.xlu0 %4383
  %4385 = vrot.lane.b32.xlu0 %v1014, 96
  %v4386 = vpop.permute.xlu0 %4385
  %4387 = vrot.lane.b32.xlu0 %v1015, 96
  %v4388 = vpop.permute.xlu0 %4387
  %4389 = vrot.lane.b32.xlu0 %v1016, 96
  %v4390 = vpop.permute.xlu0 %4389
  %4391 = vrot.lane.b32.xlu0 %v1017, 96
  %v4392 = vpop.permute.xlu0 %4391
  %4393 = vrot.lane.b32.xlu0 %v1018, 96
  %v4394 = vpop.permute.xlu0 %4393
  %4395 = vrot.lane.b32.xlu0 %v1019, 96
  %v4396 = vpop.permute.xlu0 %4395
  %4397 = vrot.lane.b32.xlu0 %v1020, 96
  %v4398 = vpop.permute.xlu0 %4397
  %4399 = vrot.lane.b32.xlu0 %v1021, 96
  %v4400 = vpop.permute.xlu0 %4399
  %4401 = vrot.lane.b32.xlu0 %v1022, 96
  %v4402 = vpop.permute.xlu0 %4401
  %4403 = vrot.lane.b32.xlu0 %v1023, 96
  %v4404 = vpop.permute.xlu0 %4403
  %4405 = vrot.lane.b32.xlu0 %v1024, 96
  %v4406 = vpop.permute.xlu0 %4405
  %4407 = vrot.lane.b32.xlu0 %v1025, 96
  %v4408 = vpop.permute.xlu0 %4407
  %4409 = vrot.lane.b32.xlu0 %v1026, 96
  %v4410 = vpop.permute.xlu0 %4409
  %4411 = vrot.lane.b32.xlu0 %v1027, 96
  %v4412 = vpop.permute.xlu0 %4411
  %4413 = vrot.lane.b32.xlu0 %v1028, 96
  %v4414 = vpop.permute.xlu0 %4413
  %4415 = vrot.lane.b32.xlu0 %v1029, 96
  %v4416 = vpop.permute.xlu0 %4415
  %4417 = vrot.lane.b32.xlu0 %v1030, 96
  %v4418 = vpop.permute.xlu0 %4417
  %4419 = vrot.lane.b32.xlu0 %v1031, 96
  %v4420 = vpop.permute.xlu0 %4419
  %4421 = vrot.lane.b32.xlu0 %v1032, 96
  %v4422 = vpop.permute.xlu0 %4421
  %4423 = vrot.lane.b32.xlu0 %v1033, 96
  %v4424 = vpop.permute.xlu0 %4423
  %4425 = vrot.lane.b32.xlu0 %v1034, 96
  %v4426 = vpop.permute.xlu0 %4425
  %4427 = vrot.lane.b32.xlu0 %v1035, 96
  %v4428 = vpop.permute.xlu0 %4427
  %4429 = vrot.lane.b32.xlu0 %v1036, 96
  %v4430 = vpop.permute.xlu0 %4429
  %4431 = vrot.lane.b32.xlu0 %v1037, 96
  %v4432 = vpop.permute.xlu0 %4431
  %v4561 = vsel %vm1038, %v4178, 0.0
  %4562 = vadd.xlane.f32.xlu0 %v4561
  %v4563 = vpop.xlane.xlu0 %4562
  %v4564 = vsel %vm1038, %v4180, 0.0
  %4565 = vadd.xlane.f32.xlu0 %v4564
  %v4566 = vpop.xlane.xlu0 %4565
  %v4567 = vsel %vm1038, %v4182, 0.0
  %4568 = vadd.xlane.f32.xlu0 %v4567
  %v4569 = vpop.xlane.xlu0 %4568
  %v4570 = vsel %vm1038, %v4184, 0.0
  %4571 = vadd.xlane.f32.xlu0 %v4570
  %v4572 = vpop.xlane.xlu0 %4571
  %v4573 = vsel %vm1038, %v4186, 0.0
  %4574 = vadd.xlane.f32.xlu0 %v4573
  %v4575 = vpop.xlane.xlu0 %4574
  %v4576 = vsel %vm1038, %v4188, 0.0
  %4577 = vadd.xlane.f32.xlu0 %v4576
  %v4578 = vpop.xlane.xlu0 %4577
  %v4579 = vsel %vm1038, %v4190, 0.0
  %4580 = vadd.xlane.f32.xlu0 %v4579
  %v4581 = vpop.xlane.xlu0 %4580
  %v4582 = vsel %vm1038, %v4192, 0.0
  %4583 = vadd.xlane.f32.xlu0 %v4582
  %v4584 = vpop.xlane.xlu0 %4583
  %v4585 = vsel %vm1038, %v4194, 0.0
  %4586 = vadd.xlane.f32.xlu0 %v4585
  %v4587 = vpop.xlane.xlu0 %4586
  %v4588 = vsel %vm1038, %v4196, 0.0
  %4589 = vadd.xlane.f32.xlu0 %v4588
  %v4590 = vpop.xlane.xlu0 %4589
  %v4591 = vsel %vm1038, %v4198, 0.0
  %4592 = vadd.xlane.f32.xlu0 %v4591
  %v4593 = vpop.xlane.xlu0 %4592
  %v4594 = vsel %vm1038, %v4200, 0.0
  %4595 = vadd.xlane.f32.xlu0 %v4594
  %v4596 = vpop.xlane.xlu0 %4595
  %v4597 = vsel %vm1038, %v4202, 0.0
  %4598 = vadd.xlane.f32.xlu0 %v4597
  %v4599 = vpop.xlane.xlu0 %4598
  %v4600 = vsel %vm1038, %v4204, 0.0
  %4601 = vadd.xlane.f32.xlu0 %v4600
  %v4602 = vpop.xlane.xlu0 %4601
  %v4603 = vsel %vm1038, %v4206, 0.0
  %4604 = vadd.xlane.f32.xlu0 %v4603
  %v4605 = vpop.xlane.xlu0 %4604
  %v4606 = vsel %vm1038, %v4208, 0.0
  %4607 = vadd.xlane.f32.xlu0 %v4606
  %v4608 = vpop.xlane.xlu0 %4607
  %v4609 = vsel %vm1038, %v4210, 0.0
  %4610 = vadd.xlane.f32.xlu0 %v4609
  %v4611 = vpop.xlane.xlu0 %4610
  %v4612 = vsel %vm1038, %v4212, 0.0
  %4613 = vadd.xlane.f32.xlu0 %v4612
  %v4614 = vpop.xlane.xlu0 %4613
  %v4615 = vsel %vm1038, %v4214, 0.0
  %4616 = vadd.xlane.f32.xlu0 %v4615
  %v4617 = vpop.xlane.xlu0 %4616
  %v4618 = vsel %vm1038, %v4216, 0.0
  %4619 = vadd.xlane.f32.xlu0 %v4618
  %v4620 = vpop.xlane.xlu0 %4619
  %v4621 = vsel %vm1038, %v4218, 0.0
  %4622 = vadd.xlane.f32.xlu0 %v4621
  %v4623 = vpop.xlane.xlu0 %4622
  %v4624 = vsel %vm1038, %v4220, 0.0
  %4625 = vadd.xlane.f32.xlu0 %v4624
  %v4626 = vpop.xlane.xlu0 %4625
  %v4627 = vsel %vm1038, %v4222, 0.0
  %4628 = vadd.xlane.f32.xlu0 %v4627
  %v4629 = vpop.xlane.xlu0 %4628
  %v4630 = vsel %vm1038, %v4224, 0.0
  %4631 = vadd.xlane.f32.xlu0 %v4630
  %v4632 = vpop.xlane.xlu0 %4631
  %v4633 = vsel %vm1038, %v4226, 0.0
  %4634 = vadd.xlane.f32.xlu0 %v4633
  %v4635 = vpop.xlane.xlu0 %4634
  %v4636 = vsel %vm1038, %v4228, 0.0
  %4637 = vadd.xlane.f32.xlu0 %v4636
  %v4638 = vpop.xlane.xlu0 %4637
  %v4639 = vsel %vm1038, %v4230, 0.0
  %4640 = vadd.xlane.f32.xlu0 %v4639
  %v4641 = vpop.xlane.xlu0 %4640
  %v4642 = vsel %vm1038, %v4232, 0.0
  %4643 = vadd.xlane.f32.xlu0 %v4642
  %v4644 = vpop.xlane.xlu0 %4643
  %v4645 = vsel %vm1038, %v4234, 0.0
  %4646 = vadd.xlane.f32.xlu0 %v4645
  %v4647 = vpop.xlane.xlu0 %4646
  %v4648 = vsel %vm1038, %v4236, 0.0
  %4649 = vadd.xlane.f32.xlu0 %v4648
  %v4650 = vpop.xlane.xlu0 %4649
  %v4651 = vsel %vm1038, %v4238, 0.0
  %4652 = vadd.xlane.f32.xlu0 %v4651
  %v4653 = vpop.xlane.xlu0 %4652
  %v4654 = vsel %vm1038, %v4240, 0.0
  %4655 = vadd.xlane.f32.xlu0 %v4654
  %v4656 = vpop.xlane.xlu0 %4655
  %v4657 = vsel %vm1038, %v4242, 0.0
  %4658 = vadd.xlane.f32.xlu0 %v4657
  %v4659 = vpop.xlane.xlu0 %4658
  %v4660 = vsel %vm1038, %v4244, 0.0
  %4661 = vadd.xlane.f32.xlu0 %v4660
  %v4662 = vpop.xlane.xlu0 %4661
  %v4663 = vsel %vm1038, %v4246, 0.0
  %4664 = vadd.xlane.f32.xlu0 %v4663
  %v4665 = vpop.xlane.xlu0 %4664
  %v4666 = vsel %vm1038, %v4248, 0.0
  %4667 = vadd.xlane.f32.xlu0 %v4666
  %v4668 = vpop.xlane.xlu0 %4667
  %v4669 = vsel %vm1038, %v4250, 0.0
  %4670 = vadd.xlane.f32.xlu0 %v4669
  %v4671 = vpop.xlane.xlu0 %4670
  %v4672 = vsel %vm1038, %v4252, 0.0
  %4673 = vadd.xlane.f32.xlu0 %v4672
  %v4674 = vpop.xlane.xlu0 %4673
  %v4675 = vsel %vm1038, %v4254, 0.0
  %4676 = vadd.xlane.f32.xlu0 %v4675
  %v4677 = vpop.xlane.xlu0 %4676
  %v4678 = vsel %vm1038, %v4256, 0.0
  %4679 = vadd.xlane.f32.xlu0 %v4678
  %v4680 = vpop.xlane.xlu0 %4679
  %v4681 = vsel %vm1038, %v4258, 0.0
  %4682 = vadd.xlane.f32.xlu0 %v4681
  %v4683 = vpop.xlane.xlu0 %4682
  %v4684 = vsel %vm1038, %v4260, 0.0
  %4685 = vadd.xlane.f32.xlu0 %v4684
  %v4686 = vpop.xlane.xlu0 %4685
  %v4687 = vsel %vm1038, %v4262, 0.0
  %4688 = vadd.xlane.f32.xlu0 %v4687
  %v4689 = vpop.xlane.xlu0 %4688
  %v4690 = vsel %vm1038, %v4264, 0.0
  %4691 = vadd.xlane.f32.xlu0 %v4690
  %v4692 = vpop.xlane.xlu0 %4691
  %v4693 = vsel %vm1038, %v4266, 0.0
  %4694 = vadd.xlane.f32.xlu0 %v4693
  %v4695 = vpop.xlane.xlu0 %4694
  %v4696 = vsel %vm1038, %v4268, 0.0
  %4697 = vadd.xlane.f32.xlu0 %v4696
  %v4698 = vpop.xlane.xlu0 %4697
  %v4699 = vsel %vm1038, %v4270, 0.0
  %4700 = vadd.xlane.f32.xlu0 %v4699
  %v4701 = vpop.xlane.xlu0 %4700
  %v4702 = vsel %vm1038, %v4272, 0.0
  %4703 = vadd.xlane.f32.xlu0 %v4702
  %v4704 = vpop.xlane.xlu0 %4703
  %v4705 = vsel %vm1038, %v4274, 0.0
  %4706 = vadd.xlane.f32.xlu0 %v4705
  %v4707 = vpop.xlane.xlu0 %4706
  %v4708 = vsel %vm1038, %v4276, 0.0
  %4709 = vadd.xlane.f32.xlu0 %v4708
  %v4710 = vpop.xlane.xlu0 %4709
  %v4711 = vsel %vm1038, %v4278, 0.0
  %4712 = vadd.xlane.f32.xlu0 %v4711
  %v4713 = vpop.xlane.xlu0 %4712
  %v4714 = vsel %vm1038, %v4280, 0.0
  %4715 = vadd.xlane.f32.xlu0 %v4714
  %v4716 = vpop.xlane.xlu0 %4715
  %v4717 = vsel %vm1038, %v4282, 0.0
  %4718 = vadd.xlane.f32.xlu0 %v4717
  %v4719 = vpop.xlane.xlu0 %4718
  %v4720 = vsel %vm1038, %v4284, 0.0
  %4721 = vadd.xlane.f32.xlu0 %v4720
  %v4722 = vpop.xlane.xlu0 %4721
  %v4723 = vsel %vm1038, %v4286, 0.0
  %4724 = vadd.xlane.f32.xlu0 %v4723
  %v4725 = vpop.xlane.xlu0 %4724
  %v4726 = vsel %vm1038, %v4288, 0.0
  %4727 = vadd.xlane.f32.xlu0 %v4726
  %v4728 = vpop.xlane.xlu0 %4727
  %v4729 = vsel %vm1038, %v4290, 0.0
  %4730 = vadd.xlane.f32.xlu0 %v4729
  %v4731 = vpop.xlane.xlu0 %4730
  %v4732 = vsel %vm1038, %v4292, 0.0
  %4733 = vadd.xlane.f32.xlu0 %v4732
  %v4734 = vpop.xlane.xlu0 %4733
  %v4735 = vsel %vm1038, %v4294, 0.0
  %4736 = vadd.xlane.f32.xlu0 %v4735
  %v4737 = vpop.xlane.xlu0 %4736
  %v4738 = vsel %vm1038, %v4296, 0.0
  %4739 = vadd.xlane.f32.xlu0 %v4738
  %v4740 = vpop.xlane.xlu0 %4739
  %v4741 = vsel %vm1038, %v4298, 0.0
  %4742 = vadd.xlane.f32.xlu0 %v4741
  %v4743 = vpop.xlane.xlu0 %4742
  %v4744 = vsel %vm1038, %v4300, 0.0
  %4745 = vadd.xlane.f32.xlu0 %v4744
  %v4746 = vpop.xlane.xlu0 %4745
  %v4747 = vsel %vm1038, %v4302, 0.0
  %4748 = vadd.xlane.f32.xlu0 %v4747
  %v4749 = vpop.xlane.xlu0 %4748
  %v4750 = vsel %vm1038, %v4304, 0.0
  %4751 = vadd.xlane.f32.xlu0 %v4750
  %v4752 = vpop.xlane.xlu0 %4751
  %v4753 = vsel %vm1038, %v4306, 0.0
  %4754 = vadd.xlane.f32.xlu0 %v4753
  %v4755 = vpop.xlane.xlu0 %4754
  %v4756 = vsel %vm1038, %v4308, 0.0
  %4757 = vadd.xlane.f32.xlu0 %v4756
  %v4758 = vpop.xlane.xlu0 %4757
  %v4759 = vsel %vm1038, %v4310, 0.0
  %4760 = vadd.xlane.f32.xlu0 %v4759
  %v4761 = vpop.xlane.xlu0 %4760
  %v4762 = vsel %vm1038, %v4312, 0.0
  %4763 = vadd.xlane.f32.xlu0 %v4762
  %v4764 = vpop.xlane.xlu0 %4763
  %v4765 = vsel %vm1038, %v4314, 0.0
  %4766 = vadd.xlane.f32.xlu0 %v4765
  %v4767 = vpop.xlane.xlu0 %4766
  %v4768 = vsel %vm1038, %v4316, 0.0
  %4769 = vadd.xlane.f32.xlu0 %v4768
  %v4770 = vpop.xlane.xlu0 %4769
  %v4771 = vsel %vm1038, %v4318, 0.0
  %4772 = vadd.xlane.f32.xlu0 %v4771
  %v4773 = vpop.xlane.xlu0 %4772
  %v4774 = vsel %vm1038, %v4320, 0.0
  %4775 = vadd.xlane.f32.xlu0 %v4774
  %v4776 = vpop.xlane.xlu0 %4775
  %v4777 = vsel %vm1038, %v4322, 0.0
  %4778 = vadd.xlane.f32.xlu0 %v4777
  %v4779 = vpop.xlane.xlu0 %4778
  %v4780 = vsel %vm1038, %v4324, 0.0
  %4781 = vadd.xlane.f32.xlu0 %v4780
  %v4782 = vpop.xlane.xlu0 %4781
  %v4783 = vsel %vm1038, %v4326, 0.0
  %4784 = vadd.xlane.f32.xlu0 %v4783
  %v4785 = vpop.xlane.xlu0 %4784
  %v4786 = vsel %vm1038, %v4328, 0.0
  %4787 = vadd.xlane.f32.xlu0 %v4786
  %v4788 = vpop.xlane.xlu0 %4787
  %v4789 = vsel %vm1038, %v4330, 0.0
  %4790 = vadd.xlane.f32.xlu0 %v4789
  %v4791 = vpop.xlane.xlu0 %4790
  %v4792 = vsel %vm1038, %v4332, 0.0
  %4793 = vadd.xlane.f32.xlu0 %v4792
  %v4794 = vpop.xlane.xlu0 %4793
  %v4795 = vsel %vm1038, %v4334, 0.0
  %4796 = vadd.xlane.f32.xlu0 %v4795
  %v4797 = vpop.xlane.xlu0 %4796
  %v4798 = vsel %vm1038, %v4336, 0.0
  %4799 = vadd.xlane.f32.xlu0 %v4798
  %v4800 = vpop.xlane.xlu0 %4799
  %v4801 = vsel %vm1038, %v4338, 0.0
  %4802 = vadd.xlane.f32.xlu0 %v4801
  %v4803 = vpop.xlane.xlu0 %4802
  %v4804 = vsel %vm1038, %v4340, 0.0
  %4805 = vadd.xlane.f32.xlu0 %v4804
  %v4806 = vpop.xlane.xlu0 %4805
  %v4807 = vsel %vm1038, %v4342, 0.0
  %4808 = vadd.xlane.f32.xlu0 %v4807
  %v4809 = vpop.xlane.xlu0 %4808
  %v4810 = vsel %vm1038, %v4344, 0.0
  %4811 = vadd.xlane.f32.xlu0 %v4810
  %v4812 = vpop.xlane.xlu0 %4811
  %v4813 = vsel %vm1038, %v4346, 0.0
  %4814 = vadd.xlane.f32.xlu0 %v4813
  %v4815 = vpop.xlane.xlu0 %4814
  %v4816 = vsel %vm1038, %v4348, 0.0
  %4817 = vadd.xlane.f32.xlu0 %v4816
  %v4818 = vpop.xlane.xlu0 %4817
  %v4819 = vsel %vm1038, %v4350, 0.0
  %4820 = vadd.xlane.f32.xlu0 %v4819
  %v4821 = vpop.xlane.xlu0 %4820
  %v4822 = vsel %vm1038, %v4352, 0.0
  %4823 = vadd.xlane.f32.xlu0 %v4822
  %v4824 = vpop.xlane.xlu0 %4823
  %v4825 = vsel %vm1038, %v4354, 0.0
  %4826 = vadd.xlane.f32.xlu0 %v4825
  %v4827 = vpop.xlane.xlu0 %4826
  %v4828 = vsel %vm1038, %v4356, 0.0
  %4829 = vadd.xlane.f32.xlu0 %v4828
  %v4830 = vpop.xlane.xlu0 %4829
  %v4831 = vsel %vm1038, %v4358, 0.0
  %4832 = vadd.xlane.f32.xlu0 %v4831
  %v4833 = vpop.xlane.xlu0 %4832
  %v4834 = vsel %vm1038, %v4360, 0.0
  %4835 = vadd.xlane.f32.xlu0 %v4834
  %v4836 = vpop.xlane.xlu0 %4835
  %v4837 = vsel %vm1038, %v4362, 0.0
  %4838 = vadd.xlane.f32.xlu0 %v4837
  %v4839 = vpop.xlane.xlu0 %4838
  %v4840 = vsel %vm1038, %v4364, 0.0
  %4841 = vadd.xlane.f32.xlu0 %v4840
  %v4842 = vpop.xlane.xlu0 %4841
  %v4843 = vsel %vm1038, %v4366, 0.0
  %4844 = vadd.xlane.f32.xlu0 %v4843
  %v4845 = vpop.xlane.xlu0 %4844
  %v4846 = vsel %vm1038, %v4368, 0.0
  %4847 = vadd.xlane.f32.xlu0 %v4846
  %v4848 = vpop.xlane.xlu0 %4847
  %v4849 = vsel %vm1038, %v4370, 0.0
  %4850 = vadd.xlane.f32.xlu0 %v4849
  %v4851 = vpop.xlane.xlu0 %4850
  %v4852 = vsel %vm1038, %v4372, 0.0
  %4853 = vadd.xlane.f32.xlu0 %v4852
  %v4854 = vpop.xlane.xlu0 %4853
  %v4855 = vsel %vm1038, %v4374, 0.0
  %4856 = vadd.xlane.f32.xlu0 %v4855
  %v4857 = vpop.xlane.xlu0 %4856
  %v4858 = vsel %vm1038, %v4376, 0.0
  %4859 = vadd.xlane.f32.xlu0 %v4858
  %v4860 = vpop.xlane.xlu0 %4859
  %v4861 = vsel %vm1038, %v4378, 0.0
  %4862 = vadd.xlane.f32.xlu0 %v4861
  %v4863 = vpop.xlane.xlu0 %4862
  %v4864 = vsel %vm1038, %v4380, 0.0
  %4865 = vadd.xlane.f32.xlu0 %v4864
  %v4866 = vpop.xlane.xlu0 %4865
  %v4867 = vsel %vm1038, %v4382, 0.0
  %4868 = vadd.xlane.f32.xlu0 %v4867
  %v4869 = vpop.xlane.xlu0 %4868
  %v4870 = vsel %vm1038, %v4384, 0.0
  %4871 = vadd.xlane.f32.xlu0 %v4870
  %v4872 = vpop.xlane.xlu0 %4871
  %v4873 = vsel %vm1038, %v4386, 0.0
  %4874 = vadd.xlane.f32.xlu0 %v4873
  %v4875 = vpop.xlane.xlu0 %4874
  %v4876 = vsel %vm1038, %v4388, 0.0
  %4877 = vadd.xlane.f32.xlu0 %v4876
  %v4878 = vpop.xlane.xlu0 %4877
  %v4879 = vsel %vm1038, %v4390, 0.0
  %4880 = vadd.xlane.f32.xlu0 %v4879
  %v4881 = vpop.xlane.xlu0 %4880
  %v4882 = vsel %vm1038, %v4392, 0.0
  %4883 = vadd.xlane.f32.xlu0 %v4882
  %v4884 = vpop.xlane.xlu0 %4883
  %v4885 = vsel %vm1038, %v4394, 0.0
  %4886 = vadd.xlane.f32.xlu0 %v4885
  %v4887 = vpop.xlane.xlu0 %4886
  %v4888 = vsel %vm1038, %v4396, 0.0
  %4889 = vadd.xlane.f32.xlu0 %v4888
  %v4890 = vpop.xlane.xlu0 %4889
  %v4891 = vsel %vm1038, %v4398, 0.0
  %4892 = vadd.xlane.f32.xlu0 %v4891
  %v4893 = vpop.xlane.xlu0 %4892
  %v4894 = vsel %vm1038, %v4400, 0.0
  %4895 = vadd.xlane.f32.xlu0 %v4894
  %v4896 = vpop.xlane.xlu0 %4895
  %v4897 = vsel %vm1038, %v4402, 0.0
  %4898 = vadd.xlane.f32.xlu0 %v4897
  %v4899 = vpop.xlane.xlu0 %4898
  %v4900 = vsel %vm1038, %v4404, 0.0
  %4901 = vadd.xlane.f32.xlu0 %v4900
  %v4902 = vpop.xlane.xlu0 %4901
  %v4903 = vsel %vm1038, %v4406, 0.0
  %4904 = vadd.xlane.f32.xlu0 %v4903
  %v4905 = vpop.xlane.xlu0 %4904
  %v4906 = vsel %vm1038, %v4408, 0.0
  %4907 = vadd.xlane.f32.xlu0 %v4906
  %v4908 = vpop.xlane.xlu0 %4907
  %v4909 = vsel %vm1038, %v4410, 0.0
  %4910 = vadd.xlane.f32.xlu0 %v4909
  %v4911 = vpop.xlane.xlu0 %4910
  %v4912 = vsel %vm1038, %v4412, 0.0
  %4913 = vadd.xlane.f32.xlu0 %v4912
  %v4914 = vpop.xlane.xlu0 %4913
  %v4915 = vsel %vm1038, %v4414, 0.0
  %4916 = vadd.xlane.f32.xlu0 %v4915
  %v4917 = vpop.xlane.xlu0 %4916
  %v4918 = vsel %vm1038, %v4416, 0.0
  %4919 = vadd.xlane.f32.xlu0 %v4918
  %v4920 = vpop.xlane.xlu0 %4919
  %v4921 = vsel %vm1038, %v4418, 0.0
  %4922 = vadd.xlane.f32.xlu0 %v4921
  %v4923 = vpop.xlane.xlu0 %4922
  %v4924 = vsel %vm1038, %v4420, 0.0
  %4925 = vadd.xlane.f32.xlu0 %v4924
  %v4926 = vpop.xlane.xlu0 %4925
  %v4927 = vsel %vm1038, %v4422, 0.0
  %4928 = vadd.xlane.f32.xlu0 %v4927
  %v4929 = vpop.xlane.xlu0 %4928
  %v4930 = vsel %vm1038, %v4424, 0.0
  %4931 = vadd.xlane.f32.xlu0 %v4930
  %v4932 = vpop.xlane.xlu0 %4931
  %v4933 = vsel %vm1038, %v4426, 0.0
  %4934 = vadd.xlane.f32.xlu0 %v4933
  %v4935 = vpop.xlane.xlu0 %4934
  %v4936 = vsel %vm1038, %v4428, 0.0
  %4937 = vadd.xlane.f32.xlu0 %v4936
  %v4938 = vpop.xlane.xlu0 %4937
  %v4939 = vsel %vm1038, %v4430, 0.0
  %4940 = vadd.xlane.f32.xlu0 %v4939
  %v4941 = vpop.xlane.xlu0 %4940
  %v4942 = vsel %vm1038, %v4432, 0.0
  %4943 = vadd.xlane.f32.xlu0 %v4942
  %v4944 = vpop.xlane.xlu0 %4943
  %v5073 = vlaneseq
  %v5074 = vshrl.u32 %v5073, 7
  %v5075 = vsub.s32 %v1552, %v5074
  %v5076 = vrot.slane %v4563, %v5075
  %v5077 = vlaneseq
  %v5078 = vshrl.u32 %v5077, 7
  %v5079 = vsub.s32 %v1557, %v5078
  %v5080 = vrot.slane %v4566, %v5079
  %v5081 = vsel %vm1562, %v5080, %v5076
  %v5082 = vlaneseq
  %v5083 = vshrl.u32 %v5082, 7
  %v5084 = vsub.s32 %v1564, %v5083
  %v5085 = vrot.slane %v4569, %v5084
  %v5086 = vsel %vm1569, %v5085, %v5081
  %v5087 = vlaneseq
  %v5088 = vshrl.u32 %v5087, 7
  %v5089 = vsub.s32 %v1571, %v5088
  %v5090 = vrot.slane %v4572, %v5089
  %v5091 = vsel %vm1576, %v5090, %v5086
  %v5092 = vlaneseq
  %v5093 = vshrl.u32 %v5092, 7
  %v5094 = vsub.s32 %v1552, %v5093
  %v5095 = vrot.slane %v4575, %v5094
  %v5096 = vlaneseq
  %v5097 = vshrl.u32 %v5096, 7
  %v5098 = vsub.s32 %v1557, %v5097
  %v5099 = vrot.slane %v4578, %v5098
  %v5100 = vsel %vm1562, %v5099, %v5095
  %v5101 = vlaneseq
  %v5102 = vshrl.u32 %v5101, 7
  %v5103 = vsub.s32 %v1564, %v5102
  %v5104 = vrot.slane %v4581, %v5103
  %v5105 = vsel %vm1569, %v5104, %v5100
  %v5106 = vlaneseq
  %v5107 = vshrl.u32 %v5106, 7
  %v5108 = vsub.s32 %v1571, %v5107
  %v5109 = vrot.slane %v4584, %v5108
  %v5110 = vsel %vm1576, %v5109, %v5105
  %v5111 = vlaneseq
  %v5112 = vshrl.u32 %v5111, 7
  %v5113 = vsub.s32 %v1552, %v5112
  %v5114 = vrot.slane %v4587, %v5113
  %v5115 = vlaneseq
  %v5116 = vshrl.u32 %v5115, 7
  %v5117 = vsub.s32 %v1557, %v5116
  %v5118 = vrot.slane %v4590, %v5117
  %v5119 = vsel %vm1562, %v5118, %v5114
  %v5120 = vlaneseq
  %v5121 = vshrl.u32 %v5120, 7
  %v5122 = vsub.s32 %v1564, %v5121
  %v5123 = vrot.slane %v4593, %v5122
  %v5124 = vsel %vm1569, %v5123, %v5119
  %v5125 = vlaneseq
  %v5126 = vshrl.u32 %v5125, 7
  %v5127 = vsub.s32 %v1571, %v5126
  %v5128 = vrot.slane %v4596, %v5127
  %v5129 = vsel %vm1576, %v5128, %v5124
  %v5130 = vlaneseq
  %v5131 = vshrl.u32 %v5130, 7
  %v5132 = vsub.s32 %v1552, %v5131
  %v5133 = vrot.slane %v4599, %v5132
  %v5134 = vlaneseq
  %v5135 = vshrl.u32 %v5134, 7
  %v5136 = vsub.s32 %v1557, %v5135
  %v5137 = vrot.slane %v4602, %v5136
  %v5138 = vsel %vm1562, %v5137, %v5133
  %v5139 = vlaneseq
  %v5140 = vshrl.u32 %v5139, 7
  %v5141 = vsub.s32 %v1564, %v5140
  %v5142 = vrot.slane %v4605, %v5141
  %v5143 = vsel %vm1569, %v5142, %v5138
  %v5144 = vlaneseq
  %v5145 = vshrl.u32 %v5144, 7
  %v5146 = vsub.s32 %v1571, %v5145
  %v5147 = vrot.slane %v4608, %v5146
  %v5148 = vsel %vm1576, %v5147, %v5143
  %v5149 = vlaneseq
  %v5150 = vshrl.u32 %v5149, 7
  %v5151 = vsub.s32 %v1552, %v5150
  %v5152 = vrot.slane %v4611, %v5151
  %v5153 = vlaneseq
  %v5154 = vshrl.u32 %v5153, 7
  %v5155 = vsub.s32 %v1557, %v5154
  %v5156 = vrot.slane %v4614, %v5155
  %v5157 = vsel %vm1562, %v5156, %v5152
  %v5158 = vlaneseq
  %v5159 = vshrl.u32 %v5158, 7
  %v5160 = vsub.s32 %v1564, %v5159
  %v5161 = vrot.slane %v4617, %v5160
  %v5162 = vsel %vm1569, %v5161, %v5157
  %v5163 = vlaneseq
  %v5164 = vshrl.u32 %v5163, 7
  %v5165 = vsub.s32 %v1571, %v5164
  %v5166 = vrot.slane %v4620, %v5165
  %v5167 = vsel %vm1576, %v5166, %v5162
  %v5168 = vlaneseq
  %v5169 = vshrl.u32 %v5168, 7
  %v5170 = vsub.s32 %v1552, %v5169
  %v5171 = vrot.slane %v4623, %v5170
  %v5172 = vlaneseq
  %v5173 = vshrl.u32 %v5172, 7
  %v5174 = vsub.s32 %v1557, %v5173
  %v5175 = vrot.slane %v4626, %v5174
  %v5176 = vsel %vm1562, %v5175, %v5171
  %v5177 = vlaneseq
  %v5178 = vshrl.u32 %v5177, 7
  %v5179 = vsub.s32 %v1564, %v5178
  %v5180 = vrot.slane %v4629, %v5179
  %v5181 = vsel %vm1569, %v5180, %v5176
  %v5182 = vlaneseq
  %v5183 = vshrl.u32 %v5182, 7
  %v5184 = vsub.s32 %v1571, %v5183
  %v5185 = vrot.slane %v4632, %v5184
  %v5186 = vsel %vm1576, %v5185, %v5181
  %v5187 = vlaneseq
  %v5188 = vshrl.u32 %v5187, 7
  %v5189 = vsub.s32 %v1552, %v5188
  %v5190 = vrot.slane %v4635, %v5189
  %v5191 = vlaneseq
  %v5192 = vshrl.u32 %v5191, 7
  %v5193 = vsub.s32 %v1557, %v5192
  %v5194 = vrot.slane %v4638, %v5193
  %v5195 = vsel %vm1562, %v5194, %v5190
  %v5196 = vlaneseq
  %v5197 = vshrl.u32 %v5196, 7
  %v5198 = vsub.s32 %v1564, %v5197
  %v5199 = vrot.slane %v4641, %v5198
  %v5200 = vsel %vm1569, %v5199, %v5195
  %v5201 = vlaneseq
  %v5202 = vshrl.u32 %v5201, 7
  %v5203 = vsub.s32 %v1571, %v5202
  %v5204 = vrot.slane %v4644, %v5203
  %v5205 = vsel %vm1576, %v5204, %v5200
  %v5206 = vlaneseq
  %v5207 = vshrl.u32 %v5206, 7
  %v5208 = vsub.s32 %v1552, %v5207
  %v5209 = vrot.slane %v4647, %v5208
  %v5210 = vlaneseq
  %v5211 = vshrl.u32 %v5210, 7
  %v5212 = vsub.s32 %v1557, %v5211
  %v5213 = vrot.slane %v4650, %v5212
  %v5214 = vsel %vm1562, %v5213, %v5209
  %v5215 = vlaneseq
  %v5216 = vshrl.u32 %v5215, 7
  %v5217 = vsub.s32 %v1564, %v5216
  %v5218 = vrot.slane %v4653, %v5217
  %v5219 = vsel %vm1569, %v5218, %v5214
  %v5220 = vlaneseq
  %v5221 = vshrl.u32 %v5220, 7
  %v5222 = vsub.s32 %v1571, %v5221
  %v5223 = vrot.slane %v4656, %v5222
  %v5224 = vsel %vm1576, %v5223, %v5219
  %v5225 = vlaneseq
  %v5226 = vshrl.u32 %v5225, 7
  %v5227 = vsub.s32 %v1552, %v5226
  %v5228 = vrot.slane %v4659, %v5227
  %v5229 = vlaneseq
  %v5230 = vshrl.u32 %v5229, 7
  %v5231 = vsub.s32 %v1557, %v5230
  %v5232 = vrot.slane %v4662, %v5231
  %v5233 = vsel %vm1562, %v5232, %v5228
  %v5234 = vlaneseq
  %v5235 = vshrl.u32 %v5234, 7
  %v5236 = vsub.s32 %v1564, %v5235
  %v5237 = vrot.slane %v4665, %v5236
  %v5238 = vsel %vm1569, %v5237, %v5233
  %v5239 = vlaneseq
  %v5240 = vshrl.u32 %v5239, 7
  %v5241 = vsub.s32 %v1571, %v5240
  %v5242 = vrot.slane %v4668, %v5241
  %v5243 = vsel %vm1576, %v5242, %v5238
  %v5244 = vlaneseq
  %v5245 = vshrl.u32 %v5244, 7
  %v5246 = vsub.s32 %v1552, %v5245
  %v5247 = vrot.slane %v4671, %v5246
  %v5248 = vlaneseq
  %v5249 = vshrl.u32 %v5248, 7
  %v5250 = vsub.s32 %v1557, %v5249
  %v5251 = vrot.slane %v4674, %v5250
  %v5252 = vsel %vm1562, %v5251, %v5247
  %v5253 = vlaneseq
  %v5254 = vshrl.u32 %v5253, 7
  %v5255 = vsub.s32 %v1564, %v5254
  %v5256 = vrot.slane %v4677, %v5255
  %v5257 = vsel %vm1569, %v5256, %v5252
  %v5258 = vlaneseq
  %v5259 = vshrl.u32 %v5258, 7
  %v5260 = vsub.s32 %v1571, %v5259
  %v5261 = vrot.slane %v4680, %v5260
  %v5262 = vsel %vm1576, %v5261, %v5257
  %v5263 = vlaneseq
  %v5264 = vshrl.u32 %v5263, 7
  %v5265 = vsub.s32 %v1552, %v5264
  %v5266 = vrot.slane %v4683, %v5265
  %v5267 = vlaneseq
  %v5268 = vshrl.u32 %v5267, 7
  %v5269 = vsub.s32 %v1557, %v5268
  %v5270 = vrot.slane %v4686, %v5269
  %v5271 = vsel %vm1562, %v5270, %v5266
  %v5272 = vlaneseq
  %v5273 = vshrl.u32 %v5272, 7
  %v5274 = vsub.s32 %v1564, %v5273
  %v5275 = vrot.slane %v4689, %v5274
  %v5276 = vsel %vm1569, %v5275, %v5271
  %v5277 = vlaneseq
  %v5278 = vshrl.u32 %v5277, 7
  %v5279 = vsub.s32 %v1571, %v5278
  %v5280 = vrot.slane %v4692, %v5279
  %v5281 = vsel %vm1576, %v5280, %v5276
  %v5282 = vlaneseq
  %v5283 = vshrl.u32 %v5282, 7
  %v5284 = vsub.s32 %v1552, %v5283
  %v5285 = vrot.slane %v4695, %v5284
  %v5286 = vlaneseq
  %v5287 = vshrl.u32 %v5286, 7
  %v5288 = vsub.s32 %v1557, %v5287
  %v5289 = vrot.slane %v4698, %v5288
  %v5290 = vsel %vm1562, %v5289, %v5285
  %v5291 = vlaneseq
  %v5292 = vshrl.u32 %v5291, 7
  %v5293 = vsub.s32 %v1564, %v5292
  %v5294 = vrot.slane %v4701, %v5293
  %v5295 = vsel %vm1569, %v5294, %v5290
  %v5296 = vlaneseq
  %v5297 = vshrl.u32 %v5296, 7
  %v5298 = vsub.s32 %v1571, %v5297
  %v5299 = vrot.slane %v4704, %v5298
  %v5300 = vsel %vm1576, %v5299, %v5295
  %v5301 = vlaneseq
  %v5302 = vshrl.u32 %v5301, 7
  %v5303 = vsub.s32 %v1552, %v5302
  %v5304 = vrot.slane %v4707, %v5303
  %v5305 = vlaneseq
  %v5306 = vshrl.u32 %v5305, 7
  %v5307 = vsub.s32 %v1557, %v5306
  %v5308 = vrot.slane %v4710, %v5307
  %v5309 = vsel %vm1562, %v5308, %v5304
  %v5310 = vlaneseq
  %v5311 = vshrl.u32 %v5310, 7
  %v5312 = vsub.s32 %v1564, %v5311
  %v5313 = vrot.slane %v4713, %v5312
  %v5314 = vsel %vm1569, %v5313, %v5309
  %v5315 = vlaneseq
  %v5316 = vshrl.u32 %v5315, 7
  %v5317 = vsub.s32 %v1571, %v5316
  %v5318 = vrot.slane %v4716, %v5317
  %v5319 = vsel %vm1576, %v5318, %v5314
  %v5320 = vlaneseq
  %v5321 = vshrl.u32 %v5320, 7
  %v5322 = vsub.s32 %v1552, %v5321
  %v5323 = vrot.slane %v4719, %v5322
  %v5324 = vlaneseq
  %v5325 = vshrl.u32 %v5324, 7
  %v5326 = vsub.s32 %v1557, %v5325
  %v5327 = vrot.slane %v4722, %v5326
  %v5328 = vsel %vm1562, %v5327, %v5323
  %v5329 = vlaneseq
  %v5330 = vshrl.u32 %v5329, 7
  %v5331 = vsub.s32 %v1564, %v5330
  %v5332 = vrot.slane %v4725, %v5331
  %v5333 = vsel %vm1569, %v5332, %v5328
  %v5334 = vlaneseq
  %v5335 = vshrl.u32 %v5334, 7
  %v5336 = vsub.s32 %v1571, %v5335
  %v5337 = vrot.slane %v4728, %v5336
  %v5338 = vsel %vm1576, %v5337, %v5333
  %v5339 = vlaneseq
  %v5340 = vshrl.u32 %v5339, 7
  %v5341 = vsub.s32 %v1552, %v5340
  %v5342 = vrot.slane %v4731, %v5341
  %v5343 = vlaneseq
  %v5344 = vshrl.u32 %v5343, 7
  %v5345 = vsub.s32 %v1557, %v5344
  %v5346 = vrot.slane %v4734, %v5345
  %v5347 = vsel %vm1562, %v5346, %v5342
  %v5348 = vlaneseq
  %v5349 = vshrl.u32 %v5348, 7
  %v5350 = vsub.s32 %v1564, %v5349
  %v5351 = vrot.slane %v4737, %v5350
  %v5352 = vsel %vm1569, %v5351, %v5347
  %v5353 = vlaneseq
  %v5354 = vshrl.u32 %v5353, 7
  %v5355 = vsub.s32 %v1571, %v5354
  %v5356 = vrot.slane %v4740, %v5355
  %v5357 = vsel %vm1576, %v5356, %v5352
  %v5358 = vlaneseq
  %v5359 = vshrl.u32 %v5358, 7
  %v5360 = vsub.s32 %v1552, %v5359
  %v5361 = vrot.slane %v4743, %v5360
  %v5362 = vlaneseq
  %v5363 = vshrl.u32 %v5362, 7
  %v5364 = vsub.s32 %v1557, %v5363
  %v5365 = vrot.slane %v4746, %v5364
  %v5366 = vsel %vm1562, %v5365, %v5361
  %v5367 = vlaneseq
  %v5368 = vshrl.u32 %v5367, 7
  %v5369 = vsub.s32 %v1564, %v5368
  %v5370 = vrot.slane %v4749, %v5369
  %v5371 = vsel %vm1569, %v5370, %v5366
  %v5372 = vlaneseq
  %v5373 = vshrl.u32 %v5372, 7
  %v5374 = vsub.s32 %v1571, %v5373
  %v5375 = vrot.slane %v4752, %v5374
  %v5376 = vsel %vm1576, %v5375, %v5371
  %v5377 = vlaneseq
  %v5378 = vshrl.u32 %v5377, 7
  %v5379 = vsub.s32 %v1552, %v5378
  %v5380 = vrot.slane %v4755, %v5379
  %v5381 = vlaneseq
  %v5382 = vshrl.u32 %v5381, 7
  %v5383 = vsub.s32 %v1557, %v5382
  %v5384 = vrot.slane %v4758, %v5383
  %v5385 = vsel %vm1562, %v5384, %v5380
  %v5386 = vlaneseq
  %v5387 = vshrl.u32 %v5386, 7
  %v5388 = vsub.s32 %v1564, %v5387
  %v5389 = vrot.slane %v4761, %v5388
  %v5390 = vsel %vm1569, %v5389, %v5385
  %v5391 = vlaneseq
  %v5392 = vshrl.u32 %v5391, 7
  %v5393 = vsub.s32 %v1571, %v5392
  %v5394 = vrot.slane %v4764, %v5393
  %v5395 = vsel %vm1576, %v5394, %v5390
  %v5396 = vlaneseq
  %v5397 = vshrl.u32 %v5396, 7
  %v5398 = vsub.s32 %v1552, %v5397
  %v5399 = vrot.slane %v4767, %v5398
  %v5400 = vlaneseq
  %v5401 = vshrl.u32 %v5400, 7
  %v5402 = vsub.s32 %v1557, %v5401
  %v5403 = vrot.slane %v4770, %v5402
  %v5404 = vsel %vm1562, %v5403, %v5399
  %v5405 = vlaneseq
  %v5406 = vshrl.u32 %v5405, 7
  %v5407 = vsub.s32 %v1564, %v5406
  %v5408 = vrot.slane %v4773, %v5407
  %v5409 = vsel %vm1569, %v5408, %v5404
  %v5410 = vlaneseq
  %v5411 = vshrl.u32 %v5410, 7
  %v5412 = vsub.s32 %v1571, %v5411
  %v5413 = vrot.slane %v4776, %v5412
  %v5414 = vsel %vm1576, %v5413, %v5409
  %v5415 = vlaneseq
  %v5416 = vshrl.u32 %v5415, 7
  %v5417 = vsub.s32 %v1552, %v5416
  %v5418 = vrot.slane %v4779, %v5417
  %v5419 = vlaneseq
  %v5420 = vshrl.u32 %v5419, 7
  %v5421 = vsub.s32 %v1557, %v5420
  %v5422 = vrot.slane %v4782, %v5421
  %v5423 = vsel %vm1562, %v5422, %v5418
  %v5424 = vlaneseq
  %v5425 = vshrl.u32 %v5424, 7
  %v5426 = vsub.s32 %v1564, %v5425
  %v5427 = vrot.slane %v4785, %v5426
  %v5428 = vsel %vm1569, %v5427, %v5423
  %v5429 = vlaneseq
  %v5430 = vshrl.u32 %v5429, 7
  %v5431 = vsub.s32 %v1571, %v5430
  %v5432 = vrot.slane %v4788, %v5431
  %v5433 = vsel %vm1576, %v5432, %v5428
  %v5434 = vlaneseq
  %v5435 = vshrl.u32 %v5434, 7
  %v5436 = vsub.s32 %v1552, %v5435
  %v5437 = vrot.slane %v4791, %v5436
  %v5438 = vlaneseq
  %v5439 = vshrl.u32 %v5438, 7
  %v5440 = vsub.s32 %v1557, %v5439
  %v5441 = vrot.slane %v4794, %v5440
  %v5442 = vsel %vm1562, %v5441, %v5437
  %v5443 = vlaneseq
  %v5444 = vshrl.u32 %v5443, 7
  %v5445 = vsub.s32 %v1564, %v5444
  %v5446 = vrot.slane %v4797, %v5445
  %v5447 = vsel %vm1569, %v5446, %v5442
  %v5448 = vlaneseq
  %v5449 = vshrl.u32 %v5448, 7
  %v5450 = vsub.s32 %v1571, %v5449
  %v5451 = vrot.slane %v4800, %v5450
  %v5452 = vsel %vm1576, %v5451, %v5447
  %v5453 = vlaneseq
  %v5454 = vshrl.u32 %v5453, 7
  %v5455 = vsub.s32 %v1552, %v5454
  %v5456 = vrot.slane %v4803, %v5455
  %v5457 = vlaneseq
  %v5458 = vshrl.u32 %v5457, 7
  %v5459 = vsub.s32 %v1557, %v5458
  %v5460 = vrot.slane %v4806, %v5459
  %v5461 = vsel %vm1562, %v5460, %v5456
  %v5462 = vlaneseq
  %v5463 = vshrl.u32 %v5462, 7
  %v5464 = vsub.s32 %v1564, %v5463
  %v5465 = vrot.slane %v4809, %v5464
  %v5466 = vsel %vm1569, %v5465, %v5461
  %v5467 = vlaneseq
  %v5468 = vshrl.u32 %v5467, 7
  %v5469 = vsub.s32 %v1571, %v5468
  %v5470 = vrot.slane %v4812, %v5469
  %v5471 = vsel %vm1576, %v5470, %v5466
  %v5472 = vlaneseq
  %v5473 = vshrl.u32 %v5472, 7
  %v5474 = vsub.s32 %v1552, %v5473
  %v5475 = vrot.slane %v4815, %v5474
  %v5476 = vlaneseq
  %v5477 = vshrl.u32 %v5476, 7
  %v5478 = vsub.s32 %v1557, %v5477
  %v5479 = vrot.slane %v4818, %v5478
  %v5480 = vsel %vm1562, %v5479, %v5475
  %v5481 = vlaneseq
  %v5482 = vshrl.u32 %v5481, 7
  %v5483 = vsub.s32 %v1564, %v5482
  %v5484 = vrot.slane %v4821, %v5483
  %v5485 = vsel %vm1569, %v5484, %v5480
  %v5486 = vlaneseq
  %v5487 = vshrl.u32 %v5486, 7
  %v5488 = vsub.s32 %v1571, %v5487
  %v5489 = vrot.slane %v4824, %v5488
  %v5490 = vsel %vm1576, %v5489, %v5485
  %v5491 = vlaneseq
  %v5492 = vshrl.u32 %v5491, 7
  %v5493 = vsub.s32 %v1552, %v5492
  %v5494 = vrot.slane %v4827, %v5493
  %v5495 = vlaneseq
  %v5496 = vshrl.u32 %v5495, 7
  %v5497 = vsub.s32 %v1557, %v5496
  %v5498 = vrot.slane %v4830, %v5497
  %v5499 = vsel %vm1562, %v5498, %v5494
  %v5500 = vlaneseq
  %v5501 = vshrl.u32 %v5500, 7
  %v5502 = vsub.s32 %v1564, %v5501
  %v5503 = vrot.slane %v4833, %v5502
  %v5504 = vsel %vm1569, %v5503, %v5499
  %v5505 = vlaneseq
  %v5506 = vshrl.u32 %v5505, 7
  %v5507 = vsub.s32 %v1571, %v5506
  %v5508 = vrot.slane %v4836, %v5507
  %v5509 = vsel %vm1576, %v5508, %v5504
  %v5510 = vlaneseq
  %v5511 = vshrl.u32 %v5510, 7
  %v5512 = vsub.s32 %v1552, %v5511
  %v5513 = vrot.slane %v4839, %v5512
  %v5514 = vlaneseq
  %v5515 = vshrl.u32 %v5514, 7
  %v5516 = vsub.s32 %v1557, %v5515
  %v5517 = vrot.slane %v4842, %v5516
  %v5518 = vsel %vm1562, %v5517, %v5513
  %v5519 = vlaneseq
  %v5520 = vshrl.u32 %v5519, 7
  %v5521 = vsub.s32 %v1564, %v5520
  %v5522 = vrot.slane %v4845, %v5521
  %v5523 = vsel %vm1569, %v5522, %v5518
  %v5524 = vlaneseq
  %v5525 = vshrl.u32 %v5524, 7
  %v5526 = vsub.s32 %v1571, %v5525
  %v5527 = vrot.slane %v4848, %v5526
  %v5528 = vsel %vm1576, %v5527, %v5523
  %v5529 = vlaneseq
  %v5530 = vshrl.u32 %v5529, 7
  %v5531 = vsub.s32 %v1552, %v5530
  %v5532 = vrot.slane %v4851, %v5531
  %v5533 = vlaneseq
  %v5534 = vshrl.u32 %v5533, 7
  %v5535 = vsub.s32 %v1557, %v5534
  %v5536 = vrot.slane %v4854, %v5535
  %v5537 = vsel %vm1562, %v5536, %v5532
  %v5538 = vlaneseq
  %v5539 = vshrl.u32 %v5538, 7
  %v5540 = vsub.s32 %v1564, %v5539
  %v5541 = vrot.slane %v4857, %v5540
  %v5542 = vsel %vm1569, %v5541, %v5537
  %v5543 = vlaneseq
  %v5544 = vshrl.u32 %v5543, 7
  %v5545 = vsub.s32 %v1571, %v5544
  %v5546 = vrot.slane %v4860, %v5545
  %v5547 = vsel %vm1576, %v5546, %v5542
  %v5548 = vlaneseq
  %v5549 = vshrl.u32 %v5548, 7
  %v5550 = vsub.s32 %v1552, %v5549
  %v5551 = vrot.slane %v4863, %v5550
  %v5552 = vlaneseq
  %v5553 = vshrl.u32 %v5552, 7
  %v5554 = vsub.s32 %v1557, %v5553
  %v5555 = vrot.slane %v4866, %v5554
  %v5556 = vsel %vm1562, %v5555, %v5551
  %v5557 = vlaneseq
  %v5558 = vshrl.u32 %v5557, 7
  %v5559 = vsub.s32 %v1564, %v5558
  %v5560 = vrot.slane %v4869, %v5559
  %v5561 = vsel %vm1569, %v5560, %v5556
  %v5562 = vlaneseq
  %v5563 = vshrl.u32 %v5562, 7
  %v5564 = vsub.s32 %v1571, %v5563
  %v5565 = vrot.slane %v4872, %v5564
  %v5566 = vsel %vm1576, %v5565, %v5561
  %v5567 = vlaneseq
  %v5568 = vshrl.u32 %v5567, 7
  %v5569 = vsub.s32 %v1552, %v5568
  %v5570 = vrot.slane %v4875, %v5569
  %v5571 = vlaneseq
  %v5572 = vshrl.u32 %v5571, 7
  %v5573 = vsub.s32 %v1557, %v5572
  %v5574 = vrot.slane %v4878, %v5573
  %v5575 = vsel %vm1562, %v5574, %v5570
  %v5576 = vlaneseq
  %v5577 = vshrl.u32 %v5576, 7
  %v5578 = vsub.s32 %v1564, %v5577
  %v5579 = vrot.slane %v4881, %v5578
  %v5580 = vsel %vm1569, %v5579, %v5575
  %v5581 = vlaneseq
  %v5582 = vshrl.u32 %v5581, 7
  %v5583 = vsub.s32 %v1571, %v5582
  %v5584 = vrot.slane %v4884, %v5583
  %v5585 = vsel %vm1576, %v5584, %v5580
  %v5586 = vlaneseq
  %v5587 = vshrl.u32 %v5586, 7
  %v5588 = vsub.s32 %v1552, %v5587
  %v5589 = vrot.slane %v4887, %v5588
  %v5590 = vlaneseq
  %v5591 = vshrl.u32 %v5590, 7
  %v5592 = vsub.s32 %v1557, %v5591
  %v5593 = vrot.slane %v4890, %v5592
  %v5594 = vsel %vm1562, %v5593, %v5589
  %v5595 = vlaneseq
  %v5596 = vshrl.u32 %v5595, 7
  %v5597 = vsub.s32 %v1564, %v5596
  %v5598 = vrot.slane %v4893, %v5597
  %v5599 = vsel %vm1569, %v5598, %v5594
  %v5600 = vlaneseq
  %v5601 = vshrl.u32 %v5600, 7
  %v5602 = vsub.s32 %v1571, %v5601
  %v5603 = vrot.slane %v4896, %v5602
  %v5604 = vsel %vm1576, %v5603, %v5599
  %v5605 = vlaneseq
  %v5606 = vshrl.u32 %v5605, 7
  %v5607 = vsub.s32 %v1552, %v5606
  %v5608 = vrot.slane %v4899, %v5607
  %v5609 = vlaneseq
  %v5610 = vshrl.u32 %v5609, 7
  %v5611 = vsub.s32 %v1557, %v5610
  %v5612 = vrot.slane %v4902, %v5611
  %v5613 = vsel %vm1562, %v5612, %v5608
  %v5614 = vlaneseq
  %v5615 = vshrl.u32 %v5614, 7
  %v5616 = vsub.s32 %v1564, %v5615
  %v5617 = vrot.slane %v4905, %v5616
  %v5618 = vsel %vm1569, %v5617, %v5613
  %v5619 = vlaneseq
  %v5620 = vshrl.u32 %v5619, 7
  %v5621 = vsub.s32 %v1571, %v5620
  %v5622 = vrot.slane %v4908, %v5621
  %v5623 = vsel %vm1576, %v5622, %v5618
  %v5624 = vlaneseq
  %v5625 = vshrl.u32 %v5624, 7
  %v5626 = vsub.s32 %v1552, %v5625
  %v5627 = vrot.slane %v4911, %v5626
  %v5628 = vlaneseq
  %v5629 = vshrl.u32 %v5628, 7
  %v5630 = vsub.s32 %v1557, %v5629
  %v5631 = vrot.slane %v4914, %v5630
  %v5632 = vsel %vm1562, %v5631, %v5627
  %v5633 = vlaneseq
  %v5634 = vshrl.u32 %v5633, 7
  %v5635 = vsub.s32 %v1564, %v5634
  %v5636 = vrot.slane %v4917, %v5635
  %v5637 = vsel %vm1569, %v5636, %v5632
  %v5638 = vlaneseq
  %v5639 = vshrl.u32 %v5638, 7
  %v5640 = vsub.s32 %v1571, %v5639
  %v5641 = vrot.slane %v4920, %v5640
  %v5642 = vsel %vm1576, %v5641, %v5637
  %v5643 = vlaneseq
  %v5644 = vshrl.u32 %v5643, 7
  %v5645 = vsub.s32 %v1552, %v5644
  %v5646 = vrot.slane %v4923, %v5645
  %v5647 = vlaneseq
  %v5648 = vshrl.u32 %v5647, 7
  %v5649 = vsub.s32 %v1557, %v5648
  %v5650 = vrot.slane %v4926, %v5649
  %v5651 = vsel %vm1562, %v5650, %v5646
  %v5652 = vlaneseq
  %v5653 = vshrl.u32 %v5652, 7
  %v5654 = vsub.s32 %v1564, %v5653
  %v5655 = vrot.slane %v4929, %v5654
  %v5656 = vsel %vm1569, %v5655, %v5651
  %v5657 = vlaneseq
  %v5658 = vshrl.u32 %v5657, 7
  %v5659 = vsub.s32 %v1571, %v5658
  %v5660 = vrot.slane %v4932, %v5659
  %v5661 = vsel %vm1576, %v5660, %v5656
  %v5662 = vlaneseq
  %v5663 = vshrl.u32 %v5662, 7
  %v5664 = vsub.s32 %v1552, %v5663
  %v5665 = vrot.slane %v4935, %v5664
  %v5666 = vlaneseq
  %v5667 = vshrl.u32 %v5666, 7
  %v5668 = vsub.s32 %v1557, %v5667
  %v5669 = vrot.slane %v4938, %v5668
  %v5670 = vsel %vm1562, %v5669, %v5665
  %v5671 = vlaneseq
  %v5672 = vshrl.u32 %v5671, 7
  %v5673 = vsub.s32 %v1564, %v5672
  %v5674 = vrot.slane %v4941, %v5673
  %v5675 = vsel %vm1569, %v5674, %v5670
  %v5676 = vlaneseq
  %v5677 = vshrl.u32 %v5676, 7
  %v5678 = vsub.s32 %v1571, %v5677
  %v5679 = vrot.slane %v4944, %v5678
  %v5680 = vsel %vm1576, %v5679, %v5675
  %v5681 = vsel %vm2167, %v5110, %v5091
  %v5682 = vsel %vm2169, %v5129, %v5681
  %v5683 = vsel %vm2171, %v5148, %v5682
  %v5684 = vsel %vm2173, %v5167, %v5683
  %v5685 = vsel %vm2175, %v5186, %v5684
  %v5686 = vsel %vm2177, %v5205, %v5685
  %v5687 = vsel %vm2179, %v5224, %v5686
  %v5688 = vsel %vm2167, %v5262, %v5243
  %v5689 = vsel %vm2169, %v5281, %v5688
  %v5690 = vsel %vm2171, %v5300, %v5689
  %v5691 = vsel %vm2173, %v5319, %v5690
  %v5692 = vsel %vm2175, %v5338, %v5691
  %v5693 = vsel %vm2177, %v5357, %v5692
  %v5694 = vsel %vm2179, %v5376, %v5693
  %v5695 = vsel %vm2167, %v5414, %v5395
  %v5696 = vsel %vm2169, %v5433, %v5695
  %v5697 = vsel %vm2171, %v5452, %v5696
  %v5698 = vsel %vm2173, %v5471, %v5697
  %v5699 = vsel %vm2175, %v5490, %v5698
  %v5700 = vsel %vm2177, %v5509, %v5699
  %v5701 = vsel %vm2179, %v5528, %v5700
  %v5702 = vsel %vm2167, %v5566, %v5547
  %v5703 = vsel %vm2169, %v5585, %v5702
  %v5704 = vsel %vm2171, %v5604, %v5703
  %v5705 = vsel %vm2173, %v5623, %v5704
  %v5706 = vsel %vm2175, %v5642, %v5705
  %v5707 = vsel %vm2177, %v5661, %v5706
  %v5708 = vsel %vm2179, %v5680, %v5707
  %v5713 = vsel %vm29, %v5687, -1e+30
  %v5714 = vsel %vm30, %v5694, -1e+30
  %v5715 = vsel %vm31, %v5701, -1e+30
  %v5716 = vsel %vm32, %v5708, -1e+30
  %v5717 = vsel %vm2210, %v5713, -inf
  %5718 = vmax.xlane.f32.xlu0 %v5717
  %v5719 = vpop.xlane.xlu0 %5718
  %v5720 = vsel %vm2210, %v5714, -inf
  %5721 = vmax.xlane.f32.xlu0 %v5720
  %v5722 = vpop.xlane.xlu0 %5721
  %v5723 = vsel %vm2210, %v5715, -inf
  %5724 = vmax.xlane.f32.xlu0 %v5723
  %v5725 = vpop.xlane.xlu0 %5724
  %v5726 = vsel %vm2210, %v5716, -inf
  %5727 = vmax.xlane.f32.xlu0 %v5726
  %v5728 = vpop.xlane.xlu0 %5727
  %v5729 = vsub.f32 %v5713, %v5719
  %v5730 = vsub.f32 %v5714, %v5722
  %v5731 = vsub.f32 %v5715, %v5725
  %v5732 = vsub.f32 %v5716, %v5728
  %v5733 = vmul.f32 %v5729, 1.442695
  %v5734 = vpow.pop %v5733
  %v5735 = vmul.f32 %v5730, 1.442695
  %v5736 = vpow.pop %v5735
  %v5737 = vmul.f32 %v5731, 1.442695
  %v5738 = vpow.pop %v5737
  %v5739 = vmul.f32 %v5732, 1.442695
  %v5740 = vpow.pop %v5739
  %v5741 = vsel %vm2210, %v5734, 0.0
  %5742 = vadd.xlane.f32.xlu0 %v5741
  %v5743 = vpop.xlane.xlu0 %5742
  %v5744 = vsel %vm2210, %v5736, 0.0
  %5745 = vadd.xlane.f32.xlu0 %v5744
  %v5746 = vpop.xlane.xlu0 %5745
  %v5747 = vsel %vm2210, %v5738, 0.0
  %5748 = vadd.xlane.f32.xlu0 %v5747
  %v5749 = vpop.xlane.xlu0 %5748
  %v5750 = vsel %vm2210, %v5740, 0.0
  %5751 = vadd.xlane.f32.xlu0 %v5750
  %v5752 = vpop.xlane.xlu0 %5751
  %v5753 = vrcp.pop %v5743
  %v5754 = vrcp.pop %v5746
  %v5755 = vrcp.pop %v5749
  %v5756 = vrcp.pop %v5752
  %v5757 = vmul.f32 %v5734, %v5753
  %v5758 = vmul.f32 %v5736, %v5754
  %v5759 = vmul.f32 %v5738, %v5755
  %v5760 = vmul.f32 %v5740, %v5756
  %5761 = vrot.lane.b32.xlu0 %v17, 96
  %v5762 = vpop.permute.xlu0 %5761
  %5763 = vrot.lane.b32.xlu0 %v18, 96
  %v5764 = vpop.permute.xlu0 %5763
  %5765 = vrot.lane.b32.xlu0 %v19, 96
  %v5766 = vpop.permute.xlu0 %5765
  %5767 = vrot.lane.b32.xlu0 %v20, 96
  %v5768 = vpop.permute.xlu0 %5767
  %v5774 = vsel %vm2210, %v5757, 0
  %v5777 = vsel %vm2210, %v5758, 0
  %v5780 = vsel %vm2210, %v5759, 0
  %v5783 = vsel %vm2210, %v5760, 0
  %5785 = vmatprep.subr.mxu0 0.0
  %5786 = vmatpush1.msra.mxu0 0.0
  %5787 = vmatprep.subr.mxu0 0.0
  %5788 = vmatpush1.msra.mxu0 0.0
  %5789 = vmatprep.subr.mxu0 0.0
  %5790 = vmatpush1.msra.mxu0 0.0
  %5791 = vmatprep.subr.mxu0 0.0
  %5792 = vmatpush1.msra.mxu0 0.0
  %5793 = vmatprep.subr.mxu0 0.0
  %5794 = vmatpush1.msra.mxu0 0.0
  %5795 = vmatprep.subr.mxu0 0.0
  %5796 = vmatpush1.msra.mxu0 0.0
  %5797 = vmatprep.subr.mxu0 0.0
  %5798 = vmatpush1.msra.mxu0 0.0
  %5799 = vmatprep.subr.mxu0 0.0
  %5800 = vmatpush1.msra.mxu0 0.0
  %5801 = vmatprep.subr.mxu0 0.0
  %5802 = vmatpush1.msra.mxu0 0.0
  %5803 = vmatprep.subr.mxu0 0.0
  %5804 = vmatpush1.msra.mxu0 0.0
  %5805 = vmatprep.subr.mxu0 0.0
  %5806 = vmatpush1.msra.mxu0 0.0
  %5807 = vmatprep.subr.mxu0 0.0
  %5808 = vmatpush1.msra.mxu0 0.0
  %5809 = vmatprep.subr.mxu0 0.0
  %5810 = vmatpush1.msra.mxu0 %v5768
  %5811 = vmatprep.subr.mxu0 0.0
  %5812 = vmatpush1.msra.mxu0 %v5766
  %5813 = vmatprep.subr.mxu0 0.0
  %5814 = vmatpush1.msra.mxu0 %v5764
  %5815 = vmatprep.subr.mxu0 0.0
  %5816 = vmatpush1.msra.mxu0 %v5762
  %5817 = vmatprep.subr.mxu0 0.0
  %5818 = vmatpush2.msra.mxu0 0.0
  %5819 = vmatprep.subr.mxu0 0.0
  %5820 = vmatpush2.msra.mxu0 0.0
  %5821 = vmatprep.subr.mxu0 0.0
  %5822 = vmatpush2.msra.mxu0 0.0
  %5823 = vmatprep.subr.mxu0 0.0
  %5824 = vmatpush2.msra.mxu0 0.0
  %5825 = vmatprep.subr.mxu0 0.0
  %5826 = vmatpush2.msra.mxu0 0.0
  %5827 = vmatprep.subr.mxu0 0.0
  %5828 = vmatpush2.msra.mxu0 0.0
  %5829 = vmatprep.subr.mxu0 0.0
  %5830 = vmatpush2.msra.mxu0 0.0
  %5831 = vmatprep.subr.mxu0 0.0
  %5832 = vmatpush2.msra.mxu0 0.0
  %5833 = vmatprep.subr.mxu0 0.0
  %5834 = vmatpush2.msra.mxu0 0.0
  %5835 = vmatprep.subr.mxu0 0.0
  %5836 = vmatpush2.msra.mxu0 0.0
  %5837 = vmatprep.subr.mxu0 0.0
  %5838 = vmatpush2.msra.mxu0 0.0
  %5839 = vmatprep.subr.mxu0 0.0
  %5840 = vmatpush2.msra.mxu0 0.0
  %5841 = vmatprep.subr.mxu0 0.0
  %5842 = vmatpush2.msra.mxu0 0.0
  %5843 = vmatprep.subr.mxu0 0.0
  %5844 = vmatpush2.msra.mxu0 0.0
  %5845 = vmatprep.subr.mxu0 0.0
  %5846 = vmatpush2.msra.mxu0 0.0
  %5847 = vmatprep.subr.mxu0 0.0
  %5848 = vmatpush2.msra.mxu0 0.0
  %5849 = vmatprep.mubr.f32.mxu0 0.0
  %5850 = vmatmul.mubr.f32.gmra.mxu0 %v5774
  %v5851 = vpop.f32.mrf.mxu0
  %v5852 = vadd.f32 0.0, %v5851
  %v5853 = vpop.f32.mrf.mxu0
  %5854 = vmatprep.mubr.f32.mxu0 0.0
  %5855 = vmatmul.mubr.f32.gmra.mxu0 %v5777
  %v5856 = vpop.f32.mrf.mxu0
  %v5857 = vadd.f32 0.0, %v5856
  %v5858 = vpop.f32.mrf.mxu0
  %5859 = vmatprep.mubr.f32.mxu0 0.0
  %5860 = vmatmul.mubr.f32.gmra.mxu0 %v5780
  %v5861 = vpop.f32.mrf.mxu0
  %v5862 = vadd.f32 0.0, %v5861
  %v5863 = vpop.f32.mrf.mxu0
  %5864 = vmatprep.mubr.f32.mxu0 0.0
  %5865 = vmatmul.mubr.f32.gmra.mxu0 %v5783
  %v5866 = vpop.f32.mrf.mxu0
  %v5867 = vadd.f32 0.0, %v5866
  %v5868 = vpop.f32.mrf.mxu0
  %5869 = vdwg.mxu0
  %5870 = vrot.lane.b32.xlu0 %v910, 80
  %v5871 = vpop.permute.xlu0 %5870
  %5872 = vrot.lane.b32.xlu0 %v911, 80
  %v5873 = vpop.permute.xlu0 %5872
  %5874 = vrot.lane.b32.xlu0 %v912, 80
  %v5875 = vpop.permute.xlu0 %5874
  %5876 = vrot.lane.b32.xlu0 %v913, 80
  %v5877 = vpop.permute.xlu0 %5876
  %5878 = vrot.lane.b32.xlu0 %v914, 80
  %v5879 = vpop.permute.xlu0 %5878
  %5880 = vrot.lane.b32.xlu0 %v915, 80
  %v5881 = vpop.permute.xlu0 %5880
  %5882 = vrot.lane.b32.xlu0 %v916, 80
  %v5883 = vpop.permute.xlu0 %5882
  %5884 = vrot.lane.b32.xlu0 %v917, 80
  %v5885 = vpop.permute.xlu0 %5884
  %5886 = vrot.lane.b32.xlu0 %v918, 80
  %v5887 = vpop.permute.xlu0 %5886
  %5888 = vrot.lane.b32.xlu0 %v919, 80
  %v5889 = vpop.permute.xlu0 %5888
  %5890 = vrot.lane.b32.xlu0 %v920, 80
  %v5891 = vpop.permute.xlu0 %5890
  %5892 = vrot.lane.b32.xlu0 %v921, 80
  %v5893 = vpop.permute.xlu0 %5892
  %5894 = vrot.lane.b32.xlu0 %v922, 80
  %v5895 = vpop.permute.xlu0 %5894
  %5896 = vrot.lane.b32.xlu0 %v923, 80
  %v5897 = vpop.permute.xlu0 %5896
  %5898 = vrot.lane.b32.xlu0 %v924, 80
  %v5899 = vpop.permute.xlu0 %5898
  %5900 = vrot.lane.b32.xlu0 %v925, 80
  %v5901 = vpop.permute.xlu0 %5900
  %5902 = vrot.lane.b32.xlu0 %v926, 80
  %v5903 = vpop.permute.xlu0 %5902
  %5904 = vrot.lane.b32.xlu0 %v927, 80
  %v5905 = vpop.permute.xlu0 %5904
  %5906 = vrot.lane.b32.xlu0 %v928, 80
  %v5907 = vpop.permute.xlu0 %5906
  %5908 = vrot.lane.b32.xlu0 %v929, 80
  %v5909 = vpop.permute.xlu0 %5908
  %5910 = vrot.lane.b32.xlu0 %v930, 80
  %v5911 = vpop.permute.xlu0 %5910
  %5912 = vrot.lane.b32.xlu0 %v931, 80
  %v5913 = vpop.permute.xlu0 %5912
  %5914 = vrot.lane.b32.xlu0 %v932, 80
  %v5915 = vpop.permute.xlu0 %5914
  %5916 = vrot.lane.b32.xlu0 %v933, 80
  %v5917 = vpop.permute.xlu0 %5916
  %5918 = vrot.lane.b32.xlu0 %v934, 80
  %v5919 = vpop.permute.xlu0 %5918
  %5920 = vrot.lane.b32.xlu0 %v935, 80
  %v5921 = vpop.permute.xlu0 %5920
  %5922 = vrot.lane.b32.xlu0 %v936, 80
  %v5923 = vpop.permute.xlu0 %5922
  %5924 = vrot.lane.b32.xlu0 %v937, 80
  %v5925 = vpop.permute.xlu0 %5924
  %5926 = vrot.lane.b32.xlu0 %v938, 80
  %v5927 = vpop.permute.xlu0 %5926
  %5928 = vrot.lane.b32.xlu0 %v939, 80
  %v5929 = vpop.permute.xlu0 %5928
  %5930 = vrot.lane.b32.xlu0 %v940, 80
  %v5931 = vpop.permute.xlu0 %5930
  %5932 = vrot.lane.b32.xlu0 %v941, 80
  %v5933 = vpop.permute.xlu0 %5932
  %5934 = vrot.lane.b32.xlu0 %v942, 80
  %v5935 = vpop.permute.xlu0 %5934
  %5936 = vrot.lane.b32.xlu0 %v943, 80
  %v5937 = vpop.permute.xlu0 %5936
  %5938 = vrot.lane.b32.xlu0 %v944, 80
  %v5939 = vpop.permute.xlu0 %5938
  %5940 = vrot.lane.b32.xlu0 %v945, 80
  %v5941 = vpop.permute.xlu0 %5940
  %5942 = vrot.lane.b32.xlu0 %v946, 80
  %v5943 = vpop.permute.xlu0 %5942
  %5944 = vrot.lane.b32.xlu0 %v947, 80
  %v5945 = vpop.permute.xlu0 %5944
  %5946 = vrot.lane.b32.xlu0 %v948, 80
  %v5947 = vpop.permute.xlu0 %5946
  %5948 = vrot.lane.b32.xlu0 %v949, 80
  %v5949 = vpop.permute.xlu0 %5948
  %5950 = vrot.lane.b32.xlu0 %v950, 80
  %v5951 = vpop.permute.xlu0 %5950
  %5952 = vrot.lane.b32.xlu0 %v951, 80
  %v5953 = vpop.permute.xlu0 %5952
  %5954 = vrot.lane.b32.xlu0 %v952, 80
  %v5955 = vpop.permute.xlu0 %5954
  %5956 = vrot.lane.b32.xlu0 %v953, 80
  %v5957 = vpop.permute.xlu0 %5956
  %5958 = vrot.lane.b32.xlu0 %v954, 80
  %v5959 = vpop.permute.xlu0 %5958
  %5960 = vrot.lane.b32.xlu0 %v955, 80
  %v5961 = vpop.permute.xlu0 %5960
  %5962 = vrot.lane.b32.xlu0 %v956, 80
  %v5963 = vpop.permute.xlu0 %5962
  %5964 = vrot.lane.b32.xlu0 %v957, 80
  %v5965 = vpop.permute.xlu0 %5964
  %5966 = vrot.lane.b32.xlu0 %v958, 80
  %v5967 = vpop.permute.xlu0 %5966
  %5968 = vrot.lane.b32.xlu0 %v959, 80
  %v5969 = vpop.permute.xlu0 %5968
  %5970 = vrot.lane.b32.xlu0 %v960, 80
  %v5971 = vpop.permute.xlu0 %5970
  %5972 = vrot.lane.b32.xlu0 %v961, 80
  %v5973 = vpop.permute.xlu0 %5972
  %5974 = vrot.lane.b32.xlu0 %v962, 80
  %v5975 = vpop.permute.xlu0 %5974
  %5976 = vrot.lane.b32.xlu0 %v963, 80
  %v5977 = vpop.permute.xlu0 %5976
  %5978 = vrot.lane.b32.xlu0 %v964, 80
  %v5979 = vpop.permute.xlu0 %5978
  %5980 = vrot.lane.b32.xlu0 %v965, 80
  %v5981 = vpop.permute.xlu0 %5980
  %5982 = vrot.lane.b32.xlu0 %v966, 80
  %v5983 = vpop.permute.xlu0 %5982
  %5984 = vrot.lane.b32.xlu0 %v967, 80
  %v5985 = vpop.permute.xlu0 %5984
  %5986 = vrot.lane.b32.xlu0 %v968, 80
  %v5987 = vpop.permute.xlu0 %5986
  %5988 = vrot.lane.b32.xlu0 %v969, 80
  %v5989 = vpop.permute.xlu0 %5988
  %5990 = vrot.lane.b32.xlu0 %v970, 80
  %v5991 = vpop.permute.xlu0 %5990
  %5992 = vrot.lane.b32.xlu0 %v971, 80
  %v5993 = vpop.permute.xlu0 %5992
  %5994 = vrot.lane.b32.xlu0 %v972, 80
  %v5995 = vpop.permute.xlu0 %5994
  %5996 = vrot.lane.b32.xlu0 %v973, 80
  %v5997 = vpop.permute.xlu0 %5996
  %5998 = vrot.lane.b32.xlu0 %v974, 80
  %v5999 = vpop.permute.xlu0 %5998
  %6000 = vrot.lane.b32.xlu0 %v975, 80
  %v6001 = vpop.permute.xlu0 %6000
  %6002 = vrot.lane.b32.xlu0 %v976, 80
  %v6003 = vpop.permute.xlu0 %6002
  %6004 = vrot.lane.b32.xlu0 %v977, 80
  %v6005 = vpop.permute.xlu0 %6004
  %6006 = vrot.lane.b32.xlu0 %v978, 80
  %v6007 = vpop.permute.xlu0 %6006
  %6008 = vrot.lane.b32.xlu0 %v979, 80
  %v6009 = vpop.permute.xlu0 %6008
  %6010 = vrot.lane.b32.xlu0 %v980, 80
  %v6011 = vpop.permute.xlu0 %6010
  %6012 = vrot.lane.b32.xlu0 %v981, 80
  %v6013 = vpop.permute.xlu0 %6012
  %6014 = vrot.lane.b32.xlu0 %v982, 80
  %v6015 = vpop.permute.xlu0 %6014
  %6016 = vrot.lane.b32.xlu0 %v983, 80
  %v6017 = vpop.permute.xlu0 %6016
  %6018 = vrot.lane.b32.xlu0 %v984, 80
  %v6019 = vpop.permute.xlu0 %6018
  %6020 = vrot.lane.b32.xlu0 %v985, 80
  %v6021 = vpop.permute.xlu0 %6020
  %6022 = vrot.lane.b32.xlu0 %v986, 80
  %v6023 = vpop.permute.xlu0 %6022
  %6024 = vrot.lane.b32.xlu0 %v987, 80
  %v6025 = vpop.permute.xlu0 %6024
  %6026 = vrot.lane.b32.xlu0 %v988, 80
  %v6027 = vpop.permute.xlu0 %6026
  %6028 = vrot.lane.b32.xlu0 %v989, 80
  %v6029 = vpop.permute.xlu0 %6028
  %6030 = vrot.lane.b32.xlu0 %v990, 80
  %v6031 = vpop.permute.xlu0 %6030
  %6032 = vrot.lane.b32.xlu0 %v991, 80
  %v6033 = vpop.permute.xlu0 %6032
  %6034 = vrot.lane.b32.xlu0 %v992, 80
  %v6035 = vpop.permute.xlu0 %6034
  %6036 = vrot.lane.b32.xlu0 %v993, 80
  %v6037 = vpop.permute.xlu0 %6036
  %6038 = vrot.lane.b32.xlu0 %v994, 80
  %v6039 = vpop.permute.xlu0 %6038
  %6040 = vrot.lane.b32.xlu0 %v995, 80
  %v6041 = vpop.permute.xlu0 %6040
  %6042 = vrot.lane.b32.xlu0 %v996, 80
  %v6043 = vpop.permute.xlu0 %6042
  %6044 = vrot.lane.b32.xlu0 %v997, 80
  %v6045 = vpop.permute.xlu0 %6044
  %6046 = vrot.lane.b32.xlu0 %v998, 80
  %v6047 = vpop.permute.xlu0 %6046
  %6048 = vrot.lane.b32.xlu0 %v999, 80
  %v6049 = vpop.permute.xlu0 %6048
  %6050 = vrot.lane.b32.xlu0 %v1000, 80
  %v6051 = vpop.permute.xlu0 %6050
  %6052 = vrot.lane.b32.xlu0 %v1001, 80
  %v6053 = vpop.permute.xlu0 %6052
  %6054 = vrot.lane.b32.xlu0 %v1002, 80
  %v6055 = vpop.permute.xlu0 %6054
  %6056 = vrot.lane.b32.xlu0 %v1003, 80
  %v6057 = vpop.permute.xlu0 %6056
  %6058 = vrot.lane.b32.xlu0 %v1004, 80
  %v6059 = vpop.permute.xlu0 %6058
  %6060 = vrot.lane.b32.xlu0 %v1005, 80
  %v6061 = vpop.permute.xlu0 %6060
  %6062 = vrot.lane.b32.xlu0 %v1006, 80
  %v6063 = vpop.permute.xlu0 %6062
  %6064 = vrot.lane.b32.xlu0 %v1007, 80
  %v6065 = vpop.permute.xlu0 %6064
  %6066 = vrot.lane.b32.xlu0 %v1008, 80
  %v6067 = vpop.permute.xlu0 %6066
  %6068 = vrot.lane.b32.xlu0 %v1009, 80
  %v6069 = vpop.permute.xlu0 %6068
  %6070 = vrot.lane.b32.xlu0 %v1010, 80
  %v6071 = vpop.permute.xlu0 %6070
  %6072 = vrot.lane.b32.xlu0 %v1011, 80
  %v6073 = vpop.permute.xlu0 %6072
  %6074 = vrot.lane.b32.xlu0 %v1012, 80
  %v6075 = vpop.permute.xlu0 %6074
  %6076 = vrot.lane.b32.xlu0 %v1013, 80
  %v6077 = vpop.permute.xlu0 %6076
  %6078 = vrot.lane.b32.xlu0 %v1014, 80
  %v6079 = vpop.permute.xlu0 %6078
  %6080 = vrot.lane.b32.xlu0 %v1015, 80
  %v6081 = vpop.permute.xlu0 %6080
  %6082 = vrot.lane.b32.xlu0 %v1016, 80
  %v6083 = vpop.permute.xlu0 %6082
  %6084 = vrot.lane.b32.xlu0 %v1017, 80
  %v6085 = vpop.permute.xlu0 %6084
  %6086 = vrot.lane.b32.xlu0 %v1018, 80
  %v6087 = vpop.permute.xlu0 %6086
  %6088 = vrot.lane.b32.xlu0 %v1019, 80
  %v6089 = vpop.permute.xlu0 %6088
  %6090 = vrot.lane.b32.xlu0 %v1020, 80
  %v6091 = vpop.permute.xlu0 %6090
  %6092 = vrot.lane.b32.xlu0 %v1021, 80
  %v6093 = vpop.permute.xlu0 %6092
  %6094 = vrot.lane.b32.xlu0 %v1022, 80
  %v6095 = vpop.permute.xlu0 %6094
  %6096 = vrot.lane.b32.xlu0 %v1023, 80
  %v6097 = vpop.permute.xlu0 %6096
  %6098 = vrot.lane.b32.xlu0 %v1024, 80
  %v6099 = vpop.permute.xlu0 %6098
  %6100 = vrot.lane.b32.xlu0 %v1025, 80
  %v6101 = vpop.permute.xlu0 %6100
  %6102 = vrot.lane.b32.xlu0 %v1026, 80
  %v6103 = vpop.permute.xlu0 %6102
  %6104 = vrot.lane.b32.xlu0 %v1027, 80
  %v6105 = vpop.permute.xlu0 %6104
  %6106 = vrot.lane.b32.xlu0 %v1028, 80
  %v6107 = vpop.permute.xlu0 %6106
  %6108 = vrot.lane.b32.xlu0 %v1029, 80
  %v6109 = vpop.permute.xlu0 %6108
  %6110 = vrot.lane.b32.xlu0 %v1030, 80
  %v6111 = vpop.permute.xlu0 %6110
  %6112 = vrot.lane.b32.xlu0 %v1031, 80
  %v6113 = vpop.permute.xlu0 %6112
  %6114 = vrot.lane.b32.xlu0 %v1032, 80
  %v6115 = vpop.permute.xlu0 %6114
  %6116 = vrot.lane.b32.xlu0 %v1033, 80
  %v6117 = vpop.permute.xlu0 %6116
  %6118 = vrot.lane.b32.xlu0 %v1034, 80
  %v6119 = vpop.permute.xlu0 %6118
  %6120 = vrot.lane.b32.xlu0 %v1035, 80
  %v6121 = vpop.permute.xlu0 %6120
  %6122 = vrot.lane.b32.xlu0 %v1036, 80
  %v6123 = vpop.permute.xlu0 %6122
  %6124 = vrot.lane.b32.xlu0 %v1037, 80
  %v6125 = vpop.permute.xlu0 %6124
  %v6254 = vsel %vm1038, %v5871, 0.0
  %6255 = vadd.xlane.f32.xlu0 %v6254
  %v6256 = vpop.xlane.xlu0 %6255
  %v6257 = vsel %vm1038, %v5873, 0.0
  %6258 = vadd.xlane.f32.xlu0 %v6257
  %v6259 = vpop.xlane.xlu0 %6258
  %v6260 = vsel %vm1038, %v5875, 0.0
  %6261 = vadd.xlane.f32.xlu0 %v6260
  %v6262 = vpop.xlane.xlu0 %6261
  %v6263 = vsel %vm1038, %v5877, 0.0
  %6264 = vadd.xlane.f32.xlu0 %v6263
  %v6265 = vpop.xlane.xlu0 %6264
  %v6266 = vsel %vm1038, %v5879, 0.0
  %6267 = vadd.xlane.f32.xlu0 %v6266
  %v6268 = vpop.xlane.xlu0 %6267
  %v6269 = vsel %vm1038, %v5881, 0.0
  %6270 = vadd.xlane.f32.xlu0 %v6269
  %v6271 = vpop.xlane.xlu0 %6270
  %v6272 = vsel %vm1038, %v5883, 0.0
  %6273 = vadd.xlane.f32.xlu0 %v6272
  %v6274 = vpop.xlane.xlu0 %6273
  %v6275 = vsel %vm1038, %v5885, 0.0
  %6276 = vadd.xlane.f32.xlu0 %v6275
  %v6277 = vpop.xlane.xlu0 %6276
  %v6278 = vsel %vm1038, %v5887, 0.0
  %6279 = vadd.xlane.f32.xlu0 %v6278
  %v6280 = vpop.xlane.xlu0 %6279
  %v6281 = vsel %vm1038, %v5889, 0.0
  %6282 = vadd.xlane.f32.xlu0 %v6281
  %v6283 = vpop.xlane.xlu0 %6282
  %v6284 = vsel %vm1038, %v5891, 0.0
  %6285 = vadd.xlane.f32.xlu0 %v6284
  %v6286 = vpop.xlane.xlu0 %6285
  %v6287 = vsel %vm1038, %v5893, 0.0
  %6288 = vadd.xlane.f32.xlu0 %v6287
  %v6289 = vpop.xlane.xlu0 %6288
  %v6290 = vsel %vm1038, %v5895, 0.0
  %6291 = vadd.xlane.f32.xlu0 %v6290
  %v6292 = vpop.xlane.xlu0 %6291
  %v6293 = vsel %vm1038, %v5897, 0.0
  %6294 = vadd.xlane.f32.xlu0 %v6293
  %v6295 = vpop.xlane.xlu0 %6294
  %v6296 = vsel %vm1038, %v5899, 0.0
  %6297 = vadd.xlane.f32.xlu0 %v6296
  %v6298 = vpop.xlane.xlu0 %6297
  %v6299 = vsel %vm1038, %v5901, 0.0
  %6300 = vadd.xlane.f32.xlu0 %v6299
  %v6301 = vpop.xlane.xlu0 %6300
  %v6302 = vsel %vm1038, %v5903, 0.0
  %6303 = vadd.xlane.f32.xlu0 %v6302
  %v6304 = vpop.xlane.xlu0 %6303
  %v6305 = vsel %vm1038, %v5905, 0.0
  %6306 = vadd.xlane.f32.xlu0 %v6305
  %v6307 = vpop.xlane.xlu0 %6306
  %v6308 = vsel %vm1038, %v5907, 0.0
  %6309 = vadd.xlane.f32.xlu0 %v6308
  %v6310 = vpop.xlane.xlu0 %6309
  %v6311 = vsel %vm1038, %v5909, 0.0
  %6312 = vadd.xlane.f32.xlu0 %v6311
  %v6313 = vpop.xlane.xlu0 %6312
  %v6314 = vsel %vm1038, %v5911, 0.0
  %6315 = vadd.xlane.f32.xlu0 %v6314
  %v6316 = vpop.xlane.xlu0 %6315
  %v6317 = vsel %vm1038, %v5913, 0.0
  %6318 = vadd.xlane.f32.xlu0 %v6317
  %v6319 = vpop.xlane.xlu0 %6318
  %v6320 = vsel %vm1038, %v5915, 0.0
  %6321 = vadd.xlane.f32.xlu0 %v6320
  %v6322 = vpop.xlane.xlu0 %6321
  %v6323 = vsel %vm1038, %v5917, 0.0
  %6324 = vadd.xlane.f32.xlu0 %v6323
  %v6325 = vpop.xlane.xlu0 %6324
  %v6326 = vsel %vm1038, %v5919, 0.0
  %6327 = vadd.xlane.f32.xlu0 %v6326
  %v6328 = vpop.xlane.xlu0 %6327
  %v6329 = vsel %vm1038, %v5921, 0.0
  %6330 = vadd.xlane.f32.xlu0 %v6329
  %v6331 = vpop.xlane.xlu0 %6330
  %v6332 = vsel %vm1038, %v5923, 0.0
  %6333 = vadd.xlane.f32.xlu0 %v6332
  %v6334 = vpop.xlane.xlu0 %6333
  %v6335 = vsel %vm1038, %v5925, 0.0
  %6336 = vadd.xlane.f32.xlu0 %v6335
  %v6337 = vpop.xlane.xlu0 %6336
  %v6338 = vsel %vm1038, %v5927, 0.0
  %6339 = vadd.xlane.f32.xlu0 %v6338
  %v6340 = vpop.xlane.xlu0 %6339
  %v6341 = vsel %vm1038, %v5929, 0.0
  %6342 = vadd.xlane.f32.xlu0 %v6341
  %v6343 = vpop.xlane.xlu0 %6342
  %v6344 = vsel %vm1038, %v5931, 0.0
  %6345 = vadd.xlane.f32.xlu0 %v6344
  %v6346 = vpop.xlane.xlu0 %6345
  %v6347 = vsel %vm1038, %v5933, 0.0
  %6348 = vadd.xlane.f32.xlu0 %v6347
  %v6349 = vpop.xlane.xlu0 %6348
  %v6350 = vsel %vm1038, %v5935, 0.0
  %6351 = vadd.xlane.f32.xlu0 %v6350
  %v6352 = vpop.xlane.xlu0 %6351
  %v6353 = vsel %vm1038, %v5937, 0.0
  %6354 = vadd.xlane.f32.xlu0 %v6353
  %v6355 = vpop.xlane.xlu0 %6354
  %v6356 = vsel %vm1038, %v5939, 0.0
  %6357 = vadd.xlane.f32.xlu0 %v6356
  %v6358 = vpop.xlane.xlu0 %6357
  %v6359 = vsel %vm1038, %v5941, 0.0
  %6360 = vadd.xlane.f32.xlu0 %v6359
  %v6361 = vpop.xlane.xlu0 %6360
  %v6362 = vsel %vm1038, %v5943, 0.0
  %6363 = vadd.xlane.f32.xlu0 %v6362
  %v6364 = vpop.xlane.xlu0 %6363
  %v6365 = vsel %vm1038, %v5945, 0.0
  %6366 = vadd.xlane.f32.xlu0 %v6365
  %v6367 = vpop.xlane.xlu0 %6366
  %v6368 = vsel %vm1038, %v5947, 0.0
  %6369 = vadd.xlane.f32.xlu0 %v6368
  %v6370 = vpop.xlane.xlu0 %6369
  %v6371 = vsel %vm1038, %v5949, 0.0
  %6372 = vadd.xlane.f32.xlu0 %v6371
  %v6373 = vpop.xlane.xlu0 %6372
  %v6374 = vsel %vm1038, %v5951, 0.0
  %6375 = vadd.xlane.f32.xlu0 %v6374
  %v6376 = vpop.xlane.xlu0 %6375
  %v6377 = vsel %vm1038, %v5953, 0.0
  %6378 = vadd.xlane.f32.xlu0 %v6377
  %v6379 = vpop.xlane.xlu0 %6378
  %v6380 = vsel %vm1038, %v5955, 0.0
  %6381 = vadd.xlane.f32.xlu0 %v6380
  %v6382 = vpop.xlane.xlu0 %6381
  %v6383 = vsel %vm1038, %v5957, 0.0
  %6384 = vadd.xlane.f32.xlu0 %v6383
  %v6385 = vpop.xlane.xlu0 %6384
  %v6386 = vsel %vm1038, %v5959, 0.0
  %6387 = vadd.xlane.f32.xlu0 %v6386
  %v6388 = vpop.xlane.xlu0 %6387
  %v6389 = vsel %vm1038, %v5961, 0.0
  %6390 = vadd.xlane.f32.xlu0 %v6389
  %v6391 = vpop.xlane.xlu0 %6390
  %v6392 = vsel %vm1038, %v5963, 0.0
  %6393 = vadd.xlane.f32.xlu0 %v6392
  %v6394 = vpop.xlane.xlu0 %6393
  %v6395 = vsel %vm1038, %v5965, 0.0
  %6396 = vadd.xlane.f32.xlu0 %v6395
  %v6397 = vpop.xlane.xlu0 %6396
  %v6398 = vsel %vm1038, %v5967, 0.0
  %6399 = vadd.xlane.f32.xlu0 %v6398
  %v6400 = vpop.xlane.xlu0 %6399
  %v6401 = vsel %vm1038, %v5969, 0.0
  %6402 = vadd.xlane.f32.xlu0 %v6401
  %v6403 = vpop.xlane.xlu0 %6402
  %v6404 = vsel %vm1038, %v5971, 0.0
  %6405 = vadd.xlane.f32.xlu0 %v6404
  %v6406 = vpop.xlane.xlu0 %6405
  %v6407 = vsel %vm1038, %v5973, 0.0
  %6408 = vadd.xlane.f32.xlu0 %v6407
  %v6409 = vpop.xlane.xlu0 %6408
  %v6410 = vsel %vm1038, %v5975, 0.0
  %6411 = vadd.xlane.f32.xlu0 %v6410
  %v6412 = vpop.xlane.xlu0 %6411
  %v6413 = vsel %vm1038, %v5977, 0.0
  %6414 = vadd.xlane.f32.xlu0 %v6413
  %v6415 = vpop.xlane.xlu0 %6414
  %v6416 = vsel %vm1038, %v5979, 0.0
  %6417 = vadd.xlane.f32.xlu0 %v6416
  %v6418 = vpop.xlane.xlu0 %6417
  %v6419 = vsel %vm1038, %v5981, 0.0
  %6420 = vadd.xlane.f32.xlu0 %v6419
  %v6421 = vpop.xlane.xlu0 %6420
  %v6422 = vsel %vm1038, %v5983, 0.0
  %6423 = vadd.xlane.f32.xlu0 %v6422
  %v6424 = vpop.xlane.xlu0 %6423
  %v6425 = vsel %vm1038, %v5985, 0.0
  %6426 = vadd.xlane.f32.xlu0 %v6425
  %v6427 = vpop.xlane.xlu0 %6426
  %v6428 = vsel %vm1038, %v5987, 0.0
  %6429 = vadd.xlane.f32.xlu0 %v6428
  %v6430 = vpop.xlane.xlu0 %6429
  %v6431 = vsel %vm1038, %v5989, 0.0
  %6432 = vadd.xlane.f32.xlu0 %v6431
  %v6433 = vpop.xlane.xlu0 %6432
  %v6434 = vsel %vm1038, %v5991, 0.0
  %6435 = vadd.xlane.f32.xlu0 %v6434
  %v6436 = vpop.xlane.xlu0 %6435
  %v6437 = vsel %vm1038, %v5993, 0.0
  %6438 = vadd.xlane.f32.xlu0 %v6437
  %v6439 = vpop.xlane.xlu0 %6438
  %v6440 = vsel %vm1038, %v5995, 0.0
  %6441 = vadd.xlane.f32.xlu0 %v6440
  %v6442 = vpop.xlane.xlu0 %6441
  %v6443 = vsel %vm1038, %v5997, 0.0
  %6444 = vadd.xlane.f32.xlu0 %v6443
  %v6445 = vpop.xlane.xlu0 %6444
  %v6446 = vsel %vm1038, %v5999, 0.0
  %6447 = vadd.xlane.f32.xlu0 %v6446
  %v6448 = vpop.xlane.xlu0 %6447
  %v6449 = vsel %vm1038, %v6001, 0.0
  %6450 = vadd.xlane.f32.xlu0 %v6449
  %v6451 = vpop.xlane.xlu0 %6450
  %v6452 = vsel %vm1038, %v6003, 0.0
  %6453 = vadd.xlane.f32.xlu0 %v6452
  %v6454 = vpop.xlane.xlu0 %6453
  %v6455 = vsel %vm1038, %v6005, 0.0
  %6456 = vadd.xlane.f32.xlu0 %v6455
  %v6457 = vpop.xlane.xlu0 %6456
  %v6458 = vsel %vm1038, %v6007, 0.0
  %6459 = vadd.xlane.f32.xlu0 %v6458
  %v6460 = vpop.xlane.xlu0 %6459
  %v6461 = vsel %vm1038, %v6009, 0.0
  %6462 = vadd.xlane.f32.xlu0 %v6461
  %v6463 = vpop.xlane.xlu0 %6462
  %v6464 = vsel %vm1038, %v6011, 0.0
  %6465 = vadd.xlane.f32.xlu0 %v6464
  %v6466 = vpop.xlane.xlu0 %6465
  %v6467 = vsel %vm1038, %v6013, 0.0
  %6468 = vadd.xlane.f32.xlu0 %v6467
  %v6469 = vpop.xlane.xlu0 %6468
  %v6470 = vsel %vm1038, %v6015, 0.0
  %6471 = vadd.xlane.f32.xlu0 %v6470
  %v6472 = vpop.xlane.xlu0 %6471
  %v6473 = vsel %vm1038, %v6017, 0.0
  %6474 = vadd.xlane.f32.xlu0 %v6473
  %v6475 = vpop.xlane.xlu0 %6474
  %v6476 = vsel %vm1038, %v6019, 0.0
  %6477 = vadd.xlane.f32.xlu0 %v6476
  %v6478 = vpop.xlane.xlu0 %6477
  %v6479 = vsel %vm1038, %v6021, 0.0
  %6480 = vadd.xlane.f32.xlu0 %v6479
  %v6481 = vpop.xlane.xlu0 %6480
  %v6482 = vsel %vm1038, %v6023, 0.0
  %6483 = vadd.xlane.f32.xlu0 %v6482
  %v6484 = vpop.xlane.xlu0 %6483
  %v6485 = vsel %vm1038, %v6025, 0.0
  %6486 = vadd.xlane.f32.xlu0 %v6485
  %v6487 = vpop.xlane.xlu0 %6486
  %v6488 = vsel %vm1038, %v6027, 0.0
  %6489 = vadd.xlane.f32.xlu0 %v6488
  %v6490 = vpop.xlane.xlu0 %6489
  %v6491 = vsel %vm1038, %v6029, 0.0
  %6492 = vadd.xlane.f32.xlu0 %v6491
  %v6493 = vpop.xlane.xlu0 %6492
  %v6494 = vsel %vm1038, %v6031, 0.0
  %6495 = vadd.xlane.f32.xlu0 %v6494
  %v6496 = vpop.xlane.xlu0 %6495
  %v6497 = vsel %vm1038, %v6033, 0.0
  %6498 = vadd.xlane.f32.xlu0 %v6497
  %v6499 = vpop.xlane.xlu0 %6498
  %v6500 = vsel %vm1038, %v6035, 0.0
  %6501 = vadd.xlane.f32.xlu0 %v6500
  %v6502 = vpop.xlane.xlu0 %6501
  %v6503 = vsel %vm1038, %v6037, 0.0
  %6504 = vadd.xlane.f32.xlu0 %v6503
  %v6505 = vpop.xlane.xlu0 %6504
  %v6506 = vsel %vm1038, %v6039, 0.0
  %6507 = vadd.xlane.f32.xlu0 %v6506
  %v6508 = vpop.xlane.xlu0 %6507
  %v6509 = vsel %vm1038, %v6041, 0.0
  %6510 = vadd.xlane.f32.xlu0 %v6509
  %v6511 = vpop.xlane.xlu0 %6510
  %v6512 = vsel %vm1038, %v6043, 0.0
  %6513 = vadd.xlane.f32.xlu0 %v6512
  %v6514 = vpop.xlane.xlu0 %6513
  %v6515 = vsel %vm1038, %v6045, 0.0
  %6516 = vadd.xlane.f32.xlu0 %v6515
  %v6517 = vpop.xlane.xlu0 %6516
  %v6518 = vsel %vm1038, %v6047, 0.0
  %6519 = vadd.xlane.f32.xlu0 %v6518
  %v6520 = vpop.xlane.xlu0 %6519
  %v6521 = vsel %vm1038, %v6049, 0.0
  %6522 = vadd.xlane.f32.xlu0 %v6521
  %v6523 = vpop.xlane.xlu0 %6522
  %v6524 = vsel %vm1038, %v6051, 0.0
  %6525 = vadd.xlane.f32.xlu0 %v6524
  %v6526 = vpop.xlane.xlu0 %6525
  %v6527 = vsel %vm1038, %v6053, 0.0
  %6528 = vadd.xlane.f32.xlu0 %v6527
  %v6529 = vpop.xlane.xlu0 %6528
  %v6530 = vsel %vm1038, %v6055, 0.0
  %6531 = vadd.xlane.f32.xlu0 %v6530
  %v6532 = vpop.xlane.xlu0 %6531
  %v6533 = vsel %vm1038, %v6057, 0.0
  %6534 = vadd.xlane.f32.xlu0 %v6533
  %v6535 = vpop.xlane.xlu0 %6534
  %v6536 = vsel %vm1038, %v6059, 0.0
  %6537 = vadd.xlane.f32.xlu0 %v6536
  %v6538 = vpop.xlane.xlu0 %6537
  %v6539 = vsel %vm1038, %v6061, 0.0
  %6540 = vadd.xlane.f32.xlu0 %v6539
  %v6541 = vpop.xlane.xlu0 %6540
  %v6542 = vsel %vm1038, %v6063, 0.0
  %6543 = vadd.xlane.f32.xlu0 %v6542
  %v6544 = vpop.xlane.xlu0 %6543
  %v6545 = vsel %vm1038, %v6065, 0.0
  %6546 = vadd.xlane.f32.xlu0 %v6545
  %v6547 = vpop.xlane.xlu0 %6546
  %v6548 = vsel %vm1038, %v6067, 0.0
  %6549 = vadd.xlane.f32.xlu0 %v6548
  %v6550 = vpop.xlane.xlu0 %6549
  %v6551 = vsel %vm1038, %v6069, 0.0
  %6552 = vadd.xlane.f32.xlu0 %v6551
  %v6553 = vpop.xlane.xlu0 %6552
  %v6554 = vsel %vm1038, %v6071, 0.0
  %6555 = vadd.xlane.f32.xlu0 %v6554
  %v6556 = vpop.xlane.xlu0 %6555
  %v6557 = vsel %vm1038, %v6073, 0.0
  %6558 = vadd.xlane.f32.xlu0 %v6557
  %v6559 = vpop.xlane.xlu0 %6558
  %v6560 = vsel %vm1038, %v6075, 0.0
  %6561 = vadd.xlane.f32.xlu0 %v6560
  %v6562 = vpop.xlane.xlu0 %6561
  %v6563 = vsel %vm1038, %v6077, 0.0
  %6564 = vadd.xlane.f32.xlu0 %v6563
  %v6565 = vpop.xlane.xlu0 %6564
  %v6566 = vsel %vm1038, %v6079, 0.0
  %6567 = vadd.xlane.f32.xlu0 %v6566
  %v6568 = vpop.xlane.xlu0 %6567
  %v6569 = vsel %vm1038, %v6081, 0.0
  %6570 = vadd.xlane.f32.xlu0 %v6569
  %v6571 = vpop.xlane.xlu0 %6570
  %v6572 = vsel %vm1038, %v6083, 0.0
  %6573 = vadd.xlane.f32.xlu0 %v6572
  %v6574 = vpop.xlane.xlu0 %6573
  %v6575 = vsel %vm1038, %v6085, 0.0
  %6576 = vadd.xlane.f32.xlu0 %v6575
  %v6577 = vpop.xlane.xlu0 %6576
  %v6578 = vsel %vm1038, %v6087, 0.0
  %6579 = vadd.xlane.f32.xlu0 %v6578
  %v6580 = vpop.xlane.xlu0 %6579
  %v6581 = vsel %vm1038, %v6089, 0.0
  %6582 = vadd.xlane.f32.xlu0 %v6581
  %v6583 = vpop.xlane.xlu0 %6582
  %v6584 = vsel %vm1038, %v6091, 0.0
  %6585 = vadd.xlane.f32.xlu0 %v6584
  %v6586 = vpop.xlane.xlu0 %6585
  %v6587 = vsel %vm1038, %v6093, 0.0
  %6588 = vadd.xlane.f32.xlu0 %v6587
  %v6589 = vpop.xlane.xlu0 %6588
  %v6590 = vsel %vm1038, %v6095, 0.0
  %6591 = vadd.xlane.f32.xlu0 %v6590
  %v6592 = vpop.xlane.xlu0 %6591
  %v6593 = vsel %vm1038, %v6097, 0.0
  %6594 = vadd.xlane.f32.xlu0 %v6593
  %v6595 = vpop.xlane.xlu0 %6594
  %v6596 = vsel %vm1038, %v6099, 0.0
  %6597 = vadd.xlane.f32.xlu0 %v6596
  %v6598 = vpop.xlane.xlu0 %6597
  %v6599 = vsel %vm1038, %v6101, 0.0
  %6600 = vadd.xlane.f32.xlu0 %v6599
  %v6601 = vpop.xlane.xlu0 %6600
  %v6602 = vsel %vm1038, %v6103, 0.0
  %6603 = vadd.xlane.f32.xlu0 %v6602
  %v6604 = vpop.xlane.xlu0 %6603
  %v6605 = vsel %vm1038, %v6105, 0.0
  %6606 = vadd.xlane.f32.xlu0 %v6605
  %v6607 = vpop.xlane.xlu0 %6606
  %v6608 = vsel %vm1038, %v6107, 0.0
  %6609 = vadd.xlane.f32.xlu0 %v6608
  %v6610 = vpop.xlane.xlu0 %6609
  %v6611 = vsel %vm1038, %v6109, 0.0
  %6612 = vadd.xlane.f32.xlu0 %v6611
  %v6613 = vpop.xlane.xlu0 %6612
  %v6614 = vsel %vm1038, %v6111, 0.0
  %6615 = vadd.xlane.f32.xlu0 %v6614
  %v6616 = vpop.xlane.xlu0 %6615
  %v6617 = vsel %vm1038, %v6113, 0.0
  %6618 = vadd.xlane.f32.xlu0 %v6617
  %v6619 = vpop.xlane.xlu0 %6618
  %v6620 = vsel %vm1038, %v6115, 0.0
  %6621 = vadd.xlane.f32.xlu0 %v6620
  %v6622 = vpop.xlane.xlu0 %6621
  %v6623 = vsel %vm1038, %v6117, 0.0
  %6624 = vadd.xlane.f32.xlu0 %v6623
  %v6625 = vpop.xlane.xlu0 %6624
  %v6626 = vsel %vm1038, %v6119, 0.0
  %6627 = vadd.xlane.f32.xlu0 %v6626
  %v6628 = vpop.xlane.xlu0 %6627
  %v6629 = vsel %vm1038, %v6121, 0.0
  %6630 = vadd.xlane.f32.xlu0 %v6629
  %v6631 = vpop.xlane.xlu0 %6630
  %v6632 = vsel %vm1038, %v6123, 0.0
  %6633 = vadd.xlane.f32.xlu0 %v6632
  %v6634 = vpop.xlane.xlu0 %6633
  %v6635 = vsel %vm1038, %v6125, 0.0
  %6636 = vadd.xlane.f32.xlu0 %v6635
  %v6637 = vpop.xlane.xlu0 %6636
  %v6766 = vlaneseq
  %v6767 = vshrl.u32 %v6766, 7
  %v6768 = vsub.s32 %v1552, %v6767
  %v6769 = vrot.slane %v6256, %v6768
  %v6770 = vlaneseq
  %v6771 = vshrl.u32 %v6770, 7
  %v6772 = vsub.s32 %v1557, %v6771
  %v6773 = vrot.slane %v6259, %v6772
  %v6774 = vsel %vm1562, %v6773, %v6769
  %v6775 = vlaneseq
  %v6776 = vshrl.u32 %v6775, 7
  %v6777 = vsub.s32 %v1564, %v6776
  %v6778 = vrot.slane %v6262, %v6777
  %v6779 = vsel %vm1569, %v6778, %v6774
  %v6780 = vlaneseq
  %v6781 = vshrl.u32 %v6780, 7
  %v6782 = vsub.s32 %v1571, %v6781
  %v6783 = vrot.slane %v6265, %v6782
  %v6784 = vsel %vm1576, %v6783, %v6779
  %v6785 = vlaneseq
  %v6786 = vshrl.u32 %v6785, 7
  %v6787 = vsub.s32 %v1552, %v6786
  %v6788 = vrot.slane %v6268, %v6787
  %v6789 = vlaneseq
  %v6790 = vshrl.u32 %v6789, 7
  %v6791 = vsub.s32 %v1557, %v6790
  %v6792 = vrot.slane %v6271, %v6791
  %v6793 = vsel %vm1562, %v6792, %v6788
  %v6794 = vlaneseq
  %v6795 = vshrl.u32 %v6794, 7
  %v6796 = vsub.s32 %v1564, %v6795
  %v6797 = vrot.slane %v6274, %v6796
  %v6798 = vsel %vm1569, %v6797, %v6793
  %v6799 = vlaneseq
  %v6800 = vshrl.u32 %v6799, 7
  %v6801 = vsub.s32 %v1571, %v6800
  %v6802 = vrot.slane %v6277, %v6801
  %v6803 = vsel %vm1576, %v6802, %v6798
  %v6804 = vlaneseq
  %v6805 = vshrl.u32 %v6804, 7
  %v6806 = vsub.s32 %v1552, %v6805
  %v6807 = vrot.slane %v6280, %v6806
  %v6808 = vlaneseq
  %v6809 = vshrl.u32 %v6808, 7
  %v6810 = vsub.s32 %v1557, %v6809
  %v6811 = vrot.slane %v6283, %v6810
  %v6812 = vsel %vm1562, %v6811, %v6807
  %v6813 = vlaneseq
  %v6814 = vshrl.u32 %v6813, 7
  %v6815 = vsub.s32 %v1564, %v6814
  %v6816 = vrot.slane %v6286, %v6815
  %v6817 = vsel %vm1569, %v6816, %v6812
  %v6818 = vlaneseq
  %v6819 = vshrl.u32 %v6818, 7
  %v6820 = vsub.s32 %v1571, %v6819
  %v6821 = vrot.slane %v6289, %v6820
  %v6822 = vsel %vm1576, %v6821, %v6817
  %v6823 = vlaneseq
  %v6824 = vshrl.u32 %v6823, 7
  %v6825 = vsub.s32 %v1552, %v6824
  %v6826 = vrot.slane %v6292, %v6825
  %v6827 = vlaneseq
  %v6828 = vshrl.u32 %v6827, 7
  %v6829 = vsub.s32 %v1557, %v6828
  %v6830 = vrot.slane %v6295, %v6829
  %v6831 = vsel %vm1562, %v6830, %v6826
  %v6832 = vlaneseq
  %v6833 = vshrl.u32 %v6832, 7
  %v6834 = vsub.s32 %v1564, %v6833
  %v6835 = vrot.slane %v6298, %v6834
  %v6836 = vsel %vm1569, %v6835, %v6831
  %v6837 = vlaneseq
  %v6838 = vshrl.u32 %v6837, 7
  %v6839 = vsub.s32 %v1571, %v6838
  %v6840 = vrot.slane %v6301, %v6839
  %v6841 = vsel %vm1576, %v6840, %v6836
  %v6842 = vlaneseq
  %v6843 = vshrl.u32 %v6842, 7
  %v6844 = vsub.s32 %v1552, %v6843
  %v6845 = vrot.slane %v6304, %v6844
  %v6846 = vlaneseq
  %v6847 = vshrl.u32 %v6846, 7
  %v6848 = vsub.s32 %v1557, %v6847
  %v6849 = vrot.slane %v6307, %v6848
  %v6850 = vsel %vm1562, %v6849, %v6845
  %v6851 = vlaneseq
  %v6852 = vshrl.u32 %v6851, 7
  %v6853 = vsub.s32 %v1564, %v6852
  %v6854 = vrot.slane %v6310, %v6853
  %v6855 = vsel %vm1569, %v6854, %v6850
  %v6856 = vlaneseq
  %v6857 = vshrl.u32 %v6856, 7
  %v6858 = vsub.s32 %v1571, %v6857
  %v6859 = vrot.slane %v6313, %v6858
  %v6860 = vsel %vm1576, %v6859, %v6855
  %v6861 = vlaneseq
  %v6862 = vshrl.u32 %v6861, 7
  %v6863 = vsub.s32 %v1552, %v6862
  %v6864 = vrot.slane %v6316, %v6863
  %v6865 = vlaneseq
  %v6866 = vshrl.u32 %v6865, 7
  %v6867 = vsub.s32 %v1557, %v6866
  %v6868 = vrot.slane %v6319, %v6867
  %v6869 = vsel %vm1562, %v6868, %v6864
  %v6870 = vlaneseq
  %v6871 = vshrl.u32 %v6870, 7
  %v6872 = vsub.s32 %v1564, %v6871
  %v6873 = vrot.slane %v6322, %v6872
  %v6874 = vsel %vm1569, %v6873, %v6869
  %v6875 = vlaneseq
  %v6876 = vshrl.u32 %v6875, 7
  %v6877 = vsub.s32 %v1571, %v6876
  %v6878 = vrot.slane %v6325, %v6877
  %v6879 = vsel %vm1576, %v6878, %v6874
  %v6880 = vlaneseq
  %v6881 = vshrl.u32 %v6880, 7
  %v6882 = vsub.s32 %v1552, %v6881
  %v6883 = vrot.slane %v6328, %v6882
  %v6884 = vlaneseq
  %v6885 = vshrl.u32 %v6884, 7
  %v6886 = vsub.s32 %v1557, %v6885
  %v6887 = vrot.slane %v6331, %v6886
  %v6888 = vsel %vm1562, %v6887, %v6883
  %v6889 = vlaneseq
  %v6890 = vshrl.u32 %v6889, 7
  %v6891 = vsub.s32 %v1564, %v6890
  %v6892 = vrot.slane %v6334, %v6891
  %v6893 = vsel %vm1569, %v6892, %v6888
  %v6894 = vlaneseq
  %v6895 = vshrl.u32 %v6894, 7
  %v6896 = vsub.s32 %v1571, %v6895
  %v6897 = vrot.slane %v6337, %v6896
  %v6898 = vsel %vm1576, %v6897, %v6893
  %v6899 = vlaneseq
  %v6900 = vshrl.u32 %v6899, 7
  %v6901 = vsub.s32 %v1552, %v6900
  %v6902 = vrot.slane %v6340, %v6901
  %v6903 = vlaneseq
  %v6904 = vshrl.u32 %v6903, 7
  %v6905 = vsub.s32 %v1557, %v6904
  %v6906 = vrot.slane %v6343, %v6905
  %v6907 = vsel %vm1562, %v6906, %v6902
  %v6908 = vlaneseq
  %v6909 = vshrl.u32 %v6908, 7
  %v6910 = vsub.s32 %v1564, %v6909
  %v6911 = vrot.slane %v6346, %v6910
  %v6912 = vsel %vm1569, %v6911, %v6907
  %v6913 = vlaneseq
  %v6914 = vshrl.u32 %v6913, 7
  %v6915 = vsub.s32 %v1571, %v6914
  %v6916 = vrot.slane %v6349, %v6915
  %v6917 = vsel %vm1576, %v6916, %v6912
  %v6918 = vlaneseq
  %v6919 = vshrl.u32 %v6918, 7
  %v6920 = vsub.s32 %v1552, %v6919
  %v6921 = vrot.slane %v6352, %v6920
  %v6922 = vlaneseq
  %v6923 = vshrl.u32 %v6922, 7
  %v6924 = vsub.s32 %v1557, %v6923
  %v6925 = vrot.slane %v6355, %v6924
  %v6926 = vsel %vm1562, %v6925, %v6921
  %v6927 = vlaneseq
  %v6928 = vshrl.u32 %v6927, 7
  %v6929 = vsub.s32 %v1564, %v6928
  %v6930 = vrot.slane %v6358, %v6929
  %v6931 = vsel %vm1569, %v6930, %v6926
  %v6932 = vlaneseq
  %v6933 = vshrl.u32 %v6932, 7
  %v6934 = vsub.s32 %v1571, %v6933
  %v6935 = vrot.slane %v6361, %v6934
  %v6936 = vsel %vm1576, %v6935, %v6931
  %v6937 = vlaneseq
  %v6938 = vshrl.u32 %v6937, 7
  %v6939 = vsub.s32 %v1552, %v6938
  %v6940 = vrot.slane %v6364, %v6939
  %v6941 = vlaneseq
  %v6942 = vshrl.u32 %v6941, 7
  %v6943 = vsub.s32 %v1557, %v6942
  %v6944 = vrot.slane %v6367, %v6943
  %v6945 = vsel %vm1562, %v6944, %v6940
  %v6946 = vlaneseq
  %v6947 = vshrl.u32 %v6946, 7
  %v6948 = vsub.s32 %v1564, %v6947
  %v6949 = vrot.slane %v6370, %v6948
  %v6950 = vsel %vm1569, %v6949, %v6945
  %v6951 = vlaneseq
  %v6952 = vshrl.u32 %v6951, 7
  %v6953 = vsub.s32 %v1571, %v6952
  %v6954 = vrot.slane %v6373, %v6953
  %v6955 = vsel %vm1576, %v6954, %v6950
  %v6956 = vlaneseq
  %v6957 = vshrl.u32 %v6956, 7
  %v6958 = vsub.s32 %v1552, %v6957
  %v6959 = vrot.slane %v6376, %v6958
  %v6960 = vlaneseq
  %v6961 = vshrl.u32 %v6960, 7
  %v6962 = vsub.s32 %v1557, %v6961
  %v6963 = vrot.slane %v6379, %v6962
  %v6964 = vsel %vm1562, %v6963, %v6959
  %v6965 = vlaneseq
  %v6966 = vshrl.u32 %v6965, 7
  %v6967 = vsub.s32 %v1564, %v6966
  %v6968 = vrot.slane %v6382, %v6967
  %v6969 = vsel %vm1569, %v6968, %v6964
  %v6970 = vlaneseq
  %v6971 = vshrl.u32 %v6970, 7
  %v6972 = vsub.s32 %v1571, %v6971
  %v6973 = vrot.slane %v6385, %v6972
  %v6974 = vsel %vm1576, %v6973, %v6969
  %v6975 = vlaneseq
  %v6976 = vshrl.u32 %v6975, 7
  %v6977 = vsub.s32 %v1552, %v6976
  %v6978 = vrot.slane %v6388, %v6977
  %v6979 = vlaneseq
  %v6980 = vshrl.u32 %v6979, 7
  %v6981 = vsub.s32 %v1557, %v6980
  %v6982 = vrot.slane %v6391, %v6981
  %v6983 = vsel %vm1562, %v6982, %v6978
  %v6984 = vlaneseq
  %v6985 = vshrl.u32 %v6984, 7
  %v6986 = vsub.s32 %v1564, %v6985
  %v6987 = vrot.slane %v6394, %v6986
  %v6988 = vsel %vm1569, %v6987, %v6983
  %v6989 = vlaneseq
  %v6990 = vshrl.u32 %v6989, 7
  %v6991 = vsub.s32 %v1571, %v6990
  %v6992 = vrot.slane %v6397, %v6991
  %v6993 = vsel %vm1576, %v6992, %v6988
  %v6994 = vlaneseq
  %v6995 = vshrl.u32 %v6994, 7
  %v6996 = vsub.s32 %v1552, %v6995
  %v6997 = vrot.slane %v6400, %v6996
  %v6998 = vlaneseq
  %v6999 = vshrl.u32 %v6998, 7
  %v7000 = vsub.s32 %v1557, %v6999
  %v7001 = vrot.slane %v6403, %v7000
  %v7002 = vsel %vm1562, %v7001, %v6997
  %v7003 = vlaneseq
  %v7004 = vshrl.u32 %v7003, 7
  %v7005 = vsub.s32 %v1564, %v7004
  %v7006 = vrot.slane %v6406, %v7005
  %v7007 = vsel %vm1569, %v7006, %v7002
  %v7008 = vlaneseq
  %v7009 = vshrl.u32 %v7008, 7
  %v7010 = vsub.s32 %v1571, %v7009
  %v7011 = vrot.slane %v6409, %v7010
  %v7012 = vsel %vm1576, %v7011, %v7007
  %v7013 = vlaneseq
  %v7014 = vshrl.u32 %v7013, 7
  %v7015 = vsub.s32 %v1552, %v7014
  %v7016 = vrot.slane %v6412, %v7015
  %v7017 = vlaneseq
  %v7018 = vshrl.u32 %v7017, 7
  %v7019 = vsub.s32 %v1557, %v7018
  %v7020 = vrot.slane %v6415, %v7019
  %v7021 = vsel %vm1562, %v7020, %v7016
  %v7022 = vlaneseq
  %v7023 = vshrl.u32 %v7022, 7
  %v7024 = vsub.s32 %v1564, %v7023
  %v7025 = vrot.slane %v6418, %v7024
  %v7026 = vsel %vm1569, %v7025, %v7021
  %v7027 = vlaneseq
  %v7028 = vshrl.u32 %v7027, 7
  %v7029 = vsub.s32 %v1571, %v7028
  %v7030 = vrot.slane %v6421, %v7029
  %v7031 = vsel %vm1576, %v7030, %v7026
  %v7032 = vlaneseq
  %v7033 = vshrl.u32 %v7032, 7
  %v7034 = vsub.s32 %v1552, %v7033
  %v7035 = vrot.slane %v6424, %v7034
  %v7036 = vlaneseq
  %v7037 = vshrl.u32 %v7036, 7
  %v7038 = vsub.s32 %v1557, %v7037
  %v7039 = vrot.slane %v6427, %v7038
  %v7040 = vsel %vm1562, %v7039, %v7035
  %v7041 = vlaneseq
  %v7042 = vshrl.u32 %v7041, 7
  %v7043 = vsub.s32 %v1564, %v7042
  %v7044 = vrot.slane %v6430, %v7043
  %v7045 = vsel %vm1569, %v7044, %v7040
  %v7046 = vlaneseq
  %v7047 = vshrl.u32 %v7046, 7
  %v7048 = vsub.s32 %v1571, %v7047
  %v7049 = vrot.slane %v6433, %v7048
  %v7050 = vsel %vm1576, %v7049, %v7045
  %v7051 = vlaneseq
  %v7052 = vshrl.u32 %v7051, 7
  %v7053 = vsub.s32 %v1552, %v7052
  %v7054 = vrot.slane %v6436, %v7053
  %v7055 = vlaneseq
  %v7056 = vshrl.u32 %v7055, 7
  %v7057 = vsub.s32 %v1557, %v7056
  %v7058 = vrot.slane %v6439, %v7057
  %v7059 = vsel %vm1562, %v7058, %v7054
  %v7060 = vlaneseq
  %v7061 = vshrl.u32 %v7060, 7
  %v7062 = vsub.s32 %v1564, %v7061
  %v7063 = vrot.slane %v6442, %v7062
  %v7064 = vsel %vm1569, %v7063, %v7059
  %v7065 = vlaneseq
  %v7066 = vshrl.u32 %v7065, 7
  %v7067 = vsub.s32 %v1571, %v7066
  %v7068 = vrot.slane %v6445, %v7067
  %v7069 = vsel %vm1576, %v7068, %v7064
  %v7070 = vlaneseq
  %v7071 = vshrl.u32 %v7070, 7
  %v7072 = vsub.s32 %v1552, %v7071
  %v7073 = vrot.slane %v6448, %v7072
  %v7074 = vlaneseq
  %v7075 = vshrl.u32 %v7074, 7
  %v7076 = vsub.s32 %v1557, %v7075
  %v7077 = vrot.slane %v6451, %v7076
  %v7078 = vsel %vm1562, %v7077, %v7073
  %v7079 = vlaneseq
  %v7080 = vshrl.u32 %v7079, 7
  %v7081 = vsub.s32 %v1564, %v7080
  %v7082 = vrot.slane %v6454, %v7081
  %v7083 = vsel %vm1569, %v7082, %v7078
  %v7084 = vlaneseq
  %v7085 = vshrl.u32 %v7084, 7
  %v7086 = vsub.s32 %v1571, %v7085
  %v7087 = vrot.slane %v6457, %v7086
  %v7088 = vsel %vm1576, %v7087, %v7083
  %v7089 = vlaneseq
  %v7090 = vshrl.u32 %v7089, 7
  %v7091 = vsub.s32 %v1552, %v7090
  %v7092 = vrot.slane %v6460, %v7091
  %v7093 = vlaneseq
  %v7094 = vshrl.u32 %v7093, 7
  %v7095 = vsub.s32 %v1557, %v7094
  %v7096 = vrot.slane %v6463, %v7095
  %v7097 = vsel %vm1562, %v7096, %v7092
  %v7098 = vlaneseq
  %v7099 = vshrl.u32 %v7098, 7
  %v7100 = vsub.s32 %v1564, %v7099
  %v7101 = vrot.slane %v6466, %v7100
  %v7102 = vsel %vm1569, %v7101, %v7097
  %v7103 = vlaneseq
  %v7104 = vshrl.u32 %v7103, 7
  %v7105 = vsub.s32 %v1571, %v7104
  %v7106 = vrot.slane %v6469, %v7105
  %v7107 = vsel %vm1576, %v7106, %v7102
  %v7108 = vlaneseq
  %v7109 = vshrl.u32 %v7108, 7
  %v7110 = vsub.s32 %v1552, %v7109
  %v7111 = vrot.slane %v6472, %v7110
  %v7112 = vlaneseq
  %v7113 = vshrl.u32 %v7112, 7
  %v7114 = vsub.s32 %v1557, %v7113
  %v7115 = vrot.slane %v6475, %v7114
  %v7116 = vsel %vm1562, %v7115, %v7111
  %v7117 = vlaneseq
  %v7118 = vshrl.u32 %v7117, 7
  %v7119 = vsub.s32 %v1564, %v7118
  %v7120 = vrot.slane %v6478, %v7119
  %v7121 = vsel %vm1569, %v7120, %v7116
  %v7122 = vlaneseq
  %v7123 = vshrl.u32 %v7122, 7
  %v7124 = vsub.s32 %v1571, %v7123
  %v7125 = vrot.slane %v6481, %v7124
  %v7126 = vsel %vm1576, %v7125, %v7121
  %v7127 = vlaneseq
  %v7128 = vshrl.u32 %v7127, 7
  %v7129 = vsub.s32 %v1552, %v7128
  %v7130 = vrot.slane %v6484, %v7129
  %v7131 = vlaneseq
  %v7132 = vshrl.u32 %v7131, 7
  %v7133 = vsub.s32 %v1557, %v7132
  %v7134 = vrot.slane %v6487, %v7133
  %v7135 = vsel %vm1562, %v7134, %v7130
  %v7136 = vlaneseq
  %v7137 = vshrl.u32 %v7136, 7
  %v7138 = vsub.s32 %v1564, %v7137
  %v7139 = vrot.slane %v6490, %v7138
  %v7140 = vsel %vm1569, %v7139, %v7135
  %v7141 = vlaneseq
  %v7142 = vshrl.u32 %v7141, 7
  %v7143 = vsub.s32 %v1571, %v7142
  %v7144 = vrot.slane %v6493, %v7143
  %v7145 = vsel %vm1576, %v7144, %v7140
  %v7146 = vlaneseq
  %v7147 = vshrl.u32 %v7146, 7
  %v7148 = vsub.s32 %v1552, %v7147
  %v7149 = vrot.slane %v6496, %v7148
  %v7150 = vlaneseq
  %v7151 = vshrl.u32 %v7150, 7
  %v7152 = vsub.s32 %v1557, %v7151
  %v7153 = vrot.slane %v6499, %v7152
  %v7154 = vsel %vm1562, %v7153, %v7149
  %v7155 = vlaneseq
  %v7156 = vshrl.u32 %v7155, 7
  %v7157 = vsub.s32 %v1564, %v7156
  %v7158 = vrot.slane %v6502, %v7157
  %v7159 = vsel %vm1569, %v7158, %v7154
  %v7160 = vlaneseq
  %v7161 = vshrl.u32 %v7160, 7
  %v7162 = vsub.s32 %v1571, %v7161
  %v7163 = vrot.slane %v6505, %v7162
  %v7164 = vsel %vm1576, %v7163, %v7159
  %v7165 = vlaneseq
  %v7166 = vshrl.u32 %v7165, 7
  %v7167 = vsub.s32 %v1552, %v7166
  %v7168 = vrot.slane %v6508, %v7167
  %v7169 = vlaneseq
  %v7170 = vshrl.u32 %v7169, 7
  %v7171 = vsub.s32 %v1557, %v7170
  %v7172 = vrot.slane %v6511, %v7171
  %v7173 = vsel %vm1562, %v7172, %v7168
  %v7174 = vlaneseq
  %v7175 = vshrl.u32 %v7174, 7
  %v7176 = vsub.s32 %v1564, %v7175
  %v7177 = vrot.slane %v6514, %v7176
  %v7178 = vsel %vm1569, %v7177, %v7173
  %v7179 = vlaneseq
  %v7180 = vshrl.u32 %v7179, 7
  %v7181 = vsub.s32 %v1571, %v7180
  %v7182 = vrot.slane %v6517, %v7181
  %v7183 = vsel %vm1576, %v7182, %v7178
  %v7184 = vlaneseq
  %v7185 = vshrl.u32 %v7184, 7
  %v7186 = vsub.s32 %v1552, %v7185
  %v7187 = vrot.slane %v6520, %v7186
  %v7188 = vlaneseq
  %v7189 = vshrl.u32 %v7188, 7
  %v7190 = vsub.s32 %v1557, %v7189
  %v7191 = vrot.slane %v6523, %v7190
  %v7192 = vsel %vm1562, %v7191, %v7187
  %v7193 = vlaneseq
  %v7194 = vshrl.u32 %v7193, 7
  %v7195 = vsub.s32 %v1564, %v7194
  %v7196 = vrot.slane %v6526, %v7195
  %v7197 = vsel %vm1569, %v7196, %v7192
  %v7198 = vlaneseq
  %v7199 = vshrl.u32 %v7198, 7
  %v7200 = vsub.s32 %v1571, %v7199
  %v7201 = vrot.slane %v6529, %v7200
  %v7202 = vsel %vm1576, %v7201, %v7197
  %v7203 = vlaneseq
  %v7204 = vshrl.u32 %v7203, 7
  %v7205 = vsub.s32 %v1552, %v7204
  %v7206 = vrot.slane %v6532, %v7205
  %v7207 = vlaneseq
  %v7208 = vshrl.u32 %v7207, 7
  %v7209 = vsub.s32 %v1557, %v7208
  %v7210 = vrot.slane %v6535, %v7209
  %v7211 = vsel %vm1562, %v7210, %v7206
  %v7212 = vlaneseq
  %v7213 = vshrl.u32 %v7212, 7
  %v7214 = vsub.s32 %v1564, %v7213
  %v7215 = vrot.slane %v6538, %v7214
  %v7216 = vsel %vm1569, %v7215, %v7211
  %v7217 = vlaneseq
  %v7218 = vshrl.u32 %v7217, 7
  %v7219 = vsub.s32 %v1571, %v7218
  %v7220 = vrot.slane %v6541, %v7219
  %v7221 = vsel %vm1576, %v7220, %v7216
  %v7222 = vlaneseq
  %v7223 = vshrl.u32 %v7222, 7
  %v7224 = vsub.s32 %v1552, %v7223
  %v7225 = vrot.slane %v6544, %v7224
  %v7226 = vlaneseq
  %v7227 = vshrl.u32 %v7226, 7
  %v7228 = vsub.s32 %v1557, %v7227
  %v7229 = vrot.slane %v6547, %v7228
  %v7230 = vsel %vm1562, %v7229, %v7225
  %v7231 = vlaneseq
  %v7232 = vshrl.u32 %v7231, 7
  %v7233 = vsub.s32 %v1564, %v7232
  %v7234 = vrot.slane %v6550, %v7233
  %v7235 = vsel %vm1569, %v7234, %v7230
  %v7236 = vlaneseq
  %v7237 = vshrl.u32 %v7236, 7
  %v7238 = vsub.s32 %v1571, %v7237
  %v7239 = vrot.slane %v6553, %v7238
  %v7240 = vsel %vm1576, %v7239, %v7235
  %v7241 = vlaneseq
  %v7242 = vshrl.u32 %v7241, 7
  %v7243 = vsub.s32 %v1552, %v7242
  %v7244 = vrot.slane %v6556, %v7243
  %v7245 = vlaneseq
  %v7246 = vshrl.u32 %v7245, 7
  %v7247 = vsub.s32 %v1557, %v7246
  %v7248 = vrot.slane %v6559, %v7247
  %v7249 = vsel %vm1562, %v7248, %v7244
  %v7250 = vlaneseq
  %v7251 = vshrl.u32 %v7250, 7
  %v7252 = vsub.s32 %v1564, %v7251
  %v7253 = vrot.slane %v6562, %v7252
  %v7254 = vsel %vm1569, %v7253, %v7249
  %v7255 = vlaneseq
  %v7256 = vshrl.u32 %v7255, 7
  %v7257 = vsub.s32 %v1571, %v7256
  %v7258 = vrot.slane %v6565, %v7257
  %v7259 = vsel %vm1576, %v7258, %v7254
  %v7260 = vlaneseq
  %v7261 = vshrl.u32 %v7260, 7
  %v7262 = vsub.s32 %v1552, %v7261
  %v7263 = vrot.slane %v6568, %v7262
  %v7264 = vlaneseq
  %v7265 = vshrl.u32 %v7264, 7
  %v7266 = vsub.s32 %v1557, %v7265
  %v7267 = vrot.slane %v6571, %v7266
  %v7268 = vsel %vm1562, %v7267, %v7263
  %v7269 = vlaneseq
  %v7270 = vshrl.u32 %v7269, 7
  %v7271 = vsub.s32 %v1564, %v7270
  %v7272 = vrot.slane %v6574, %v7271
  %v7273 = vsel %vm1569, %v7272, %v7268
  %v7274 = vlaneseq
  %v7275 = vshrl.u32 %v7274, 7
  %v7276 = vsub.s32 %v1571, %v7275
  %v7277 = vrot.slane %v6577, %v7276
  %v7278 = vsel %vm1576, %v7277, %v7273
  %v7279 = vlaneseq
  %v7280 = vshrl.u32 %v7279, 7
  %v7281 = vsub.s32 %v1552, %v7280
  %v7282 = vrot.slane %v6580, %v7281
  %v7283 = vlaneseq
  %v7284 = vshrl.u32 %v7283, 7
  %v7285 = vsub.s32 %v1557, %v7284
  %v7286 = vrot.slane %v6583, %v7285
  %v7287 = vsel %vm1562, %v7286, %v7282
  %v7288 = vlaneseq
  %v7289 = vshrl.u32 %v7288, 7
  %v7290 = vsub.s32 %v1564, %v7289
  %v7291 = vrot.slane %v6586, %v7290
  %v7292 = vsel %vm1569, %v7291, %v7287
  %v7293 = vlaneseq
  %v7294 = vshrl.u32 %v7293, 7
  %v7295 = vsub.s32 %v1571, %v7294
  %v7296 = vrot.slane %v6589, %v7295
  %v7297 = vsel %vm1576, %v7296, %v7292
  %v7298 = vlaneseq
  %v7299 = vshrl.u32 %v7298, 7
  %v7300 = vsub.s32 %v1552, %v7299
  %v7301 = vrot.slane %v6592, %v7300
  %v7302 = vlaneseq
  %v7303 = vshrl.u32 %v7302, 7
  %v7304 = vsub.s32 %v1557, %v7303
  %v7305 = vrot.slane %v6595, %v7304
  %v7306 = vsel %vm1562, %v7305, %v7301
  %v7307 = vlaneseq
  %v7308 = vshrl.u32 %v7307, 7
  %v7309 = vsub.s32 %v1564, %v7308
  %v7310 = vrot.slane %v6598, %v7309
  %v7311 = vsel %vm1569, %v7310, %v7306
  %v7312 = vlaneseq
  %v7313 = vshrl.u32 %v7312, 7
  %v7314 = vsub.s32 %v1571, %v7313
  %v7315 = vrot.slane %v6601, %v7314
  %v7316 = vsel %vm1576, %v7315, %v7311
  %v7317 = vlaneseq
  %v7318 = vshrl.u32 %v7317, 7
  %v7319 = vsub.s32 %v1552, %v7318
  %v7320 = vrot.slane %v6604, %v7319
  %v7321 = vlaneseq
  %v7322 = vshrl.u32 %v7321, 7
  %v7323 = vsub.s32 %v1557, %v7322
  %v7324 = vrot.slane %v6607, %v7323
  %v7325 = vsel %vm1562, %v7324, %v7320
  %v7326 = vlaneseq
  %v7327 = vshrl.u32 %v7326, 7
  %v7328 = vsub.s32 %v1564, %v7327
  %v7329 = vrot.slane %v6610, %v7328
  %v7330 = vsel %vm1569, %v7329, %v7325
  %v7331 = vlaneseq
  %v7332 = vshrl.u32 %v7331, 7
  %v7333 = vsub.s32 %v1571, %v7332
  %v7334 = vrot.slane %v6613, %v7333
  %v7335 = vsel %vm1576, %v7334, %v7330
  %v7336 = vlaneseq
  %v7337 = vshrl.u32 %v7336, 7
  %v7338 = vsub.s32 %v1552, %v7337
  %v7339 = vrot.slane %v6616, %v7338
  %v7340 = vlaneseq
  %v7341 = vshrl.u32 %v7340, 7
  %v7342 = vsub.s32 %v1557, %v7341
  %v7343 = vrot.slane %v6619, %v7342
  %v7344 = vsel %vm1562, %v7343, %v7339
  %v7345 = vlaneseq
  %v7346 = vshrl.u32 %v7345, 7
  %v7347 = vsub.s32 %v1564, %v7346
  %v7348 = vrot.slane %v6622, %v7347
  %v7349 = vsel %vm1569, %v7348, %v7344
  %v7350 = vlaneseq
  %v7351 = vshrl.u32 %v7350, 7
  %v7352 = vsub.s32 %v1571, %v7351
  %v7353 = vrot.slane %v6625, %v7352
  %v7354 = vsel %vm1576, %v7353, %v7349
  %v7355 = vlaneseq
  %v7356 = vshrl.u32 %v7355, 7
  %v7357 = vsub.s32 %v1552, %v7356
  %v7358 = vrot.slane %v6628, %v7357
  %v7359 = vlaneseq
  %v7360 = vshrl.u32 %v7359, 7
  %v7361 = vsub.s32 %v1557, %v7360
  %v7362 = vrot.slane %v6631, %v7361
  %v7363 = vsel %vm1562, %v7362, %v7358
  %v7364 = vlaneseq
  %v7365 = vshrl.u32 %v7364, 7
  %v7366 = vsub.s32 %v1564, %v7365
  %v7367 = vrot.slane %v6634, %v7366
  %v7368 = vsel %vm1569, %v7367, %v7363
  %v7369 = vlaneseq
  %v7370 = vshrl.u32 %v7369, 7
  %v7371 = vsub.s32 %v1571, %v7370
  %v7372 = vrot.slane %v6637, %v7371
  %v7373 = vsel %vm1576, %v7372, %v7368
  %v7374 = vsel %vm2167, %v6803, %v6784
  %v7375 = vsel %vm2169, %v6822, %v7374
  %v7376 = vsel %vm2171, %v6841, %v7375
  %v7377 = vsel %vm2173, %v6860, %v7376
  %v7378 = vsel %vm2175, %v6879, %v7377
  %v7379 = vsel %vm2177, %v6898, %v7378
  %v7380 = vsel %vm2179, %v6917, %v7379
  %v7381 = vsel %vm2167, %v6955, %v6936
  %v7382 = vsel %vm2169, %v6974, %v7381
  %v7383 = vsel %vm2171, %v6993, %v7382
  %v7384 = vsel %vm2173, %v7012, %v7383
  %v7385 = vsel %vm2175, %v7031, %v7384
  %v7386 = vsel %vm2177, %v7050, %v7385
  %v7387 = vsel %vm2179, %v7069, %v7386
  %v7388 = vsel %vm2167, %v7107, %v7088
  %v7389 = vsel %vm2169, %v7126, %v7388
  %v7390 = vsel %vm2171, %v7145, %v7389
  %v7391 = vsel %vm2173, %v7164, %v7390
  %v7392 = vsel %vm2175, %v7183, %v7391
  %v7393 = vsel %vm2177, %v7202, %v7392
  %v7394 = vsel %vm2179, %v7221, %v7393
  %v7395 = vsel %vm2167, %v7259, %v7240
  %v7396 = vsel %vm2169, %v7278, %v7395
  %v7397 = vsel %vm2171, %v7297, %v7396
  %v7398 = vsel %vm2173, %v7316, %v7397
  %v7399 = vsel %vm2175, %v7335, %v7398
  %v7400 = vsel %vm2177, %v7354, %v7399
  %v7401 = vsel %vm2179, %v7373, %v7400
  %v7406 = vsel %vm29, %v7380, -1e+30
  %v7407 = vsel %vm30, %v7387, -1e+30
  %v7408 = vsel %vm31, %v7394, -1e+30
  %v7409 = vsel %vm32, %v7401, -1e+30
  %v7410 = vsel %vm2210, %v7406, -inf
  %7411 = vmax.xlane.f32.xlu0 %v7410
  %v7412 = vpop.xlane.xlu0 %7411
  %v7413 = vsel %vm2210, %v7407, -inf
  %7414 = vmax.xlane.f32.xlu0 %v7413
  %v7415 = vpop.xlane.xlu0 %7414
  %v7416 = vsel %vm2210, %v7408, -inf
  %7417 = vmax.xlane.f32.xlu0 %v7416
  %v7418 = vpop.xlane.xlu0 %7417
  %v7419 = vsel %vm2210, %v7409, -inf
  %7420 = vmax.xlane.f32.xlu0 %v7419
  %v7421 = vpop.xlane.xlu0 %7420
  %v7422 = vsub.f32 %v7406, %v7412
  %v7423 = vsub.f32 %v7407, %v7415
  %v7424 = vsub.f32 %v7408, %v7418
  %v7425 = vsub.f32 %v7409, %v7421
  %v7426 = vmul.f32 %v7422, 1.442695
  %v7427 = vpow.pop %v7426
  %v7428 = vmul.f32 %v7423, 1.442695
  %v7429 = vpow.pop %v7428
  %v7430 = vmul.f32 %v7424, 1.442695
  %v7431 = vpow.pop %v7430
  %v7432 = vmul.f32 %v7425, 1.442695
  %v7433 = vpow.pop %v7432
  %v7434 = vsel %vm2210, %v7427, 0.0
  %7435 = vadd.xlane.f32.xlu0 %v7434
  %v7436 = vpop.xlane.xlu0 %7435
  %v7437 = vsel %vm2210, %v7429, 0.0
  %7438 = vadd.xlane.f32.xlu0 %v7437
  %v7439 = vpop.xlane.xlu0 %7438
  %v7440 = vsel %vm2210, %v7431, 0.0
  %7441 = vadd.xlane.f32.xlu0 %v7440
  %v7442 = vpop.xlane.xlu0 %7441
  %v7443 = vsel %vm2210, %v7433, 0.0
  %7444 = vadd.xlane.f32.xlu0 %v7443
  %v7445 = vpop.xlane.xlu0 %7444
  %v7446 = vrcp.pop %v7436
  %v7447 = vrcp.pop %v7439
  %v7448 = vrcp.pop %v7442
  %v7449 = vrcp.pop %v7445
  %v7450 = vmul.f32 %v7427, %v7446
  %v7451 = vmul.f32 %v7429, %v7447
  %v7452 = vmul.f32 %v7431, %v7448
  %v7453 = vmul.f32 %v7433, %v7449
  %7454 = vrot.lane.b32.xlu0 %v17, 80
  %v7455 = vpop.permute.xlu0 %7454
  %7456 = vrot.lane.b32.xlu0 %v18, 80
  %v7457 = vpop.permute.xlu0 %7456
  %7458 = vrot.lane.b32.xlu0 %v19, 80
  %v7459 = vpop.permute.xlu0 %7458
  %7460 = vrot.lane.b32.xlu0 %v20, 80
  %v7461 = vpop.permute.xlu0 %7460
  %v7467 = vsel %vm2210, %v7450, 0
  %v7470 = vsel %vm2210, %v7451, 0
  %v7473 = vsel %vm2210, %v7452, 0
  %v7476 = vsel %vm2210, %v7453, 0
  %7478 = vmatprep.subr.mxu0 0.0
  %7479 = vmatpush1.msra.mxu0 0.0
  %7480 = vmatprep.subr.mxu0 0.0
  %7481 = vmatpush1.msra.mxu0 0.0
  %7482 = vmatprep.subr.mxu0 0.0
  %7483 = vmatpush1.msra.mxu0 0.0
  %7484 = vmatprep.subr.mxu0 0.0
  %7485 = vmatpush1.msra.mxu0 0.0
  %7486 = vmatprep.subr.mxu0 0.0
  %7487 = vmatpush1.msra.mxu0 0.0
  %7488 = vmatprep.subr.mxu0 0.0
  %7489 = vmatpush1.msra.mxu0 0.0
  %7490 = vmatprep.subr.mxu0 0.0
  %7491 = vmatpush1.msra.mxu0 0.0
  %7492 = vmatprep.subr.mxu0 0.0
  %7493 = vmatpush1.msra.mxu0 0.0
  %7494 = vmatprep.subr.mxu0 0.0
  %7495 = vmatpush1.msra.mxu0 0.0
  %7496 = vmatprep.subr.mxu0 0.0
  %7497 = vmatpush1.msra.mxu0 0.0
  %7498 = vmatprep.subr.mxu0 0.0
  %7499 = vmatpush1.msra.mxu0 0.0
  %7500 = vmatprep.subr.mxu0 0.0
  %7501 = vmatpush1.msra.mxu0 0.0
  %7502 = vmatprep.subr.mxu0 0.0
  %7503 = vmatpush1.msra.mxu0 %v7461
  %7504 = vmatprep.subr.mxu0 0.0
  %7505 = vmatpush1.msra.mxu0 %v7459
  %7506 = vmatprep.subr.mxu0 0.0
  %7507 = vmatpush1.msra.mxu0 %v7457
  %7508 = vmatprep.subr.mxu0 0.0
  %7509 = vmatpush1.msra.mxu0 %v7455
  %7510 = vmatprep.subr.mxu0 0.0
  %7511 = vmatpush2.msra.mxu0 0.0
  %7512 = vmatprep.subr.mxu0 0.0
  %7513 = vmatpush2.msra.mxu0 0.0
  %7514 = vmatprep.subr.mxu0 0.0
  %7515 = vmatpush2.msra.mxu0 0.0
  %7516 = vmatprep.subr.mxu0 0.0
  %7517 = vmatpush2.msra.mxu0 0.0
  %7518 = vmatprep.subr.mxu0 0.0
  %7519 = vmatpush2.msra.mxu0 0.0
  %7520 = vmatprep.subr.mxu0 0.0
  %7521 = vmatpush2.msra.mxu0 0.0
  %7522 = vmatprep.subr.mxu0 0.0
  %7523 = vmatpush2.msra.mxu0 0.0
  %7524 = vmatprep.subr.mxu0 0.0
  %7525 = vmatpush2.msra.mxu0 0.0
  %7526 = vmatprep.subr.mxu0 0.0
  %7527 = vmatpush2.msra.mxu0 0.0
  %7528 = vmatprep.subr.mxu0 0.0
  %7529 = vmatpush2.msra.mxu0 0.0
  %7530 = vmatprep.subr.mxu0 0.0
  %7531 = vmatpush2.msra.mxu0 0.0
  %7532 = vmatprep.subr.mxu0 0.0
  %7533 = vmatpush2.msra.mxu0 0.0
  %7534 = vmatprep.subr.mxu0 0.0
  %7535 = vmatpush2.msra.mxu0 0.0
  %7536 = vmatprep.subr.mxu0 0.0
  %7537 = vmatpush2.msra.mxu0 0.0
  %7538 = vmatprep.subr.mxu0 0.0
  %7539 = vmatpush2.msra.mxu0 0.0
  %7540 = vmatprep.subr.mxu0 0.0
  %7541 = vmatpush2.msra.mxu0 0.0
  %7542 = vmatprep.mubr.f32.mxu0 0.0
  %7543 = vmatmul.mubr.f32.gmra.mxu0 %v7467
  %v7544 = vpop.f32.mrf.mxu0
  %v7545 = vadd.f32 0.0, %v7544
  %v7546 = vpop.f32.mrf.mxu0
  %7547 = vmatprep.mubr.f32.mxu0 0.0
  %7548 = vmatmul.mubr.f32.gmra.mxu0 %v7470
  %v7549 = vpop.f32.mrf.mxu0
  %v7550 = vadd.f32 0.0, %v7549
  %v7551 = vpop.f32.mrf.mxu0
  %7552 = vmatprep.mubr.f32.mxu0 0.0
  %7553 = vmatmul.mubr.f32.gmra.mxu0 %v7473
  %v7554 = vpop.f32.mrf.mxu0
  %v7555 = vadd.f32 0.0, %v7554
  %v7556 = vpop.f32.mrf.mxu0
  %7557 = vmatprep.mubr.f32.mxu0 0.0
  %7558 = vmatmul.mubr.f32.gmra.mxu0 %v7476
  %v7559 = vpop.f32.mrf.mxu0
  %v7560 = vadd.f32 0.0, %v7559
  %v7561 = vpop.f32.mrf.mxu0
  %7562 = vdwg.mxu0
  %7567 = vrot.lane.b32.xlu0 %v4159, 16
  %v7568 = vpop.permute.xlu0 %7567
  %7569 = vrot.lane.b32.xlu0 %v4164, 16
  %v7570 = vpop.permute.xlu0 %7569
  %7571 = vrot.lane.b32.xlu0 %v4169, 16
  %v7572 = vpop.permute.xlu0 %7571
  %7573 = vrot.lane.b32.xlu0 %v4174, 16
  %v7574 = vpop.permute.xlu0 %7573
  %7583 = vrot.lane.b32.xlu0 %v5852, 32
  %v7584 = vpop.permute.xlu0 %7583
  %7585 = vrot.lane.b32.xlu0 %v5857, 32
  %v7586 = vpop.permute.xlu0 %7585
  %7587 = vrot.lane.b32.xlu0 %v5862, 32
  %v7588 = vpop.permute.xlu0 %7587
  %7589 = vrot.lane.b32.xlu0 %v5867, 32
  %v7590 = vpop.permute.xlu0 %7589
  %7599 = vrot.lane.b32.xlu0 %v7545, 48
  %v7600 = vpop.permute.xlu0 %7599
  %7601 = vrot.lane.b32.xlu0 %v7550, 48
  %v7602 = vpop.permute.xlu0 %7601
  %7603 = vrot.lane.b32.xlu0 %v7555, 48
  %v7604 = vpop.permute.xlu0 %7603
  %7605 = vrot.lane.b32.xlu0 %v7560, 48
  %v7606 = vpop.permute.xlu0 %7605
  %v7611 = vsel %vm1038, %v2334, %v7568
  %v7612 = vsel %vm1038, %v2339, %v7570
  %v7613 = vsel %vm1038, %v2344, %v7572
  %v7614 = vsel %vm1038, %v2349, %v7574
  %v7615 = vsel %vm2210, %v7611, %v7584
  %v7616 = vsel %vm2210, %v7612, %v7586
  %v7617 = vsel %vm2210, %v7613, %v7588
  %v7618 = vsel %vm2210, %v7614, %v7590
  %vm7619 = vcmask 392192
  %v7620 = vsel %vm7619, %v7615, %v7600
  %v7621 = vsel %vm7619, %v7616, %v7602
  %v7622 = vsel %vm7619, %v7617, %v7604
  %v7623 = vsel %vm7619, %v7618, %v7606
  %v7624 = vld [vmem:[%s3 + $0x1] sm:$0x1]
  %v7625 = vlaneseq
  %v7626 = vshrl.u32 %v7625, 7
  %v7627 = vsub.s32 0, %v7626
  %v7628 = vrot.slane %v7624, %v7627
  %v7629 = vadd.f32 %v7620, %v7628
  %v7630 = vadd.f32 %v7621, %v7628
  %v7631 = vadd.f32 %v7622, %v7628
  %v7632 = vadd.f32 %v7623, %v7628
  %vm7633 = vcmp.gt.f32.partialorder %v7629, 0.0
  %vm7634 = vcmp.gt.f32.partialorder %v7630, 0.0
  %vm7635 = vcmp.gt.f32.partialorder %v7631, 0.0
  %vm7636 = vcmp.gt.f32.partialorder %v7632, 0.0
  %v7637 = vmin.f32 %v7629, 0.0
  %v7638 = vmin.f32 %v7630, 0.0
  %v7639 = vmin.f32 %v7631, 0.0
  %v7640 = vmin.f32 %v7632, 0.0
  %v7641 = vmul.f32 %v7637, 1.442695
  %v7642 = vpow.pop %v7641
  %v7643 = vmul.f32 %v7638, 1.442695
  %v7644 = vpow.pop %v7643
  %v7645 = vmul.f32 %v7639, 1.442695
  %v7646 = vpow.pop %v7645
  %v7647 = vmul.f32 %v7640, 1.442695
  %v7648 = vpow.pop %v7647
  %v7649 = vsub.f32 %v7642, 1.0
  %v7650 = vsub.f32 %v7644, 1.0
  %v7651 = vsub.f32 %v7646, 1.0
  %v7652 = vsub.f32 %v7648, 1.0
  %v7653 = vsel %vm7633, %v7629, %v7649
  %v7654 = vsel %vm7634, %v7630, %v7650
  %v7655 = vsel %vm7635, %v7631, %v7651
  %v7656 = vsel %vm7636, %v7632, %v7652
  %vm7657 = vcmask 523264
  %7658 = vst.msk [vmem:[%s4] sm:$0xff] %vm7657, %v7653
  %7659 = vst.msk [vmem:[%s4 + $0x8] sm:$0xff] %vm7657, %v7654
  %7660 = vst.msk [vmem:[%s4 + $0x10] sm:$0xff] %vm7657, %v7655
  %7661 = vst.msk [vmem:[%s4 + $0x18] sm:$0xff] %vm7657, %v7656
  // Predicated region
  $region18: #{gat_forward.7} parent=0 // pred_check
    _
  $region19: #{gat_forward.7} parent=0 // pred_check_branch
    %7663 = sbr.rel (0) target = $region21
  $region20: #{gat_forward.7} parent=0 // pred_region
    _
  $region21: #{gat_forward.7} parent=0 // pred_fallthru
    _
  // Predicated region
  $region22: #{gat_forward.7} parent=0 // pred_check
    _
  $region23: #{gat_forward.7} parent=0 // pred_check_branch
    %7665 = sbr.rel (0) target = $region25
  $region24: #{gat_forward.7} parent=0 // pred_region
    _
  $region25: #{gat_forward.7} parent=0 // pred_fallthru
    _

</llo_original>
